<compile_context>
chip_gen: v5e
topology: v5e:2x2
jax: 0.10.0
libtpu: 0.0.40
codegen_flags: <defaults>
</compile_context>

<pallas_src>
import numpy as np

import jax
import jax.numpy as jnp
from jax import lax
from jax.experimental import pallas as pl
from jax.experimental.pallas import tpu as pltpu


CONV_SIZE = 10          # out channels of the last conv (as in the torch module)
LEAKY_SLOPE = 0.2
BN_EPS = 1e-5
CLANES = 128            # all conv channel dims are zero-padded to 128 lanes
PAD = 2                 # max spatial (feature-axis) padding across the conv stack

# (Cin, Cout, K, pad, batch_norm) for conv layers 1..6 (each followed by LeakyReLU(0.2)).
CONV_CFG = (
    (1,   32, 3, 1, True),
    (32,  64, 5, 2, True),
    (64, 128, 5, 2, True),
    (128, 128, 5, 2, True),
    (128, 128, 5, 2, True),
    (128, 64, 5, 2, False),
)
CONV7_CIN = CONV_CFG[-1][1]   # 64; final layer: Conv(64 -> CONV_SIZE, k=(1, emb)), Tanh


# --------------------------------------------------------------------------- helpers
def _full_spec(shape):
    """BlockSpec covering the full array (grid=(1,))."""
    zeros = (0,) * len(shape)
    return pl.BlockSpec(shape, lambda i, _z=zeros: _z)


# --------------------------------------------------------------------------- fused kernel
def _build_encoder_kernel(B, samples, emb_features, pdg_cnt, pdg_dim):
    N = B * samples
    W = emb_features
    WBUF = W + 2 * PAD
    n_cont = emb_features - pdg_dim - 1
    assert n_cont >= 1

    n_inputs = 5 + sum(4 if bn else 2 for (_, _, _, _, bn) in CONV_CFG) + 2

    def kernel(*refs):
        ins = refs[:n_inputs]
        in_emb_ref, c7_ref = refs[n_inputs], refs[n_inputs + 1]
        buf_a, buf_b = refs[n_inputs + 2], refs[n_inputs + 3]

        pdg_ref, stat_ref, cont_ref, wemb_ref, bemb_ref = ins[:5]
        pos = 5

        # ---------------- embedding: one-hot(pdg) -> Linear -> Tanh, concat with stat/cont
        # TODO(synk): PDGEmbedder's definition is not in the provided spec; modelled here as
        #             Linear(PDG_EMB_CNT -> PDG_EMB_DIM) + Tanh applied to the one-hot codes.
        lanes = lax.broadcasted_iota(jnp.int32, (N, pdg_cnt), 1)
        onehot = (pdg_ref[...] == lanes).astype(jnp.float32)              # (N, pdg_cnt)
        part_pdg = jnp.tanh(
            jnp.dot(onehot, wemb_ref[...], preferred_element_type=jnp.float32)
            + bemb_ref[...]
        )                                                                 # (N, pdg_dim)
        # Assemble in_emb directly in its output ref (avoids an in-kernel concatenate).
        in_emb_ref[:, 0:pdg_dim] = part_pdg
        in_emb_ref[:, pdg_dim:pdg_dim + 1] = stat_ref[...]
        in_emb_ref[:, pdg_dim + 1:W] = cont_ref[...]
        in_emb = in_emb_ref[...]                                          # (N, W) f32

        # ---------------- conv stack, fully VMEM-resident ---------------------------------
        # Activations ping-pong between two (WBUF, N, 128) f32 scratch buffers; the feature
        # axis carries PAD zeros on both sides so "same" convs are plain shifted windows.
        buf_a[...] = jnp.zeros((WBUF, N, CLANES), jnp.float32)
        buf_b[...] = jnp.zeros((WBUF, N, CLANES), jnp.float32)

        def leaky(y):
            return jnp.where(y >= 0.0, y, LEAKY_SLOPE * y)

        def apply_bn(buf, g_ref, bt_ref, ssum, ssq):
            # BatchNorm2d (training-mode batch statistics, biased variance) per channel
            # over all N*(feature positions) — statistics stay global over the whole slab.
            inv_cnt = 1.0 / float(W * N)
            mean = ssum * inv_cnt
            var = jnp.maximum(ssq * inv_cnt - mean * mean, 0.0)
            scale = lax.rsqrt(var + BN_EPS) * g_ref[...]                  # (1, 128)
            shift = bt_ref[...] - mean * scale

            def norm_body(w, c):
                buf[w + PAD] = buf[w + PAD] * scale + shift
                return c

            lax.fori_loop(0, W, norm_body, 0)

        # ---- layer 1 (Cin = 1): VPU broadcast outer products (MXU would waste a full pass
        #      on a 3-wide contraction), statically unrolled over the W positions.
        (_, _cout1, K1, p1, _bn1) = CONV_CFG[0]
        w1_ref, b1_ref, g1_ref, bt1_ref = ins[pos], ins[pos + 1], ins[pos + 2], ins[pos + 3]
        pos += 4
        w1 = w1_ref[...]            # (K1, 128) f32, lanes >= 32 are zero
        b1 = b1_ref[...]            # (1, 128)
        ssum = jnp.zeros((1, CLANES), jnp.float32)
        ssq = jnp.zeros((1, CLANES), jnp.float32)
        for w in range(W):
            acc = jnp.zeros((N, CLANES), jnp.float32)
            for kw in range(K1):
                j = w + kw - p1
                if 0 <= j < W:                                            # static padding skip
                    acc = acc + in_emb[:, j:j + 1] * w1[kw:kw + 1, :]
            y = leaky(acc + b1)
            buf_a[w + PAD] = y
            ssum = ssum + jnp.sum(y, axis=0, keepdims=True)
            ssq = ssq + jnp.sum(y * y, axis=0, keepdims=True)
        apply_bn(buf_a, g1_ref, bt1_ref, ssum, ssq)

        # ---- layers 2..6: K shifted-window matmuls per output position, 128-wide
        #      contraction on the MXU with bf16 operands and f32 accumulation.
        def conv_layer(in_buf, out_buf, w_ref, b_ref, K, pad, track_stats):
            bias = b_ref[...]                                             # hoisted (1, 128)

            def body(w, carry):
                s, ss = carry
                acc = jnp.zeros((N, CLANES), jnp.float32)
                for kw in range(K):
                    tap = in_buf[w + (PAD - pad + kw)]                    # (N, 128) f32
                    acc = acc + jnp.dot(tap.astype(jnp.bfloat16), w_ref[kw],
                                        preferred_element_type=jnp.float32)
                y = leaky(acc + bias)
                out_buf[w + PAD] = y                                      # full-lane store
                if track_stats:
                    s = s + jnp.sum(y, axis=0, keepdims=True)
                    ss = ss + jnp.sum(y * y, axis=0, keepdims=True)
                return s, ss

            init = (jnp.zeros((1, CLANES), jnp.float32),
                    jnp.zeros((1, CLANES), jnp.float32))
            return lax.fori_loop(0, W, body, init)

        src, dst = buf_a, buf_b
        for (_cin, _cout, K, pad, bn) in CONV_CFG[1:]:
            w_ref, b_ref = ins[pos], ins[pos + 1]
            pos += 2
            if bn:
                g_ref, bt_ref = ins[pos], ins[pos + 1]
                pos += 2
            ssum, ssq = conv_layer(src, dst, w_ref, b_ref, K, pad, bn)
            if bn:
                apply_bn(dst, g_ref, bt_ref, ssum, ssq)
            src, dst = dst, src

        # ---- final conv: kernel (1, emb_features), padding 0 -> width-1 output, + Tanh.
        w7_ref, b7_ref = ins[pos], ins[pos + 1]
        acc7 = jnp.zeros((N, CONV_SIZE), jnp.float32)
        for kw in range(W):                                               # static, W taps
            tap = src[kw + PAD]                                           # (N, 128) f32
            acc7 = acc7 + jnp.dot(tap.astype(jnp.bfloat16), w7_ref[kw],
                                  preferred_element_type=jnp.float32)
        c7_ref[...] = jnp.tanh(acc7 + b7_ref[...])                        # (N, CONV_SIZE)

    return kernel, n_inputs


# --------------------------------------------------------------------------- forward
def autoencoder_in_forward(params, x):
    B, S, F = x.shape
    emb = params["emb_features"]
    pdg_cnt, pdg_dim = params["pdg_cnt"], params["pdg_dim"]
    n_cont = emb - pdg_dim - 1
    assert F == 2 + n_cont, (F, n_cont)
    N = B * S

    # layout glue: split categorical / continuous columns (torch: .long() on cols 0,1)
    pdg = x[:, :, 0].astype(jnp.int32).reshape(N, 1)
    stat = x[:, :, 1:2].astype(jnp.float32).reshape(N, 1)
    cont = x[:, :, 2:].astype(jnp.float32).reshape(N, n_cont)

    kernel, n_inputs = _build_encoder_kernel(B, S, emb, pdg_cnt, pdg_dim)

    inputs = [pdg, stat, cont, params["emb_w"], params["emb_b"]]
    for layer in params["conv"]:
        inputs += [layer["w"], layer["b"]]
        if layer["bn"]:
            inputs += [layer["g"], layer["bt"]]
    inputs += [params["w7"], params["b7"]]
    assert len(inputs) == n_inputs

    # advisory cost estimate for XLA scheduling around the fused call
    flops = 2 * N * pdg_cnt * pdg_dim
    for (_cin, _cout, K, _pad, _bn) in CONV_CFG[1:]:
        flops += 2 * N * emb * K * CLANES * CLANES
    flops += 2 * N * emb * CLANES * CONV_SIZE
    bytes_accessed = sum(int(np.prod(t.shape)) * t.dtype.itemsize for t in inputs)
    bytes_accessed += N * emb * 4 + N * CONV_SIZE * 4
    cost = pl.CostEstimate(flops=int(flops),
                           transcendentals=int(N * (pdg_dim + CONV_SIZE)),
                           bytes_accessed=int(bytes_accessed))

    WBUF = emb + 2 * PAD
    in_emb_flat, c7 = pl.pallas_call(
        kernel,
        grid=(1,),
        in_specs=[_full_spec(t.shape) for t in inputs],
        out_specs=(_full_spec((N, emb)), _full_spec((N, CONV_SIZE))),
        out_shape=(jax.ShapeDtypeStruct((N, emb), jnp.float32),
                   jax.ShapeDtypeStruct((N, CONV_SIZE), jnp.float32)),
        scratch_shapes=[pltpu.VMEM((WBUF, N, CLANES), jnp.float32),
                        pltpu.VMEM((WBUF, N, CLANES), jnp.float32)],
        cost_estimate=cost,
    )(*inputs)

    in_emb = in_emb_flat.reshape(B, S, emb)

    # mu / var heads: two tiny (B, S*CONV_SIZE) @ (S*CONV_SIZE, latent) matmuls — left to
    # XLA; the torch channel-major flatten order was folded into the weight-row permutation
    # at init time, so a plain row-major reshape of c7 is exactly equivalent.
    h = c7.reshape(B, S * CONV_SIZE)
    lat_mu = h @ params["mu_w"] + params["mu_b"]
    lat_var = h @ params["var_w"] + params["var_b"]
    return in_emb, lat_mu, lat_var


# --------------------------------------------------------------------------- params
def init_params(key, samples, emb_features, latent, pdg_cnt, pdg_dim):
    keys = iter(jax.random.split(key, 64))

    def nrm(shape, scale=0.1):
        return (scale * jax.random.normal(next(keys), shape)).astype(jnp.float32)

    emb_w = nrm((pdg_cnt, pdg_dim))          # PDG embedder Linear (in, out)
    emb_b = nrm((1, pdg_dim))

    conv = []
    for (cin, cout, K, _pad, bn) in CONV_CFG:
        if cin == 1:
            # first layer runs on the VPU: weight stored as (K, Cout) padded to 128 lanes
            w = jnp.zeros((K, CLANES), jnp.float32).at[:, :cout].set(nrm((K, cout)))
        else:
            # torch weight (Cout, Cin, 1, K) -> (K, Cin, Cout), zero-padded to 128x128, bf16
            w = (jnp.zeros((K, CLANES, CLANES), jnp.float32)
                 .at[:, :cin, :cout].set(nrm((K, cin, cout)))
                 .astype(jnp.bfloat16))
        layer = {
            "w": w,
            "b": jnp.zeros((1, CLANES), jnp.float32).at[:, :cout].set(nrm((1, cout))),
            "bn": bn,
        }
        if bn:
            layer["g"] = jnp.ones((1, CLANES), jnp.float32).at[:, :cout].set(
                1.0 + nrm((1, cout), 0.05))
            layer["bt"] = jnp.zeros((1, CLANES), jnp.float32).at[:, :cout].set(
                nrm((1, cout), 0.05))
        conv.append(layer)

    # final conv: Conv(64 -> CONV_SIZE, kernel (1, emb_features)), input lanes padded to 128
    w7 = (jnp.zeros((emb_features, CLANES, CONV_SIZE), jnp.float32)
          .at[:, :CONV7_CIN, :].set(nrm((emb_features, CONV7_CIN, CONV_SIZE)))
          .astype(jnp.bfloat16))
    b7 = nrm((1, CONV_SIZE))

    # mu / var heads: torch flattens (B, C=10, H=samples, W=1) channel-major (row index
    # c*samples + s); permute weight rows once so a sample-major flatten matches exactly.
    perm = np.array([c * samples + s for s in range(samples) for c in range(CONV_SIZE)])

    def head():
        w_torch_layout = nrm((samples * CONV_SIZE, latent))    # rows indexed c*samples + s
        return w_torch_layout[perm], nrm((1, latent))

    mu_w, mu_b = head()
    var_w, var_b = head()

    return {
        "emb_w": emb_w, "emb_b": emb_b,
        "conv": conv, "w7": w7, "b7": b7,
        "mu_w": mu_w, "mu_b": mu_b, "var_w": var_w, "var_b": var_b,
        "samples": samples, "emb_features": emb_features,
        "pdg_cnt": pdg_cnt, "pdg_dim": pdg_dim, "latent": latent,
    }


# --------------------------------------------------------------------------- main
if __name__ == "__main__":
    B = 2
    SAMPLES = 8
    EMB_FEATURES = 16
    LATENT = 8
    PDG_EMB_CNT = 20
    PDG_EMB_DIM = 10
    N_CONT = EMB_FEATURES - PDG_EMB_DIM - 1      # 5 continuous features per particle

    root = jax.random.PRNGKey(0)
    k_params, k_pdg, k_stat, k_cont = jax.random.split(root, 4)
    params = init_params(k_params, SAMPLES, EMB_FEATURES, LATENT, PDG_EMB_CNT, PDG_EMB_DIM)

    pdg = jax.random.randint(k_pdg, (B, SAMPLES, 1), 0, PDG_EMB_CNT)
    stat = jax.random.randint(k_stat, (B, SAMPLES, 1), 0, 3)
    cont = jax.random.normal(k_cont, (B, SAMPLES, N_CONT), dtype=jnp.float32)
    x = jnp.concatenate(
        [pdg.astype(jnp.float32), stat.astype(jnp.float32), cont], axis=2)   # (B, S, 7)

    in_emb, lat_mu, lat_var = autoencoder_in_forward(params, x)
    in_emb, lat_mu, lat_var = jax.block_until_ready((in_emb, lat_mu, lat_var))

    assert in_emb.shape == (B, SAMPLES, EMB_FEATURES), in_emb.shape
    assert lat_mu.shape == (B, LATENT), lat_mu.shape
    assert lat_var.shape == (B, LATENT), lat_var.shape
    assert bool(jnp.all(jnp.isfinite(in_emb)))
    assert bool(jnp.all(jnp.isfinite(lat_mu)))
    assert bool(jnp.all(jnp.isfinite(lat_var)))
    print("KERNEL_OK")
</pallas_src>

<mosaic_0001>
module attributes {stable_mosaic.version = 11 : i64} {
  func.func @kernel(%arg0: i32, %arg1: memref<16x1xi32, #tpu.memory_space<vmem>>, %arg2: memref<16x1xf32, #tpu.memory_space<vmem>>, %arg3: memref<16x5xf32, #tpu.memory_space<vmem>>, %arg4: memref<20x10xf32, #tpu.memory_space<vmem>>, %arg5: memref<1x10xf32, #tpu.memory_space<vmem>>, %arg6: memref<3x128xf32, #tpu.memory_space<vmem>>, %arg7: memref<1x128xf32, #tpu.memory_space<vmem>>, %arg8: memref<1x128xf32, #tpu.memory_space<vmem>>, %arg9: memref<1x128xf32, #tpu.memory_space<vmem>>, %arg10: memref<5x128x128xbf16, #tpu.memory_space<vmem>>, %arg11: memref<1x128xf32, #tpu.memory_space<vmem>>, %arg12: memref<1x128xf32, #tpu.memory_space<vmem>>, %arg13: memref<1x128xf32, #tpu.memory_space<vmem>>, %arg14: memref<5x128x128xbf16, #tpu.memory_space<vmem>>, %arg15: memref<1x128xf32, #tpu.memory_space<vmem>>, %arg16: memref<1x128xf32, #tpu.memory_space<vmem>>, %arg17: memref<1x128xf32, #tpu.memory_space<vmem>>, %arg18: memref<5x128x128xbf16, #tpu.memory_space<vmem>>, %arg19: memref<1x128xf32, #tpu.memory_space<vmem>>, %arg20: memref<1x128xf32, #tpu.memory_space<vmem>>, %arg21: memref<1x128xf32, #tpu.memory_space<vmem>>, %arg22: memref<5x128x128xbf16, #tpu.memory_space<vmem>>, %arg23: memref<1x128xf32, #tpu.memory_space<vmem>>, %arg24: memref<1x128xf32, #tpu.memory_space<vmem>>, %arg25: memref<1x128xf32, #tpu.memory_space<vmem>>, %arg26: memref<5x128x128xbf16, #tpu.memory_space<vmem>>, %arg27: memref<1x128xf32, #tpu.memory_space<vmem>>, %arg28: memref<16x128x10xbf16, #tpu.memory_space<vmem>>, %arg29: memref<1x10xf32, #tpu.memory_space<vmem>>, %arg30: memref<16x16xf32, #tpu.memory_space<vmem>>, %arg31: memref<16x10xf32, #tpu.memory_space<vmem>>, %arg32: memref<20x16x128xf32, #tpu.memory_space<vmem>>, %arg33: memref<20x16x128xf32, #tpu.memory_space<vmem>>) attributes {dimension_semantics = [#tpu.dimension_semantics<arbitrary>], iteration_bounds = array<i64: 1>, scalar_prefetch = 0 : i64, scratch_operands = 2 : i64, tpu.core_type = #tpu.core_type<tc>, window_params = [{pipeline_mode = #tpu.pipeline_mode<synchronous>, transform_indices = @transform_0, window_bounds = array<i64: 16, 1>}, {pipeline_mode = #tpu.pipeline_mode<synchronous>, transform_indices = @transform_1, window_bounds = array<i64: 16, 1>}, {pipeline_mode = #tpu.pipeline_mode<synchronous>, transform_indices = @transform_2, window_bounds = array<i64: 16, 5>}, {pipeline_mode = #tpu.pipeline_mode<synchronous>, transform_indices = @transform_3, window_bounds = array<i64: 20, 10>}, {pipeline_mode = #tpu.pipeline_mode<synchronous>, transform_indices = @transform_4, window_bounds = array<i64: 1, 10>}, {pipeline_mode = #tpu.pipeline_mode<synchronous>, transform_indices = @transform_5, window_bounds = array<i64: 3, 128>}, {pipeline_mode = #tpu.pipeline_mode<synchronous>, transform_indices = @transform_6, window_bounds = array<i64: 1, 128>}, {pipeline_mode = #tpu.pipeline_mode<synchronous>, transform_indices = @transform_7, window_bounds = array<i64: 1, 128>}, {pipeline_mode = #tpu.pipeline_mode<synchronous>, transform_indices = @transform_8, window_bounds = array<i64: 1, 128>}, {pipeline_mode = #tpu.pipeline_mode<synchronous>, transform_indices = @transform_9, window_bounds = array<i64: 5, 128, 128>}, {pipeline_mode = #tpu.pipeline_mode<synchronous>, transform_indices = @transform_10, window_bounds = array<i64: 1, 128>}, {pipeline_mode = #tpu.pipeline_mode<synchronous>, transform_indices = @transform_11, window_bounds = array<i64: 1, 128>}, {pipeline_mode = #tpu.pipeline_mode<synchronous>, transform_indices = @transform_12, window_bounds = array<i64: 1, 128>}, {pipeline_mode = #tpu.pipeline_mode<synchronous>, transform_indices = @transform_13, window_bounds = array<i64: 5, 128, 128>}, {pipeline_mode = #tpu.pipeline_mode<synchronous>, transform_indices = @transform_14, window_bounds = array<i64: 1, 128>}, {pipeline_mode = #tpu.pipeline_mode<synchronous>, transform_indices = @transform_15, window_bounds = array<i64: 1, 128>}, {pipeline_mode = #tpu.pipeline_mode<synchronous>, transform_indices = @transform_16, window_bounds = array<i64: 1, 128>}, {pipeline_mode = #tpu.pipeline_mode<synchronous>, transform_indices = @transform_17, window_bounds = array<i64: 5, 128, 128>}, {pipeline_mode = #tpu.pipeline_mode<synchronous>, transform_indices = @transform_18, window_bounds = array<i64: 1, 128>}, {pipeline_mode = #tpu.pipeline_mode<synchronous>, transform_indices = @transform_19, window_bounds = array<i64: 1, 128>}, {pipeline_mode = #tpu.pipeline_mode<synchronous>, transform_indices = @transform_20, window_bounds = array<i64: 1, 128>}, {pipeline_mode = #tpu.pipeline_mode<synchronous>, transform_indices = @transform_21, window_bounds = array<i64: 5, 128, 128>}, {pipeline_mode = #tpu.pipeline_mode<synchronous>, transform_indices = @transform_22, window_bounds = array<i64: 1, 128>}, {pipeline_mode = #tpu.pipeline_mode<synchronous>, transform_indices = @transform_23, window_bounds = array<i64: 1, 128>}, {pipeline_mode = #tpu.pipeline_mode<synchronous>, transform_indices = @transform_24, window_bounds = array<i64: 1, 128>}, {pipeline_mode = #tpu.pipeline_mode<synchronous>, transform_indices = @transform_25, window_bounds = array<i64: 5, 128, 128>}, {pipeline_mode = #tpu.pipeline_mode<synchronous>, transform_indices = @transform_26, window_bounds = array<i64: 1, 128>}, {pipeline_mode = #tpu.pipeline_mode<synchronous>, transform_indices = @transform_27, window_bounds = array<i64: 16, 128, 10>}, {pipeline_mode = #tpu.pipeline_mode<synchronous>, transform_indices = @transform_28, window_bounds = array<i64: 1, 10>}, {pipeline_mode = #tpu.pipeline_mode<synchronous>, transform_indices = @transform_29, window_bounds = array<i64: 16, 16>}, {pipeline_mode = #tpu.pipeline_mode<synchronous>, transform_indices = @transform_30, window_bounds = array<i64: 16, 10>}]} {
    %0 = tpu.iota {dimensions = array<i32: 1>} : vector<16x20xi32>
    %c0 = arith.constant 0 : index
    %c0_0 = arith.constant 0 : index
    %1 = vector.load %arg1[%c0, %c0_0] : memref<16x1xi32, #tpu.memory_space<vmem>>, vector<16x1xi32>
    %2 = vector.broadcast %1 : vector<16x1xi32> to vector<16x20xi32>
    %3 = arith.cmpi eq, %2, %0 : vector<16x20xi32>
    %4 = arith.extui %3 : vector<16x20xi1> to vector<16x20xi32>
    %5 = arith.sitofp %4 : vector<16x20xi32> to vector<16x20xf32>
    %c0_1 = arith.constant 0 : index
    %c0_2 = arith.constant 0 : index
    %6 = vector.load %arg4[%c0_1, %c0_2] : memref<20x10xf32, #tpu.memory_space<vmem>>, vector<20x10xf32>
    %cst = arith.constant dense<0.000000e+00> : vector<16x10xf32>
    %7 = tpu.matmul %5, %6, %cst {dimension_numbers = #tpu.dot_dimension_numbers<[1], [0], [0], [1], [0, 0, 1, 1], [], []>} : vector<16x20xf32>, vector<20x10xf32>, vector<16x10xf32> -> vector<16x10xf32>
    %c0_3 = arith.constant 0 : index
    %c0_4 = arith.constant 0 : index
    %8 = vector.load %arg5[%c0_3, %c0_4] : memref<1x10xf32, #tpu.memory_space<vmem>>, vector<1x10xf32>
    %9 = vector.broadcast %8 : vector<1x10xf32> to vector<16x10xf32>
    %10 = arith.addf %7, %9 : vector<16x10xf32>
    %11 = math.tanh %10 : vector<16x10xf32>
    %c0_5 = arith.constant 0 : index
    %c0_6 = arith.constant 0 : index
    %12 = vector.load %arg30[%c0_5, %c0_6] : memref<16x16xf32, #tpu.memory_space<vmem>>, vector<16x10xf32>
    tpu.vector_store %arg30[%c0_5, %c0_6], %11 {strides = array<i32>} : memref<16x16xf32, #tpu.memory_space<vmem>>, vector<16x10xf32>,
    %c0_7 = arith.constant 0 : index
    %c0_8 = arith.constant 0 : index
    %13 = vector.load %arg2[%c0_7, %c0_8] : memref<16x1xf32, #tpu.memory_space<vmem>>, vector<16x1xf32>
    %c0_9 = arith.constant 0 : index
    %c10 = arith.constant 10 : index
    %14 = vector.load %arg30[%c0_9, %c10] : memref<16x16xf32, #tpu.memory_space<vmem>>, vector<16x1xf32>
    tpu.vector_store %arg30[%c0_9, %c10], %13 {strides = array<i32>} : memref<16x16xf32, #tpu.memory_space<vmem>>, vector<16x1xf32>,
    %c0_10 = arith.constant 0 : index
    %c0_11 = arith.constant 0 : index
    %15 = vector.load %arg3[%c0_10, %c0_11] : memref<16x5xf32, #tpu.memory_space<vmem>>, vector<16x5xf32>
    %c0_12 = arith.constant 0 : index
    %c11 = arith.constant 11 : index
    %16 = vector.load %arg30[%c0_12, %c11] : memref<16x16xf32, #tpu.memory_space<vmem>>, vector<16x5xf32>
    tpu.vector_store %arg30[%c0_12, %c11], %15 {strides = array<i32>} : memref<16x16xf32, #tpu.memory_space<vmem>>, vector<16x5xf32>,
    %c0_13 = arith.constant 0 : index
    %c0_14 = arith.constant 0 : index
    %17 = vector.load %arg30[%c0_13, %c0_14] : memref<16x16xf32, #tpu.memory_space<vmem>>, vector<16x16xf32>
    %cst_15 = arith.constant 0.000000e+00 : f32
    %18 = vector.broadcast %cst_15 : f32 to vector<20x16x128xf32>
    %c0_16 = arith.constant 0 : index
    %c0_17 = arith.constant 0 : index
    %c0_18 = arith.constant 0 : index
    %19 = vector.load %arg32[%c0_16, %c0_17, %c0_18] : memref<20x16x128xf32, #tpu.memory_space<vmem>>, vector<20x16x128xf32>
    tpu.vector_store %arg32[%c0_16, %c0_17, %c0_18], %18 {strides = array<i32>} : memref<20x16x128xf32, #tpu.memory_space<vmem>>, vector<20x16x128xf32>,
    %cst_19 = arith.constant 0.000000e+00 : f32
    %20 = vector.broadcast %cst_19 : f32 to vector<20x16x128xf32>
    %c0_20 = arith.constant 0 : index
    %c0_21 = arith.constant 0 : index
    %c0_22 = arith.constant 0 : index
    %21 = vector.load %arg33[%c0_20, %c0_21, %c0_22] : memref<20x16x128xf32, #tpu.memory_space<vmem>>, vector<20x16x128xf32>
    tpu.vector_store %arg33[%c0_20, %c0_21, %c0_22], %20 {strides = array<i32>} : memref<20x16x128xf32, #tpu.memory_space<vmem>>, vector<20x16x128xf32>,
    %c0_23 = arith.constant 0 : index
    %c0_24 = arith.constant 0 : index
    %22 = vector.load %arg6[%c0_23, %c0_24] : memref<3x128xf32, #tpu.memory_space<vmem>>, vector<3x128xf32>
    %c0_25 = arith.constant 0 : index
    %c0_26 = arith.constant 0 : index
    %23 = vector.load %arg7[%c0_25, %c0_26] : memref<1x128xf32, #tpu.memory_space<vmem>>, vector<1x128xf32>
    %cst_27 = arith.constant 0.000000e+00 : f32
    %24 = vector.broadcast %cst_27 : f32 to vector<1x128xf32>
    %cst_28 = arith.constant 0.000000e+00 : f32
    %25 = vector.broadcast %cst_28 : f32 to vector<1x128xf32>
    %cst_29 = arith.constant 0.000000e+00 : f32
    %26 = vector.broadcast %cst_29 : f32 to vector<16x128xf32>
    %27 = vector.extract_strided_slice %17 {offsets = [0, 0], sizes = [16, 1], strides = [1, 1]} : vector<16x16xf32> to vector<16x1xf32>
    %28 = vector.extract_strided_slice %22 {offsets = [1, 0], sizes = [1, 128], strides = [1, 1]} : vector<3x128xf32> to vector<1x128xf32>
    %29 = vector.broadcast %27 : vector<16x1xf32> to vector<16x128xf32>
    %30 = vector.broadcast %28 : vector<1x128xf32> to vector<16x128xf32>
    %31 = arith.mulf %29, %30 : vector<16x128xf32>
    %32 = arith.addf %26, %31 : vector<16x128xf32>
    %33 = vector.extract_strided_slice %17 {offsets = [0, 1], sizes = [16, 1], strides = [1, 1]} : vector<16x16xf32> to vector<16x1xf32>
    %34 = vector.extract_strided_slice %22 {offsets = [2, 0], sizes = [1, 128], strides = [1, 1]} : vector<3x128xf32> to vector<1x128xf32>
    %35 = vector.broadcast %33 : vector<16x1xf32> to vector<16x128xf32>
    %36 = vector.broadcast %34 : vector<1x128xf32> to vector<16x128xf32>
    %37 = arith.mulf %35, %36 : vector<16x128xf32>
    %38 = arith.addf %32, %37 : vector<16x128xf32>
    %39 = vector.broadcast %23 : vector<1x128xf32> to vector<16x128xf32>
    %40 = arith.addf %38, %39 : vector<16x128xf32>
    %cst_30 = arith.constant 0.000000e+00 : f32
    %41 = vector.broadcast %cst_30 : f32 to vector<16x128xf32>
    %42 = arith.cmpf oge, %40, %41 : vector<16x128xf32>
    %cst_31 = arith.constant 2.000000e-01 : f32
    %43 = vector.broadcast %cst_31 : f32 to vector<16x128xf32>
    %44 = arith.mulf %43, %40 : vector<16x128xf32>
    %45 = arith.select %42, %40, %44 : vector<16x128xi1>, vector<16x128xf32>
    %c2 = arith.constant 2 : index
    %c0_32 = arith.constant 0 : index
    %c0_33 = arith.constant 0 : index
    %46 = vector.load %arg32[%c2, %c0_32, %c0_33] : memref<20x16x128xf32, #tpu.memory_space<vmem>>, vector<1x16x128xf32>
    %47 = vector.shape_cast %46 : vector<1x16x128xf32> to vector<16x128xf32>
    %48 = vector.shape_cast %45 : vector<16x128xf32> to vector<1x16x128xf32>
    tpu.vector_store %arg32[%c2, %c0_32, %c0_33], %48 {strides = array<i32>} : memref<20x16x128xf32, #tpu.memory_space<vmem>>, vector<1x16x128xf32>,
    %cst_34 = arith.constant dense<0.000000e+00> : vector<128xf32>
    %49 = vector.multi_reduction <add>, %45, %cst_34 [0] : vector<16x128xf32> to vector<128xf32>
    %50 = vector.shape_cast %49 : vector<128xf32> to vector<1x128xf32>
    %51 = arith.addf %24, %50 : vector<1x128xf32>
    %52 = arith.mulf %45, %45 : vector<16x128xf32>
    %cst_35 = arith.constant dense<0.000000e+00> : vector<128xf32>
    %53 = vector.multi_reduction <add>, %52, %cst_35 [0] : vector<16x128xf32> to vector<128xf32>
    %54 = vector.shape_cast %53 : vector<128xf32> to vector<1x128xf32>
    %55 = arith.addf %25, %54 : vector<1x128xf32>
    %cst_36 = arith.constant 0.000000e+00 : f32
    %56 = vector.broadcast %cst_36 : f32 to vector<16x128xf32>
    %57 = vector.extract_strided_slice %17 {offsets = [0, 0], sizes = [16, 1], strides = [1, 1]} : vector<16x16xf32> to vector<16x1xf32>
    %58 = vector.extract_strided_slice %22 {offsets = [0, 0], sizes = [1, 128], strides = [1, 1]} : vector<3x128xf32> to vector<1x128xf32>
    %59 = vector.broadcast %57 : vector<16x1xf32> to vector<16x128xf32>
    %60 = vector.broadcast %58 : vector<1x128xf32> to vector<16x128xf32>
    %61 = arith.mulf %59, %60 : vector<16x128xf32>
    %62 = arith.addf %56, %61 : vector<16x128xf32>
    %63 = vector.extract_strided_slice %17 {offsets = [0, 1], sizes = [16, 1], strides = [1, 1]} : vector<16x16xf32> to vector<16x1xf32>
    %64 = vector.extract_strided_slice %22 {offsets = [1, 0], sizes = [1, 128], strides = [1, 1]} : vector<3x128xf32> to vector<1x128xf32>
    %65 = vector.broadcast %63 : vector<16x1xf32> to vector<16x128xf32>
    %66 = vector.broadcast %64 : vector<1x128xf32> to vector<16x128xf32>
    %67 = arith.mulf %65, %66 : vector<16x128xf32>
    %68 = arith.addf %62, %67 : vector<16x128xf32>
    %69 = vector.extract_strided_slice %17 {offsets = [0, 2], sizes = [16, 1], strides = [1, 1]} : vector<16x16xf32> to vector<16x1xf32>
    %70 = vector.extract_strided_slice %22 {offsets = [2, 0], sizes = [1, 128], strides = [1, 1]} : vector<3x128xf32> to vector<1x128xf32>
    %71 = vector.broadcast %69 : vector<16x1xf32> to vector<16x128xf32>
    %72 = vector.broadcast %70 : vector<1x128xf32> to vector<16x128xf32>
    %73 = arith.mulf %71, %72 : vector<16x128xf32>
    %74 = arith.addf %68, %73 : vector<16x128xf32>
    %75 = vector.broadcast %23 : vector<1x128xf32> to vector<16x128xf32>
    %76 = arith.addf %74, %75 : vector<16x128xf32>
    %cst_37 = arith.constant 0.000000e+00 : f32
    %77 = vector.broadcast %cst_37 : f32 to vector<16x128xf32>
    %78 = arith.cmpf oge, %76, %77 : vector<16x128xf32>
    %cst_38 = arith.constant 2.000000e-01 : f32
    %79 = vector.broadcast %cst_38 : f32 to vector<16x128xf32>
    %80 = arith.mulf %79, %76 : vector<16x128xf32>
    %81 = arith.select %78, %76, %80 : vector<16x128xi1>, vector<16x128xf32>
    %c3 = arith.constant 3 : index
    %c0_39 = arith.constant 0 : index
    %c0_40 = arith.constant 0 : index
    %82 = vector.load %arg32[%c3, %c0_39, %c0_40] : memref<20x16x128xf32, #tpu.memory_space<vmem>>, vector<1x16x128xf32>
    %83 = vector.shape_cast %82 : vector<1x16x128xf32> to vector<16x128xf32>
    %84 = vector.shape_cast %81 : vector<16x128xf32> to vector<1x16x128xf32>
    tpu.vector_store %arg32[%c3, %c0_39, %c0_40], %84 {strides = array<i32>} : memref<20x16x128xf32, #tpu.memory_space<vmem>>, vector<1x16x128xf32>,
    %cst_41 = arith.constant dense<0.000000e+00> : vector<128xf32>
    %85 = vector.multi_reduction <add>, %81, %cst_41 [0] : vector<16x128xf32> to vector<128xf32>
    %86 = vector.shape_cast %85 : vector<128xf32> to vector<1x128xf32>
    %87 = arith.addf %51, %86 : vector<1x128xf32>
    %88 = arith.mulf %81, %81 : vector<16x128xf32>
    %cst_42 = arith.constant dense<0.000000e+00> : vector<128xf32>
    %89 = vector.multi_reduction <add>, %88, %cst_42 [0] : vector<16x128xf32> to vector<128xf32>
    %90 = vector.shape_cast %89 : vector<128xf32> to vector<1x128xf32>
    %91 = arith.addf %55, %90 : vector<1x128xf32>
    %cst_43 = arith.constant 0.000000e+00 : f32
    %92 = vector.broadcast %cst_43 : f32 to vector<16x128xf32>
    %93 = vector.extract_strided_slice %17 {offsets = [0, 1], sizes = [16, 1], strides = [1, 1]} : vector<16x16xf32> to vector<16x1xf32>
    %94 = vector.extract_strided_slice %22 {offsets = [0, 0], sizes = [1, 128], strides = [1, 1]} : vector<3x128xf32> to vector<1x128xf32>
    %95 = vector.broadcast %93 : vector<16x1xf32> to vector<16x128xf32>
    %96 = vector.broadcast %94 : vector<1x128xf32> to vector<16x128xf32>
    %97 = arith.mulf %95, %96 : vector<16x128xf32>
    %98 = arith.addf %92, %97 : vector<16x128xf32>
    %99 = vector.extract_strided_slice %17 {offsets = [0, 2], sizes = [16, 1], strides = [1, 1]} : vector<16x16xf32> to vector<16x1xf32>
    %100 = vector.extract_strided_slice %22 {offsets = [1, 0], sizes = [1, 128], strides = [1, 1]} : vector<3x128xf32> to vector<1x128xf32>
    %101 = vector.broadcast %99 : vector<16x1xf32> to vector<16x128xf32>
    %102 = vector.broadcast %100 : vector<1x128xf32> to vector<16x128xf32>
    %103 = arith.mulf %101, %102 : vector<16x128xf32>
    %104 = arith.addf %98, %103 : vector<16x128xf32>
    %105 = vector.extract_strided_slice %17 {offsets = [0, 3], sizes = [16, 1], strides = [1, 1]} : vector<16x16xf32> to vector<16x1xf32>
    %106 = vector.extract_strided_slice %22 {offsets = [2, 0], sizes = [1, 128], strides = [1, 1]} : vector<3x128xf32> to vector<1x128xf32>
    %107 = vector.broadcast %105 : vector<16x1xf32> to vector<16x128xf32>
    %108 = vector.broadcast %106 : vector<1x128xf32> to vector<16x128xf32>
    %109 = arith.mulf %107, %108 : vector<16x128xf32>
    %110 = arith.addf %104, %109 : vector<16x128xf32>
    %111 = vector.broadcast %23 : vector<1x128xf32> to vector<16x128xf32>
    %112 = arith.addf %110, %111 : vector<16x128xf32>
    %cst_44 = arith.constant 0.000000e+00 : f32
    %113 = vector.broadcast %cst_44 : f32 to vector<16x128xf32>
    %114 = arith.cmpf oge, %112, %113 : vector<16x128xf32>
    %cst_45 = arith.constant 2.000000e-01 : f32
    %115 = vector.broadcast %cst_45 : f32 to vector<16x128xf32>
    %116 = arith.mulf %115, %112 : vector<16x128xf32>
    %117 = arith.select %114, %112, %116 : vector<16x128xi1>, vector<16x128xf32>
    %c4 = arith.constant 4 : index
    %c0_46 = arith.constant 0 : index
    %c0_47 = arith.constant 0 : index
    %118 = vector.load %arg32[%c4, %c0_46, %c0_47] : memref<20x16x128xf32, #tpu.memory_space<vmem>>, vector<1x16x128xf32>
    %119 = vector.shape_cast %118 : vector<1x16x128xf32> to vector<16x128xf32>
    %120 = vector.shape_cast %117 : vector<16x128xf32> to vector<1x16x128xf32>
    tpu.vector_store %arg32[%c4, %c0_46, %c0_47], %120 {strides = array<i32>} : memref<20x16x128xf32, #tpu.memory_space<vmem>>, vector<1x16x128xf32>,
    %cst_48 = arith.constant dense<0.000000e+00> : vector<128xf32>
    %121 = vector.multi_reduction <add>, %117, %cst_48 [0] : vector<16x128xf32> to vector<128xf32>
    %122 = vector.shape_cast %121 : vector<128xf32> to vector<1x128xf32>
    %123 = arith.addf %87, %122 : vector<1x128xf32>
    %124 = arith.mulf %117, %117 : vector<16x128xf32>
    %cst_49 = arith.constant dense<0.000000e+00> : vector<128xf32>
    %125 = vector.multi_reduction <add>, %124, %cst_49 [0] : vector<16x128xf32> to vector<128xf32>
    %126 = vector.shape_cast %125 : vector<128xf32> to vector<1x128xf32>
    %127 = arith.addf %91, %126 : vector<1x128xf32>
    %cst_50 = arith.constant 0.000000e+00 : f32
    %128 = vector.broadcast %cst_50 : f32 to vector<16x128xf32>
    %129 = vector.extract_strided_slice %17 {offsets = [0, 2], sizes = [16, 1], strides = [1, 1]} : vector<16x16xf32> to vector<16x1xf32>
    %130 = vector.extract_strided_slice %22 {offsets = [0, 0], sizes = [1, 128], strides = [1, 1]} : vector<3x128xf32> to vector<1x128xf32>
    %131 = vector.broadcast %129 : vector<16x1xf32> to vector<16x128xf32>
    %132 = vector.broadcast %130 : vector<1x128xf32> to vector<16x128xf32>
    %133 = arith.mulf %131, %132 : vector<16x128xf32>
    %134 = arith.addf %128, %133 : vector<16x128xf32>
    %135 = vector.extract_strided_slice %17 {offsets = [0, 3], sizes = [16, 1], strides = [1, 1]} : vector<16x16xf32> to vector<16x1xf32>
    %136 = vector.extract_strided_slice %22 {offsets = [1, 0], sizes = [1, 128], strides = [1, 1]} : vector<3x128xf32> to vector<1x128xf32>
    %137 = vector.broadcast %135 : vector<16x1xf32> to vector<16x128xf32>
    %138 = vector.broadcast %136 : vector<1x128xf32> to vector<16x128xf32>
    %139 = arith.mulf %137, %138 : vector<16x128xf32>
    %140 = arith.addf %134, %139 : vector<16x128xf32>
    %141 = vector.extract_strided_slice %17 {offsets = [0, 4], sizes = [16, 1], strides = [1, 1]} : vector<16x16xf32> to vector<16x1xf32>
    %142 = vector.extract_strided_slice %22 {offsets = [2, 0], sizes = [1, 128], strides = [1, 1]} : vector<3x128xf32> to vector<1x128xf32>
    %143 = vector.broadcast %141 : vector<16x1xf32> to vector<16x128xf32>
    %144 = vector.broadcast %142 : vector<1x128xf32> to vector<16x128xf32>
    %145 = arith.mulf %143, %144 : vector<16x128xf32>
    %146 = arith.addf %140, %145 : vector<16x128xf32>
    %147 = vector.broadcast %23 : vector<1x128xf32> to vector<16x128xf32>
    %148 = arith.addf %146, %147 : vector<16x128xf32>
    %cst_51 = arith.constant 0.000000e+00 : f32
    %149 = vector.broadcast %cst_51 : f32 to vector<16x128xf32>
    %150 = arith.cmpf oge, %148, %149 : vector<16x128xf32>
    %cst_52 = arith.constant 2.000000e-01 : f32
    %151 = vector.broadcast %cst_52 : f32 to vector<16x128xf32>
    %152 = arith.mulf %151, %148 : vector<16x128xf32>
    %153 = arith.select %150, %148, %152 : vector<16x128xi1>, vector<16x128xf32>
    %c5 = arith.constant 5 : index
    %c0_53 = arith.constant 0 : index
    %c0_54 = arith.constant 0 : index
    %154 = vector.load %arg32[%c5, %c0_53, %c0_54] : memref<20x16x128xf32, #tpu.memory_space<vmem>>, vector<1x16x128xf32>
    %155 = vector.shape_cast %154 : vector<1x16x128xf32> to vector<16x128xf32>
    %156 = vector.shape_cast %153 : vector<16x128xf32> to vector<1x16x128xf32>
    tpu.vector_store %arg32[%c5, %c0_53, %c0_54], %156 {strides = array<i32>} : memref<20x16x128xf32, #tpu.memory_space<vmem>>, vector<1x16x128xf32>,
    %cst_55 = arith.constant dense<0.000000e+00> : vector<128xf32>
    %157 = vector.multi_reduction <add>, %153, %cst_55 [0] : vector<16x128xf32> to vector<128xf32>
    %158 = vector.shape_cast %157 : vector<128xf32> to vector<1x128xf32>
    %159 = arith.addf %123, %158 : vector<1x128xf32>
    %160 = arith.mulf %153, %153 : vector<16x128xf32>
    %cst_56 = arith.constant dense<0.000000e+00> : vector<128xf32>
    %161 = vector.multi_reduction <add>, %160, %cst_56 [0] : vector<16x128xf32> to vector<128xf32>
    %162 = vector.shape_cast %161 : vector<128xf32> to vector<1x128xf32>
    %163 = arith.addf %127, %162 : vector<1x128xf32>
    %cst_57 = arith.constant 0.000000e+00 : f32
    %164 = vector.broadcast %cst_57 : f32 to vector<16x128xf32>
    %165 = vector.extract_strided_slice %17 {offsets = [0, 3], sizes = [16, 1], strides = [1, 1]} : vector<16x16xf32> to vector<16x1xf32>
    %166 = vector.extract_strided_slice %22 {offsets = [0, 0], sizes = [1, 128], strides = [1, 1]} : vector<3x128xf32> to vector<1x128xf32>
    %167 = vector.broadcast %165 : vector<16x1xf32> to vector<16x128xf32>
    %168 = vector.broadcast %166 : vector<1x128xf32> to vector<16x128xf32>
    %169 = arith.mulf %167, %168 : vector<16x128xf32>
    %170 = arith.addf %164, %169 : vector<16x128xf32>
    %171 = vector.extract_strided_slice %17 {offsets = [0, 4], sizes = [16, 1], strides = [1, 1]} : vector<16x16xf32> to vector<16x1xf32>
    %172 = vector.extract_strided_slice %22 {offsets = [1, 0], sizes = [1, 128], strides = [1, 1]} : vector<3x128xf32> to vector<1x128xf32>
    %173 = vector.broadcast %171 : vector<16x1xf32> to vector<16x128xf32>
    %174 = vector.broadcast %172 : vector<1x128xf32> to vector<16x128xf32>
    %175 = arith.mulf %173, %174 : vector<16x128xf32>
    %176 = arith.addf %170, %175 : vector<16x128xf32>
    %177 = vector.extract_strided_slice %17 {offsets = [0, 5], sizes = [16, 1], strides = [1, 1]} : vector<16x16xf32> to vector<16x1xf32>
    %178 = vector.extract_strided_slice %22 {offsets = [2, 0], sizes = [1, 128], strides = [1, 1]} : vector<3x128xf32> to vector<1x128xf32>
    %179 = vector.broadcast %177 : vector<16x1xf32> to vector<16x128xf32>
    %180 = vector.broadcast %178 : vector<1x128xf32> to vector<16x128xf32>
    %181 = arith.mulf %179, %180 : vector<16x128xf32>
    %182 = arith.addf %176, %181 : vector<16x128xf32>
    %183 = vector.broadcast %23 : vector<1x128xf32> to vector<16x128xf32>
    %184 = arith.addf %182, %183 : vector<16x128xf32>
    %cst_58 = arith.constant 0.000000e+00 : f32
    %185 = vector.broadcast %cst_58 : f32 to vector<16x128xf32>
    %186 = arith.cmpf oge, %184, %185 : vector<16x128xf32>
    %cst_59 = arith.constant 2.000000e-01 : f32
    %187 = vector.broadcast %cst_59 : f32 to vector<16x128xf32>
    %188 = arith.mulf %187, %184 : vector<16x128xf32>
    %189 = arith.select %186, %184, %188 : vector<16x128xi1>, vector<16x128xf32>
    %c6 = arith.constant 6 : index
    %c0_60 = arith.constant 0 : index
    %c0_61 = arith.constant 0 : index
    %190 = vector.load %arg32[%c6, %c0_60, %c0_61] : memref<20x16x128xf32, #tpu.memory_space<vmem>>, vector<1x16x128xf32>
    %191 = vector.shape_cast %190 : vector<1x16x128xf32> to vector<16x128xf32>
    %192 = vector.shape_cast %189 : vector<16x128xf32> to vector<1x16x128xf32>
    tpu.vector_store %arg32[%c6, %c0_60, %c0_61], %192 {strides = array<i32>} : memref<20x16x128xf32, #tpu.memory_space<vmem>>, vector<1x16x128xf32>,
    %cst_62 = arith.constant dense<0.000000e+00> : vector<128xf32>
    %193 = vector.multi_reduction <add>, %189, %cst_62 [0] : vector<16x128xf32> to vector<128xf32>
    %194 = vector.shape_cast %193 : vector<128xf32> to vector<1x128xf32>
    %195 = arith.addf %159, %194 : vector<1x128xf32>
    %196 = arith.mulf %189, %189 : vector<16x128xf32>
    %cst_63 = arith.constant dense<0.000000e+00> : vector<128xf32>
    %197 = vector.multi_reduction <add>, %196, %cst_63 [0] : vector<16x128xf32> to vector<128xf32>
    %198 = vector.shape_cast %197 : vector<128xf32> to vector<1x128xf32>
    %199 = arith.addf %163, %198 : vector<1x128xf32>
    %cst_64 = arith.constant 0.000000e+00 : f32
    %200 = vector.broadcast %cst_64 : f32 to vector<16x128xf32>
    %201 = vector.extract_strided_slice %17 {offsets = [0, 4], sizes = [16, 1], strides = [1, 1]} : vector<16x16xf32> to vector<16x1xf32>
    %202 = vector.extract_strided_slice %22 {offsets = [0, 0], sizes = [1, 128], strides = [1, 1]} : vector<3x128xf32> to vector<1x128xf32>
    %203 = vector.broadcast %201 : vector<16x1xf32> to vector<16x128xf32>
    %204 = vector.broadcast %202 : vector<1x128xf32> to vector<16x128xf32>
    %205 = arith.mulf %203, %204 : vector<16x128xf32>
    %206 = arith.addf %200, %205 : vector<16x128xf32>
    %207 = vector.extract_strided_slice %17 {offsets = [0, 5], sizes = [16, 1], strides = [1, 1]} : vector<16x16xf32> to vector<16x1xf32>
    %208 = vector.extract_strided_slice %22 {offsets = [1, 0], sizes = [1, 128], strides = [1, 1]} : vector<3x128xf32> to vector<1x128xf32>
    %209 = vector.broadcast %207 : vector<16x1xf32> to vector<16x128xf32>
    %210 = vector.broadcast %208 : vector<1x128xf32> to vector<16x128xf32>
    %211 = arith.mulf %209, %210 : vector<16x128xf32>
    %212 = arith.addf %206, %211 : vector<16x128xf32>
    %213 = vector.extract_strided_slice %17 {offsets = [0, 6], sizes = [16, 1], strides = [1, 1]} : vector<16x16xf32> to vector<16x1xf32>
    %214 = vector.extract_strided_slice %22 {offsets = [2, 0], sizes = [1, 128], strides = [1, 1]} : vector<3x128xf32> to vector<1x128xf32>
    %215 = vector.broadcast %213 : vector<16x1xf32> to vector<16x128xf32>
    %216 = vector.broadcast %214 : vector<1x128xf32> to vector<16x128xf32>
    %217 = arith.mulf %215, %216 : vector<16x128xf32>
    %218 = arith.addf %212, %217 : vector<16x128xf32>
    %219 = vector.broadcast %23 : vector<1x128xf32> to vector<16x128xf32>
    %220 = arith.addf %218, %219 : vector<16x128xf32>
    %cst_65 = arith.constant 0.000000e+00 : f32
    %221 = vector.broadcast %cst_65 : f32 to vector<16x128xf32>
    %222 = arith.cmpf oge, %220, %221 : vector<16x128xf32>
    %cst_66 = arith.constant 2.000000e-01 : f32
    %223 = vector.broadcast %cst_66 : f32 to vector<16x128xf32>
    %224 = arith.mulf %223, %220 : vector<16x128xf32>
    %225 = arith.select %222, %220, %224 : vector<16x128xi1>, vector<16x128xf32>
    %c7 = arith.constant 7 : index
    %c0_67 = arith.constant 0 : index
    %c0_68 = arith.constant 0 : index
    %226 = vector.load %arg32[%c7, %c0_67, %c0_68] : memref<20x16x128xf32, #tpu.memory_space<vmem>>, vector<1x16x128xf32>
    %227 = vector.shape_cast %226 : vector<1x16x128xf32> to vector<16x128xf32>
    %228 = vector.shape_cast %225 : vector<16x128xf32> to vector<1x16x128xf32>
    tpu.vector_store %arg32[%c7, %c0_67, %c0_68], %228 {strides = array<i32>} : memref<20x16x128xf32, #tpu.memory_space<vmem>>, vector<1x16x128xf32>,
    %cst_69 = arith.constant dense<0.000000e+00> : vector<128xf32>
    %229 = vector.multi_reduction <add>, %225, %cst_69 [0] : vector<16x128xf32> to vector<128xf32>
    %230 = vector.shape_cast %229 : vector<128xf32> to vector<1x128xf32>
    %231 = arith.addf %195, %230 : vector<1x128xf32>
    %232 = arith.mulf %225, %225 : vector<16x128xf32>
    %cst_70 = arith.constant dense<0.000000e+00> : vector<128xf32>
    %233 = vector.multi_reduction <add>, %232, %cst_70 [0] : vector<16x128xf32> to vector<128xf32>
    %234 = vector.shape_cast %233 : vector<128xf32> to vector<1x128xf32>
    %235 = arith.addf %199, %234 : vector<1x128xf32>
    %cst_71 = arith.constant 0.000000e+00 : f32
    %236 = vector.broadcast %cst_71 : f32 to vector<16x128xf32>
    %237 = vector.extract_strided_slice %17 {offsets = [0, 5], sizes = [16, 1], strides = [1, 1]} : vector<16x16xf32> to vector<16x1xf32>
    %238 = vector.extract_strided_slice %22 {offsets = [0, 0], sizes = [1, 128], strides = [1, 1]} : vector<3x128xf32> to vector<1x128xf32>
    %239 = vector.broadcast %237 : vector<16x1xf32> to vector<16x128xf32>
    %240 = vector.broadcast %238 : vector<1x128xf32> to vector<16x128xf32>
    %241 = arith.mulf %239, %240 : vector<16x128xf32>
    %242 = arith.addf %236, %241 : vector<16x128xf32>
    %243 = vector.extract_strided_slice %17 {offsets = [0, 6], sizes = [16, 1], strides = [1, 1]} : vector<16x16xf32> to vector<16x1xf32>
    %244 = vector.extract_strided_slice %22 {offsets = [1, 0], sizes = [1, 128], strides = [1, 1]} : vector<3x128xf32> to vector<1x128xf32>
    %245 = vector.broadcast %243 : vector<16x1xf32> to vector<16x128xf32>
    %246 = vector.broadcast %244 : vector<1x128xf32> to vector<16x128xf32>
    %247 = arith.mulf %245, %246 : vector<16x128xf32>
    %248 = arith.addf %242, %247 : vector<16x128xf32>
    %249 = vector.extract_strided_slice %17 {offsets = [0, 7], sizes = [16, 1], strides = [1, 1]} : vector<16x16xf32> to vector<16x1xf32>
    %250 = vector.extract_strided_slice %22 {offsets = [2, 0], sizes = [1, 128], strides = [1, 1]} : vector<3x128xf32> to vector<1x128xf32>
    %251 = vector.broadcast %249 : vector<16x1xf32> to vector<16x128xf32>
    %252 = vector.broadcast %250 : vector<1x128xf32> to vector<16x128xf32>
    %253 = arith.mulf %251, %252 : vector<16x128xf32>
    %254 = arith.addf %248, %253 : vector<16x128xf32>
    %255 = vector.broadcast %23 : vector<1x128xf32> to vector<16x128xf32>
    %256 = arith.addf %254, %255 : vector<16x128xf32>
    %cst_72 = arith.constant 0.000000e+00 : f32
    %257 = vector.broadcast %cst_72 : f32 to vector<16x128xf32>
    %258 = arith.cmpf oge, %256, %257 : vector<16x128xf32>
    %cst_73 = arith.constant 2.000000e-01 : f32
    %259 = vector.broadcast %cst_73 : f32 to vector<16x128xf32>
    %260 = arith.mulf %259, %256 : vector<16x128xf32>
    %261 = arith.select %258, %256, %260 : vector<16x128xi1>, vector<16x128xf32>
    %c8 = arith.constant 8 : index
    %c0_74 = arith.constant 0 : index
    %c0_75 = arith.constant 0 : index
    %262 = vector.load %arg32[%c8, %c0_74, %c0_75] : memref<20x16x128xf32, #tpu.memory_space<vmem>>, vector<1x16x128xf32>
    %263 = vector.shape_cast %262 : vector<1x16x128xf32> to vector<16x128xf32>
    %264 = vector.shape_cast %261 : vector<16x128xf32> to vector<1x16x128xf32>
    tpu.vector_store %arg32[%c8, %c0_74, %c0_75], %264 {strides = array<i32>} : memref<20x16x128xf32, #tpu.memory_space<vmem>>, vector<1x16x128xf32>,
    %cst_76 = arith.constant dense<0.000000e+00> : vector<128xf32>
    %265 = vector.multi_reduction <add>, %261, %cst_76 [0] : vector<16x128xf32> to vector<128xf32>
    %266 = vector.shape_cast %265 : vector<128xf32> to vector<1x128xf32>
    %267 = arith.addf %231, %266 : vector<1x128xf32>
    %268 = arith.mulf %261, %261 : vector<16x128xf32>
    %cst_77 = arith.constant dense<0.000000e+00> : vector<128xf32>
    %269 = vector.multi_reduction <add>, %268, %cst_77 [0] : vector<16x128xf32> to vector<128xf32>
    %270 = vector.shape_cast %269 : vector<128xf32> to vector<1x128xf32>
    %271 = arith.addf %235, %270 : vector<1x128xf32>
    %cst_78 = arith.constant 0.000000e+00 : f32
    %272 = vector.broadcast %cst_78 : f32 to vector<16x128xf32>
    %273 = vector.extract_strided_slice %17 {offsets = [0, 6], sizes = [16, 1], strides = [1, 1]} : vector<16x16xf32> to vector<16x1xf32>
    %274 = vector.extract_strided_slice %22 {offsets = [0, 0], sizes = [1, 128], strides = [1, 1]} : vector<3x128xf32> to vector<1x128xf32>
    %275 = vector.broadcast %273 : vector<16x1xf32> to vector<16x128xf32>
    %276 = vector.broadcast %274 : vector<1x128xf32> to vector<16x128xf32>
    %277 = arith.mulf %275, %276 : vector<16x128xf32>
    %278 = arith.addf %272, %277 : vector<16x128xf32>
    %279 = vector.extract_strided_slice %17 {offsets = [0, 7], sizes = [16, 1], strides = [1, 1]} : vector<16x16xf32> to vector<16x1xf32>
    %280 = vector.extract_strided_slice %22 {offsets = [1, 0], sizes = [1, 128], strides = [1, 1]} : vector<3x128xf32> to vector<1x128xf32>
    %281 = vector.broadcast %279 : vector<16x1xf32> to vector<16x128xf32>
    %282 = vector.broadcast %280 : vector<1x128xf32> to vector<16x128xf32>
    %283 = arith.mulf %281, %282 : vector<16x128xf32>
    %284 = arith.addf %278, %283 : vector<16x128xf32>
    %285 = vector.extract_strided_slice %17 {offsets = [0, 8], sizes = [16, 1], strides = [1, 1]} : vector<16x16xf32> to vector<16x1xf32>
    %286 = vector.extract_strided_slice %22 {offsets = [2, 0], sizes = [1, 128], strides = [1, 1]} : vector<3x128xf32> to vector<1x128xf32>
    %287 = vector.broadcast %285 : vector<16x1xf32> to vector<16x128xf32>
    %288 = vector.broadcast %286 : vector<1x128xf32> to vector<16x128xf32>
    %289 = arith.mulf %287, %288 : vector<16x128xf32>
    %290 = arith.addf %284, %289 : vector<16x128xf32>
    %291 = vector.broadcast %23 : vector<1x128xf32> to vector<16x128xf32>
    %292 = arith.addf %290, %291 : vector<16x128xf32>
    %cst_79 = arith.constant 0.000000e+00 : f32
    %293 = vector.broadcast %cst_79 : f32 to vector<16x128xf32>
    %294 = arith.cmpf oge, %292, %293 : vector<16x128xf32>
    %cst_80 = arith.constant 2.000000e-01 : f32
    %295 = vector.broadcast %cst_80 : f32 to vector<16x128xf32>
    %296 = arith.mulf %295, %292 : vector<16x128xf32>
    %297 = arith.select %294, %292, %296 : vector<16x128xi1>, vector<16x128xf32>
    %c9 = arith.constant 9 : index
    %c0_81 = arith.constant 0 : index
    %c0_82 = arith.constant 0 : index
    %298 = vector.load %arg32[%c9, %c0_81, %c0_82] : memref<20x16x128xf32, #tpu.memory_space<vmem>>, vector<1x16x128xf32>
    %299 = vector.shape_cast %298 : vector<1x16x128xf32> to vector<16x128xf32>
    %300 = vector.shape_cast %297 : vector<16x128xf32> to vector<1x16x128xf32>
    tpu.vector_store %arg32[%c9, %c0_81, %c0_82], %300 {strides = array<i32>} : memref<20x16x128xf32, #tpu.memory_space<vmem>>, vector<1x16x128xf32>,
    %cst_83 = arith.constant dense<0.000000e+00> : vector<128xf32>
    %301 = vector.multi_reduction <add>, %297, %cst_83 [0] : vector<16x128xf32> to vector<128xf32>
    %302 = vector.shape_cast %301 : vector<128xf32> to vector<1x128xf32>
    %303 = arith.addf %267, %302 : vector<1x128xf32>
    %304 = arith.mulf %297, %297 : vector<16x128xf32>
    %cst_84 = arith.constant dense<0.000000e+00> : vector<128xf32>
    %305 = vector.multi_reduction <add>, %304, %cst_84 [0] : vector<16x128xf32> to vector<128xf32>
    %306 = vector.shape_cast %305 : vector<128xf32> to vector<1x128xf32>
    %307 = arith.addf %271, %306 : vector<1x128xf32>
    %cst_85 = arith.constant 0.000000e+00 : f32
    %308 = vector.broadcast %cst_85 : f32 to vector<16x128xf32>
    %309 = vector.extract_strided_slice %17 {offsets = [0, 7], sizes = [16, 1], strides = [1, 1]} : vector<16x16xf32> to vector<16x1xf32>
    %310 = vector.extract_strided_slice %22 {offsets = [0, 0], sizes = [1, 128], strides = [1, 1]} : vector<3x128xf32> to vector<1x128xf32>
    %311 = vector.broadcast %309 : vector<16x1xf32> to vector<16x128xf32>
    %312 = vector.broadcast %310 : vector<1x128xf32> to vector<16x128xf32>
    %313 = arith.mulf %311, %312 : vector<16x128xf32>
    %314 = arith.addf %308, %313 : vector<16x128xf32>
    %315 = vector.extract_strided_slice %17 {offsets = [0, 8], sizes = [16, 1], strides = [1, 1]} : vector<16x16xf32> to vector<16x1xf32>
    %316 = vector.extract_strided_slice %22 {offsets = [1, 0], sizes = [1, 128], strides = [1, 1]} : vector<3x128xf32> to vector<1x128xf32>
    %317 = vector.broadcast %315 : vector<16x1xf32> to vector<16x128xf32>
    %318 = vector.broadcast %316 : vector<1x128xf32> to vector<16x128xf32>
    %319 = arith.mulf %317, %318 : vector<16x128xf32>
    %320 = arith.addf %314, %319 : vector<16x128xf32>
    %321 = vector.extract_strided_slice %17 {offsets = [0, 9], sizes = [16, 1], strides = [1, 1]} : vector<16x16xf32> to vector<16x1xf32>
    %322 = vector.extract_strided_slice %22 {offsets = [2, 0], sizes = [1, 128], strides = [1, 1]} : vector<3x128xf32> to vector<1x128xf32>
    %323 = vector.broadcast %321 : vector<16x1xf32> to vector<16x128xf32>
    %324 = vector.broadcast %322 : vector<1x128xf32> to vector<16x128xf32>
    %325 = arith.mulf %323, %324 : vector<16x128xf32>
    %326 = arith.addf %320, %325 : vector<16x128xf32>
    %327 = vector.broadcast %23 : vector<1x128xf32> to vector<16x128xf32>
    %328 = arith.addf %326, %327 : vector<16x128xf32>
    %cst_86 = arith.constant 0.000000e+00 : f32
    %329 = vector.broadcast %cst_86 : f32 to vector<16x128xf32>
    %330 = arith.cmpf oge, %328, %329 : vector<16x128xf32>
    %cst_87 = arith.constant 2.000000e-01 : f32
    %331 = vector.broadcast %cst_87 : f32 to vector<16x128xf32>
    %332 = arith.mulf %331, %328 : vector<16x128xf32>
    %333 = arith.select %330, %328, %332 : vector<16x128xi1>, vector<16x128xf32>
    %c10_88 = arith.constant 10 : index
    %c0_89 = arith.constant 0 : index
    %c0_90 = arith.constant 0 : index
    %334 = vector.load %arg32[%c10_88, %c0_89, %c0_90] : memref<20x16x128xf32, #tpu.memory_space<vmem>>, vector<1x16x128xf32>
    %335 = vector.shape_cast %334 : vector<1x16x128xf32> to vector<16x128xf32>
    %336 = vector.shape_cast %333 : vector<16x128xf32> to vector<1x16x128xf32>
    tpu.vector_store %arg32[%c10_88, %c0_89, %c0_90], %336 {strides = array<i32>} : memref<20x16x128xf32, #tpu.memory_space<vmem>>, vector<1x16x128xf32>,
    %cst_91 = arith.constant dense<0.000000e+00> : vector<128xf32>
    %337 = vector.multi_reduction <add>, %333, %cst_91 [0] : vector<16x128xf32> to vector<128xf32>
    %338 = vector.shape_cast %337 : vector<128xf32> to vector<1x128xf32>
    %339 = arith.addf %303, %338 : vector<1x128xf32>
    %340 = arith.mulf %333, %333 : vector<16x128xf32>
    %cst_92 = arith.constant dense<0.000000e+00> : vector<128xf32>
    %341 = vector.multi_reduction <add>, %340, %cst_92 [0] : vector<16x128xf32> to vector<128xf32>
    %342 = vector.shape_cast %341 : vector<128xf32> to vector<1x128xf32>
    %343 = arith.addf %307, %342 : vector<1x128xf32>
    %cst_93 = arith.constant 0.000000e+00 : f32
    %344 = vector.broadcast %cst_93 : f32 to vector<16x128xf32>
    %345 = vector.extract_strided_slice %17 {offsets = [0, 8], sizes = [16, 1], strides = [1, 1]} : vector<16x16xf32> to vector<16x1xf32>
    %346 = vector.extract_strided_slice %22 {offsets = [0, 0], sizes = [1, 128], strides = [1, 1]} : vector<3x128xf32> to vector<1x128xf32>
    %347 = vector.broadcast %345 : vector<16x1xf32> to vector<16x128xf32>
    %348 = vector.broadcast %346 : vector<1x128xf32> to vector<16x128xf32>
    %349 = arith.mulf %347, %348 : vector<16x128xf32>
    %350 = arith.addf %344, %349 : vector<16x128xf32>
    %351 = vector.extract_strided_slice %17 {offsets = [0, 9], sizes = [16, 1], strides = [1, 1]} : vector<16x16xf32> to vector<16x1xf32>
    %352 = vector.extract_strided_slice %22 {offsets = [1, 0], sizes = [1, 128], strides = [1, 1]} : vector<3x128xf32> to vector<1x128xf32>
    %353 = vector.broadcast %351 : vector<16x1xf32> to vector<16x128xf32>
    %354 = vector.broadcast %352 : vector<1x128xf32> to vector<16x128xf32>
    %355 = arith.mulf %353, %354 : vector<16x128xf32>
    %356 = arith.addf %350, %355 : vector<16x128xf32>
    %357 = vector.extract_strided_slice %17 {offsets = [0, 10], sizes = [16, 1], strides = [1, 1]} : vector<16x16xf32> to vector<16x1xf32>
    %358 = vector.extract_strided_slice %22 {offsets = [2, 0], sizes = [1, 128], strides = [1, 1]} : vector<3x128xf32> to vector<1x128xf32>
    %359 = vector.broadcast %357 : vector<16x1xf32> to vector<16x128xf32>
    %360 = vector.broadcast %358 : vector<1x128xf32> to vector<16x128xf32>
    %361 = arith.mulf %359, %360 : vector<16x128xf32>
    %362 = arith.addf %356, %361 : vector<16x128xf32>
    %363 = vector.broadcast %23 : vector<1x128xf32> to vector<16x128xf32>
    %364 = arith.addf %362, %363 : vector<16x128xf32>
    %cst_94 = arith.constant 0.000000e+00 : f32
    %365 = vector.broadcast %cst_94 : f32 to vector<16x128xf32>
    %366 = arith.cmpf oge, %364, %365 : vector<16x128xf32>
    %cst_95 = arith.constant 2.000000e-01 : f32
    %367 = vector.broadcast %cst_95 : f32 to vector<16x128xf32>
    %368 = arith.mulf %367, %364 : vector<16x128xf32>
    %369 = arith.select %366, %364, %368 : vector<16x128xi1>, vector<16x128xf32>
    %c11_96 = arith.constant 11 : index
    %c0_97 = arith.constant 0 : index
    %c0_98 = arith.constant 0 : index
    %370 = vector.load %arg32[%c11_96, %c0_97, %c0_98] : memref<20x16x128xf32, #tpu.memory_space<vmem>>, vector<1x16x128xf32>
    %371 = vector.shape_cast %370 : vector<1x16x128xf32> to vector<16x128xf32>
    %372 = vector.shape_cast %369 : vector<16x128xf32> to vector<1x16x128xf32>
    tpu.vector_store %arg32[%c11_96, %c0_97, %c0_98], %372 {strides = array<i32>} : memref<20x16x128xf32, #tpu.memory_space<vmem>>, vector<1x16x128xf32>,
    %cst_99 = arith.constant dense<0.000000e+00> : vector<128xf32>
    %373 = vector.multi_reduction <add>, %369, %cst_99 [0] : vector<16x128xf32> to vector<128xf32>
    %374 = vector.shape_cast %373 : vector<128xf32> to vector<1x128xf32>
    %375 = arith.addf %339, %374 : vector<1x128xf32>
    %376 = arith.mulf %369, %369 : vector<16x128xf32>
    %cst_100 = arith.constant dense<0.000000e+00> : vector<128xf32>
    %377 = vector.multi_reduction <add>, %376, %cst_100 [0] : vector<16x128xf32> to vector<128xf32>
    %378 = vector.shape_cast %377 : vector<128xf32> to vector<1x128xf32>
    %379 = arith.addf %343, %378 : vector<1x128xf32>
    %cst_101 = arith.constant 0.000000e+00 : f32
    %380 = vector.broadcast %cst_101 : f32 to vector<16x128xf32>
    %381 = vector.extract_strided_slice %17 {offsets = [0, 9], sizes = [16, 1], strides = [1, 1]} : vector<16x16xf32> to vector<16x1xf32>
    %382 = vector.extract_strided_slice %22 {offsets = [0, 0], sizes = [1, 128], strides = [1, 1]} : vector<3x128xf32> to vector<1x128xf32>
    %383 = vector.broadcast %381 : vector<16x1xf32> to vector<16x128xf32>
    %384 = vector.broadcast %382 : vector<1x128xf32> to vector<16x128xf32>
    %385 = arith.mulf %383, %384 : vector<16x128xf32>
    %386 = arith.addf %380, %385 : vector<16x128xf32>
    %387 = vector.extract_strided_slice %17 {offsets = [0, 10], sizes = [16, 1], strides = [1, 1]} : vector<16x16xf32> to vector<16x1xf32>
    %388 = vector.extract_strided_slice %22 {offsets = [1, 0], sizes = [1, 128], strides = [1, 1]} : vector<3x128xf32> to vector<1x128xf32>
    %389 = vector.broadcast %387 : vector<16x1xf32> to vector<16x128xf32>
    %390 = vector.broadcast %388 : vector<1x128xf32> to vector<16x128xf32>
    %391 = arith.mulf %389, %390 : vector<16x128xf32>
    %392 = arith.addf %386, %391 : vector<16x128xf32>
    %393 = vector.extract_strided_slice %17 {offsets = [0, 11], sizes = [16, 1], strides = [1, 1]} : vector<16x16xf32> to vector<16x1xf32>
    %394 = vector.extract_strided_slice %22 {offsets = [2, 0], sizes = [1, 128], strides = [1, 1]} : vector<3x128xf32> to vector<1x128xf32>
    %395 = vector.broadcast %393 : vector<16x1xf32> to vector<16x128xf32>
    %396 = vector.broadcast %394 : vector<1x128xf32> to vector<16x128xf32>
    %397 = arith.mulf %395, %396 : vector<16x128xf32>
    %398 = arith.addf %392, %397 : vector<16x128xf32>
    %399 = vector.broadcast %23 : vector<1x128xf32> to vector<16x128xf32>
    %400 = arith.addf %398, %399 : vector<16x128xf32>
    %cst_102 = arith.constant 0.000000e+00 : f32
    %401 = vector.broadcast %cst_102 : f32 to vector<16x128xf32>
    %402 = arith.cmpf oge, %400, %401 : vector<16x128xf32>
    %cst_103 = arith.constant 2.000000e-01 : f32
    %403 = vector.broadcast %cst_103 : f32 to vector<16x128xf32>
    %404 = arith.mulf %403, %400 : vector<16x128xf32>
    %405 = arith.select %402, %400, %404 : vector<16x128xi1>, vector<16x128xf32>
    %c12 = arith.constant 12 : index
    %c0_104 = arith.constant 0 : index
    %c0_105 = arith.constant 0 : index
    %406 = vector.load %arg32[%c12, %c0_104, %c0_105] : memref<20x16x128xf32, #tpu.memory_space<vmem>>, vector<1x16x128xf32>
    %407 = vector.shape_cast %406 : vector<1x16x128xf32> to vector<16x128xf32>
    %408 = vector.shape_cast %405 : vector<16x128xf32> to vector<1x16x128xf32>
    tpu.vector_store %arg32[%c12, %c0_104, %c0_105], %408 {strides = array<i32>} : memref<20x16x128xf32, #tpu.memory_space<vmem>>, vector<1x16x128xf32>,
    %cst_106 = arith.constant dense<0.000000e+00> : vector<128xf32>
    %409 = vector.multi_reduction <add>, %405, %cst_106 [0] : vector<16x128xf32> to vector<128xf32>
    %410 = vector.shape_cast %409 : vector<128xf32> to vector<1x128xf32>
    %411 = arith.addf %375, %410 : vector<1x128xf32>
    %412 = arith.mulf %405, %405 : vector<16x128xf32>
    %cst_107 = arith.constant dense<0.000000e+00> : vector<128xf32>
    %413 = vector.multi_reduction <add>, %412, %cst_107 [0] : vector<16x128xf32> to vector<128xf32>
    %414 = vector.shape_cast %413 : vector<128xf32> to vector<1x128xf32>
    %415 = arith.addf %379, %414 : vector<1x128xf32>
    %cst_108 = arith.constant 0.000000e+00 : f32
    %416 = vector.broadcast %cst_108 : f32 to vector<16x128xf32>
    %417 = vector.extract_strided_slice %17 {offsets = [0, 10], sizes = [16, 1], strides = [1, 1]} : vector<16x16xf32> to vector<16x1xf32>
    %418 = vector.extract_strided_slice %22 {offsets = [0, 0], sizes = [1, 128], strides = [1, 1]} : vector<3x128xf32> to vector<1x128xf32>
    %419 = vector.broadcast %417 : vector<16x1xf32> to vector<16x128xf32>
    %420 = vector.broadcast %418 : vector<1x128xf32> to vector<16x128xf32>
    %421 = arith.mulf %419, %420 : vector<16x128xf32>
    %422 = arith.addf %416, %421 : vector<16x128xf32>
    %423 = vector.extract_strided_slice %17 {offsets = [0, 11], sizes = [16, 1], strides = [1, 1]} : vector<16x16xf32> to vector<16x1xf32>
    %424 = vector.extract_strided_slice %22 {offsets = [1, 0], sizes = [1, 128], strides = [1, 1]} : vector<3x128xf32> to vector<1x128xf32>
    %425 = vector.broadcast %423 : vector<16x1xf32> to vector<16x128xf32>
    %426 = vector.broadcast %424 : vector<1x128xf32> to vector<16x128xf32>
    %427 = arith.mulf %425, %426 : vector<16x128xf32>
    %428 = arith.addf %422, %427 : vector<16x128xf32>
    %429 = vector.extract_strided_slice %17 {offsets = [0, 12], sizes = [16, 1], strides = [1, 1]} : vector<16x16xf32> to vector<16x1xf32>
    %430 = vector.extract_strided_slice %22 {offsets = [2, 0], sizes = [1, 128], strides = [1, 1]} : vector<3x128xf32> to vector<1x128xf32>
    %431 = vector.broadcast %429 : vector<16x1xf32> to vector<16x128xf32>
    %432 = vector.broadcast %430 : vector<1x128xf32> to vector<16x128xf32>
    %433 = arith.mulf %431, %432 : vector<16x128xf32>
    %434 = arith.addf %428, %433 : vector<16x128xf32>
    %435 = vector.broadcast %23 : vector<1x128xf32> to vector<16x128xf32>
    %436 = arith.addf %434, %435 : vector<16x128xf32>
    %cst_109 = arith.constant 0.000000e+00 : f32
    %437 = vector.broadcast %cst_109 : f32 to vector<16x128xf32>
    %438 = arith.cmpf oge, %436, %437 : vector<16x128xf32>
    %cst_110 = arith.constant 2.000000e-01 : f32
    %439 = vector.broadcast %cst_110 : f32 to vector<16x128xf32>
    %440 = arith.mulf %439, %436 : vector<16x128xf32>
    %441 = arith.select %438, %436, %440 : vector<16x128xi1>, vector<16x128xf32>
    %c13 = arith.constant 13 : index
    %c0_111 = arith.constant 0 : index
    %c0_112 = arith.constant 0 : index
    %442 = vector.load %arg32[%c13, %c0_111, %c0_112] : memref<20x16x128xf32, #tpu.memory_space<vmem>>, vector<1x16x128xf32>
    %443 = vector.shape_cast %442 : vector<1x16x128xf32> to vector<16x128xf32>
    %444 = vector.shape_cast %441 : vector<16x128xf32> to vector<1x16x128xf32>
    tpu.vector_store %arg32[%c13, %c0_111, %c0_112], %444 {strides = array<i32>} : memref<20x16x128xf32, #tpu.memory_space<vmem>>, vector<1x16x128xf32>,
    %cst_113 = arith.constant dense<0.000000e+00> : vector<128xf32>
    %445 = vector.multi_reduction <add>, %441, %cst_113 [0] : vector<16x128xf32> to vector<128xf32>
    %446 = vector.shape_cast %445 : vector<128xf32> to vector<1x128xf32>
    %447 = arith.addf %411, %446 : vector<1x128xf32>
    %448 = arith.mulf %441, %441 : vector<16x128xf32>
    %cst_114 = arith.constant dense<0.000000e+00> : vector<128xf32>
    %449 = vector.multi_reduction <add>, %448, %cst_114 [0] : vector<16x128xf32> to vector<128xf32>
    %450 = vector.shape_cast %449 : vector<128xf32> to vector<1x128xf32>
    %451 = arith.addf %415, %450 : vector<1x128xf32>
    %cst_115 = arith.constant 0.000000e+00 : f32
    %452 = vector.broadcast %cst_115 : f32 to vector<16x128xf32>
    %453 = vector.extract_strided_slice %17 {offsets = [0, 11], sizes = [16, 1], strides = [1, 1]} : vector<16x16xf32> to vector<16x1xf32>
    %454 = vector.extract_strided_slice %22 {offsets = [0, 0], sizes = [1, 128], strides = [1, 1]} : vector<3x128xf32> to vector<1x128xf32>
    %455 = vector.broadcast %453 : vector<16x1xf32> to vector<16x128xf32>
    %456 = vector.broadcast %454 : vector<1x128xf32> to vector<16x128xf32>
    %457 = arith.mulf %455, %456 : vector<16x128xf32>
    %458 = arith.addf %452, %457 : vector<16x128xf32>
    %459 = vector.extract_strided_slice %17 {offsets = [0, 12], sizes = [16, 1], strides = [1, 1]} : vector<16x16xf32> to vector<16x1xf32>
    %460 = vector.extract_strided_slice %22 {offsets = [1, 0], sizes = [1, 128], strides = [1, 1]} : vector<3x128xf32> to vector<1x128xf32>
    %461 = vector.broadcast %459 : vector<16x1xf32> to vector<16x128xf32>
    %462 = vector.broadcast %460 : vector<1x128xf32> to vector<16x128xf32>
    %463 = arith.mulf %461, %462 : vector<16x128xf32>
    %464 = arith.addf %458, %463 : vector<16x128xf32>
    %465 = vector.extract_strided_slice %17 {offsets = [0, 13], sizes = [16, 1], strides = [1, 1]} : vector<16x16xf32> to vector<16x1xf32>
    %466 = vector.extract_strided_slice %22 {offsets = [2, 0], sizes = [1, 128], strides = [1, 1]} : vector<3x128xf32> to vector<1x128xf32>
    %467 = vector.broadcast %465 : vector<16x1xf32> to vector<16x128xf32>
    %468 = vector.broadcast %466 : vector<1x128xf32> to vector<16x128xf32>
    %469 = arith.mulf %467, %468 : vector<16x128xf32>
    %470 = arith.addf %464, %469 : vector<16x128xf32>
    %471 = vector.broadcast %23 : vector<1x128xf32> to vector<16x128xf32>
    %472 = arith.addf %470, %471 : vector<16x128xf32>
    %cst_116 = arith.constant 0.000000e+00 : f32
    %473 = vector.broadcast %cst_116 : f32 to vector<16x128xf32>
    %474 = arith.cmpf oge, %472, %473 : vector<16x128xf32>
    %cst_117 = arith.constant 2.000000e-01 : f32
    %475 = vector.broadcast %cst_117 : f32 to vector<16x128xf32>
    %476 = arith.mulf %475, %472 : vector<16x128xf32>
    %477 = arith.select %474, %472, %476 : vector<16x128xi1>, vector<16x128xf32>
    %c14 = arith.constant 14 : index
    %c0_118 = arith.constant 0 : index
    %c0_119 = arith.constant 0 : index
    %478 = vector.load %arg32[%c14, %c0_118, %c0_119] : memref<20x16x128xf32, #tpu.memory_space<vmem>>, vector<1x16x128xf32>
    %479 = vector.shape_cast %478 : vector<1x16x128xf32> to vector<16x128xf32>
    %480 = vector.shape_cast %477 : vector<16x128xf32> to vector<1x16x128xf32>
    tpu.vector_store %arg32[%c14, %c0_118, %c0_119], %480 {strides = array<i32>} : memref<20x16x128xf32, #tpu.memory_space<vmem>>, vector<1x16x128xf32>,
    %cst_120 = arith.constant dense<0.000000e+00> : vector<128xf32>
    %481 = vector.multi_reduction <add>, %477, %cst_120 [0] : vector<16x128xf32> to vector<128xf32>
    %482 = vector.shape_cast %481 : vector<128xf32> to vector<1x128xf32>
    %483 = arith.addf %447, %482 : vector<1x128xf32>
    %484 = arith.mulf %477, %477 : vector<16x128xf32>
    %cst_121 = arith.constant dense<0.000000e+00> : vector<128xf32>
    %485 = vector.multi_reduction <add>, %484, %cst_121 [0] : vector<16x128xf32> to vector<128xf32>
    %486 = vector.shape_cast %485 : vector<128xf32> to vector<1x128xf32>
    %487 = arith.addf %451, %486 : vector<1x128xf32>
    %cst_122 = arith.constant 0.000000e+00 : f32
    %488 = vector.broadcast %cst_122 : f32 to vector<16x128xf32>
    %489 = vector.extract_strided_slice %17 {offsets = [0, 12], sizes = [16, 1], strides = [1, 1]} : vector<16x16xf32> to vector<16x1xf32>
    %490 = vector.extract_strided_slice %22 {offsets = [0, 0], sizes = [1, 128], strides = [1, 1]} : vector<3x128xf32> to vector<1x128xf32>
    %491 = vector.broadcast %489 : vector<16x1xf32> to vector<16x128xf32>
    %492 = vector.broadcast %490 : vector<1x128xf32> to vector<16x128xf32>
    %493 = arith.mulf %491, %492 : vector<16x128xf32>
    %494 = arith.addf %488, %493 : vector<16x128xf32>
    %495 = vector.extract_strided_slice %17 {offsets = [0, 13], sizes = [16, 1], strides = [1, 1]} : vector<16x16xf32> to vector<16x1xf32>
    %496 = vector.extract_strided_slice %22 {offsets = [1, 0], sizes = [1, 128], strides = [1, 1]} : vector<3x128xf32> to vector<1x128xf32>
    %497 = vector.broadcast %495 : vector<16x1xf32> to vector<16x128xf32>
    %498 = vector.broadcast %496 : vector<1x128xf32> to vector<16x128xf32>
    %499 = arith.mulf %497, %498 : vector<16x128xf32>
    %500 = arith.addf %494, %499 : vector<16x128xf32>
    %501 = vector.extract_strided_slice %17 {offsets = [0, 14], sizes = [16, 1], strides = [1, 1]} : vector<16x16xf32> to vector<16x1xf32>
    %502 = vector.extract_strided_slice %22 {offsets = [2, 0], sizes = [1, 128], strides = [1, 1]} : vector<3x128xf32> to vector<1x128xf32>
    %503 = vector.broadcast %501 : vector<16x1xf32> to vector<16x128xf32>
    %504 = vector.broadcast %502 : vector<1x128xf32> to vector<16x128xf32>
    %505 = arith.mulf %503, %504 : vector<16x128xf32>
    %506 = arith.addf %500, %505 : vector<16x128xf32>
    %507 = vector.broadcast %23 : vector<1x128xf32> to vector<16x128xf32>
    %508 = arith.addf %506, %507 : vector<16x128xf32>
    %cst_123 = arith.constant 0.000000e+00 : f32
    %509 = vector.broadcast %cst_123 : f32 to vector<16x128xf32>
    %510 = arith.cmpf oge, %508, %509 : vector<16x128xf32>
    %cst_124 = arith.constant 2.000000e-01 : f32
    %511 = vector.broadcast %cst_124 : f32 to vector<16x128xf32>
    %512 = arith.mulf %511, %508 : vector<16x128xf32>
    %513 = arith.select %510, %508, %512 : vector<16x128xi1>, vector<16x128xf32>
    %c15 = arith.constant 15 : index
    %c0_125 = arith.constant 0 : index
    %c0_126 = arith.constant 0 : index
    %514 = vector.load %arg32[%c15, %c0_125, %c0_126] : memref<20x16x128xf32, #tpu.memory_space<vmem>>, vector<1x16x128xf32>
    %515 = vector.shape_cast %514 : vector<1x16x128xf32> to vector<16x128xf32>
    %516 = vector.shape_cast %513 : vector<16x128xf32> to vector<1x16x128xf32>
    tpu.vector_store %arg32[%c15, %c0_125, %c0_126], %516 {strides = array<i32>} : memref<20x16x128xf32, #tpu.memory_space<vmem>>, vector<1x16x128xf32>,
    %cst_127 = arith.constant dense<0.000000e+00> : vector<128xf32>
    %517 = vector.multi_reduction <add>, %513, %cst_127 [0] : vector<16x128xf32> to vector<128xf32>
    %518 = vector.shape_cast %517 : vector<128xf32> to vector<1x128xf32>
    %519 = arith.addf %483, %518 : vector<1x128xf32>
    %520 = arith.mulf %513, %513 : vector<16x128xf32>
    %cst_128 = arith.constant dense<0.000000e+00> : vector<128xf32>
    %521 = vector.multi_reduction <add>, %520, %cst_128 [0] : vector<16x128xf32> to vector<128xf32>
    %522 = vector.shape_cast %521 : vector<128xf32> to vector<1x128xf32>
    %523 = arith.addf %487, %522 : vector<1x128xf32>
    %cst_129 = arith.constant 0.000000e+00 : f32
    %524 = vector.broadcast %cst_129 : f32 to vector<16x128xf32>
    %525 = vector.extract_strided_slice %17 {offsets = [0, 13], sizes = [16, 1], strides = [1, 1]} : vector<16x16xf32> to vector<16x1xf32>
    %526 = vector.extract_strided_slice %22 {offsets = [0, 0], sizes = [1, 128], strides = [1, 1]} : vector<3x128xf32> to vector<1x128xf32>
    %527 = vector.broadcast %525 : vector<16x1xf32> to vector<16x128xf32>
    %528 = vector.broadcast %526 : vector<1x128xf32> to vector<16x128xf32>
    %529 = arith.mulf %527, %528 : vector<16x128xf32>
    %530 = arith.addf %524, %529 : vector<16x128xf32>
    %531 = vector.extract_strided_slice %17 {offsets = [0, 14], sizes = [16, 1], strides = [1, 1]} : vector<16x16xf32> to vector<16x1xf32>
    %532 = vector.extract_strided_slice %22 {offsets = [1, 0], sizes = [1, 128], strides = [1, 1]} : vector<3x128xf32> to vector<1x128xf32>
    %533 = vector.broadcast %531 : vector<16x1xf32> to vector<16x128xf32>
    %534 = vector.broadcast %532 : vector<1x128xf32> to vector<16x128xf32>
    %535 = arith.mulf %533, %534 : vector<16x128xf32>
    %536 = arith.addf %530, %535 : vector<16x128xf32>
    %537 = vector.extract_strided_slice %17 {offsets = [0, 15], sizes = [16, 1], strides = [1, 1]} : vector<16x16xf32> to vector<16x1xf32>
    %538 = vector.extract_strided_slice %22 {offsets = [2, 0], sizes = [1, 128], strides = [1, 1]} : vector<3x128xf32> to vector<1x128xf32>
    %539 = vector.broadcast %537 : vector<16x1xf32> to vector<16x128xf32>
    %540 = vector.broadcast %538 : vector<1x128xf32> to vector<16x128xf32>
    %541 = arith.mulf %539, %540 : vector<16x128xf32>
    %542 = arith.addf %536, %541 : vector<16x128xf32>
    %543 = vector.broadcast %23 : vector<1x128xf32> to vector<16x128xf32>
    %544 = arith.addf %542, %543 : vector<16x128xf32>
    %cst_130 = arith.constant 0.000000e+00 : f32
    %545 = vector.broadcast %cst_130 : f32 to vector<16x128xf32>
    %546 = arith.cmpf oge, %544, %545 : vector<16x128xf32>
    %cst_131 = arith.constant 2.000000e-01 : f32
    %547 = vector.broadcast %cst_131 : f32 to vector<16x128xf32>
    %548 = arith.mulf %547, %544 : vector<16x128xf32>
    %549 = arith.select %546, %544, %548 : vector<16x128xi1>, vector<16x128xf32>
    %c16 = arith.constant 16 : index
    %c0_132 = arith.constant 0 : index
    %c0_133 = arith.constant 0 : index
    %550 = vector.load %arg32[%c16, %c0_132, %c0_133] : memref<20x16x128xf32, #tpu.memory_space<vmem>>, vector<1x16x128xf32>
    %551 = vector.shape_cast %550 : vector<1x16x128xf32> to vector<16x128xf32>
    %552 = vector.shape_cast %549 : vector<16x128xf32> to vector<1x16x128xf32>
    tpu.vector_store %arg32[%c16, %c0_132, %c0_133], %552 {strides = array<i32>} : memref<20x16x128xf32, #tpu.memory_space<vmem>>, vector<1x16x128xf32>,
    %cst_134 = arith.constant dense<0.000000e+00> : vector<128xf32>
    %553 = vector.multi_reduction <add>, %549, %cst_134 [0] : vector<16x128xf32> to vector<128xf32>
    %554 = vector.shape_cast %553 : vector<128xf32> to vector<1x128xf32>
    %555 = arith.addf %519, %554 : vector<1x128xf32>
    %556 = arith.mulf %549, %549 : vector<16x128xf32>
    %cst_135 = arith.constant dense<0.000000e+00> : vector<128xf32>
    %557 = vector.multi_reduction <add>, %556, %cst_135 [0] : vector<16x128xf32> to vector<128xf32>
    %558 = vector.shape_cast %557 : vector<128xf32> to vector<1x128xf32>
    %559 = arith.addf %523, %558 : vector<1x128xf32>
    %cst_136 = arith.constant 0.000000e+00 : f32
    %560 = vector.broadcast %cst_136 : f32 to vector<16x128xf32>
    %561 = vector.extract_strided_slice %17 {offsets = [0, 14], sizes = [16, 1], strides = [1, 1]} : vector<16x16xf32> to vector<16x1xf32>
    %562 = vector.extract_strided_slice %22 {offsets = [0, 0], sizes = [1, 128], strides = [1, 1]} : vector<3x128xf32> to vector<1x128xf32>
    %563 = vector.broadcast %561 : vector<16x1xf32> to vector<16x128xf32>
    %564 = vector.broadcast %562 : vector<1x128xf32> to vector<16x128xf32>
    %565 = arith.mulf %563, %564 : vector<16x128xf32>
    %566 = arith.addf %560, %565 : vector<16x128xf32>
    %567 = vector.extract_strided_slice %17 {offsets = [0, 15], sizes = [16, 1], strides = [1, 1]} : vector<16x16xf32> to vector<16x1xf32>
    %568 = vector.extract_strided_slice %22 {offsets = [1, 0], sizes = [1, 128], strides = [1, 1]} : vector<3x128xf32> to vector<1x128xf32>
    %569 = vector.broadcast %567 : vector<16x1xf32> to vector<16x128xf32>
    %570 = vector.broadcast %568 : vector<1x128xf32> to vector<16x128xf32>
    %571 = arith.mulf %569, %570 : vector<16x128xf32>
    %572 = arith.addf %566, %571 : vector<16x128xf32>
    %573 = vector.broadcast %23 : vector<1x128xf32> to vector<16x128xf32>
    %574 = arith.addf %572, %573 : vector<16x128xf32>
    %cst_137 = arith.constant 0.000000e+00 : f32
    %575 = vector.broadcast %cst_137 : f32 to vector<16x128xf32>
    %576 = arith.cmpf oge, %574, %575 : vector<16x128xf32>
    %cst_138 = arith.constant 2.000000e-01 : f32
    %577 = vector.broadcast %cst_138 : f32 to vector<16x128xf32>
    %578 = arith.mulf %577, %574 : vector<16x128xf32>
    %579 = arith.select %576, %574, %578 : vector<16x128xi1>, vector<16x128xf32>
    %c17 = arith.constant 17 : index
    %c0_139 = arith.constant 0 : index
    %c0_140 = arith.constant 0 : index
    %580 = vector.load %arg32[%c17, %c0_139, %c0_140] : memref<20x16x128xf32, #tpu.memory_space<vmem>>, vector<1x16x128xf32>
    %581 = vector.shape_cast %580 : vector<1x16x128xf32> to vector<16x128xf32>
    %582 = vector.shape_cast %579 : vector<16x128xf32> to vector<1x16x128xf32>
    tpu.vector_store %arg32[%c17, %c0_139, %c0_140], %582 {strides = array<i32>} : memref<20x16x128xf32, #tpu.memory_space<vmem>>, vector<1x16x128xf32>,
    %cst_141 = arith.constant dense<0.000000e+00> : vector<128xf32>
    %583 = vector.multi_reduction <add>, %579, %cst_141 [0] : vector<16x128xf32> to vector<128xf32>
    %584 = vector.shape_cast %583 : vector<128xf32> to vector<1x128xf32>
    %585 = arith.addf %555, %584 : vector<1x128xf32>
    %586 = arith.mulf %579, %579 : vector<16x128xf32>
    %cst_142 = arith.constant dense<0.000000e+00> : vector<128xf32>
    %587 = vector.multi_reduction <add>, %586, %cst_142 [0] : vector<16x128xf32> to vector<128xf32>
    %588 = vector.shape_cast %587 : vector<128xf32> to vector<1x128xf32>
    %589 = arith.addf %559, %588 : vector<1x128xf32>
    %cst_143 = arith.constant 3.906250e-03 : f32
    %590 = vector.broadcast %cst_143 : f32 to vector<1x128xf32>
    %591 = arith.mulf %585, %590 : vector<1x128xf32>
    %cst_144 = arith.constant 3.906250e-03 : f32
    %592 = vector.broadcast %cst_144 : f32 to vector<1x128xf32>
    %593 = arith.mulf %589, %592 : vector<1x128xf32>
    %594 = arith.mulf %591, %591 : vector<1x128xf32>
    %595 = arith.subf %593, %594 : vector<1x128xf32>
    %cst_145 = arith.constant 0.000000e+00 : f32
    %596 = vector.broadcast %cst_145 : f32 to vector<1x128xf32>
    %597 = arith.maximumf %595, %596 : vector<1x128xf32>
    %cst_146 = arith.constant 9.99999974E-6 : f32
    %598 = vector.broadcast %cst_146 : f32 to vector<1x128xf32>
    %599 = arith.addf %597, %598 : vector<1x128xf32>
    %600 = math.rsqrt %599 : vector<1x128xf32>
    %c0_147 = arith.constant 0 : index
    %c0_148 = arith.constant 0 : index
    %601 = vector.load %arg8[%c0_147, %c0_148] : memref<1x128xf32, #tpu.memory_space<vmem>>, vector<1x128xf32>
    %602 = arith.mulf %600, %601 : vector<1x128xf32>
    %c0_149 = arith.constant 0 : index
    %c0_150 = arith.constant 0 : index
    %603 = vector.load %arg9[%c0_149, %c0_150] : memref<1x128xf32, #tpu.memory_space<vmem>>, vector<1x128xf32>
    %604 = arith.mulf %591, %602 : vector<1x128xf32>
    %605 = arith.subf %603, %604 : vector<1x128xf32>
    %c0_i32 = arith.constant 0 : i32
    %c16_i32 = arith.constant 16 : i32
    %606 = arith.addi %c0_i32, %c16_i32 : i32
    %c1_i32 = arith.constant 1 : i32
    scf.for %arg34 = %c0_i32 to %606 step %c1_i32  : i32 {
      %c2_i32 = arith.constant 2 : i32
      %815 = arith.addi %arg34, %c2_i32 : i32
      %816 = arith.index_cast %815 : i32 to index
      %c0_354 = arith.constant 0 : index
      %c0_355 = arith.constant 0 : index
      %817 = vector.load %arg32[%816, %c0_354, %c0_355] : memref<20x16x128xf32, #tpu.memory_space<vmem>>, vector<1x16x128xf32>
      %818 = vector.shape_cast %817 : vector<1x16x128xf32> to vector<16x128xf32>
      %819 = vector.broadcast %602 : vector<1x128xf32> to vector<16x128xf32>
      %820 = arith.mulf %818, %819 : vector<16x128xf32>
      %821 = vector.broadcast %605 : vector<1x128xf32> to vector<16x128xf32>
      %822 = arith.addf %820, %821 : vector<16x128xf32>
      %c2_i32_356 = arith.constant 2 : i32
      %823 = arith.addi %arg34, %c2_i32_356 : i32
      %824 = arith.index_cast %823 : i32 to index
      %c0_357 = arith.constant 0 : index
      %c0_358 = arith.constant 0 : index
      %825 = vector.load %arg32[%824, %c0_357, %c0_358] : memref<20x16x128xf32, #tpu.memory_space<vmem>>, vector<1x16x128xf32>
      %826 = vector.shape_cast %825 : vector<1x16x128xf32> to vector<16x128xf32>
      %827 = vector.shape_cast %822 : vector<16x128xf32> to vector<1x16x128xf32>
      tpu.vector_store %arg32[%824, %c0_357, %c0_358], %827 {strides = array<i32>} : memref<20x16x128xf32, #tpu.memory_space<vmem>>, vector<1x16x128xf32>,
    }
    %c16_i32_151 = arith.constant 16 : i32
    %c0_152 = arith.constant 0 : index
    %c0_153 = arith.constant 0 : index
    %607 = vector.load %arg11[%c0_152, %c0_153] : memref<1x128xf32, #tpu.memory_space<vmem>>, vector<1x128xf32>
    %cst_154 = arith.constant 0.000000e+00 : f32
    %608 = vector.broadcast %cst_154 : f32 to vector<1x128xf32>
    %cst_155 = arith.constant 0.000000e+00 : f32
    %609 = vector.broadcast %cst_155 : f32 to vector<1x128xf32>
    %c0_i32_156 = arith.constant 0 : i32
    %c16_i32_157 = arith.constant 16 : i32
    %610 = arith.addi %c0_i32_156, %c16_i32_157 : i32
    %c1_i32_158 = arith.constant 1 : i32
    %611:2 = scf.for %arg34 = %c0_i32_156 to %610 step %c1_i32_158 iter_args(%arg35 = %608, %arg36 = %609) -> (vector<1x128xf32>, vector<1x128xf32>)  : i32 {
      %cst_354 = arith.constant 0.000000e+00 : f32
      %815 = vector.broadcast %cst_354 : f32 to vector<16x128xf32>
      %c0_i32_355 = arith.constant 0 : i32
      %816 = arith.addi %arg34, %c0_i32_355 : i32
      %817 = arith.index_cast %816 : i32 to index
      %c0_356 = arith.constant 0 : index
      %c0_357 = arith.constant 0 : index
      %818 = vector.load %arg32[%817, %c0_356, %c0_357] : memref<20x16x128xf32, #tpu.memory_space<vmem>>, vector<1x16x128xf32>
      %819 = vector.shape_cast %818 : vector<1x16x128xf32> to vector<16x128xf32>
      %820 = arith.truncf %819 : vector<16x128xf32> to vector<16x128xbf16>
      %c0_358 = arith.constant 0 : index
      %c0_359 = arith.constant 0 : index
      %c0_360 = arith.constant 0 : index
      %821 = vector.load %arg10[%c0_358, %c0_359, %c0_360] : memref<5x128x128xbf16, #tpu.memory_space<vmem>>, vector<1x128x128xbf16>
      %822 = vector.shape_cast %821 : vector<1x128x128xbf16> to vector<128x128xbf16>
      %cst_361 = arith.constant dense<0.000000e+00> : vector<16x128xf32>
      %823 = tpu.matmul %820, %822, %cst_361 {dimension_numbers = #tpu.dot_dimension_numbers<[1], [0], [0], [1], [0, 0, 1, 1], [], []>} : vector<16x128xbf16>, vector<128x128xbf16>, vector<16x128xf32> -> vector<16x128xf32>
      %824 = arith.addf %815, %823 : vector<16x128xf32>
      %c1_i32_362 = arith.constant 1 : i32
      %825 = arith.addi %arg34, %c1_i32_362 : i32
      %826 = arith.index_cast %825 : i32 to index
      %c0_363 = arith.constant 0 : index
      %c0_364 = arith.constant 0 : index
      %827 = vector.load %arg32[%826, %c0_363, %c0_364] : memref<20x16x128xf32, #tpu.memory_space<vmem>>, vector<1x16x128xf32>
      %828 = vector.shape_cast %827 : vector<1x16x128xf32> to vector<16x128xf32>
      %829 = arith.truncf %828 : vector<16x128xf32> to vector<16x128xbf16>
      %c1_365 = arith.constant 1 : index
      %c0_366 = arith.constant 0 : index
      %c0_367 = arith.constant 0 : index
      %830 = vector.load %arg10[%c1_365, %c0_366, %c0_367] : memref<5x128x128xbf16, #tpu.memory_space<vmem>>, vector<1x128x128xbf16>
      %831 = vector.shape_cast %830 : vector<1x128x128xbf16> to vector<128x128xbf16>
      %cst_368 = arith.constant dense<0.000000e+00> : vector<16x128xf32>
      %832 = tpu.matmul %829, %831, %cst_368 {dimension_numbers = #tpu.dot_dimension_numbers<[1], [0], [0], [1], [0, 0, 1, 1], [], []>} : vector<16x128xbf16>, vector<128x128xbf16>, vector<16x128xf32> -> vector<16x128xf32>
      %833 = arith.addf %824, %832 : vector<16x128xf32>
      %c2_i32 = arith.constant 2 : i32
      %834 = arith.addi %arg34, %c2_i32 : i32
      %835 = arith.index_cast %834 : i32 to index
      %c0_369 = arith.constant 0 : index
      %c0_370 = arith.constant 0 : index
      %836 = vector.load %arg32[%835, %c0_369, %c0_370] : memref<20x16x128xf32, #tpu.memory_space<vmem>>, vector<1x16x128xf32>
      %837 = vector.shape_cast %836 : vector<1x16x128xf32> to vector<16x128xf32>
      %838 = arith.truncf %837 : vector<16x128xf32> to vector<16x128xbf16>
      %c2_371 = arith.constant 2 : index
      %c0_372 = arith.constant 0 : index
      %c0_373 = arith.constant 0 : index
      %839 = vector.load %arg10[%c2_371, %c0_372, %c0_373] : memref<5x128x128xbf16, #tpu.memory_space<vmem>>, vector<1x128x128xbf16>
      %840 = vector.shape_cast %839 : vector<1x128x128xbf16> to vector<128x128xbf16>
      %cst_374 = arith.constant dense<0.000000e+00> : vector<16x128xf32>
      %841 = tpu.matmul %838, %840, %cst_374 {dimension_numbers = #tpu.dot_dimension_numbers<[1], [0], [0], [1], [0, 0, 1, 1], [], []>} : vector<16x128xbf16>, vector<128x128xbf16>, vector<16x128xf32> -> vector<16x128xf32>
      %842 = arith.addf %833, %841 : vector<16x128xf32>
      %c3_i32 = arith.constant 3 : i32
      %843 = arith.addi %arg34, %c3_i32 : i32
      %844 = arith.index_cast %843 : i32 to index
      %c0_375 = arith.constant 0 : index
      %c0_376 = arith.constant 0 : index
      %845 = vector.load %arg32[%844, %c0_375, %c0_376] : memref<20x16x128xf32, #tpu.memory_space<vmem>>, vector<1x16x128xf32>
      %846 = vector.shape_cast %845 : vector<1x16x128xf32> to vector<16x128xf32>
      %847 = arith.truncf %846 : vector<16x128xf32> to vector<16x128xbf16>
      %c3_377 = arith.constant 3 : index
      %c0_378 = arith.constant 0 : index
      %c0_379 = arith.constant 0 : index
      %848 = vector.load %arg10[%c3_377, %c0_378, %c0_379] : memref<5x128x128xbf16, #tpu.memory_space<vmem>>, vector<1x128x128xbf16>
      %849 = vector.shape_cast %848 : vector<1x128x128xbf16> to vector<128x128xbf16>
      %cst_380 = arith.constant dense<0.000000e+00> : vector<16x128xf32>
      %850 = tpu.matmul %847, %849, %cst_380 {dimension_numbers = #tpu.dot_dimension_numbers<[1], [0], [0], [1], [0, 0, 1, 1], [], []>} : vector<16x128xbf16>, vector<128x128xbf16>, vector<16x128xf32> -> vector<16x128xf32>
      %851 = arith.addf %842, %850 : vector<16x128xf32>
      %c4_i32 = arith.constant 4 : i32
      %852 = arith.addi %arg34, %c4_i32 : i32
      %853 = arith.index_cast %852 : i32 to index
      %c0_381 = arith.constant 0 : index
      %c0_382 = arith.constant 0 : index
      %854 = vector.load %arg32[%853, %c0_381, %c0_382] : memref<20x16x128xf32, #tpu.memory_space<vmem>>, vector<1x16x128xf32>
      %855 = vector.shape_cast %854 : vector<1x16x128xf32> to vector<16x128xf32>
      %856 = arith.truncf %855 : vector<16x128xf32> to vector<16x128xbf16>
      %c4_383 = arith.constant 4 : index
      %c0_384 = arith.constant 0 : index
      %c0_385 = arith.constant 0 : index
      %857 = vector.load %arg10[%c4_383, %c0_384, %c0_385] : memref<5x128x128xbf16, #tpu.memory_space<vmem>>, vector<1x128x128xbf16>
      %858 = vector.shape_cast %857 : vector<1x128x128xbf16> to vector<128x128xbf16>
      %cst_386 = arith.constant dense<0.000000e+00> : vector<16x128xf32>
      %859 = tpu.matmul %856, %858, %cst_386 {dimension_numbers = #tpu.dot_dimension_numbers<[1], [0], [0], [1], [0, 0, 1, 1], [], []>} : vector<16x128xbf16>, vector<128x128xbf16>, vector<16x128xf32> -> vector<16x128xf32>
      %860 = arith.addf %851, %859 : vector<16x128xf32>
      %861 = vector.broadcast %607 : vector<1x128xf32> to vector<16x128xf32>
      %862 = arith.addf %860, %861 : vector<16x128xf32>
      %cst_387 = arith.constant 0.000000e+00 : f32
      %863 = vector.broadcast %cst_387 : f32 to vector<16x128xf32>
      %864 = arith.cmpf oge, %862, %863 : vector<16x128xf32>
      %cst_388 = arith.constant 2.000000e-01 : f32
      %865 = vector.broadcast %cst_388 : f32 to vector<16x128xf32>
      %866 = arith.mulf %865, %862 : vector<16x128xf32>
      %867 = arith.select %864, %862, %866 : vector<16x128xi1>, vector<16x128xf32>
      %c2_i32_389 = arith.constant 2 : i32
      %868 = arith.addi %arg34, %c2_i32_389 : i32
      %869 = arith.index_cast %868 : i32 to index
      %c0_390 = arith.constant 0 : index
      %c0_391 = arith.constant 0 : index
      %870 = vector.load %arg33[%869, %c0_390, %c0_391] : memref<20x16x128xf32, #tpu.memory_space<vmem>>, vector<1x16x128xf32>
      %871 = vector.shape_cast %870 : vector<1x16x128xf32> to vector<16x128xf32>
      %872 = vector.shape_cast %867 : vector<16x128xf32> to vector<1x16x128xf32>
      tpu.vector_store %arg33[%869, %c0_390, %c0_391], %872 {strides = array<i32>} : memref<20x16x128xf32, #tpu.memory_space<vmem>>, vector<1x16x128xf32>,
      %cst_392 = arith.constant dense<0.000000e+00> : vector<128xf32>
      %873 = vector.multi_reduction <add>, %867, %cst_392 [0] : vector<16x128xf32> to vector<128xf32>
      %874 = vector.shape_cast %873 : vector<128xf32> to vector<1x128xf32>
      %875 = arith.addf %arg35, %874 : vector<1x128xf32>
      %876 = arith.mulf %867, %867 : vector<16x128xf32>
      %cst_393 = arith.constant dense<0.000000e+00> : vector<128xf32>
      %877 = vector.multi_reduction <add>, %876, %cst_393 [0] : vector<16x128xf32> to vector<128xf32>
      %878 = vector.shape_cast %877 : vector<128xf32> to vector<1x128xf32>
      %879 = arith.addf %arg36, %878 : vector<1x128xf32>
      scf.yield %875, %879 : vector<1x128xf32>, vector<1x128xf32>
    }
    %c16_i32_159 = arith.constant 16 : i32
    %cst_160 = arith.constant 3.906250e-03 : f32
    %612 = vector.broadcast %cst_160 : f32 to vector<1x128xf32>
    %613 = arith.mulf %611#0, %612 : vector<1x128xf32>
    %cst_161 = arith.constant 3.906250e-03 : f32
    %614 = vector.broadcast %cst_161 : f32 to vector<1x128xf32>
    %615 = arith.mulf %611#1, %614 : vector<1x128xf32>
    %616 = arith.mulf %613, %613 : vector<1x128xf32>
    %617 = arith.subf %615, %616 : vector<1x128xf32>
    %cst_162 = arith.constant 0.000000e+00 : f32
    %618 = vector.broadcast %cst_162 : f32 to vector<1x128xf32>
    %619 = arith.maximumf %617, %618 : vector<1x128xf32>
    %cst_163 = arith.constant 9.99999974E-6 : f32
    %620 = vector.broadcast %cst_163 : f32 to vector<1x128xf32>
    %621 = arith.addf %619, %620 : vector<1x128xf32>
    %622 = math.rsqrt %621 : vector<1x128xf32>
    %c0_164 = arith.constant 0 : index
    %c0_165 = arith.constant 0 : index
    %623 = vector.load %arg12[%c0_164, %c0_165] : memref<1x128xf32, #tpu.memory_space<vmem>>, vector<1x128xf32>
    %624 = arith.mulf %622, %623 : vector<1x128xf32>
    %c0_166 = arith.constant 0 : index
    %c0_167 = arith.constant 0 : index
    %625 = vector.load %arg13[%c0_166, %c0_167] : memref<1x128xf32, #tpu.memory_space<vmem>>, vector<1x128xf32>
    %626 = arith.mulf %613, %624 : vector<1x128xf32>
    %627 = arith.subf %625, %626 : vector<1x128xf32>
    %c0_i32_168 = arith.constant 0 : i32
    %c16_i32_169 = arith.constant 16 : i32
    %628 = arith.addi %c0_i32_168, %c16_i32_169 : i32
    %c1_i32_170 = arith.constant 1 : i32
    scf.for %arg34 = %c0_i32_168 to %628 step %c1_i32_170  : i32 {
      %c2_i32 = arith.constant 2 : i32
      %815 = arith.addi %arg34, %c2_i32 : i32
      %816 = arith.index_cast %815 : i32 to index
      %c0_354 = arith.constant 0 : index
      %c0_355 = arith.constant 0 : index
      %817 = vector.load %arg33[%816, %c0_354, %c0_355] : memref<20x16x128xf32, #tpu.memory_space<vmem>>, vector<1x16x128xf32>
      %818 = vector.shape_cast %817 : vector<1x16x128xf32> to vector<16x128xf32>
      %819 = vector.broadcast %624 : vector<1x128xf32> to vector<16x128xf32>
      %820 = arith.mulf %818, %819 : vector<16x128xf32>
      %821 = vector.broadcast %627 : vector<1x128xf32> to vector<16x128xf32>
      %822 = arith.addf %820, %821 : vector<16x128xf32>
      %c2_i32_356 = arith.constant 2 : i32
      %823 = arith.addi %arg34, %c2_i32_356 : i32
      %824 = arith.index_cast %823 : i32 to index
      %c0_357 = arith.constant 0 : index
      %c0_358 = arith.constant 0 : index
      %825 = vector.load %arg33[%824, %c0_357, %c0_358] : memref<20x16x128xf32, #tpu.memory_space<vmem>>, vector<1x16x128xf32>
      %826 = vector.shape_cast %825 : vector<1x16x128xf32> to vector<16x128xf32>
      %827 = vector.shape_cast %822 : vector<16x128xf32> to vector<1x16x128xf32>
      tpu.vector_store %arg33[%824, %c0_357, %c0_358], %827 {strides = array<i32>} : memref<20x16x128xf32, #tpu.memory_space<vmem>>, vector<1x16x128xf32>,
    }
    %c16_i32_171 = arith.constant 16 : i32
    %c0_172 = arith.constant 0 : index
    %c0_173 = arith.constant 0 : index
    %629 = vector.load %arg15[%c0_172, %c0_173] : memref<1x128xf32, #tpu.memory_space<vmem>>, vector<1x128xf32>
    %cst_174 = arith.constant 0.000000e+00 : f32
    %630 = vector.broadcast %cst_174 : f32 to vector<1x128xf32>
    %cst_175 = arith.constant 0.000000e+00 : f32
    %631 = vector.broadcast %cst_175 : f32 to vector<1x128xf32>
    %c0_i32_176 = arith.constant 0 : i32
    %c16_i32_177 = arith.constant 16 : i32
    %632 = arith.addi %c0_i32_176, %c16_i32_177 : i32
    %c1_i32_178 = arith.constant 1 : i32
    %633:2 = scf.for %arg34 = %c0_i32_176 to %632 step %c1_i32_178 iter_args(%arg35 = %630, %arg36 = %631) -> (vector<1x128xf32>, vector<1x128xf32>)  : i32 {
      %cst_354 = arith.constant 0.000000e+00 : f32
      %815 = vector.broadcast %cst_354 : f32 to vector<16x128xf32>
      %c0_i32_355 = arith.constant 0 : i32
      %816 = arith.addi %arg34, %c0_i32_355 : i32
      %817 = arith.index_cast %816 : i32 to index
      %c0_356 = arith.constant 0 : index
      %c0_357 = arith.constant 0 : index
      %818 = vector.load %arg33[%817, %c0_356, %c0_357] : memref<20x16x128xf32, #tpu.memory_space<vmem>>, vector<1x16x128xf32>
      %819 = vector.shape_cast %818 : vector<1x16x128xf32> to vector<16x128xf32>
      %820 = arith.truncf %819 : vector<16x128xf32> to vector<16x128xbf16>
      %c0_358 = arith.constant 0 : index
      %c0_359 = arith.constant 0 : index
      %c0_360 = arith.constant 0 : index
      %821 = vector.load %arg14[%c0_358, %c0_359, %c0_360] : memref<5x128x128xbf16, #tpu.memory_space<vmem>>, vector<1x128x128xbf16>
      %822 = vector.shape_cast %821 : vector<1x128x128xbf16> to vector<128x128xbf16>
      %cst_361 = arith.constant dense<0.000000e+00> : vector<16x128xf32>
      %823 = tpu.matmul %820, %822, %cst_361 {dimension_numbers = #tpu.dot_dimension_numbers<[1], [0], [0], [1], [0, 0, 1, 1], [], []>} : vector<16x128xbf16>, vector<128x128xbf16>, vector<16x128xf32> -> vector<16x128xf32>
      %824 = arith.addf %815, %823 : vector<16x128xf32>
      %c1_i32_362 = arith.constant 1 : i32
      %825 = arith.addi %arg34, %c1_i32_362 : i32
      %826 = arith.index_cast %825 : i32 to index
      %c0_363 = arith.constant 0 : index
      %c0_364 = arith.constant 0 : index
      %827 = vector.load %arg33[%826, %c0_363, %c0_364] : memref<20x16x128xf32, #tpu.memory_space<vmem>>, vector<1x16x128xf32>
      %828 = vector.shape_cast %827 : vector<1x16x128xf32> to vector<16x128xf32>
      %829 = arith.truncf %828 : vector<16x128xf32> to vector<16x128xbf16>
      %c1_365 = arith.constant 1 : index
      %c0_366 = arith.constant 0 : index
      %c0_367 = arith.constant 0 : index
      %830 = vector.load %arg14[%c1_365, %c0_366, %c0_367] : memref<5x128x128xbf16, #tpu.memory_space<vmem>>, vector<1x128x128xbf16>
      %831 = vector.shape_cast %830 : vector<1x128x128xbf16> to vector<128x128xbf16>
      %cst_368 = arith.constant dense<0.000000e+00> : vector<16x128xf32>
      %832 = tpu.matmul %829, %831, %cst_368 {dimension_numbers = #tpu.dot_dimension_numbers<[1], [0], [0], [1], [0, 0, 1, 1], [], []>} : vector<16x128xbf16>, vector<128x128xbf16>, vector<16x128xf32> -> vector<16x128xf32>
      %833 = arith.addf %824, %832 : vector<16x128xf32>
      %c2_i32 = arith.constant 2 : i32
      %834 = arith.addi %arg34, %c2_i32 : i32
      %835 = arith.index_cast %834 : i32 to index
      %c0_369 = arith.constant 0 : index
      %c0_370 = arith.constant 0 : index
      %836 = vector.load %arg33[%835, %c0_369, %c0_370] : memref<20x16x128xf32, #tpu.memory_space<vmem>>, vector<1x16x128xf32>
      %837 = vector.shape_cast %836 : vector<1x16x128xf32> to vector<16x128xf32>
      %838 = arith.truncf %837 : vector<16x128xf32> to vector<16x128xbf16>
      %c2_371 = arith.constant 2 : index
      %c0_372 = arith.constant 0 : index
      %c0_373 = arith.constant 0 : index
      %839 = vector.load %arg14[%c2_371, %c0_372, %c0_373] : memref<5x128x128xbf16, #tpu.memory_space<vmem>>, vector<1x128x128xbf16>
      %840 = vector.shape_cast %839 : vector<1x128x128xbf16> to vector<128x128xbf16>
      %cst_374 = arith.constant dense<0.000000e+00> : vector<16x128xf32>
      %841 = tpu.matmul %838, %840, %cst_374 {dimension_numbers = #tpu.dot_dimension_numbers<[1], [0], [0], [1], [0, 0, 1, 1], [], []>} : vector<16x128xbf16>, vector<128x128xbf16>, vector<16x128xf32> -> vector<16x128xf32>
      %842 = arith.addf %833, %841 : vector<16x128xf32>
      %c3_i32 = arith.constant 3 : i32
      %843 = arith.addi %arg34, %c3_i32 : i32
      %844 = arith.index_cast %843 : i32 to index
      %c0_375 = arith.constant 0 : index
      %c0_376 = arith.constant 0 : index
      %845 = vector.load %arg33[%844, %c0_375, %c0_376] : memref<20x16x128xf32, #tpu.memory_space<vmem>>, vector<1x16x128xf32>
      %846 = vector.shape_cast %845 : vector<1x16x128xf32> to vector<16x128xf32>
      %847 = arith.truncf %846 : vector<16x128xf32> to vector<16x128xbf16>
      %c3_377 = arith.constant 3 : index
      %c0_378 = arith.constant 0 : index
      %c0_379 = arith.constant 0 : index
      %848 = vector.load %arg14[%c3_377, %c0_378, %c0_379] : memref<5x128x128xbf16, #tpu.memory_space<vmem>>, vector<1x128x128xbf16>
      %849 = vector.shape_cast %848 : vector<1x128x128xbf16> to vector<128x128xbf16>
      %cst_380 = arith.constant dense<0.000000e+00> : vector<16x128xf32>
      %850 = tpu.matmul %847, %849, %cst_380 {dimension_numbers = #tpu.dot_dimension_numbers<[1], [0], [0], [1], [0, 0, 1, 1], [], []>} : vector<16x128xbf16>, vector<128x128xbf16>, vector<16x128xf32> -> vector<16x128xf32>
      %851 = arith.addf %842, %850 : vector<16x128xf32>
      %c4_i32 = arith.constant 4 : i32
      %852 = arith.addi %arg34, %c4_i32 : i32
      %853 = arith.index_cast %852 : i32 to index
      %c0_381 = arith.constant 0 : index
      %c0_382 = arith.constant 0 : index
      %854 = vector.load %arg33[%853, %c0_381, %c0_382] : memref<20x16x128xf32, #tpu.memory_space<vmem>>, vector<1x16x128xf32>
      %855 = vector.shape_cast %854 : vector<1x16x128xf32> to vector<16x128xf32>
      %856 = arith.truncf %855 : vector<16x128xf32> to vector<16x128xbf16>
      %c4_383 = arith.constant 4 : index
      %c0_384 = arith.constant 0 : index
      %c0_385 = arith.constant 0 : index
      %857 = vector.load %arg14[%c4_383, %c0_384, %c0_385] : memref<5x128x128xbf16, #tpu.memory_space<vmem>>, vector<1x128x128xbf16>
      %858 = vector.shape_cast %857 : vector<1x128x128xbf16> to vector<128x128xbf16>
      %cst_386 = arith.constant dense<0.000000e+00> : vector<16x128xf32>
      %859 = tpu.matmul %856, %858, %cst_386 {dimension_numbers = #tpu.dot_dimension_numbers<[1], [0], [0], [1], [0, 0, 1, 1], [], []>} : vector<16x128xbf16>, vector<128x128xbf16>, vector<16x128xf32> -> vector<16x128xf32>
      %860 = arith.addf %851, %859 : vector<16x128xf32>
      %861 = vector.broadcast %629 : vector<1x128xf32> to vector<16x128xf32>
      %862 = arith.addf %860, %861 : vector<16x128xf32>
      %cst_387 = arith.constant 0.000000e+00 : f32
      %863 = vector.broadcast %cst_387 : f32 to vector<16x128xf32>
      %864 = arith.cmpf oge, %862, %863 : vector<16x128xf32>
      %cst_388 = arith.constant 2.000000e-01 : f32
      %865 = vector.broadcast %cst_388 : f32 to vector<16x128xf32>
      %866 = arith.mulf %865, %862 : vector<16x128xf32>
      %867 = arith.select %864, %862, %866 : vector<16x128xi1>, vector<16x128xf32>
      %c2_i32_389 = arith.constant 2 : i32
      %868 = arith.addi %arg34, %c2_i32_389 : i32
      %869 = arith.index_cast %868 : i32 to index
      %c0_390 = arith.constant 0 : index
      %c0_391 = arith.constant 0 : index
      %870 = vector.load %arg32[%869, %c0_390, %c0_391] : memref<20x16x128xf32, #tpu.memory_space<vmem>>, vector<1x16x128xf32>
      %871 = vector.shape_cast %870 : vector<1x16x128xf32> to vector<16x128xf32>
      %872 = vector.shape_cast %867 : vector<16x128xf32> to vector<1x16x128xf32>
      tpu.vector_store %arg32[%869, %c0_390, %c0_391], %872 {strides = array<i32>} : memref<20x16x128xf32, #tpu.memory_space<vmem>>, vector<1x16x128xf32>,
      %cst_392 = arith.constant dense<0.000000e+00> : vector<128xf32>
      %873 = vector.multi_reduction <add>, %867, %cst_392 [0] : vector<16x128xf32> to vector<128xf32>
      %874 = vector.shape_cast %873 : vector<128xf32> to vector<1x128xf32>
      %875 = arith.addf %arg35, %874 : vector<1x128xf32>
      %876 = arith.mulf %867, %867 : vector<16x128xf32>
      %cst_393 = arith.constant dense<0.000000e+00> : vector<128xf32>
      %877 = vector.multi_reduction <add>, %876, %cst_393 [0] : vector<16x128xf32> to vector<128xf32>
      %878 = vector.shape_cast %877 : vector<128xf32> to vector<1x128xf32>
      %879 = arith.addf %arg36, %878 : vector<1x128xf32>
      scf.yield %875, %879 : vector<1x128xf32>, vector<1x128xf32>
    }
    %c16_i32_179 = arith.constant 16 : i32
    %cst_180 = arith.constant 3.906250e-03 : f32
    %634 = vector.broadcast %cst_180 : f32 to vector<1x128xf32>
    %635 = arith.mulf %633#0, %634 : vector<1x128xf32>
    %cst_181 = arith.constant 3.906250e-03 : f32
    %636 = vector.broadcast %cst_181 : f32 to vector<1x128xf32>
    %637 = arith.mulf %633#1, %636 : vector<1x128xf32>
    %638 = arith.mulf %635, %635 : vector<1x128xf32>
    %639 = arith.subf %637, %638 : vector<1x128xf32>
    %cst_182 = arith.constant 0.000000e+00 : f32
    %640 = vector.broadcast %cst_182 : f32 to vector<1x128xf32>
    %641 = arith.maximumf %639, %640 : vector<1x128xf32>
    %cst_183 = arith.constant 9.99999974E-6 : f32
    %642 = vector.broadcast %cst_183 : f32 to vector<1x128xf32>
    %643 = arith.addf %641, %642 : vector<1x128xf32>
    %644 = math.rsqrt %643 : vector<1x128xf32>
    %c0_184 = arith.constant 0 : index
    %c0_185 = arith.constant 0 : index
    %645 = vector.load %arg16[%c0_184, %c0_185] : memref<1x128xf32, #tpu.memory_space<vmem>>, vector<1x128xf32>
    %646 = arith.mulf %644, %645 : vector<1x128xf32>
    %c0_186 = arith.constant 0 : index
    %c0_187 = arith.constant 0 : index
    %647 = vector.load %arg17[%c0_186, %c0_187] : memref<1x128xf32, #tpu.memory_space<vmem>>, vector<1x128xf32>
    %648 = arith.mulf %635, %646 : vector<1x128xf32>
    %649 = arith.subf %647, %648 : vector<1x128xf32>
    %c0_i32_188 = arith.constant 0 : i32
    %c16_i32_189 = arith.constant 16 : i32
    %650 = arith.addi %c0_i32_188, %c16_i32_189 : i32
    %c1_i32_190 = arith.constant 1 : i32
    scf.for %arg34 = %c0_i32_188 to %650 step %c1_i32_190  : i32 {
      %c2_i32 = arith.constant 2 : i32
      %815 = arith.addi %arg34, %c2_i32 : i32
      %816 = arith.index_cast %815 : i32 to index
      %c0_354 = arith.constant 0 : index
      %c0_355 = arith.constant 0 : index
      %817 = vector.load %arg32[%816, %c0_354, %c0_355] : memref<20x16x128xf32, #tpu.memory_space<vmem>>, vector<1x16x128xf32>
      %818 = vector.shape_cast %817 : vector<1x16x128xf32> to vector<16x128xf32>
      %819 = vector.broadcast %646 : vector<1x128xf32> to vector<16x128xf32>
      %820 = arith.mulf %818, %819 : vector<16x128xf32>
      %821 = vector.broadcast %649 : vector<1x128xf32> to vector<16x128xf32>
      %822 = arith.addf %820, %821 : vector<16x128xf32>
      %c2_i32_356 = arith.constant 2 : i32
      %823 = arith.addi %arg34, %c2_i32_356 : i32
      %824 = arith.index_cast %823 : i32 to index
      %c0_357 = arith.constant 0 : index
      %c0_358 = arith.constant 0 : index
      %825 = vector.load %arg32[%824, %c0_357, %c0_358] : memref<20x16x128xf32, #tpu.memory_space<vmem>>, vector<1x16x128xf32>
      %826 = vector.shape_cast %825 : vector<1x16x128xf32> to vector<16x128xf32>
      %827 = vector.shape_cast %822 : vector<16x128xf32> to vector<1x16x128xf32>
      tpu.vector_store %arg32[%824, %c0_357, %c0_358], %827 {strides = array<i32>} : memref<20x16x128xf32, #tpu.memory_space<vmem>>, vector<1x16x128xf32>,
    }
    %c16_i32_191 = arith.constant 16 : i32
    %c0_192 = arith.constant 0 : index
    %c0_193 = arith.constant 0 : index
    %651 = vector.load %arg19[%c0_192, %c0_193] : memref<1x128xf32, #tpu.memory_space<vmem>>, vector<1x128xf32>
    %cst_194 = arith.constant 0.000000e+00 : f32
    %652 = vector.broadcast %cst_194 : f32 to vector<1x128xf32>
    %cst_195 = arith.constant 0.000000e+00 : f32
    %653 = vector.broadcast %cst_195 : f32 to vector<1x128xf32>
    %c0_i32_196 = arith.constant 0 : i32
    %c16_i32_197 = arith.constant 16 : i32
    %654 = arith.addi %c0_i32_196, %c16_i32_197 : i32
    %c1_i32_198 = arith.constant 1 : i32
    %655:2 = scf.for %arg34 = %c0_i32_196 to %654 step %c1_i32_198 iter_args(%arg35 = %652, %arg36 = %653) -> (vector<1x128xf32>, vector<1x128xf32>)  : i32 {
      %cst_354 = arith.constant 0.000000e+00 : f32
      %815 = vector.broadcast %cst_354 : f32 to vector<16x128xf32>
      %c0_i32_355 = arith.constant 0 : i32
      %816 = arith.addi %arg34, %c0_i32_355 : i32
      %817 = arith.index_cast %816 : i32 to index
      %c0_356 = arith.constant 0 : index
      %c0_357 = arith.constant 0 : index
      %818 = vector.load %arg32[%817, %c0_356, %c0_357] : memref<20x16x128xf32, #tpu.memory_space<vmem>>, vector<1x16x128xf32>
      %819 = vector.shape_cast %818 : vector<1x16x128xf32> to vector<16x128xf32>
      %820 = arith.truncf %819 : vector<16x128xf32> to vector<16x128xbf16>
      %c0_358 = arith.constant 0 : index
      %c0_359 = arith.constant 0 : index
      %c0_360 = arith.constant 0 : index
      %821 = vector.load %arg18[%c0_358, %c0_359, %c0_360] : memref<5x128x128xbf16, #tpu.memory_space<vmem>>, vector<1x128x128xbf16>
      %822 = vector.shape_cast %821 : vector<1x128x128xbf16> to vector<128x128xbf16>
      %cst_361 = arith.constant dense<0.000000e+00> : vector<16x128xf32>
      %823 = tpu.matmul %820, %822, %cst_361 {dimension_numbers = #tpu.dot_dimension_numbers<[1], [0], [0], [1], [0, 0, 1, 1], [], []>} : vector<16x128xbf16>, vector<128x128xbf16>, vector<16x128xf32> -> vector<16x128xf32>
      %824 = arith.addf %815, %823 : vector<16x128xf32>
      %c1_i32_362 = arith.constant 1 : i32
      %825 = arith.addi %arg34, %c1_i32_362 : i32
      %826 = arith.index_cast %825 : i32 to index
      %c0_363 = arith.constant 0 : index
      %c0_364 = arith.constant 0 : index
      %827 = vector.load %arg32[%826, %c0_363, %c0_364] : memref<20x16x128xf32, #tpu.memory_space<vmem>>, vector<1x16x128xf32>
      %828 = vector.shape_cast %827 : vector<1x16x128xf32> to vector<16x128xf32>
      %829 = arith.truncf %828 : vector<16x128xf32> to vector<16x128xbf16>
      %c1_365 = arith.constant 1 : index
      %c0_366 = arith.constant 0 : index
      %c0_367 = arith.constant 0 : index
      %830 = vector.load %arg18[%c1_365, %c0_366, %c0_367] : memref<5x128x128xbf16, #tpu.memory_space<vmem>>, vector<1x128x128xbf16>
      %831 = vector.shape_cast %830 : vector<1x128x128xbf16> to vector<128x128xbf16>
      %cst_368 = arith.constant dense<0.000000e+00> : vector<16x128xf32>
      %832 = tpu.matmul %829, %831, %cst_368 {dimension_numbers = #tpu.dot_dimension_numbers<[1], [0], [0], [1], [0, 0, 1, 1], [], []>} : vector<16x128xbf16>, vector<128x128xbf16>, vector<16x128xf32> -> vector<16x128xf32>
      %833 = arith.addf %824, %832 : vector<16x128xf32>
      %c2_i32 = arith.constant 2 : i32
      %834 = arith.addi %arg34, %c2_i32 : i32
      %835 = arith.index_cast %834 : i32 to index
      %c0_369 = arith.constant 0 : index
      %c0_370 = arith.constant 0 : index
      %836 = vector.load %arg32[%835, %c0_369, %c0_370] : memref<20x16x128xf32, #tpu.memory_space<vmem>>, vector<1x16x128xf32>
      %837 = vector.shape_cast %836 : vector<1x16x128xf32> to vector<16x128xf32>
      %838 = arith.truncf %837 : vector<16x128xf32> to vector<16x128xbf16>
      %c2_371 = arith.constant 2 : index
      %c0_372 = arith.constant 0 : index
      %c0_373 = arith.constant 0 : index
      %839 = vector.load %arg18[%c2_371, %c0_372, %c0_373] : memref<5x128x128xbf16, #tpu.memory_space<vmem>>, vector<1x128x128xbf16>
      %840 = vector.shape_cast %839 : vector<1x128x128xbf16> to vector<128x128xbf16>
      %cst_374 = arith.constant dense<0.000000e+00> : vector<16x128xf32>
      %841 = tpu.matmul %838, %840, %cst_374 {dimension_numbers = #tpu.dot_dimension_numbers<[1], [0], [0], [1], [0, 0, 1, 1], [], []>} : vector<16x128xbf16>, vector<128x128xbf16>, vector<16x128xf32> -> vector<16x128xf32>
      %842 = arith.addf %833, %841 : vector<16x128xf32>
      %c3_i32 = arith.constant 3 : i32
      %843 = arith.addi %arg34, %c3_i32 : i32
      %844 = arith.index_cast %843 : i32 to index
      %c0_375 = arith.constant 0 : index
      %c0_376 = arith.constant 0 : index
      %845 = vector.load %arg32[%844, %c0_375, %c0_376] : memref<20x16x128xf32, #tpu.memory_space<vmem>>, vector<1x16x128xf32>
      %846 = vector.shape_cast %845 : vector<1x16x128xf32> to vector<16x128xf32>
      %847 = arith.truncf %846 : vector<16x128xf32> to vector<16x128xbf16>
      %c3_377 = arith.constant 3 : index
      %c0_378 = arith.constant 0 : index
      %c0_379 = arith.constant 0 : index
      %848 = vector.load %arg18[%c3_377, %c0_378, %c0_379] : memref<5x128x128xbf16, #tpu.memory_space<vmem>>, vector<1x128x128xbf16>
      %849 = vector.shape_cast %848 : vector<1x128x128xbf16> to vector<128x128xbf16>
      %cst_380 = arith.constant dense<0.000000e+00> : vector<16x128xf32>
      %850 = tpu.matmul %847, %849, %cst_380 {dimension_numbers = #tpu.dot_dimension_numbers<[1], [0], [0], [1], [0, 0, 1, 1], [], []>} : vector<16x128xbf16>, vector<128x128xbf16>, vector<16x128xf32> -> vector<16x128xf32>
      %851 = arith.addf %842, %850 : vector<16x128xf32>
      %c4_i32 = arith.constant 4 : i32
      %852 = arith.addi %arg34, %c4_i32 : i32
      %853 = arith.index_cast %852 : i32 to index
      %c0_381 = arith.constant 0 : index
      %c0_382 = arith.constant 0 : index
      %854 = vector.load %arg32[%853, %c0_381, %c0_382] : memref<20x16x128xf32, #tpu.memory_space<vmem>>, vector<1x16x128xf32>
      %855 = vector.shape_cast %854 : vector<1x16x128xf32> to vector<16x128xf32>
      %856 = arith.truncf %855 : vector<16x128xf32> to vector<16x128xbf16>
      %c4_383 = arith.constant 4 : index
      %c0_384 = arith.constant 0 : index
      %c0_385 = arith.constant 0 : index
      %857 = vector.load %arg18[%c4_383, %c0_384, %c0_385] : memref<5x128x128xbf16, #tpu.memory_space<vmem>>, vector<1x128x128xbf16>
      %858 = vector.shape_cast %857 : vector<1x128x128xbf16> to vector<128x128xbf16>
      %cst_386 = arith.constant dense<0.000000e+00> : vector<16x128xf32>
      %859 = tpu.matmul %856, %858, %cst_386 {dimension_numbers = #tpu.dot_dimension_numbers<[1], [0], [0], [1], [0, 0, 1, 1], [], []>} : vector<16x128xbf16>, vector<128x128xbf16>, vector<16x128xf32> -> vector<16x128xf32>
      %860 = arith.addf %851, %859 : vector<16x128xf32>
      %861 = vector.broadcast %651 : vector<1x128xf32> to vector<16x128xf32>
      %862 = arith.addf %860, %861 : vector<16x128xf32>
      %cst_387 = arith.constant 0.000000e+00 : f32
      %863 = vector.broadcast %cst_387 : f32 to vector<16x128xf32>
      %864 = arith.cmpf oge, %862, %863 : vector<16x128xf32>
      %cst_388 = arith.constant 2.000000e-01 : f32
      %865 = vector.broadcast %cst_388 : f32 to vector<16x128xf32>
      %866 = arith.mulf %865, %862 : vector<16x128xf32>
      %867 = arith.select %864, %862, %866 : vector<16x128xi1>, vector<16x128xf32>
      %c2_i32_389 = arith.constant 2 : i32
      %868 = arith.addi %arg34, %c2_i32_389 : i32
      %869 = arith.index_cast %868 : i32 to index
      %c0_390 = arith.constant 0 : index
      %c0_391 = arith.constant 0 : index
      %870 = vector.load %arg33[%869, %c0_390, %c0_391] : memref<20x16x128xf32, #tpu.memory_space<vmem>>, vector<1x16x128xf32>
      %871 = vector.shape_cast %870 : vector<1x16x128xf32> to vector<16x128xf32>
      %872 = vector.shape_cast %867 : vector<16x128xf32> to vector<1x16x128xf32>
      tpu.vector_store %arg33[%869, %c0_390, %c0_391], %872 {strides = array<i32>} : memref<20x16x128xf32, #tpu.memory_space<vmem>>, vector<1x16x128xf32>,
      %cst_392 = arith.constant dense<0.000000e+00> : vector<128xf32>
      %873 = vector.multi_reduction <add>, %867, %cst_392 [0] : vector<16x128xf32> to vector<128xf32>
      %874 = vector.shape_cast %873 : vector<128xf32> to vector<1x128xf32>
      %875 = arith.addf %arg35, %874 : vector<1x128xf32>
      %876 = arith.mulf %867, %867 : vector<16x128xf32>
      %cst_393 = arith.constant dense<0.000000e+00> : vector<128xf32>
      %877 = vector.multi_reduction <add>, %876, %cst_393 [0] : vector<16x128xf32> to vector<128xf32>
      %878 = vector.shape_cast %877 : vector<128xf32> to vector<1x128xf32>
      %879 = arith.addf %arg36, %878 : vector<1x128xf32>
      scf.yield %875, %879 : vector<1x128xf32>, vector<1x128xf32>
    }
    %c16_i32_199 = arith.constant 16 : i32
    %cst_200 = arith.constant 3.906250e-03 : f32
    %656 = vector.broadcast %cst_200 : f32 to vector<1x128xf32>
    %657 = arith.mulf %655#0, %656 : vector<1x128xf32>
    %cst_201 = arith.constant 3.906250e-03 : f32
    %658 = vector.broadcast %cst_201 : f32 to vector<1x128xf32>
    %659 = arith.mulf %655#1, %658 : vector<1x128xf32>
    %660 = arith.mulf %657, %657 : vector<1x128xf32>
    %661 = arith.subf %659, %660 : vector<1x128xf32>
    %cst_202 = arith.constant 0.000000e+00 : f32
    %662 = vector.broadcast %cst_202 : f32 to vector<1x128xf32>
    %663 = arith.maximumf %661, %662 : vector<1x128xf32>
    %cst_203 = arith.constant 9.99999974E-6 : f32
    %664 = vector.broadcast %cst_203 : f32 to vector<1x128xf32>
    %665 = arith.addf %663, %664 : vector<1x128xf32>
    %666 = math.rsqrt %665 : vector<1x128xf32>
    %c0_204 = arith.constant 0 : index
    %c0_205 = arith.constant 0 : index
    %667 = vector.load %arg20[%c0_204, %c0_205] : memref<1x128xf32, #tpu.memory_space<vmem>>, vector<1x128xf32>
    %668 = arith.mulf %666, %667 : vector<1x128xf32>
    %c0_206 = arith.constant 0 : index
    %c0_207 = arith.constant 0 : index
    %669 = vector.load %arg21[%c0_206, %c0_207] : memref<1x128xf32, #tpu.memory_space<vmem>>, vector<1x128xf32>
    %670 = arith.mulf %657, %668 : vector<1x128xf32>
    %671 = arith.subf %669, %670 : vector<1x128xf32>
    %c0_i32_208 = arith.constant 0 : i32
    %c16_i32_209 = arith.constant 16 : i32
    %672 = arith.addi %c0_i32_208, %c16_i32_209 : i32
    %c1_i32_210 = arith.constant 1 : i32
    scf.for %arg34 = %c0_i32_208 to %672 step %c1_i32_210  : i32 {
      %c2_i32 = arith.constant 2 : i32
      %815 = arith.addi %arg34, %c2_i32 : i32
      %816 = arith.index_cast %815 : i32 to index
      %c0_354 = arith.constant 0 : index
      %c0_355 = arith.constant 0 : index
      %817 = vector.load %arg33[%816, %c0_354, %c0_355] : memref<20x16x128xf32, #tpu.memory_space<vmem>>, vector<1x16x128xf32>
      %818 = vector.shape_cast %817 : vector<1x16x128xf32> to vector<16x128xf32>
      %819 = vector.broadcast %668 : vector<1x128xf32> to vector<16x128xf32>
      %820 = arith.mulf %818, %819 : vector<16x128xf32>
      %821 = vector.broadcast %671 : vector<1x128xf32> to vector<16x128xf32>
      %822 = arith.addf %820, %821 : vector<16x128xf32>
      %c2_i32_356 = arith.constant 2 : i32
      %823 = arith.addi %arg34, %c2_i32_356 : i32
      %824 = arith.index_cast %823 : i32 to index
      %c0_357 = arith.constant 0 : index
      %c0_358 = arith.constant 0 : index
      %825 = vector.load %arg33[%824, %c0_357, %c0_358] : memref<20x16x128xf32, #tpu.memory_space<vmem>>, vector<1x16x128xf32>
      %826 = vector.shape_cast %825 : vector<1x16x128xf32> to vector<16x128xf32>
      %827 = vector.shape_cast %822 : vector<16x128xf32> to vector<1x16x128xf32>
      tpu.vector_store %arg33[%824, %c0_357, %c0_358], %827 {strides = array<i32>} : memref<20x16x128xf32, #tpu.memory_space<vmem>>, vector<1x16x128xf32>,
    }
    %c16_i32_211 = arith.constant 16 : i32
    %c0_212 = arith.constant 0 : index
    %c0_213 = arith.constant 0 : index
    %673 = vector.load %arg23[%c0_212, %c0_213] : memref<1x128xf32, #tpu.memory_space<vmem>>, vector<1x128xf32>
    %cst_214 = arith.constant 0.000000e+00 : f32
    %674 = vector.broadcast %cst_214 : f32 to vector<1x128xf32>
    %cst_215 = arith.constant 0.000000e+00 : f32
    %675 = vector.broadcast %cst_215 : f32 to vector<1x128xf32>
    %c0_i32_216 = arith.constant 0 : i32
    %c16_i32_217 = arith.constant 16 : i32
    %676 = arith.addi %c0_i32_216, %c16_i32_217 : i32
    %c1_i32_218 = arith.constant 1 : i32
    %677:2 = scf.for %arg34 = %c0_i32_216 to %676 step %c1_i32_218 iter_args(%arg35 = %674, %arg36 = %675) -> (vector<1x128xf32>, vector<1x128xf32>)  : i32 {
      %cst_354 = arith.constant 0.000000e+00 : f32
      %815 = vector.broadcast %cst_354 : f32 to vector<16x128xf32>
      %c0_i32_355 = arith.constant 0 : i32
      %816 = arith.addi %arg34, %c0_i32_355 : i32
      %817 = arith.index_cast %816 : i32 to index
      %c0_356 = arith.constant 0 : index
      %c0_357 = arith.constant 0 : index
      %818 = vector.load %arg33[%817, %c0_356, %c0_357] : memref<20x16x128xf32, #tpu.memory_space<vmem>>, vector<1x16x128xf32>
      %819 = vector.shape_cast %818 : vector<1x16x128xf32> to vector<16x128xf32>
      %820 = arith.truncf %819 : vector<16x128xf32> to vector<16x128xbf16>
      %c0_358 = arith.constant 0 : index
      %c0_359 = arith.constant 0 : index
      %c0_360 = arith.constant 0 : index
      %821 = vector.load %arg22[%c0_358, %c0_359, %c0_360] : memref<5x128x128xbf16, #tpu.memory_space<vmem>>, vector<1x128x128xbf16>
      %822 = vector.shape_cast %821 : vector<1x128x128xbf16> to vector<128x128xbf16>
      %cst_361 = arith.constant dense<0.000000e+00> : vector<16x128xf32>
      %823 = tpu.matmul %820, %822, %cst_361 {dimension_numbers = #tpu.dot_dimension_numbers<[1], [0], [0], [1], [0, 0, 1, 1], [], []>} : vector<16x128xbf16>, vector<128x128xbf16>, vector<16x128xf32> -> vector<16x128xf32>
      %824 = arith.addf %815, %823 : vector<16x128xf32>
      %c1_i32_362 = arith.constant 1 : i32
      %825 = arith.addi %arg34, %c1_i32_362 : i32
      %826 = arith.index_cast %825 : i32 to index
      %c0_363 = arith.constant 0 : index
      %c0_364 = arith.constant 0 : index
      %827 = vector.load %arg33[%826, %c0_363, %c0_364] : memref<20x16x128xf32, #tpu.memory_space<vmem>>, vector<1x16x128xf32>
      %828 = vector.shape_cast %827 : vector<1x16x128xf32> to vector<16x128xf32>
      %829 = arith.truncf %828 : vector<16x128xf32> to vector<16x128xbf16>
      %c1_365 = arith.constant 1 : index
      %c0_366 = arith.constant 0 : index
      %c0_367 = arith.constant 0 : index
      %830 = vector.load %arg22[%c1_365, %c0_366, %c0_367] : memref<5x128x128xbf16, #tpu.memory_space<vmem>>, vector<1x128x128xbf16>
      %831 = vector.shape_cast %830 : vector<1x128x128xbf16> to vector<128x128xbf16>
      %cst_368 = arith.constant dense<0.000000e+00> : vector<16x128xf32>
      %832 = tpu.matmul %829, %831, %cst_368 {dimension_numbers = #tpu.dot_dimension_numbers<[1], [0], [0], [1], [0, 0, 1, 1], [], []>} : vector<16x128xbf16>, vector<128x128xbf16>, vector<16x128xf32> -> vector<16x128xf32>
      %833 = arith.addf %824, %832 : vector<16x128xf32>
      %c2_i32 = arith.constant 2 : i32
      %834 = arith.addi %arg34, %c2_i32 : i32
      %835 = arith.index_cast %834 : i32 to index
      %c0_369 = arith.constant 0 : index
      %c0_370 = arith.constant 0 : index
      %836 = vector.load %arg33[%835, %c0_369, %c0_370] : memref<20x16x128xf32, #tpu.memory_space<vmem>>, vector<1x16x128xf32>
      %837 = vector.shape_cast %836 : vector<1x16x128xf32> to vector<16x128xf32>
      %838 = arith.truncf %837 : vector<16x128xf32> to vector<16x128xbf16>
      %c2_371 = arith.constant 2 : index
      %c0_372 = arith.constant 0 : index
      %c0_373 = arith.constant 0 : index
      %839 = vector.load %arg22[%c2_371, %c0_372, %c0_373] : memref<5x128x128xbf16, #tpu.memory_space<vmem>>, vector<1x128x128xbf16>
      %840 = vector.shape_cast %839 : vector<1x128x128xbf16> to vector<128x128xbf16>
      %cst_374 = arith.constant dense<0.000000e+00> : vector<16x128xf32>
      %841 = tpu.matmul %838, %840, %cst_374 {dimension_numbers = #tpu.dot_dimension_numbers<[1], [0], [0], [1], [0, 0, 1, 1], [], []>} : vector<16x128xbf16>, vector<128x128xbf16>, vector<16x128xf32> -> vector<16x128xf32>
      %842 = arith.addf %833, %841 : vector<16x128xf32>
      %c3_i32 = arith.constant 3 : i32
      %843 = arith.addi %arg34, %c3_i32 : i32
      %844 = arith.index_cast %843 : i32 to index
      %c0_375 = arith.constant 0 : index
      %c0_376 = arith.constant 0 : index
      %845 = vector.load %arg33[%844, %c0_375, %c0_376] : memref<20x16x128xf32, #tpu.memory_space<vmem>>, vector<1x16x128xf32>
      %846 = vector.shape_cast %845 : vector<1x16x128xf32> to vector<16x128xf32>
      %847 = arith.truncf %846 : vector<16x128xf32> to vector<16x128xbf16>
      %c3_377 = arith.constant 3 : index
      %c0_378 = arith.constant 0 : index
      %c0_379 = arith.constant 0 : index
      %848 = vector.load %arg22[%c3_377, %c0_378, %c0_379] : memref<5x128x128xbf16, #tpu.memory_space<vmem>>, vector<1x128x128xbf16>
      %849 = vector.shape_cast %848 : vector<1x128x128xbf16> to vector<128x128xbf16>
      %cst_380 = arith.constant dense<0.000000e+00> : vector<16x128xf32>
      %850 = tpu.matmul %847, %849, %cst_380 {dimension_numbers = #tpu.dot_dimension_numbers<[1], [0], [0], [1], [0, 0, 1, 1], [], []>} : vector<16x128xbf16>, vector<128x128xbf16>, vector<16x128xf32> -> vector<16x128xf32>
      %851 = arith.addf %842, %850 : vector<16x128xf32>
      %c4_i32 = arith.constant 4 : i32
      %852 = arith.addi %arg34, %c4_i32 : i32
      %853 = arith.index_cast %852 : i32 to index
      %c0_381 = arith.constant 0 : index
      %c0_382 = arith.constant 0 : index
      %854 = vector.load %arg33[%853, %c0_381, %c0_382] : memref<20x16x128xf32, #tpu.memory_space<vmem>>, vector<1x16x128xf32>
      %855 = vector.shape_cast %854 : vector<1x16x128xf32> to vector<16x128xf32>
      %856 = arith.truncf %855 : vector<16x128xf32> to vector<16x128xbf16>
      %c4_383 = arith.constant 4 : index
      %c0_384 = arith.constant 0 : index
      %c0_385 = arith.constant 0 : index
      %857 = vector.load %arg22[%c4_383, %c0_384, %c0_385] : memref<5x128x128xbf16, #tpu.memory_space<vmem>>, vector<1x128x128xbf16>
      %858 = vector.shape_cast %857 : vector<1x128x128xbf16> to vector<128x128xbf16>
      %cst_386 = arith.constant dense<0.000000e+00> : vector<16x128xf32>
      %859 = tpu.matmul %856, %858, %cst_386 {dimension_numbers = #tpu.dot_dimension_numbers<[1], [0], [0], [1], [0, 0, 1, 1], [], []>} : vector<16x128xbf16>, vector<128x128xbf16>, vector<16x128xf32> -> vector<16x128xf32>
      %860 = arith.addf %851, %859 : vector<16x128xf32>
      %861 = vector.broadcast %673 : vector<1x128xf32> to vector<16x128xf32>
      %862 = arith.addf %860, %861 : vector<16x128xf32>
      %cst_387 = arith.constant 0.000000e+00 : f32
      %863 = vector.broadcast %cst_387 : f32 to vector<16x128xf32>
      %864 = arith.cmpf oge, %862, %863 : vector<16x128xf32>
      %cst_388 = arith.constant 2.000000e-01 : f32
      %865 = vector.broadcast %cst_388 : f32 to vector<16x128xf32>
      %866 = arith.mulf %865, %862 : vector<16x128xf32>
      %867 = arith.select %864, %862, %866 : vector<16x128xi1>, vector<16x128xf32>
      %c2_i32_389 = arith.constant 2 : i32
      %868 = arith.addi %arg34, %c2_i32_389 : i32
      %869 = arith.index_cast %868 : i32 to index
      %c0_390 = arith.constant 0 : index
      %c0_391 = arith.constant 0 : index
      %870 = vector.load %arg32[%869, %c0_390, %c0_391] : memref<20x16x128xf32, #tpu.memory_space<vmem>>, vector<1x16x128xf32>
      %871 = vector.shape_cast %870 : vector<1x16x128xf32> to vector<16x128xf32>
      %872 = vector.shape_cast %867 : vector<16x128xf32> to vector<1x16x128xf32>
      tpu.vector_store %arg32[%869, %c0_390, %c0_391], %872 {strides = array<i32>} : memref<20x16x128xf32, #tpu.memory_space<vmem>>, vector<1x16x128xf32>,
      %cst_392 = arith.constant dense<0.000000e+00> : vector<128xf32>
      %873 = vector.multi_reduction <add>, %867, %cst_392 [0] : vector<16x128xf32> to vector<128xf32>
      %874 = vector.shape_cast %873 : vector<128xf32> to vector<1x128xf32>
      %875 = arith.addf %arg35, %874 : vector<1x128xf32>
      %876 = arith.mulf %867, %867 : vector<16x128xf32>
      %cst_393 = arith.constant dense<0.000000e+00> : vector<128xf32>
      %877 = vector.multi_reduction <add>, %876, %cst_393 [0] : vector<16x128xf32> to vector<128xf32>
      %878 = vector.shape_cast %877 : vector<128xf32> to vector<1x128xf32>
      %879 = arith.addf %arg36, %878 : vector<1x128xf32>
      scf.yield %875, %879 : vector<1x128xf32>, vector<1x128xf32>
    }
    %c16_i32_219 = arith.constant 16 : i32
    %cst_220 = arith.constant 3.906250e-03 : f32
    %678 = vector.broadcast %cst_220 : f32 to vector<1x128xf32>
    %679 = arith.mulf %677#0, %678 : vector<1x128xf32>
    %cst_221 = arith.constant 3.906250e-03 : f32
    %680 = vector.broadcast %cst_221 : f32 to vector<1x128xf32>
    %681 = arith.mulf %677#1, %680 : vector<1x128xf32>
    %682 = arith.mulf %679, %679 : vector<1x128xf32>
    %683 = arith.subf %681, %682 : vector<1x128xf32>
    %cst_222 = arith.constant 0.000000e+00 : f32
    %684 = vector.broadcast %cst_222 : f32 to vector<1x128xf32>
    %685 = arith.maximumf %683, %684 : vector<1x128xf32>
    %cst_223 = arith.constant 9.99999974E-6 : f32
    %686 = vector.broadcast %cst_223 : f32 to vector<1x128xf32>
    %687 = arith.addf %685, %686 : vector<1x128xf32>
    %688 = math.rsqrt %687 : vector<1x128xf32>
    %c0_224 = arith.constant 0 : index
    %c0_225 = arith.constant 0 : index
    %689 = vector.load %arg24[%c0_224, %c0_225] : memref<1x128xf32, #tpu.memory_space<vmem>>, vector<1x128xf32>
    %690 = arith.mulf %688, %689 : vector<1x128xf32>
    %c0_226 = arith.constant 0 : index
    %c0_227 = arith.constant 0 : index
    %691 = vector.load %arg25[%c0_226, %c0_227] : memref<1x128xf32, #tpu.memory_space<vmem>>, vector<1x128xf32>
    %692 = arith.mulf %679, %690 : vector<1x128xf32>
    %693 = arith.subf %691, %692 : vector<1x128xf32>
    %c0_i32_228 = arith.constant 0 : i32
    %c16_i32_229 = arith.constant 16 : i32
    %694 = arith.addi %c0_i32_228, %c16_i32_229 : i32
    %c1_i32_230 = arith.constant 1 : i32
    scf.for %arg34 = %c0_i32_228 to %694 step %c1_i32_230  : i32 {
      %c2_i32 = arith.constant 2 : i32
      %815 = arith.addi %arg34, %c2_i32 : i32
      %816 = arith.index_cast %815 : i32 to index
      %c0_354 = arith.constant 0 : index
      %c0_355 = arith.constant 0 : index
      %817 = vector.load %arg32[%816, %c0_354, %c0_355] : memref<20x16x128xf32, #tpu.memory_space<vmem>>, vector<1x16x128xf32>
      %818 = vector.shape_cast %817 : vector<1x16x128xf32> to vector<16x128xf32>
      %819 = vector.broadcast %690 : vector<1x128xf32> to vector<16x128xf32>
      %820 = arith.mulf %818, %819 : vector<16x128xf32>
      %821 = vector.broadcast %693 : vector<1x128xf32> to vector<16x128xf32>
      %822 = arith.addf %820, %821 : vector<16x128xf32>
      %c2_i32_356 = arith.constant 2 : i32
      %823 = arith.addi %arg34, %c2_i32_356 : i32
      %824 = arith.index_cast %823 : i32 to index
      %c0_357 = arith.constant 0 : index
      %c0_358 = arith.constant 0 : index
      %825 = vector.load %arg32[%824, %c0_357, %c0_358] : memref<20x16x128xf32, #tpu.memory_space<vmem>>, vector<1x16x128xf32>
      %826 = vector.shape_cast %825 : vector<1x16x128xf32> to vector<16x128xf32>
      %827 = vector.shape_cast %822 : vector<16x128xf32> to vector<1x16x128xf32>
      tpu.vector_store %arg32[%824, %c0_357, %c0_358], %827 {strides = array<i32>} : memref<20x16x128xf32, #tpu.memory_space<vmem>>, vector<1x16x128xf32>,
    }
    %c16_i32_231 = arith.constant 16 : i32
    %c0_232 = arith.constant 0 : index
    %c0_233 = arith.constant 0 : index
    %695 = vector.load %arg27[%c0_232, %c0_233] : memref<1x128xf32, #tpu.memory_space<vmem>>, vector<1x128xf32>
    %c0_i32_234 = arith.constant 0 : i32
    %c16_i32_235 = arith.constant 16 : i32
    %696 = arith.addi %c0_i32_234, %c16_i32_235 : i32
    %c1_i32_236 = arith.constant 1 : i32
    scf.for %arg34 = %c0_i32_234 to %696 step %c1_i32_236  : i32 {
      %cst_354 = arith.constant 0.000000e+00 : f32
      %815 = vector.broadcast %cst_354 : f32 to vector<16x128xf32>
      %c0_i32_355 = arith.constant 0 : i32
      %816 = arith.addi %arg34, %c0_i32_355 : i32
      %817 = arith.index_cast %816 : i32 to index
      %c0_356 = arith.constant 0 : index
      %c0_357 = arith.constant 0 : index
      %818 = vector.load %arg32[%817, %c0_356, %c0_357] : memref<20x16x128xf32, #tpu.memory_space<vmem>>, vector<1x16x128xf32>
      %819 = vector.shape_cast %818 : vector<1x16x128xf32> to vector<16x128xf32>
      %820 = arith.truncf %819 : vector<16x128xf32> to vector<16x128xbf16>
      %c0_358 = arith.constant 0 : index
      %c0_359 = arith.constant 0 : index
      %c0_360 = arith.constant 0 : index
      %821 = vector.load %arg26[%c0_358, %c0_359, %c0_360] : memref<5x128x128xbf16, #tpu.memory_space<vmem>>, vector<1x128x128xbf16>
      %822 = vector.shape_cast %821 : vector<1x128x128xbf16> to vector<128x128xbf16>
      %cst_361 = arith.constant dense<0.000000e+00> : vector<16x128xf32>
      %823 = tpu.matmul %820, %822, %cst_361 {dimension_numbers = #tpu.dot_dimension_numbers<[1], [0], [0], [1], [0, 0, 1, 1], [], []>} : vector<16x128xbf16>, vector<128x128xbf16>, vector<16x128xf32> -> vector<16x128xf32>
      %824 = arith.addf %815, %823 : vector<16x128xf32>
      %c1_i32_362 = arith.constant 1 : i32
      %825 = arith.addi %arg34, %c1_i32_362 : i32
      %826 = arith.index_cast %825 : i32 to index
      %c0_363 = arith.constant 0 : index
      %c0_364 = arith.constant 0 : index
      %827 = vector.load %arg32[%826, %c0_363, %c0_364] : memref<20x16x128xf32, #tpu.memory_space<vmem>>, vector<1x16x128xf32>
      %828 = vector.shape_cast %827 : vector<1x16x128xf32> to vector<16x128xf32>
      %829 = arith.truncf %828 : vector<16x128xf32> to vector<16x128xbf16>
      %c1_365 = arith.constant 1 : index
      %c0_366 = arith.constant 0 : index
      %c0_367 = arith.constant 0 : index
      %830 = vector.load %arg26[%c1_365, %c0_366, %c0_367] : memref<5x128x128xbf16, #tpu.memory_space<vmem>>, vector<1x128x128xbf16>
      %831 = vector.shape_cast %830 : vector<1x128x128xbf16> to vector<128x128xbf16>
      %cst_368 = arith.constant dense<0.000000e+00> : vector<16x128xf32>
      %832 = tpu.matmul %829, %831, %cst_368 {dimension_numbers = #tpu.dot_dimension_numbers<[1], [0], [0], [1], [0, 0, 1, 1], [], []>} : vector<16x128xbf16>, vector<128x128xbf16>, vector<16x128xf32> -> vector<16x128xf32>
      %833 = arith.addf %824, %832 : vector<16x128xf32>
      %c2_i32 = arith.constant 2 : i32
      %834 = arith.addi %arg34, %c2_i32 : i32
      %835 = arith.index_cast %834 : i32 to index
      %c0_369 = arith.constant 0 : index
      %c0_370 = arith.constant 0 : index
      %836 = vector.load %arg32[%835, %c0_369, %c0_370] : memref<20x16x128xf32, #tpu.memory_space<vmem>>, vector<1x16x128xf32>
      %837 = vector.shape_cast %836 : vector<1x16x128xf32> to vector<16x128xf32>
      %838 = arith.truncf %837 : vector<16x128xf32> to vector<16x128xbf16>
      %c2_371 = arith.constant 2 : index
      %c0_372 = arith.constant 0 : index
      %c0_373 = arith.constant 0 : index
      %839 = vector.load %arg26[%c2_371, %c0_372, %c0_373] : memref<5x128x128xbf16, #tpu.memory_space<vmem>>, vector<1x128x128xbf16>
      %840 = vector.shape_cast %839 : vector<1x128x128xbf16> to vector<128x128xbf16>
      %cst_374 = arith.constant dense<0.000000e+00> : vector<16x128xf32>
      %841 = tpu.matmul %838, %840, %cst_374 {dimension_numbers = #tpu.dot_dimension_numbers<[1], [0], [0], [1], [0, 0, 1, 1], [], []>} : vector<16x128xbf16>, vector<128x128xbf16>, vector<16x128xf32> -> vector<16x128xf32>
      %842 = arith.addf %833, %841 : vector<16x128xf32>
      %c3_i32 = arith.constant 3 : i32
      %843 = arith.addi %arg34, %c3_i32 : i32
      %844 = arith.index_cast %843 : i32 to index
      %c0_375 = arith.constant 0 : index
      %c0_376 = arith.constant 0 : index
      %845 = vector.load %arg32[%844, %c0_375, %c0_376] : memref<20x16x128xf32, #tpu.memory_space<vmem>>, vector<1x16x128xf32>
      %846 = vector.shape_cast %845 : vector<1x16x128xf32> to vector<16x128xf32>
      %847 = arith.truncf %846 : vector<16x128xf32> to vector<16x128xbf16>
      %c3_377 = arith.constant 3 : index
      %c0_378 = arith.constant 0 : index
      %c0_379 = arith.constant 0 : index
      %848 = vector.load %arg26[%c3_377, %c0_378, %c0_379] : memref<5x128x128xbf16, #tpu.memory_space<vmem>>, vector<1x128x128xbf16>
      %849 = vector.shape_cast %848 : vector<1x128x128xbf16> to vector<128x128xbf16>
      %cst_380 = arith.constant dense<0.000000e+00> : vector<16x128xf32>
      %850 = tpu.matmul %847, %849, %cst_380 {dimension_numbers = #tpu.dot_dimension_numbers<[1], [0], [0], [1], [0, 0, 1, 1], [], []>} : vector<16x128xbf16>, vector<128x128xbf16>, vector<16x128xf32> -> vector<16x128xf32>
      %851 = arith.addf %842, %850 : vector<16x128xf32>
      %c4_i32 = arith.constant 4 : i32
      %852 = arith.addi %arg34, %c4_i32 : i32
      %853 = arith.index_cast %852 : i32 to index
      %c0_381 = arith.constant 0 : index
      %c0_382 = arith.constant 0 : index
      %854 = vector.load %arg32[%853, %c0_381, %c0_382] : memref<20x16x128xf32, #tpu.memory_space<vmem>>, vector<1x16x128xf32>
      %855 = vector.shape_cast %854 : vector<1x16x128xf32> to vector<16x128xf32>
      %856 = arith.truncf %855 : vector<16x128xf32> to vector<16x128xbf16>
      %c4_383 = arith.constant 4 : index
      %c0_384 = arith.constant 0 : index
      %c0_385 = arith.constant 0 : index
      %857 = vector.load %arg26[%c4_383, %c0_384, %c0_385] : memref<5x128x128xbf16, #tpu.memory_space<vmem>>, vector<1x128x128xbf16>
      %858 = vector.shape_cast %857 : vector<1x128x128xbf16> to vector<128x128xbf16>
      %cst_386 = arith.constant dense<0.000000e+00> : vector<16x128xf32>
      %859 = tpu.matmul %856, %858, %cst_386 {dimension_numbers = #tpu.dot_dimension_numbers<[1], [0], [0], [1], [0, 0, 1, 1], [], []>} : vector<16x128xbf16>, vector<128x128xbf16>, vector<16x128xf32> -> vector<16x128xf32>
      %860 = arith.addf %851, %859 : vector<16x128xf32>
      %861 = vector.broadcast %695 : vector<1x128xf32> to vector<16x128xf32>
      %862 = arith.addf %860, %861 : vector<16x128xf32>
      %cst_387 = arith.constant 0.000000e+00 : f32
      %863 = vector.broadcast %cst_387 : f32 to vector<16x128xf32>
      %864 = arith.cmpf oge, %862, %863 : vector<16x128xf32>
      %cst_388 = arith.constant 2.000000e-01 : f32
      %865 = vector.broadcast %cst_388 : f32 to vector<16x128xf32>
      %866 = arith.mulf %865, %862 : vector<16x128xf32>
      %867 = arith.select %864, %862, %866 : vector<16x128xi1>, vector<16x128xf32>
      %c2_i32_389 = arith.constant 2 : i32
      %868 = arith.addi %arg34, %c2_i32_389 : i32
      %869 = arith.index_cast %868 : i32 to index
      %c0_390 = arith.constant 0 : index
      %c0_391 = arith.constant 0 : index
      %870 = vector.load %arg33[%869, %c0_390, %c0_391] : memref<20x16x128xf32, #tpu.memory_space<vmem>>, vector<1x16x128xf32>
      %871 = vector.shape_cast %870 : vector<1x16x128xf32> to vector<16x128xf32>
      %872 = vector.shape_cast %867 : vector<16x128xf32> to vector<1x16x128xf32>
      tpu.vector_store %arg33[%869, %c0_390, %c0_391], %872 {strides = array<i32>} : memref<20x16x128xf32, #tpu.memory_space<vmem>>, vector<1x16x128xf32>,
    }
    %c16_i32_237 = arith.constant 16 : i32
    %cst_238 = arith.constant 0.000000e+00 : f32
    %697 = vector.broadcast %cst_238 : f32 to vector<16x10xf32>
    %c2_239 = arith.constant 2 : index
    %c0_240 = arith.constant 0 : index
    %c0_241 = arith.constant 0 : index
    %698 = vector.load %arg33[%c2_239, %c0_240, %c0_241] : memref<20x16x128xf32, #tpu.memory_space<vmem>>, vector<1x16x128xf32>
    %699 = vector.shape_cast %698 : vector<1x16x128xf32> to vector<16x128xf32>
    %700 = arith.truncf %699 : vector<16x128xf32> to vector<16x128xbf16>
    %c0_242 = arith.constant 0 : index
    %c0_243 = arith.constant 0 : index
    %c0_244 = arith.constant 0 : index
    %701 = vector.load %arg28[%c0_242, %c0_243, %c0_244] : memref<16x128x10xbf16, #tpu.memory_space<vmem>>, vector<1x128x10xbf16>
    %702 = vector.shape_cast %701 : vector<1x128x10xbf16> to vector<128x10xbf16>
    %cst_245 = arith.constant dense<0.000000e+00> : vector<16x10xf32>
    %703 = tpu.matmul %700, %702, %cst_245 {dimension_numbers = #tpu.dot_dimension_numbers<[1], [0], [0], [1], [0, 0, 1, 1], [], []>} : vector<16x128xbf16>, vector<128x10xbf16>, vector<16x10xf32> -> vector<16x10xf32>
    %704 = arith.addf %697, %703 : vector<16x10xf32>
    %c3_246 = arith.constant 3 : index
    %c0_247 = arith.constant 0 : index
    %c0_248 = arith.constant 0 : index
    %705 = vector.load %arg33[%c3_246, %c0_247, %c0_248] : memref<20x16x128xf32, #tpu.memory_space<vmem>>, vector<1x16x128xf32>
    %706 = vector.shape_cast %705 : vector<1x16x128xf32> to vector<16x128xf32>
    %707 = arith.truncf %706 : vector<16x128xf32> to vector<16x128xbf16>
    %c1 = arith.constant 1 : index
    %c0_249 = arith.constant 0 : index
    %c0_250 = arith.constant 0 : index
    %708 = vector.load %arg28[%c1, %c0_249, %c0_250] : memref<16x128x10xbf16, #tpu.memory_space<vmem>>, vector<1x128x10xbf16>
    %709 = vector.shape_cast %708 : vector<1x128x10xbf16> to vector<128x10xbf16>
    %cst_251 = arith.constant dense<0.000000e+00> : vector<16x10xf32>
    %710 = tpu.matmul %707, %709, %cst_251 {dimension_numbers = #tpu.dot_dimension_numbers<[1], [0], [0], [1], [0, 0, 1, 1], [], []>} : vector<16x128xbf16>, vector<128x10xbf16>, vector<16x10xf32> -> vector<16x10xf32>
    %711 = arith.addf %704, %710 : vector<16x10xf32>
    %c4_252 = arith.constant 4 : index
    %c0_253 = arith.constant 0 : index
    %c0_254 = arith.constant 0 : index
    %712 = vector.load %arg33[%c4_252, %c0_253, %c0_254] : memref<20x16x128xf32, #tpu.memory_space<vmem>>, vector<1x16x128xf32>
    %713 = vector.shape_cast %712 : vector<1x16x128xf32> to vector<16x128xf32>
    %714 = arith.truncf %713 : vector<16x128xf32> to vector<16x128xbf16>
    %c2_255 = arith.constant 2 : index
    %c0_256 = arith.constant 0 : index
    %c0_257 = arith.constant 0 : index
    %715 = vector.load %arg28[%c2_255, %c0_256, %c0_257] : memref<16x128x10xbf16, #tpu.memory_space<vmem>>, vector<1x128x10xbf16>
    %716 = vector.shape_cast %715 : vector<1x128x10xbf16> to vector<128x10xbf16>
    %cst_258 = arith.constant dense<0.000000e+00> : vector<16x10xf32>
    %717 = tpu.matmul %714, %716, %cst_258 {dimension_numbers = #tpu.dot_dimension_numbers<[1], [0], [0], [1], [0, 0, 1, 1], [], []>} : vector<16x128xbf16>, vector<128x10xbf16>, vector<16x10xf32> -> vector<16x10xf32>
    %718 = arith.addf %711, %717 : vector<16x10xf32>
    %c5_259 = arith.constant 5 : index
    %c0_260 = arith.constant 0 : index
    %c0_261 = arith.constant 0 : index
    %719 = vector.load %arg33[%c5_259, %c0_260, %c0_261] : memref<20x16x128xf32, #tpu.memory_space<vmem>>, vector<1x16x128xf32>
    %720 = vector.shape_cast %719 : vector<1x16x128xf32> to vector<16x128xf32>
    %721 = arith.truncf %720 : vector<16x128xf32> to vector<16x128xbf16>
    %c3_262 = arith.constant 3 : index
    %c0_263 = arith.constant 0 : index
    %c0_264 = arith.constant 0 : index
    %722 = vector.load %arg28[%c3_262, %c0_263, %c0_264] : memref<16x128x10xbf16, #tpu.memory_space<vmem>>, vector<1x128x10xbf16>
    %723 = vector.shape_cast %722 : vector<1x128x10xbf16> to vector<128x10xbf16>
    %cst_265 = arith.constant dense<0.000000e+00> : vector<16x10xf32>
    %724 = tpu.matmul %721, %723, %cst_265 {dimension_numbers = #tpu.dot_dimension_numbers<[1], [0], [0], [1], [0, 0, 1, 1], [], []>} : vector<16x128xbf16>, vector<128x10xbf16>, vector<16x10xf32> -> vector<16x10xf32>
    %725 = arith.addf %718, %724 : vector<16x10xf32>
    %c6_266 = arith.constant 6 : index
    %c0_267 = arith.constant 0 : index
    %c0_268 = arith.constant 0 : index
    %726 = vector.load %arg33[%c6_266, %c0_267, %c0_268] : memref<20x16x128xf32, #tpu.memory_space<vmem>>, vector<1x16x128xf32>
    %727 = vector.shape_cast %726 : vector<1x16x128xf32> to vector<16x128xf32>
    %728 = arith.truncf %727 : vector<16x128xf32> to vector<16x128xbf16>
    %c4_269 = arith.constant 4 : index
    %c0_270 = arith.constant 0 : index
    %c0_271 = arith.constant 0 : index
    %729 = vector.load %arg28[%c4_269, %c0_270, %c0_271] : memref<16x128x10xbf16, #tpu.memory_space<vmem>>, vector<1x128x10xbf16>
    %730 = vector.shape_cast %729 : vector<1x128x10xbf16> to vector<128x10xbf16>
    %cst_272 = arith.constant dense<0.000000e+00> : vector<16x10xf32>
    %731 = tpu.matmul %728, %730, %cst_272 {dimension_numbers = #tpu.dot_dimension_numbers<[1], [0], [0], [1], [0, 0, 1, 1], [], []>} : vector<16x128xbf16>, vector<128x10xbf16>, vector<16x10xf32> -> vector<16x10xf32>
    %732 = arith.addf %725, %731 : vector<16x10xf32>
    %c7_273 = arith.constant 7 : index
    %c0_274 = arith.constant 0 : index
    %c0_275 = arith.constant 0 : index
    %733 = vector.load %arg33[%c7_273, %c0_274, %c0_275] : memref<20x16x128xf32, #tpu.memory_space<vmem>>, vector<1x16x128xf32>
    %734 = vector.shape_cast %733 : vector<1x16x128xf32> to vector<16x128xf32>
    %735 = arith.truncf %734 : vector<16x128xf32> to vector<16x128xbf16>
    %c5_276 = arith.constant 5 : index
    %c0_277 = arith.constant 0 : index
    %c0_278 = arith.constant 0 : index
    %736 = vector.load %arg28[%c5_276, %c0_277, %c0_278] : memref<16x128x10xbf16, #tpu.memory_space<vmem>>, vector<1x128x10xbf16>
    %737 = vector.shape_cast %736 : vector<1x128x10xbf16> to vector<128x10xbf16>
    %cst_279 = arith.constant dense<0.000000e+00> : vector<16x10xf32>
    %738 = tpu.matmul %735, %737, %cst_279 {dimension_numbers = #tpu.dot_dimension_numbers<[1], [0], [0], [1], [0, 0, 1, 1], [], []>} : vector<16x128xbf16>, vector<128x10xbf16>, vector<16x10xf32> -> vector<16x10xf32>
    %739 = arith.addf %732, %738 : vector<16x10xf32>
    %c8_280 = arith.constant 8 : index
    %c0_281 = arith.constant 0 : index
    %c0_282 = arith.constant 0 : index
    %740 = vector.load %arg33[%c8_280, %c0_281, %c0_282] : memref<20x16x128xf32, #tpu.memory_space<vmem>>, vector<1x16x128xf32>
    %741 = vector.shape_cast %740 : vector<1x16x128xf32> to vector<16x128xf32>
    %742 = arith.truncf %741 : vector<16x128xf32> to vector<16x128xbf16>
    %c6_283 = arith.constant 6 : index
    %c0_284 = arith.constant 0 : index
    %c0_285 = arith.constant 0 : index
    %743 = vector.load %arg28[%c6_283, %c0_284, %c0_285] : memref<16x128x10xbf16, #tpu.memory_space<vmem>>, vector<1x128x10xbf16>
    %744 = vector.shape_cast %743 : vector<1x128x10xbf16> to vector<128x10xbf16>
    %cst_286 = arith.constant dense<0.000000e+00> : vector<16x10xf32>
    %745 = tpu.matmul %742, %744, %cst_286 {dimension_numbers = #tpu.dot_dimension_numbers<[1], [0], [0], [1], [0, 0, 1, 1], [], []>} : vector<16x128xbf16>, vector<128x10xbf16>, vector<16x10xf32> -> vector<16x10xf32>
    %746 = arith.addf %739, %745 : vector<16x10xf32>
    %c9_287 = arith.constant 9 : index
    %c0_288 = arith.constant 0 : index
    %c0_289 = arith.constant 0 : index
    %747 = vector.load %arg33[%c9_287, %c0_288, %c0_289] : memref<20x16x128xf32, #tpu.memory_space<vmem>>, vector<1x16x128xf32>
    %748 = vector.shape_cast %747 : vector<1x16x128xf32> to vector<16x128xf32>
    %749 = arith.truncf %748 : vector<16x128xf32> to vector<16x128xbf16>
    %c7_290 = arith.constant 7 : index
    %c0_291 = arith.constant 0 : index
    %c0_292 = arith.constant 0 : index
    %750 = vector.load %arg28[%c7_290, %c0_291, %c0_292] : memref<16x128x10xbf16, #tpu.memory_space<vmem>>, vector<1x128x10xbf16>
    %751 = vector.shape_cast %750 : vector<1x128x10xbf16> to vector<128x10xbf16>
    %cst_293 = arith.constant dense<0.000000e+00> : vector<16x10xf32>
    %752 = tpu.matmul %749, %751, %cst_293 {dimension_numbers = #tpu.dot_dimension_numbers<[1], [0], [0], [1], [0, 0, 1, 1], [], []>} : vector<16x128xbf16>, vector<128x10xbf16>, vector<16x10xf32> -> vector<16x10xf32>
    %753 = arith.addf %746, %752 : vector<16x10xf32>
    %c10_294 = arith.constant 10 : index
    %c0_295 = arith.constant 0 : index
    %c0_296 = arith.constant 0 : index
    %754 = vector.load %arg33[%c10_294, %c0_295, %c0_296] : memref<20x16x128xf32, #tpu.memory_space<vmem>>, vector<1x16x128xf32>
    %755 = vector.shape_cast %754 : vector<1x16x128xf32> to vector<16x128xf32>
    %756 = arith.truncf %755 : vector<16x128xf32> to vector<16x128xbf16>
    %c8_297 = arith.constant 8 : index
    %c0_298 = arith.constant 0 : index
    %c0_299 = arith.constant 0 : index
    %757 = vector.load %arg28[%c8_297, %c0_298, %c0_299] : memref<16x128x10xbf16, #tpu.memory_space<vmem>>, vector<1x128x10xbf16>
    %758 = vector.shape_cast %757 : vector<1x128x10xbf16> to vector<128x10xbf16>
    %cst_300 = arith.constant dense<0.000000e+00> : vector<16x10xf32>
    %759 = tpu.matmul %756, %758, %cst_300 {dimension_numbers = #tpu.dot_dimension_numbers<[1], [0], [0], [1], [0, 0, 1, 1], [], []>} : vector<16x128xbf16>, vector<128x10xbf16>, vector<16x10xf32> -> vector<16x10xf32>
    %760 = arith.addf %753, %759 : vector<16x10xf32>
    %c11_301 = arith.constant 11 : index
    %c0_302 = arith.constant 0 : index
    %c0_303 = arith.constant 0 : index
    %761 = vector.load %arg33[%c11_301, %c0_302, %c0_303] : memref<20x16x128xf32, #tpu.memory_space<vmem>>, vector<1x16x128xf32>
    %762 = vector.shape_cast %761 : vector<1x16x128xf32> to vector<16x128xf32>
    %763 = arith.truncf %762 : vector<16x128xf32> to vector<16x128xbf16>
    %c9_304 = arith.constant 9 : index
    %c0_305 = arith.constant 0 : index
    %c0_306 = arith.constant 0 : index
    %764 = vector.load %arg28[%c9_304, %c0_305, %c0_306] : memref<16x128x10xbf16, #tpu.memory_space<vmem>>, vector<1x128x10xbf16>
    %765 = vector.shape_cast %764 : vector<1x128x10xbf16> to vector<128x10xbf16>
    %cst_307 = arith.constant dense<0.000000e+00> : vector<16x10xf32>
    %766 = tpu.matmul %763, %765, %cst_307 {dimension_numbers = #tpu.dot_dimension_numbers<[1], [0], [0], [1], [0, 0, 1, 1], [], []>} : vector<16x128xbf16>, vector<128x10xbf16>, vector<16x10xf32> -> vector<16x10xf32>
    %767 = arith.addf %760, %766 : vector<16x10xf32>
    %c12_308 = arith.constant 12 : index
    %c0_309 = arith.constant 0 : index
    %c0_310 = arith.constant 0 : index
    %768 = vector.load %arg33[%c12_308, %c0_309, %c0_310] : memref<20x16x128xf32, #tpu.memory_space<vmem>>, vector<1x16x128xf32>
    %769 = vector.shape_cast %768 : vector<1x16x128xf32> to vector<16x128xf32>
    %770 = arith.truncf %769 : vector<16x128xf32> to vector<16x128xbf16>
    %c10_311 = arith.constant 10 : index
    %c0_312 = arith.constant 0 : index
    %c0_313 = arith.constant 0 : index
    %771 = vector.load %arg28[%c10_311, %c0_312, %c0_313] : memref<16x128x10xbf16, #tpu.memory_space<vmem>>, vector<1x128x10xbf16>
    %772 = vector.shape_cast %771 : vector<1x128x10xbf16> to vector<128x10xbf16>
    %cst_314 = arith.constant dense<0.000000e+00> : vector<16x10xf32>
    %773 = tpu.matmul %770, %772, %cst_314 {dimension_numbers = #tpu.dot_dimension_numbers<[1], [0], [0], [1], [0, 0, 1, 1], [], []>} : vector<16x128xbf16>, vector<128x10xbf16>, vector<16x10xf32> -> vector<16x10xf32>
    %774 = arith.addf %767, %773 : vector<16x10xf32>
    %c13_315 = arith.constant 13 : index
    %c0_316 = arith.constant 0 : index
    %c0_317 = arith.constant 0 : index
    %775 = vector.load %arg33[%c13_315, %c0_316, %c0_317] : memref<20x16x128xf32, #tpu.memory_space<vmem>>, vector<1x16x128xf32>
    %776 = vector.shape_cast %775 : vector<1x16x128xf32> to vector<16x128xf32>
    %777 = arith.truncf %776 : vector<16x128xf32> to vector<16x128xbf16>
    %c11_318 = arith.constant 11 : index
    %c0_319 = arith.constant 0 : index
    %c0_320 = arith.constant 0 : index
    %778 = vector.load %arg28[%c11_318, %c0_319, %c0_320] : memref<16x128x10xbf16, #tpu.memory_space<vmem>>, vector<1x128x10xbf16>
    %779 = vector.shape_cast %778 : vector<1x128x10xbf16> to vector<128x10xbf16>
    %cst_321 = arith.constant dense<0.000000e+00> : vector<16x10xf32>
    %780 = tpu.matmul %777, %779, %cst_321 {dimension_numbers = #tpu.dot_dimension_numbers<[1], [0], [0], [1], [0, 0, 1, 1], [], []>} : vector<16x128xbf16>, vector<128x10xbf16>, vector<16x10xf32> -> vector<16x10xf32>
    %781 = arith.addf %774, %780 : vector<16x10xf32>
    %c14_322 = arith.constant 14 : index
    %c0_323 = arith.constant 0 : index
    %c0_324 = arith.constant 0 : index
    %782 = vector.load %arg33[%c14_322, %c0_323, %c0_324] : memref<20x16x128xf32, #tpu.memory_space<vmem>>, vector<1x16x128xf32>
    %783 = vector.shape_cast %782 : vector<1x16x128xf32> to vector<16x128xf32>
    %784 = arith.truncf %783 : vector<16x128xf32> to vector<16x128xbf16>
    %c12_325 = arith.constant 12 : index
    %c0_326 = arith.constant 0 : index
    %c0_327 = arith.constant 0 : index
    %785 = vector.load %arg28[%c12_325, %c0_326, %c0_327] : memref<16x128x10xbf16, #tpu.memory_space<vmem>>, vector<1x128x10xbf16>
    %786 = vector.shape_cast %785 : vector<1x128x10xbf16> to vector<128x10xbf16>
    %cst_328 = arith.constant dense<0.000000e+00> : vector<16x10xf32>
    %787 = tpu.matmul %784, %786, %cst_328 {dimension_numbers = #tpu.dot_dimension_numbers<[1], [0], [0], [1], [0, 0, 1, 1], [], []>} : vector<16x128xbf16>, vector<128x10xbf16>, vector<16x10xf32> -> vector<16x10xf32>
    %788 = arith.addf %781, %787 : vector<16x10xf32>
    %c15_329 = arith.constant 15 : index
    %c0_330 = arith.constant 0 : index
    %c0_331 = arith.constant 0 : index
    %789 = vector.load %arg33[%c15_329, %c0_330, %c0_331] : memref<20x16x128xf32, #tpu.memory_space<vmem>>, vector<1x16x128xf32>
    %790 = vector.shape_cast %789 : vector<1x16x128xf32> to vector<16x128xf32>
    %791 = arith.truncf %790 : vector<16x128xf32> to vector<16x128xbf16>
    %c13_332 = arith.constant 13 : index
    %c0_333 = arith.constant 0 : index
    %c0_334 = arith.constant 0 : index
    %792 = vector.load %arg28[%c13_332, %c0_333, %c0_334] : memref<16x128x10xbf16, #tpu.memory_space<vmem>>, vector<1x128x10xbf16>
    %793 = vector.shape_cast %792 : vector<1x128x10xbf16> to vector<128x10xbf16>
    %cst_335 = arith.constant dense<0.000000e+00> : vector<16x10xf32>
    %794 = tpu.matmul %791, %793, %cst_335 {dimension_numbers = #tpu.dot_dimension_numbers<[1], [0], [0], [1], [0, 0, 1, 1], [], []>} : vector<16x128xbf16>, vector<128x10xbf16>, vector<16x10xf32> -> vector<16x10xf32>
    %795 = arith.addf %788, %794 : vector<16x10xf32>
    %c16_336 = arith.constant 16 : index
    %c0_337 = arith.constant 0 : index
    %c0_338 = arith.constant 0 : index
    %796 = vector.load %arg33[%c16_336, %c0_337, %c0_338] : memref<20x16x128xf32, #tpu.memory_space<vmem>>, vector<1x16x128xf32>
    %797 = vector.shape_cast %796 : vector<1x16x128xf32> to vector<16x128xf32>
    %798 = arith.truncf %797 : vector<16x128xf32> to vector<16x128xbf16>
    %c14_339 = arith.constant 14 : index
    %c0_340 = arith.constant 0 : index
    %c0_341 = arith.constant 0 : index
    %799 = vector.load %arg28[%c14_339, %c0_340, %c0_341] : memref<16x128x10xbf16, #tpu.memory_space<vmem>>, vector<1x128x10xbf16>
    %800 = vector.shape_cast %799 : vector<1x128x10xbf16> to vector<128x10xbf16>
    %cst_342 = arith.constant dense<0.000000e+00> : vector<16x10xf32>
    %801 = tpu.matmul %798, %800, %cst_342 {dimension_numbers = #tpu.dot_dimension_numbers<[1], [0], [0], [1], [0, 0, 1, 1], [], []>} : vector<16x128xbf16>, vector<128x10xbf16>, vector<16x10xf32> -> vector<16x10xf32>
    %802 = arith.addf %795, %801 : vector<16x10xf32>
    %c17_343 = arith.constant 17 : index
    %c0_344 = arith.constant 0 : index
    %c0_345 = arith.constant 0 : index
    %803 = vector.load %arg33[%c17_343, %c0_344, %c0_345] : memref<20x16x128xf32, #tpu.memory_space<vmem>>, vector<1x16x128xf32>
    %804 = vector.shape_cast %803 : vector<1x16x128xf32> to vector<16x128xf32>
    %805 = arith.truncf %804 : vector<16x128xf32> to vector<16x128xbf16>
    %c15_346 = arith.constant 15 : index
    %c0_347 = arith.constant 0 : index
    %c0_348 = arith.constant 0 : index
    %806 = vector.load %arg28[%c15_346, %c0_347, %c0_348] : memref<16x128x10xbf16, #tpu.memory_space<vmem>>, vector<1x128x10xbf16>
    %807 = vector.shape_cast %806 : vector<1x128x10xbf16> to vector<128x10xbf16>
    %cst_349 = arith.constant dense<0.000000e+00> : vector<16x10xf32>
    %808 = tpu.matmul %805, %807, %cst_349 {dimension_numbers = #tpu.dot_dimension_numbers<[1], [0], [0], [1], [0, 0, 1, 1], [], []>} : vector<16x128xbf16>, vector<128x10xbf16>, vector<16x10xf32> -> vector<16x10xf32>
    %809 = arith.addf %802, %808 : vector<16x10xf32>
    %c0_350 = arith.constant 0 : index
    %c0_351 = arith.constant 0 : index
    %810 = vector.load %arg29[%c0_350, %c0_351] : memref<1x10xf32, #tpu.memory_space<vmem>>, vector<1x10xf32>
    %811 = vector.broadcast %810 : vector<1x10xf32> to vector<16x10xf32>
    %812 = arith.addf %809, %811 : vector<16x10xf32>
    %813 = math.tanh %812 : vector<16x10xf32>
    %c0_352 = arith.constant 0 : index
    %c0_353 = arith.constant 0 : index
    %814 = vector.load %arg31[%c0_352, %c0_353] : memref<16x10xf32, #tpu.memory_space<vmem>>, vector<16x10xf32>
    tpu.vector_store %arg31[%c0_352, %c0_353], %813 {strides = array<i32>} : memref<16x10xf32, #tpu.memory_space<vmem>>, vector<16x10xf32>,
    return
  }
  func.func @transform_0(%arg0: i32) -> (i32, i32) {
    %c0_i32 = arith.constant 0 : i32
    %c0_i32_0 = arith.constant 0 : i32
    %c0_i32_1 = arith.constant 0 : i32
    return %c0_i32, %c0_i32_0 : i32, i32
  }
  func.func @transform_1(%arg0: i32) -> (i32, i32) {
    %c0_i32 = arith.constant 0 : i32
    %c0_i32_0 = arith.constant 0 : i32
    %c0_i32_1 = arith.constant 0 : i32
    return %c0_i32, %c0_i32_0 : i32, i32
  }
  func.func @transform_2(%arg0: i32) -> (i32, i32) {
    %c0_i32 = arith.constant 0 : i32
    %c0_i32_0 = arith.constant 0 : i32
    %c0_i32_1 = arith.constant 0 : i32
    return %c0_i32, %c0_i32_0 : i32, i32
  }
  func.func @transform_3(%arg0: i32) -> (i32, i32) {
    %c0_i32 = arith.constant 0 : i32
    %c0_i32_0 = arith.constant 0 : i32
    %c0_i32_1 = arith.constant 0 : i32
    return %c0_i32, %c0_i32_0 : i32, i32
  }
  func.func @transform_4(%arg0: i32) -> (i32, i32) {
    %c0_i32 = arith.constant 0 : i32
    %c0_i32_0 = arith.constant 0 : i32
    %c0_i32_1 = arith.constant 0 : i32
    return %c0_i32, %c0_i32_0 : i32, i32
  }
  func.func @transform_5(%arg0: i32) -> (i32, i32) {
    %c0_i32 = arith.constant 0 : i32
    %c0_i32_0 = arith.constant 0 : i32
    %c0_i32_1 = arith.constant 0 : i32
    return %c0_i32, %c0_i32_0 : i32, i32
  }
  func.func @transform_6(%arg0: i32) -> (i32, i32) {
    %c0_i32 = arith.constant 0 : i32
    %c0_i32_0 = arith.constant 0 : i32
    %c0_i32_1 = arith.constant 0 : i32
    return %c0_i32, %c0_i32_0 : i32, i32
  }
  func.func @transform_7(%arg0: i32) -> (i32, i32) {
    %c0_i32 = arith.constant 0 : i32
    %c0_i32_0 = arith.constant 0 : i32
    %c0_i32_1 = arith.constant 0 : i32
    return %c0_i32, %c0_i32_0 : i32, i32
  }
  func.func @transform_8(%arg0: i32) -> (i32, i32) {
    %c0_i32 = arith.constant 0 : i32
    %c0_i32_0 = arith.constant 0 : i32
    %c0_i32_1 = arith.constant 0 : i32
    return %c0_i32, %c0_i32_0 : i32, i32
  }
  func.func @transform_9(%arg0: i32) -> (i32, i32, i32) {
    %c0_i32 = arith.constant 0 : i32
    %c0_i32_0 = arith.constant 0 : i32
    %c0_i32_1 = arith.constant 0 : i32
    %c0_i32_2 = arith.constant 0 : i32
    return %c0_i32, %c0_i32_0, %c0_i32_1 : i32, i32, i32
  }
  func.func @transform_10(%arg0: i32) -> (i32, i32) {
    %c0_i32 = arith.constant 0 : i32
    %c0_i32_0 = arith.constant 0 : i32
    %c0_i32_1 = arith.constant 0 : i32
    return %c0_i32, %c0_i32_0 : i32, i32
  }
  func.func @transform_11(%arg0: i32) -> (i32, i32) {
    %c0_i32 = arith.constant 0 : i32
    %c0_i32_0 = arith.constant 0 : i32
    %c0_i32_1 = arith.constant 0 : i32
    return %c0_i32, %c0_i32_0 : i32, i32
  }
  func.func @transform_12(%arg0: i32) -> (i32, i32) {
    %c0_i32 = arith.constant 0 : i32
    %c0_i32_0 = arith.constant 0 : i32
    %c0_i32_1 = arith.constant 0 : i32
    return %c0_i32, %c0_i32_0 : i32, i32
  }
  func.func @transform_13(%arg0: i32) -> (i32, i32, i32) {
    %c0_i32 = arith.constant 0 : i32
    %c0_i32_0 = arith.constant 0 : i32
    %c0_i32_1 = arith.constant 0 : i32
    %c0_i32_2 = arith.constant 0 : i32
    return %c0_i32, %c0_i32_0, %c0_i32_1 : i32, i32, i32
  }
  func.func @transform_14(%arg0: i32) -> (i32, i32) {
    %c0_i32 = arith.constant 0 : i32
    %c0_i32_0 = arith.constant 0 : i32
    %c0_i32_1 = arith.constant 0 : i32
    return %c0_i32, %c0_i32_0 : i32, i32
  }
  func.func @transform_15(%arg0: i32) -> (i32, i32) {
    %c0_i32 = arith.constant 0 : i32
    %c0_i32_0 = arith.constant 0 : i32
    %c0_i32_1 = arith.constant 0 : i32
    return %c0_i32, %c0_i32_0 : i32, i32
  }
  func.func @transform_16(%arg0: i32) -> (i32, i32) {
    %c0_i32 = arith.constant 0 : i32
    %c0_i32_0 = arith.constant 0 : i32
    %c0_i32_1 = arith.constant 0 : i32
    return %c0_i32, %c0_i32_0 : i32, i32
  }
  func.func @transform_17(%arg0: i32) -> (i32, i32, i32) {
    %c0_i32 = arith.constant 0 : i32
    %c0_i32_0 = arith.constant 0 : i32
    %c0_i32_1 = arith.constant 0 : i32
    %c0_i32_2 = arith.constant 0 : i32
    return %c0_i32, %c0_i32_0, %c0_i32_1 : i32, i32, i32
  }
  func.func @transform_18(%arg0: i32) -> (i32, i32) {
    %c0_i32 = arith.constant 0 : i32
    %c0_i32_0 = arith.constant 0 : i32
    %c0_i32_1 = arith.constant 0 : i32
    return %c0_i32, %c0_i32_0 : i32, i32
  }
  func.func @transform_19(%arg0: i32) -> (i32, i32) {
    %c0_i32 = arith.constant 0 : i32
    %c0_i32_0 = arith.constant 0 : i32
    %c0_i32_1 = arith.constant 0 : i32
    return %c0_i32, %c0_i32_0 : i32, i32
  }
  func.func @transform_20(%arg0: i32) -> (i32, i32) {
    %c0_i32 = arith.constant 0 : i32
    %c0_i32_0 = arith.constant 0 : i32
    %c0_i32_1 = arith.constant 0 : i32
    return %c0_i32, %c0_i32_0 : i32, i32
  }
  func.func @transform_21(%arg0: i32) -> (i32, i32, i32) {
    %c0_i32 = arith.constant 0 : i32
    %c0_i32_0 = arith.constant 0 : i32
    %c0_i32_1 = arith.constant 0 : i32
    %c0_i32_2 = arith.constant 0 : i32
    return %c0_i32, %c0_i32_0, %c0_i32_1 : i32, i32, i32
  }
  func.func @transform_22(%arg0: i32) -> (i32, i32) {
    %c0_i32 = arith.constant 0 : i32
    %c0_i32_0 = arith.constant 0 : i32
    %c0_i32_1 = arith.constant 0 : i32
    return %c0_i32, %c0_i32_0 : i32, i32
  }
  func.func @transform_23(%arg0: i32) -> (i32, i32) {
    %c0_i32 = arith.constant 0 : i32
    %c0_i32_0 = arith.constant 0 : i32
    %c0_i32_1 = arith.constant 0 : i32
    return %c0_i32, %c0_i32_0 : i32, i32
  }
  func.func @transform_24(%arg0: i32) -> (i32, i32) {
    %c0_i32 = arith.constant 0 : i32
    %c0_i32_0 = arith.constant 0 : i32
    %c0_i32_1 = arith.constant 0 : i32
    return %c0_i32, %c0_i32_0 : i32, i32
  }
  func.func @transform_25(%arg0: i32) -> (i32, i32, i32) {
    %c0_i32 = arith.constant 0 : i32
    %c0_i32_0 = arith.constant 0 : i32
    %c0_i32_1 = arith.constant 0 : i32
    %c0_i32_2 = arith.constant 0 : i32
    return %c0_i32, %c0_i32_0, %c0_i32_1 : i32, i32, i32
  }
  func.func @transform_26(%arg0: i32) -> (i32, i32) {
    %c0_i32 = arith.constant 0 : i32
    %c0_i32_0 = arith.constant 0 : i32
    %c0_i32_1 = arith.constant 0 : i32
    return %c0_i32, %c0_i32_0 : i32, i32
  }
  func.func @transform_27(%arg0: i32) -> (i32, i32, i32) {
    %c0_i32 = arith.constant 0 : i32
    %c0_i32_0 = arith.constant 0 : i32
    %c0_i32_1 = arith.constant 0 : i32
    %c0_i32_2 = arith.constant 0 : i32
    return %c0_i32, %c0_i32_0, %c0_i32_1 : i32, i32, i32
  }
  func.func @transform_28(%arg0: i32) -> (i32, i32) {
    %c0_i32 = arith.constant 0 : i32
    %c0_i32_0 = arith.constant 0 : i32
    %c0_i32_1 = arith.constant 0 : i32
    return %c0_i32, %c0_i32_0 : i32, i32
  }
  func.func @transform_29(%arg0: i32) -> (i32, i32) {
    %c0_i32 = arith.constant 0 : i32
    %c0_i32_0 = arith.constant 0 : i32
    %c0_i32_1 = arith.constant 0 : i32
    return %c0_i32, %c0_i32_0 : i32, i32
  }
  func.func @transform_30(%arg0: i32) -> (i32, i32) {
    %c0_i32 = arith.constant 0 : i32
    %c0_i32_0 = arith.constant 0 : i32
    %c0_i32_1 = arith.constant 0 : i32
    return %c0_i32, %c0_i32_0 : i32, i32
  }
}

</mosaic_0001>

<llo_original>
// kernel: tpu_custom_call.1
$region0: #{tpu_custom_call.1}
  #allocation0 [shape = 'u32[]', space=smem, size = 0x4, offset = 0x4, fixed_abs, tag = 'smem constant byte address 0x4 - core index']
  #allocation1 [shape = 'u32[72,128]{1,0:T(1,128)}', space=vmem, size = 0x9000, scoped, tag = 'internal scratch']
  #allocation2 [shape = 'f32[20,16,128]{2,1,0:T(8,128)}', space=vmem, size = 0x28000, scoped, tag = 'scratch operand']
  #allocation3 [shape = 'f32[20,16,128]{2,1,0:T(8,128)}', space=vmem, size = 0x28000, scoped, tag = 'scratch operand']
  %s0 = inlined_call_operand.smem [shape: u32[31], index: -1, kind: input, shape index: {}]
  %s1 = sld [smem:[%s0]]
  %s2 = scalar_lea.smem %s0, 1
  %s3 = sld [smem:[%s2]]
  %s4 = scalar_lea.smem %s0, 2
  %s5 = sld [smem:[%s4]]
  %s6 = scalar_lea.smem %s0, 3
  %s7 = sld [smem:[%s6]]
  %s8 = scalar_lea.smem %s0, 4
  %s9 = sld [smem:[%s8]]
  %s10 = scalar_lea.smem %s0, 5
  %s11 = sld [smem:[%s10]]
  %s12 = scalar_lea.smem %s0, 6
  %s13 = sld [smem:[%s12]]
  %s14 = scalar_lea.smem %s0, 7
  %s15 = sld [smem:[%s14]]
  %s16 = scalar_lea.smem %s0, 8
  %s17 = sld [smem:[%s16]]
  %s18 = scalar_lea.smem %s0, 9
  %s19 = sld [smem:[%s18]]
  %s20 = scalar_lea.smem %s0, 10
  %s21 = sld [smem:[%s20]]
  %s22 = scalar_lea.smem %s0, 11
  %s23 = sld [smem:[%s22]]
  %s24 = scalar_lea.smem %s0, 12
  %s25 = sld [smem:[%s24]]
  %s26 = scalar_lea.smem %s0, 13
  %s27 = sld [smem:[%s26]]
  %s28 = scalar_lea.smem %s0, 14
  %s29 = sld [smem:[%s28]]
  %s30 = scalar_lea.smem %s0, 15
  %s31 = sld [smem:[%s30]]
  %s32 = scalar_lea.smem %s0, 16
  %s33 = sld [smem:[%s32]]
  %s34 = scalar_lea.smem %s0, 17
  %s35 = sld [smem:[%s34]]
  %s36 = scalar_lea.smem %s0, 18
  %s37 = sld [smem:[%s36]]
  %s38 = scalar_lea.smem %s0, 19
  %s39 = sld [smem:[%s38]]
  %s40 = scalar_lea.smem %s0, 20
  %s41 = sld [smem:[%s40]]
  %s42 = scalar_lea.smem %s0, 21
  %s43 = sld [smem:[%s42]]
  %s44 = scalar_lea.smem %s0, 22
  %s45 = sld [smem:[%s44]]
  %s46 = scalar_lea.smem %s0, 23
  %s47 = sld [smem:[%s46]]
  %s48 = scalar_lea.smem %s0, 24
  %s49 = sld [smem:[%s48]]
  %s50 = scalar_lea.smem %s0, 25
  %s51 = sld [smem:[%s50]]
  %s52 = scalar_lea.smem %s0, 26
  %s53 = sld [smem:[%s52]]
  %s54 = scalar_lea.smem %s0, 27
  %s55 = sld [smem:[%s54]]
  %s56 = scalar_lea.smem %s0, 28
  %s57 = sld [smem:[%s56]]
  %s58 = scalar_lea.smem %s0, 29
  %s59 = sld [smem:[%s58]]
  %s60 = scalar_lea.smem %s0, 30
  %s61 = sld [smem:[%s60]]
  %62 = xla_tuple %s59, %s61
  %s63 = sld [smem:[#allocation0]]
  $region212: #{tpu_custom_call.1} parent=0
    _
  %s65 = ssub.s32 1, %s63
  %s66 = scalar_select 0, %s65, %s63
  $region1: #{tpu_custom_call.1} parent=0
    #allocation4 [shape = 'u8[163840]{0}', space=vmem, size = 0x28000, scoped, tag = 'input window, operand 21, single buffered']
    #allocation5 [shape = 's32[1]{0}', space=sflag, size = 0x4, scoped, tag = 'scoped memory for tpu_custom_call.1']
    #allocation6 [shape = 's32[1]{0}', space=sflag, size = 0x4, scoped, tag = 'scoped memory for tpu_custom_call.1']
    #allocation7 [shape = 'u8[163840]{0}', space=vmem, size = 0x28000, scoped, tag = 'input window, operand 25, single buffered']
    #allocation8 [shape = 's32[1]{0}', space=sflag, size = 0x4, scoped, tag = 'scoped memory for tpu_custom_call.1']
    #allocation9 [shape = 'u8[8192]{0}', space=vmem, size = 0x2000, scoped, tag = 'output window, operand 0, single buffered']
    #allocation10 [shape = 'u8[8192]{0}', space=vmem, size = 0x2000, scoped, tag = 'output window, operand 1, single buffered']
    #allocation11 [shape = 's32[1]{0}', space=sflag, size = 0x4, scoped, tag = 'scoped memory for tpu_custom_call.1']
    %67 = vsyncpa [#allocation5], 0
    %68 = vsyncpa [#allocation8], 0
    %69 = vsyncpa [#allocation6], 0
    %70 = vsyncpa [#allocation11], 0
    // Predicated region
    $region2: #{tpu_custom_call.1} parent=1 // pred_check
      _
    $region3: #{tpu_custom_call.1} parent=1 // pred_check_branch
      %72 = sbr.rel (0) target = $region5
    $region4: #{tpu_custom_call.1} parent=1 // pred_region
      _
    $region5: #{tpu_custom_call.1} parent=1 // pred_fallthru
      _
    // Predicated region
    $region6: #{tpu_custom_call.1} parent=1 // pred_check
      _
    $region7: #{tpu_custom_call.1} parent=1 // pred_check_branch
      %74 = sbr.rel (0) target = $region9
    $region8: #{tpu_custom_call.1} parent=1 // pred_region
      _
    $region9: #{tpu_custom_call.1} parent=1 // pred_fallthru
      _
    // Predicated region
    $region10: #{tpu_custom_call.1} parent=1 // pred_check
      _
    $region11: #{tpu_custom_call.1} parent=1 // pred_check_branch
      %76 = sbr.rel (0) target = $region13
    $region12: #{tpu_custom_call.1} parent=1 // pred_region
      _
    $region13: #{tpu_custom_call.1} parent=1 // pred_fallthru
      _
    // Predicated region
    $region14: #{tpu_custom_call.1} parent=1 // pred_check
      _
    $region15: #{tpu_custom_call.1} parent=1 // pred_check_branch
      %78 = sbr.rel (0) target = $region17
    $region16: #{tpu_custom_call.1} parent=1 // pred_region
      _
    $region17: #{tpu_custom_call.1} parent=1 // pred_fallthru
      _
    // Predicated region
    $region18: #{tpu_custom_call.1} parent=1 // pred_check
      _
    $region19: #{tpu_custom_call.1} parent=1 // pred_check_branch
      %80 = sbr.rel (0) target = $region21
    $region20: #{tpu_custom_call.1} parent=1 // pred_region
      _
    $region21: #{tpu_custom_call.1} parent=1 // pred_fallthru
      _
    // Predicated region
    $region22: #{tpu_custom_call.1} parent=1 // pred_check
      _
    $region23: #{tpu_custom_call.1} parent=1 // pred_check_branch
      %82 = sbr.rel (0) target = $region25
    $region24: #{tpu_custom_call.1} parent=1 // pred_region
      _
    $region25: #{tpu_custom_call.1} parent=1 // pred_fallthru
      _
    // Predicated region
    $region26: #{tpu_custom_call.1} parent=1 // pred_check
      _
    $region27: #{tpu_custom_call.1} parent=1 // pred_check_branch
      %84 = sbr.rel (0) target = $region29
    $region28: #{tpu_custom_call.1} parent=1 // pred_region
      _
    $region29: #{tpu_custom_call.1} parent=1 // pred_fallthru
      _
    // Predicated region
    $region30: #{tpu_custom_call.1} parent=1 // pred_check
      _
    $region31: #{tpu_custom_call.1} parent=1 // pred_check_branch
      %86 = sbr.rel (0) target = $region33
    $region32: #{tpu_custom_call.1} parent=1 // pred_region
      _
    $region33: #{tpu_custom_call.1} parent=1 // pred_fallthru
      _
    // Predicated region
    $region34: #{tpu_custom_call.1} parent=1 // pred_check
      _
    $region35: #{tpu_custom_call.1} parent=1 // pred_check_branch
      %88 = sbr.rel (0) target = $region37
    $region36: #{tpu_custom_call.1} parent=1 // pred_region
      _
    $region37: #{tpu_custom_call.1} parent=1 // pred_fallthru
      _
    // Predicated region
    $region38: #{tpu_custom_call.1} parent=1 // pred_check
      _
    $region39: #{tpu_custom_call.1} parent=1 // pred_check_branch
      %90 = sbr.rel (0) target = $region41
    $region40: #{tpu_custom_call.1} parent=1 // pred_region
      _
    $region41: #{tpu_custom_call.1} parent=1 // pred_fallthru
      _
    // Predicated region
    $region42: #{tpu_custom_call.1} parent=1 // pred_check
      _
    $region43: #{tpu_custom_call.1} parent=1 // pred_check_branch
      %92 = sbr.rel (0) target = $region45
    $region44: #{tpu_custom_call.1} parent=1 // pred_region
      _
    $region45: #{tpu_custom_call.1} parent=1 // pred_fallthru
      _
    // Predicated region
    $region46: #{tpu_custom_call.1} parent=1 // pred_check
      _
    $region47: #{tpu_custom_call.1} parent=1 // pred_check_branch
      %94 = sbr.rel (0) target = $region49
    $region48: #{tpu_custom_call.1} parent=1 // pred_region
      _
    $region49: #{tpu_custom_call.1} parent=1 // pred_fallthru
      _
    // Predicated region
    $region50: #{tpu_custom_call.1} parent=1 // pred_check
      _
    $region51: #{tpu_custom_call.1} parent=1 // pred_check_branch
      %96 = sbr.rel (0) target = $region53
    $region52: #{tpu_custom_call.1} parent=1 // pred_region
      _
    $region53: #{tpu_custom_call.1} parent=1 // pred_fallthru
      _
    // Predicated region
    $region54: #{tpu_custom_call.1} parent=1 // pred_check
      _
    $region55: #{tpu_custom_call.1} parent=1 // pred_check_branch
      %98 = sbr.rel (0) target = $region57
    $region56: #{tpu_custom_call.1} parent=1 // pred_region
      _
    $region57: #{tpu_custom_call.1} parent=1 // pred_fallthru
      _
    // Predicated region
    $region58: #{tpu_custom_call.1} parent=1 // pred_check
      _
    $region59: #{tpu_custom_call.1} parent=1 // pred_check_branch
      %100 = sbr.rel (0) target = $region61
    $region60: #{tpu_custom_call.1} parent=1 // pred_region
      _
    $region61: #{tpu_custom_call.1} parent=1 // pred_fallthru
      _
    // Predicated region
    $region62: #{tpu_custom_call.1} parent=1 // pred_check
      _
    $region63: #{tpu_custom_call.1} parent=1 // pred_check_branch
      %102 = sbr.rel (0) target = $region65
    $region64: #{tpu_custom_call.1} parent=1 // pred_region
      _
    $region65: #{tpu_custom_call.1} parent=1 // pred_fallthru
      _
    // Predicated region
    $region66: #{tpu_custom_call.1} parent=1 // pred_check
      _
    $region67: #{tpu_custom_call.1} parent=1 // pred_check_branch
      %104 = sbr.rel (0) target = $region69
    $region68: #{tpu_custom_call.1} parent=1 // pred_region
      _
    $region69: #{tpu_custom_call.1} parent=1 // pred_fallthru
      _
    // Predicated region
    $region70: #{tpu_custom_call.1} parent=1 // pred_check
      _
    $region71: #{tpu_custom_call.1} parent=1 // pred_check_branch
      %106 = sbr.rel (0) target = $region73
    $region72: #{tpu_custom_call.1} parent=1 // pred_region
      _
    $region73: #{tpu_custom_call.1} parent=1 // pred_fallthru
      _
    // Predicated region
    $region74: #{tpu_custom_call.1} parent=1 // pred_check
      _
    $region75: #{tpu_custom_call.1} parent=1 // pred_check_branch
      %108 = sbr.rel (0) target = $region77
    $region76: #{tpu_custom_call.1} parent=1 // pred_region
      _
    $region77: #{tpu_custom_call.1} parent=1 // pred_fallthru
      _
    // Predicated region
    $region78: #{tpu_custom_call.1} parent=1 // pred_check
      _
    $region79: #{tpu_custom_call.1} parent=1 // pred_check_branch
      %110 = sbr.rel (0) target = $region81
    $region80: #{tpu_custom_call.1} parent=1 // pred_region
      _
    $region81: #{tpu_custom_call.1} parent=1 // pred_fallthru
      _
    // Predicated region
    $region82: #{tpu_custom_call.1} parent=1 // pred_check
      _
    $region83: #{tpu_custom_call.1} parent=1 // pred_check_branch
      %112 = sbr.rel (0) target = $region85
    $region84: #{tpu_custom_call.1} parent=1 // pred_region
      _
    $region85: #{tpu_custom_call.1} parent=1 // pred_fallthru
      _
    // Predicated region
    $region86: #{tpu_custom_call.1} parent=1 // pred_check
      _
    $region87: #{tpu_custom_call.1} parent=1 // pred_check_branch
      %114 = sbr.rel (0) target = $region89
    $region88: #{tpu_custom_call.1} parent=1 // pred_region
      %116 = vsyncadd [#allocation5], 0
      %s117 = sshll.u32 %s43, 4
      %s118 = int_to_ptr.hbm [resolvable:$true] %s117
      %s119 = sshll.u32 [#allocation4], 4
      %s120 = int_to_ptr.vmem [resolvable:$true] %s119
      %125 = dma.hbm_to_vmem [thread:$0]  %s118, 5120, %s120, [#allocation5], 64, 64, 4
    $region89: #{tpu_custom_call.1} parent=1 // pred_fallthru
      _
    // Predicated region
    $region90: #{tpu_custom_call.1} parent=1 // pred_check
      _
    $region91: #{tpu_custom_call.1} parent=1 // pred_check_branch
      %127 = sbr.rel (0) target = $region93
    $region92: #{tpu_custom_call.1} parent=1 // pred_region
      _
    $region93: #{tpu_custom_call.1} parent=1 // pred_fallthru
      _
    // Predicated region
    $region94: #{tpu_custom_call.1} parent=1 // pred_check
      _
    $region95: #{tpu_custom_call.1} parent=1 // pred_check_branch
      %129 = sbr.rel (0) target = $region97
    $region96: #{tpu_custom_call.1} parent=1 // pred_region
      _
    $region97: #{tpu_custom_call.1} parent=1 // pred_fallthru
      _
    // Predicated region
    $region98: #{tpu_custom_call.1} parent=1 // pred_check
      _
    $region99: #{tpu_custom_call.1} parent=1 // pred_check_branch
      %131 = sbr.rel (0) target = $region101
    $region100: #{tpu_custom_call.1} parent=1 // pred_region
      _
    $region101: #{tpu_custom_call.1} parent=1 // pred_fallthru
      _
    // Predicated region
    $region102: #{tpu_custom_call.1} parent=1 // pred_check
      _
    $region103: #{tpu_custom_call.1} parent=1 // pred_check_branch
      %133 = sbr.rel (0) target = $region105
    $region104: #{tpu_custom_call.1} parent=1 // pred_region
      %135 = vsyncadd [#allocation8], 0
      %s136 = sshll.u32 %s51, 4
      %s137 = int_to_ptr.hbm [resolvable:$true] %s136
      %s138 = sshll.u32 [#allocation7], 4
      %s139 = int_to_ptr.vmem [resolvable:$true] %s138
      %144 = dma.hbm_to_vmem [thread:$0]  %s137, 5120, %s139, [#allocation8], 64, 64, 4
    $region105: #{tpu_custom_call.1} parent=1 // pred_fallthru
      _
    // Predicated region
    $region106: #{tpu_custom_call.1} parent=1 // pred_check
      _
    $region107: #{tpu_custom_call.1} parent=1 // pred_check_branch
      %146 = sbr.rel (0) target = $region109
    $region108: #{tpu_custom_call.1} parent=1 // pred_region
      _
    $region109: #{tpu_custom_call.1} parent=1 // pred_fallthru
      _
    // Predicated region
    $region110: #{tpu_custom_call.1} parent=1 // pred_check
      _
    $region111: #{tpu_custom_call.1} parent=1 // pred_check_branch
      %148 = sbr.rel (0) target = $region113
    $region112: #{tpu_custom_call.1} parent=1 // pred_region
      _
    $region113: #{tpu_custom_call.1} parent=1 // pred_fallthru
      _
    // Predicated region
    $region114: #{tpu_custom_call.1} parent=1 // pred_check
      _
    $region115: #{tpu_custom_call.1} parent=1 // pred_check_branch
      %150 = sbr.rel (0) target = $region117
    $region116: #{tpu_custom_call.1} parent=1 // pred_region
      _
    $region117: #{tpu_custom_call.1} parent=1 // pred_fallthru
      _
    // Predicated region
    $region118: #{tpu_custom_call.1} parent=1 // pred_check
      _
    $region119: #{tpu_custom_call.1} parent=1 // pred_check_branch
      %152 = sbr.rel (0) target = $region121
    $region120: #{tpu_custom_call.1} parent=1 // pred_region
      %154 = dma.done [#allocation5], 5120
    $region121: #{tpu_custom_call.1} parent=1 // pred_fallthru
      _
    // Predicated region
    $region122: #{tpu_custom_call.1} parent=1 // pred_check
      _
    $region123: #{tpu_custom_call.1} parent=1 // pred_check_branch
      %156 = sbr.rel (0) target = $region125
    $region124: #{tpu_custom_call.1} parent=1 // pred_region
      %158 = dma.done [#allocation8], 5120
    $region125: #{tpu_custom_call.1} parent=1 // pred_fallthru
      _
    %v159 = vlaneseq
    %v160 = vand.u32 %v159, 127
    %v161 = vld [vmem:[%s1] sm:$0xff]
    %v162 = vld [vmem:[%s1 + $0x8] sm:$0xff]
    %163 = vset.pattern.permute.xlu0 0
    %164 = vperm.xlu0 %163, %v161
    %v165 = vpop.permute.xlu0 %164
    %166 = vset.pattern.permute.xlu0 0
    %167 = vperm.xlu0 %166, %v162
    %v168 = vpop.permute.xlu0 %167
    %vm169 = vcmp.eq.s32.totalorder %v165, %v160
    %vm170 = vcmp.eq.s32.totalorder %v168, %v160
    %v171 = vsel %vm169, 1, 0
    %v172 = vsel %vm170, 1, 0
    %v173 = vcvt.s32.f32 %v171
    %v174 = vcvt.s32.f32 %v172
    %v175 = vld [vmem:[%s7] sm:$0xff]
    %v176 = vld [vmem:[%s7 + $0x8] sm:$0xff]
    %v177 = vld [vmem:[%s7 + $0x10] sm:$0xf]
    %v178 = vld [vmem:[%s9] sm:$0x1]
    %v180 = vperm.slane %v178, 0
    %vm182 = vcmask 162816
    %v184 = vsel %vm182, %v173, 0
    %v187 = vsel %vm182, %v174, 0
    %vm189 = vcmask 1043456
    %v191 = vsel %vm189, %v177, 0
    %193 = vmatpush.msra.mxu0 0.0
    %194 = vmatpush.msra.mxu0 0.0
    %195 = vmatpush.msra.mxu0 0.0
    %196 = vmatpush.msra.mxu0 0.0
    %197 = vmatpush.msra.mxu0 0.0
    %198 = vmatpush.msra.mxu0 0.0
    %199 = vmatpush.msra.mxu0 0.0
    %200 = vmatpush.msra.mxu0 0.0
    %201 = vmatpush.msra.mxu0 0.0
    %202 = vmatpush.msra.mxu0 0.0
    %203 = vmatpush.msra.mxu0 0.0
    %204 = vmatpush.msra.mxu0 0.0
    %205 = vmatpush.msra.mxu0 0.0
    %206 = vmatpush.msra.mxu0 %v191
    %207 = vmatpush.msra.mxu0 %v176
    %208 = vmatpush.msra.mxu0 %v175
    %209 = vmatmul.f32.gmra.mxu0 %v184
    %v210 = vpop.f32.mrf.mxu0
    %v211 = vadd.f32 %v180, %v210
    %212 = vmatmul.f32.gmra.mxu0 %v187
    %v213 = vpop.f32.mrf.mxu0
    %v214 = vadd.f32 %v180, %v213
    %215 = vdwg.mxu0
    %v216 = vtanh.pop %v211
    %v217 = vtanh.pop %v214
    %vm218 = vcmask 80896
    %219 = vst.msk [vmem:[#allocation9] sm:$0xff] %vm218, %v216
    %220 = vst.msk [vmem:[#allocation9 + $0x8] sm:$0xff] %vm218, %v217
    %v221 = vld [vmem:[%s3] sm:$0xff]
    %v222 = vld [vmem:[%s3 + $0x8] sm:$0xff]
    %225 = vrot.lane.b32.xlu0 %v221, 10
    %v226 = vpop.permute.xlu0 %225
    %227 = vrot.lane.b32.xlu0 %v222, 10
    %v228 = vpop.permute.xlu0 %227
    %vm231 = vcmask 89168
    %232 = vst.msk [vmem:[#allocation9] sm:$0xff] %vm231, %v226
    %233 = vst.msk [vmem:[#allocation9 + $0x8] sm:$0xff] %vm231, %v228
    %v234 = vld [vmem:[%s5] sm:$0xff]
    %v235 = vld [vmem:[%s5 + $0x8] sm:$0xff]
    %238 = vrot.lane.b32.xlu0 %v234, 11
    %v239 = vpop.permute.xlu0 %238
    %240 = vrot.lane.b32.xlu0 %v235, 11
    %v241 = vpop.permute.xlu0 %240
    %vm244 = vcmask 130136
    %245 = vst.msk [vmem:[#allocation9] sm:$0xff] %vm244, %v239
    %246 = vst.msk [vmem:[#allocation9 + $0x8] sm:$0xff] %vm244, %v241
    %v247 = vld [vmem:[#allocation9] sm:$0xff]
    %v248 = vld [vmem:[#allocation9 + $0x8] sm:$0xff]
    %249 = vst [vmem:[#allocation2] sm:$0xff] 0.0
    %250 = vst [vmem:[#allocation2 + $0x8] sm:$0xff] 0.0
    %251 = vst [vmem:[#allocation2 + $0x10] sm:$0xff] 0.0
    %252 = vst [vmem:[#allocation2 + $0x18] sm:$0xff] 0.0
    %253 = vst [vmem:[#allocation2 + $0x20] sm:$0xff] 0.0
    %254 = vst [vmem:[#allocation2 + $0x28] sm:$0xff] 0.0
    %255 = vst [vmem:[#allocation2 + $0x30] sm:$0xff] 0.0
    %256 = vst [vmem:[#allocation2 + $0x38] sm:$0xff] 0.0
    %257 = vst [vmem:[#allocation2 + $0x40] sm:$0xff] 0.0
    %258 = vst [vmem:[#allocation2 + $0x48] sm:$0xff] 0.0
    %259 = vst [vmem:[#allocation2 + $0x50] sm:$0xff] 0.0
    %260 = vst [vmem:[#allocation2 + $0x58] sm:$0xff] 0.0
    %261 = vst [vmem:[#allocation2 + $0x60] sm:$0xff] 0.0
    %262 = vst [vmem:[#allocation2 + $0x68] sm:$0xff] 0.0
    %263 = vst [vmem:[#allocation2 + $0x70] sm:$0xff] 0.0
    %264 = vst [vmem:[#allocation2 + $0x78] sm:$0xff] 0.0
    %265 = vst [vmem:[#allocation2 + $0x80] sm:$0xff] 0.0
    %266 = vst [vmem:[#allocation2 + $0x88] sm:$0xff] 0.0
    %267 = vst [vmem:[#allocation2 + $0x90] sm:$0xff] 0.0
    %268 = vst [vmem:[#allocation2 + $0x98] sm:$0xff] 0.0
    %269 = vst [vmem:[#allocation2 + $0xa0] sm:$0xff] 0.0
    %270 = vst [vmem:[#allocation2 + $0xa8] sm:$0xff] 0.0
    %271 = vst [vmem:[#allocation2 + $0xb0] sm:$0xff] 0.0
    %272 = vst [vmem:[#allocation2 + $0xb8] sm:$0xff] 0.0
    %273 = vst [vmem:[#allocation2 + $0xc0] sm:$0xff] 0.0
    %274 = vst [vmem:[#allocation2 + $0xc8] sm:$0xff] 0.0
    %275 = vst [vmem:[#allocation2 + $0xd0] sm:$0xff] 0.0
    %276 = vst [vmem:[#allocation2 + $0xd8] sm:$0xff] 0.0
    %277 = vst [vmem:[#allocation2 + $0xe0] sm:$0xff] 0.0
    %278 = vst [vmem:[#allocation2 + $0xe8] sm:$0xff] 0.0
    %279 = vst [vmem:[#allocation2 + $0xf0] sm:$0xff] 0.0
    %280 = vst [vmem:[#allocation2 + $0xf8] sm:$0xff] 0.0
    %281 = vst [vmem:[#allocation2 + $0x100] sm:$0xff] 0.0
    %282 = vst [vmem:[#allocation2 + $0x108] sm:$0xff] 0.0
    %283 = vst [vmem:[#allocation2 + $0x110] sm:$0xff] 0.0
    %284 = vst [vmem:[#allocation2 + $0x118] sm:$0xff] 0.0
    %285 = vst [vmem:[#allocation2 + $0x120] sm:$0xff] 0.0
    %286 = vst [vmem:[#allocation2 + $0x128] sm:$0xff] 0.0
    %287 = vst [vmem:[#allocation2 + $0x130] sm:$0xff] 0.0
    %288 = vst [vmem:[#allocation2 + $0x138] sm:$0xff] 0.0
    %289 = vst [vmem:[#allocation3] sm:$0xff] 0.0
    %290 = vst [vmem:[#allocation3 + $0x8] sm:$0xff] 0.0
    %291 = vst [vmem:[#allocation3 + $0x10] sm:$0xff] 0.0
    %292 = vst [vmem:[#allocation3 + $0x18] sm:$0xff] 0.0
    %293 = vst [vmem:[#allocation3 + $0x20] sm:$0xff] 0.0
    %294 = vst [vmem:[#allocation3 + $0x28] sm:$0xff] 0.0
    %295 = vst [vmem:[#allocation3 + $0x30] sm:$0xff] 0.0
    %296 = vst [vmem:[#allocation3 + $0x38] sm:$0xff] 0.0
    %297 = vst [vmem:[#allocation3 + $0x40] sm:$0xff] 0.0
    %298 = vst [vmem:[#allocation3 + $0x48] sm:$0xff] 0.0
    %299 = vst [vmem:[#allocation3 + $0x50] sm:$0xff] 0.0
    %300 = vst [vmem:[#allocation3 + $0x58] sm:$0xff] 0.0
    %301 = vst [vmem:[#allocation3 + $0x60] sm:$0xff] 0.0
    %302 = vst [vmem:[#allocation3 + $0x68] sm:$0xff] 0.0
    %303 = vst [vmem:[#allocation3 + $0x70] sm:$0xff] 0.0
    %304 = vst [vmem:[#allocation3 + $0x78] sm:$0xff] 0.0
    %305 = vst [vmem:[#allocation3 + $0x80] sm:$0xff] 0.0
    %306 = vst [vmem:[#allocation3 + $0x88] sm:$0xff] 0.0
    %307 = vst [vmem:[#allocation3 + $0x90] sm:$0xff] 0.0
    %308 = vst [vmem:[#allocation3 + $0x98] sm:$0xff] 0.0
    %309 = vst [vmem:[#allocation3 + $0xa0] sm:$0xff] 0.0
    %310 = vst [vmem:[#allocation3 + $0xa8] sm:$0xff] 0.0
    %311 = vst [vmem:[#allocation3 + $0xb0] sm:$0xff] 0.0
    %312 = vst [vmem:[#allocation3 + $0xb8] sm:$0xff] 0.0
    %313 = vst [vmem:[#allocation3 + $0xc0] sm:$0xff] 0.0
    %314 = vst [vmem:[#allocation3 + $0xc8] sm:$0xff] 0.0
    %315 = vst [vmem:[#allocation3 + $0xd0] sm:$0xff] 0.0
    %316 = vst [vmem:[#allocation3 + $0xd8] sm:$0xff] 0.0
    %317 = vst [vmem:[#allocation3 + $0xe0] sm:$0xff] 0.0
    %318 = vst [vmem:[#allocation3 + $0xe8] sm:$0xff] 0.0
    %319 = vst [vmem:[#allocation3 + $0xf0] sm:$0xff] 0.0
    %320 = vst [vmem:[#allocation3 + $0xf8] sm:$0xff] 0.0
    %321 = vst [vmem:[#allocation3 + $0x100] sm:$0xff] 0.0
    %322 = vst [vmem:[#allocation3 + $0x108] sm:$0xff] 0.0
    %323 = vst [vmem:[#allocation3 + $0x110] sm:$0xff] 0.0
    %324 = vst [vmem:[#allocation3 + $0x118] sm:$0xff] 0.0
    %325 = vst [vmem:[#allocation3 + $0x120] sm:$0xff] 0.0
    %326 = vst [vmem:[#allocation3 + $0x128] sm:$0xff] 0.0
    %327 = vst [vmem:[#allocation3 + $0x130] sm:$0xff] 0.0
    %328 = vst [vmem:[#allocation3 + $0x138] sm:$0xff] 0.0
    %v329 = vld [vmem:[%s11] sm:$0x7]
    %v330 = vld [vmem:[%s13] sm:$0x1]
    %332 = vset.pattern.permute.xlu0 0
    %333 = vperm.xlu0 %332, %v247
    %v334 = vpop.permute.xlu0 %333
    %337 = vset.pattern.permute.xlu0 0
    %338 = vperm.xlu0 %337, %v248
    %v339 = vpop.permute.xlu0 %338
    %v341 = vperm.slane %v329, 1
    %v342 = vmul.f32 %v334, %v341
    %v343 = vmul.f32 %v339, %v341
    %v344 = vadd.f32 %v342, 0.0
    %v345 = vadd.f32 %v343, 0.0
    %346 = vset.pattern.permute.xlu0 1
    %347 = vperm.xlu0 %346, %v247
    %v348 = vpop.permute.xlu0 %347
    %350 = vset.pattern.permute.xlu0 1
    %351 = vperm.xlu0 %350, %v248
    %v352 = vpop.permute.xlu0 %351
    %v354 = vperm.slane %v329, 2
    %v355 = vmul.f32 %v348, %v354
    %v356 = vmul.f32 %v352, %v354
    %v357 = vadd.f32 %v344, %v355
    %v358 = vadd.f32 %v345, %v356
    %v360 = vperm.slane %v330, 0
    %v362 = vadd.f32 %v357, %v360
    %v363 = vadd.f32 %v358, %v360
    %vm364 = vcmp.ge.f32.partialorder %v362, 0.0
    %vm365 = vcmp.ge.f32.partialorder %v363, 0.0
    %v366 = vmul.f32 %v362, 0.2
    %v367 = vmul.f32 %v363, 0.2
    %v368 = vsel %vm364, %v362, %v366
    %v369 = vsel %vm365, %v363, %v367
    %s370 = scalar_lea.vmem [#allocation2], 32
    %371 = vst [vmem:[%s370] sm:$0xff] %v368
    %372 = vst [vmem:[%s370 + $0x8] sm:$0xff] %v369
    %v373 = vadd.f32 %v368, %v369
    %v374 = vrot.slane %v373, 4
    %v375 = vadd.f32 %v373, %v374
    %v376 = vrot.slane %v375, 2
    %v377 = vadd.f32 %v375, %v376
    %v378 = vrot.slane %v377, 1
    %v379 = vadd.f32 %v377, %v378
    %v380 = vadd.f32 %v379, 0.0
    %v381 = vmul.f32 %v368, %v368
    %v382 = vmul.f32 %v369, %v369
    %v383 = vadd.f32 %v381, %v382
    %v384 = vrot.slane %v383, 4
    %v385 = vadd.f32 %v383, %v384
    %v386 = vrot.slane %v385, 2
    %v387 = vadd.f32 %v385, %v386
    %v388 = vrot.slane %v387, 1
    %v389 = vadd.f32 %v387, %v388
    %v390 = vadd.f32 %v389, 0.0
    %v391 = vperm.slane %v329, 0
    %v392 = vmul.f32 %v334, %v391
    %v393 = vmul.f32 %v339, %v391
    %v394 = vadd.f32 %v392, 0.0
    %v395 = vadd.f32 %v393, 0.0
    %v396 = vmul.f32 %v348, %v341
    %v397 = vmul.f32 %v352, %v341
    %v398 = vadd.f32 %v394, %v396
    %v399 = vadd.f32 %v395, %v397
    %400 = vset.pattern.permute.xlu0 2
    %401 = vperm.xlu0 %400, %v247
    %v402 = vpop.permute.xlu0 %401
    %404 = vset.pattern.permute.xlu0 2
    %405 = vperm.xlu0 %404, %v248
    %v406 = vpop.permute.xlu0 %405
    %v408 = vmul.f32 %v402, %v354
    %v409 = vmul.f32 %v406, %v354
    %v410 = vadd.f32 %v398, %v408
    %v411 = vadd.f32 %v399, %v409
    %v412 = vadd.f32 %v410, %v360
    %v413 = vadd.f32 %v411, %v360
    %vm414 = vcmp.ge.f32.partialorder %v412, 0.0
    %vm415 = vcmp.ge.f32.partialorder %v413, 0.0
    %v416 = vmul.f32 %v412, 0.2
    %v417 = vmul.f32 %v413, 0.2
    %v418 = vsel %vm414, %v412, %v416
    %v419 = vsel %vm415, %v413, %v417
    %s420 = scalar_lea.vmem [#allocation2], 48
    %421 = vst [vmem:[%s420] sm:$0xff] %v418
    %422 = vst [vmem:[%s420 + $0x8] sm:$0xff] %v419
    %v423 = vadd.f32 %v418, %v419
    %v424 = vrot.slane %v423, 4
    %v425 = vadd.f32 %v423, %v424
    %v426 = vrot.slane %v425, 2
    %v427 = vadd.f32 %v425, %v426
    %v428 = vrot.slane %v427, 1
    %v429 = vadd.f32 %v427, %v428
    %v430 = vadd.f32 %v380, %v429
    %v431 = vmul.f32 %v418, %v418
    %v432 = vmul.f32 %v419, %v419
    %v433 = vadd.f32 %v431, %v432
    %v434 = vrot.slane %v433, 4
    %v435 = vadd.f32 %v433, %v434
    %v436 = vrot.slane %v435, 2
    %v437 = vadd.f32 %v435, %v436
    %v438 = vrot.slane %v437, 1
    %v439 = vadd.f32 %v437, %v438
    %v440 = vadd.f32 %v390, %v439
    %v441 = vmul.f32 %v348, %v391
    %v442 = vmul.f32 %v352, %v391
    %v443 = vadd.f32 %v441, 0.0
    %v444 = vadd.f32 %v442, 0.0
    %v445 = vmul.f32 %v402, %v341
    %v446 = vmul.f32 %v406, %v341
    %v447 = vadd.f32 %v443, %v445
    %v448 = vadd.f32 %v444, %v446
    %449 = vset.pattern.permute.xlu0 3
    %450 = vperm.xlu0 %449, %v247
    %v451 = vpop.permute.xlu0 %450
    %453 = vset.pattern.permute.xlu0 3
    %454 = vperm.xlu0 %453, %v248
    %v455 = vpop.permute.xlu0 %454
    %v457 = vmul.f32 %v451, %v354
    %v458 = vmul.f32 %v455, %v354
    %v459 = vadd.f32 %v447, %v457
    %v460 = vadd.f32 %v448, %v458
    %v461 = vadd.f32 %v459, %v360
    %v462 = vadd.f32 %v460, %v360
    %vm463 = vcmp.ge.f32.partialorder %v461, 0.0
    %vm464 = vcmp.ge.f32.partialorder %v462, 0.0
    %v465 = vmul.f32 %v461, 0.2
    %v466 = vmul.f32 %v462, 0.2
    %v467 = vsel %vm463, %v461, %v465
    %v468 = vsel %vm464, %v462, %v466
    %s469 = scalar_lea.vmem [#allocation2], 64
    %470 = vst [vmem:[%s469] sm:$0xff] %v467
    %471 = vst [vmem:[%s469 + $0x8] sm:$0xff] %v468
    %v472 = vadd.f32 %v467, %v468
    %v473 = vrot.slane %v472, 4
    %v474 = vadd.f32 %v472, %v473
    %v475 = vrot.slane %v474, 2
    %v476 = vadd.f32 %v474, %v475
    %v477 = vrot.slane %v476, 1
    %v478 = vadd.f32 %v476, %v477
    %v479 = vadd.f32 %v430, %v478
    %v480 = vmul.f32 %v467, %v467
    %v481 = vmul.f32 %v468, %v468
    %v482 = vadd.f32 %v480, %v481
    %v483 = vrot.slane %v482, 4
    %v484 = vadd.f32 %v482, %v483
    %v485 = vrot.slane %v484, 2
    %v486 = vadd.f32 %v484, %v485
    %v487 = vrot.slane %v486, 1
    %v488 = vadd.f32 %v486, %v487
    %v489 = vadd.f32 %v440, %v488
    %v490 = vmul.f32 %v402, %v391
    %v491 = vmul.f32 %v406, %v391
    %v492 = vadd.f32 %v490, 0.0
    %v493 = vadd.f32 %v491, 0.0
    %v494 = vmul.f32 %v451, %v341
    %v495 = vmul.f32 %v455, %v341
    %v496 = vadd.f32 %v492, %v494
    %v497 = vadd.f32 %v493, %v495
    %498 = vset.pattern.permute.xlu0 4
    %499 = vperm.xlu0 %498, %v247
    %v500 = vpop.permute.xlu0 %499
    %502 = vset.pattern.permute.xlu0 4
    %503 = vperm.xlu0 %502, %v248
    %v504 = vpop.permute.xlu0 %503
    %v506 = vmul.f32 %v500, %v354
    %v507 = vmul.f32 %v504, %v354
    %v508 = vadd.f32 %v496, %v506
    %v509 = vadd.f32 %v497, %v507
    %v510 = vadd.f32 %v508, %v360
    %v511 = vadd.f32 %v509, %v360
    %vm512 = vcmp.ge.f32.partialorder %v510, 0.0
    %vm513 = vcmp.ge.f32.partialorder %v511, 0.0
    %v514 = vmul.f32 %v510, 0.2
    %v515 = vmul.f32 %v511, 0.2
    %v516 = vsel %vm512, %v510, %v514
    %v517 = vsel %vm513, %v511, %v515
    %s518 = scalar_lea.vmem [#allocation2], 80
    %519 = vst [vmem:[%s518] sm:$0xff] %v516
    %520 = vst [vmem:[%s518 + $0x8] sm:$0xff] %v517
    %v521 = vadd.f32 %v516, %v517
    %v522 = vrot.slane %v521, 4
    %v523 = vadd.f32 %v521, %v522
    %v524 = vrot.slane %v523, 2
    %v525 = vadd.f32 %v523, %v524
    %v526 = vrot.slane %v525, 1
    %v527 = vadd.f32 %v525, %v526
    %v528 = vadd.f32 %v479, %v527
    %v529 = vmul.f32 %v516, %v516
    %v530 = vmul.f32 %v517, %v517
    %v531 = vadd.f32 %v529, %v530
    %v532 = vrot.slane %v531, 4
    %v533 = vadd.f32 %v531, %v532
    %v534 = vrot.slane %v533, 2
    %v535 = vadd.f32 %v533, %v534
    %v536 = vrot.slane %v535, 1
    %v537 = vadd.f32 %v535, %v536
    %v538 = vadd.f32 %v489, %v537
    %v539 = vmul.f32 %v451, %v391
    %v540 = vmul.f32 %v455, %v391
    %v541 = vadd.f32 %v539, 0.0
    %v542 = vadd.f32 %v540, 0.0
    %v543 = vmul.f32 %v500, %v341
    %v544 = vmul.f32 %v504, %v341
    %v545 = vadd.f32 %v541, %v543
    %v546 = vadd.f32 %v542, %v544
    %547 = vset.pattern.permute.xlu0 5
    %548 = vperm.xlu0 %547, %v247
    %v549 = vpop.permute.xlu0 %548
    %551 = vset.pattern.permute.xlu0 5
    %552 = vperm.xlu0 %551, %v248
    %v553 = vpop.permute.xlu0 %552
    %v555 = vmul.f32 %v549, %v354
    %v556 = vmul.f32 %v553, %v354
    %v557 = vadd.f32 %v545, %v555
    %v558 = vadd.f32 %v546, %v556
    %v559 = vadd.f32 %v557, %v360
    %v560 = vadd.f32 %v558, %v360
    %vm561 = vcmp.ge.f32.partialorder %v559, 0.0
    %vm562 = vcmp.ge.f32.partialorder %v560, 0.0
    %v563 = vmul.f32 %v559, 0.2
    %v564 = vmul.f32 %v560, 0.2
    %v565 = vsel %vm561, %v559, %v563
    %v566 = vsel %vm562, %v560, %v564
    %s567 = scalar_lea.vmem [#allocation2], 96
    %568 = vst [vmem:[%s567] sm:$0xff] %v565
    %569 = vst [vmem:[%s567 + $0x8] sm:$0xff] %v566
    %v570 = vadd.f32 %v565, %v566
    %v571 = vrot.slane %v570, 4
    %v572 = vadd.f32 %v570, %v571
    %v573 = vrot.slane %v572, 2
    %v574 = vadd.f32 %v572, %v573
    %v575 = vrot.slane %v574, 1
    %v576 = vadd.f32 %v574, %v575
    %v577 = vadd.f32 %v528, %v576
    %v578 = vmul.f32 %v565, %v565
    %v579 = vmul.f32 %v566, %v566
    %v580 = vadd.f32 %v578, %v579
    %v581 = vrot.slane %v580, 4
    %v582 = vadd.f32 %v580, %v581
    %v583 = vrot.slane %v582, 2
    %v584 = vadd.f32 %v582, %v583
    %v585 = vrot.slane %v584, 1
    %v586 = vadd.f32 %v584, %v585
    %v587 = vadd.f32 %v538, %v586
    %v588 = vmul.f32 %v500, %v391
    %v589 = vmul.f32 %v504, %v391
    %v590 = vadd.f32 %v588, 0.0
    %v591 = vadd.f32 %v589, 0.0
    %v592 = vmul.f32 %v549, %v341
    %v593 = vmul.f32 %v553, %v341
    %v594 = vadd.f32 %v590, %v592
    %v595 = vadd.f32 %v591, %v593
    %596 = vset.pattern.permute.xlu0 6
    %597 = vperm.xlu0 %596, %v247
    %v598 = vpop.permute.xlu0 %597
    %600 = vset.pattern.permute.xlu0 6
    %601 = vperm.xlu0 %600, %v248
    %v602 = vpop.permute.xlu0 %601
    %v604 = vmul.f32 %v598, %v354
    %v605 = vmul.f32 %v602, %v354
    %v606 = vadd.f32 %v594, %v604
    %v607 = vadd.f32 %v595, %v605
    %v608 = vadd.f32 %v606, %v360
    %v609 = vadd.f32 %v607, %v360
    %vm610 = vcmp.ge.f32.partialorder %v608, 0.0
    %vm611 = vcmp.ge.f32.partialorder %v609, 0.0
    %v612 = vmul.f32 %v608, 0.2
    %v613 = vmul.f32 %v609, 0.2
    %v614 = vsel %vm610, %v608, %v612
    %v615 = vsel %vm611, %v609, %v613
    %s616 = scalar_lea.vmem [#allocation2], 112
    %617 = vst [vmem:[%s616] sm:$0xff] %v614
    %618 = vst [vmem:[%s616 + $0x8] sm:$0xff] %v615
    %v619 = vadd.f32 %v614, %v615
    %v620 = vrot.slane %v619, 4
    %v621 = vadd.f32 %v619, %v620
    %v622 = vrot.slane %v621, 2
    %v623 = vadd.f32 %v621, %v622
    %v624 = vrot.slane %v623, 1
    %v625 = vadd.f32 %v623, %v624
    %v626 = vadd.f32 %v577, %v625
    %v627 = vmul.f32 %v614, %v614
    %v628 = vmul.f32 %v615, %v615
    %v629 = vadd.f32 %v627, %v628
    %v630 = vrot.slane %v629, 4
    %v631 = vadd.f32 %v629, %v630
    %v632 = vrot.slane %v631, 2
    %v633 = vadd.f32 %v631, %v632
    %v634 = vrot.slane %v633, 1
    %v635 = vadd.f32 %v633, %v634
    %v636 = vadd.f32 %v587, %v635
    %v637 = vmul.f32 %v549, %v391
    %v638 = vmul.f32 %v553, %v391
    %v639 = vadd.f32 %v637, 0.0
    %v640 = vadd.f32 %v638, 0.0
    %v641 = vmul.f32 %v598, %v341
    %v642 = vmul.f32 %v602, %v341
    %v643 = vadd.f32 %v639, %v641
    %v644 = vadd.f32 %v640, %v642
    %645 = vset.pattern.permute.xlu0 7
    %646 = vperm.xlu0 %645, %v247
    %v647 = vpop.permute.xlu0 %646
    %649 = vset.pattern.permute.xlu0 7
    %650 = vperm.xlu0 %649, %v248
    %v651 = vpop.permute.xlu0 %650
    %v653 = vmul.f32 %v647, %v354
    %v654 = vmul.f32 %v651, %v354
    %v655 = vadd.f32 %v643, %v653
    %v656 = vadd.f32 %v644, %v654
    %v657 = vadd.f32 %v655, %v360
    %v658 = vadd.f32 %v656, %v360
    %vm659 = vcmp.ge.f32.partialorder %v657, 0.0
    %vm660 = vcmp.ge.f32.partialorder %v658, 0.0
    %v661 = vmul.f32 %v657, 0.2
    %v662 = vmul.f32 %v658, 0.2
    %v663 = vsel %vm659, %v657, %v661
    %v664 = vsel %vm660, %v658, %v662
    %s665 = scalar_lea.vmem [#allocation2], 128
    %666 = vst [vmem:[%s665] sm:$0xff] %v663
    %667 = vst [vmem:[%s665 + $0x8] sm:$0xff] %v664
    %v668 = vadd.f32 %v663, %v664
    %v669 = vrot.slane %v668, 4
    %v670 = vadd.f32 %v668, %v669
    %v671 = vrot.slane %v670, 2
    %v672 = vadd.f32 %v670, %v671
    %v673 = vrot.slane %v672, 1
    %v674 = vadd.f32 %v672, %v673
    %v675 = vadd.f32 %v626, %v674
    %v676 = vmul.f32 %v663, %v663
    %v677 = vmul.f32 %v664, %v664
    %v678 = vadd.f32 %v676, %v677
    %v679 = vrot.slane %v678, 4
    %v680 = vadd.f32 %v678, %v679
    %v681 = vrot.slane %v680, 2
    %v682 = vadd.f32 %v680, %v681
    %v683 = vrot.slane %v682, 1
    %v684 = vadd.f32 %v682, %v683
    %v685 = vadd.f32 %v636, %v684
    %v686 = vmul.f32 %v598, %v391
    %v687 = vmul.f32 %v602, %v391
    %v688 = vadd.f32 %v686, 0.0
    %v689 = vadd.f32 %v687, 0.0
    %v690 = vmul.f32 %v647, %v341
    %v691 = vmul.f32 %v651, %v341
    %v692 = vadd.f32 %v688, %v690
    %v693 = vadd.f32 %v689, %v691
    %694 = vset.pattern.permute.xlu0 8
    %695 = vperm.xlu0 %694, %v247
    %v696 = vpop.permute.xlu0 %695
    %698 = vset.pattern.permute.xlu0 8
    %699 = vperm.xlu0 %698, %v248
    %v700 = vpop.permute.xlu0 %699
    %v702 = vmul.f32 %v696, %v354
    %v703 = vmul.f32 %v700, %v354
    %v704 = vadd.f32 %v692, %v702
    %v705 = vadd.f32 %v693, %v703
    %v706 = vadd.f32 %v704, %v360
    %v707 = vadd.f32 %v705, %v360
    %vm708 = vcmp.ge.f32.partialorder %v706, 0.0
    %vm709 = vcmp.ge.f32.partialorder %v707, 0.0
    %v710 = vmul.f32 %v706, 0.2
    %v711 = vmul.f32 %v707, 0.2
    %v712 = vsel %vm708, %v706, %v710
    %v713 = vsel %vm709, %v707, %v711
    %s714 = scalar_lea.vmem [#allocation2], 144
    %715 = vst [vmem:[%s714] sm:$0xff] %v712
    %716 = vst [vmem:[%s714 + $0x8] sm:$0xff] %v713
    %v717 = vadd.f32 %v712, %v713
    %v718 = vrot.slane %v717, 4
    %v719 = vadd.f32 %v717, %v718
    %v720 = vrot.slane %v719, 2
    %v721 = vadd.f32 %v719, %v720
    %v722 = vrot.slane %v721, 1
    %v723 = vadd.f32 %v721, %v722
    %v724 = vadd.f32 %v675, %v723
    %v725 = vmul.f32 %v712, %v712
    %v726 = vmul.f32 %v713, %v713
    %v727 = vadd.f32 %v725, %v726
    %v728 = vrot.slane %v727, 4
    %v729 = vadd.f32 %v727, %v728
    %v730 = vrot.slane %v729, 2
    %v731 = vadd.f32 %v729, %v730
    %v732 = vrot.slane %v731, 1
    %v733 = vadd.f32 %v731, %v732
    %v734 = vadd.f32 %v685, %v733
    %v735 = vmul.f32 %v647, %v391
    %v736 = vmul.f32 %v651, %v391
    %v737 = vadd.f32 %v735, 0.0
    %v738 = vadd.f32 %v736, 0.0
    %v739 = vmul.f32 %v696, %v341
    %v740 = vmul.f32 %v700, %v341
    %v741 = vadd.f32 %v737, %v739
    %v742 = vadd.f32 %v738, %v740
    %743 = vset.pattern.permute.xlu0 9
    %744 = vperm.xlu0 %743, %v247
    %v745 = vpop.permute.xlu0 %744
    %747 = vset.pattern.permute.xlu0 9
    %748 = vperm.xlu0 %747, %v248
    %v749 = vpop.permute.xlu0 %748
    %v751 = vmul.f32 %v745, %v354
    %v752 = vmul.f32 %v749, %v354
    %v753 = vadd.f32 %v741, %v751
    %v754 = vadd.f32 %v742, %v752
    %v755 = vadd.f32 %v753, %v360
    %v756 = vadd.f32 %v754, %v360
    %vm757 = vcmp.ge.f32.partialorder %v755, 0.0
    %vm758 = vcmp.ge.f32.partialorder %v756, 0.0
    %v759 = vmul.f32 %v755, 0.2
    %v760 = vmul.f32 %v756, 0.2
    %v761 = vsel %vm757, %v755, %v759
    %v762 = vsel %vm758, %v756, %v760
    %s763 = scalar_lea.vmem [#allocation2], 160
    %764 = vst [vmem:[%s763] sm:$0xff] %v761
    %765 = vst [vmem:[%s763 + $0x8] sm:$0xff] %v762
    %v766 = vadd.f32 %v761, %v762
    %v767 = vrot.slane %v766, 4
    %v768 = vadd.f32 %v766, %v767
    %v769 = vrot.slane %v768, 2
    %v770 = vadd.f32 %v768, %v769
    %v771 = vrot.slane %v770, 1
    %v772 = vadd.f32 %v770, %v771
    %v773 = vadd.f32 %v724, %v772
    %v774 = vmul.f32 %v761, %v761
    %v775 = vmul.f32 %v762, %v762
    %v776 = vadd.f32 %v774, %v775
    %v777 = vrot.slane %v776, 4
    %v778 = vadd.f32 %v776, %v777
    %v779 = vrot.slane %v778, 2
    %v780 = vadd.f32 %v778, %v779
    %v781 = vrot.slane %v780, 1
    %v782 = vadd.f32 %v780, %v781
    %v783 = vadd.f32 %v734, %v782
    %v784 = vmul.f32 %v696, %v391
    %v785 = vmul.f32 %v700, %v391
    %v786 = vadd.f32 %v784, 0.0
    %v787 = vadd.f32 %v785, 0.0
    %v788 = vmul.f32 %v745, %v341
    %v789 = vmul.f32 %v749, %v341
    %v790 = vadd.f32 %v786, %v788
    %v791 = vadd.f32 %v787, %v789
    %792 = vset.pattern.permute.xlu0 10
    %793 = vperm.xlu0 %792, %v247
    %v794 = vpop.permute.xlu0 %793
    %796 = vset.pattern.permute.xlu0 10
    %797 = vperm.xlu0 %796, %v248
    %v798 = vpop.permute.xlu0 %797
    %v800 = vmul.f32 %v794, %v354
    %v801 = vmul.f32 %v798, %v354
    %v802 = vadd.f32 %v790, %v800
    %v803 = vadd.f32 %v791, %v801
    %v804 = vadd.f32 %v802, %v360
    %v805 = vadd.f32 %v803, %v360
    %vm806 = vcmp.ge.f32.partialorder %v804, 0.0
    %vm807 = vcmp.ge.f32.partialorder %v805, 0.0
    %v808 = vmul.f32 %v804, 0.2
    %v809 = vmul.f32 %v805, 0.2
    %v810 = vsel %vm806, %v804, %v808
    %v811 = vsel %vm807, %v805, %v809
    %s812 = scalar_lea.vmem [#allocation2], 176
    %813 = vst [vmem:[%s812] sm:$0xff] %v810
    %814 = vst [vmem:[%s812 + $0x8] sm:$0xff] %v811
    %v815 = vadd.f32 %v810, %v811
    %v816 = vrot.slane %v815, 4
    %v817 = vadd.f32 %v815, %v816
    %v818 = vrot.slane %v817, 2
    %v819 = vadd.f32 %v817, %v818
    %v820 = vrot.slane %v819, 1
    %v821 = vadd.f32 %v819, %v820
    %v822 = vadd.f32 %v773, %v821
    %v823 = vmul.f32 %v810, %v810
    %v824 = vmul.f32 %v811, %v811
    %v825 = vadd.f32 %v823, %v824
    %v826 = vrot.slane %v825, 4
    %v827 = vadd.f32 %v825, %v826
    %v828 = vrot.slane %v827, 2
    %v829 = vadd.f32 %v827, %v828
    %v830 = vrot.slane %v829, 1
    %v831 = vadd.f32 %v829, %v830
    %v832 = vadd.f32 %v783, %v831
    %v833 = vmul.f32 %v745, %v391
    %v834 = vmul.f32 %v749, %v391
    %v835 = vadd.f32 %v833, 0.0
    %v836 = vadd.f32 %v834, 0.0
    %v837 = vmul.f32 %v794, %v341
    %v838 = vmul.f32 %v798, %v341
    %v839 = vadd.f32 %v835, %v837
    %v840 = vadd.f32 %v836, %v838
    %841 = vset.pattern.permute.xlu0 11
    %842 = vperm.xlu0 %841, %v247
    %v843 = vpop.permute.xlu0 %842
    %845 = vset.pattern.permute.xlu0 11
    %846 = vperm.xlu0 %845, %v248
    %v847 = vpop.permute.xlu0 %846
    %v849 = vmul.f32 %v843, %v354
    %v850 = vmul.f32 %v847, %v354
    %v851 = vadd.f32 %v839, %v849
    %v852 = vadd.f32 %v840, %v850
    %v853 = vadd.f32 %v851, %v360
    %v854 = vadd.f32 %v852, %v360
    %vm855 = vcmp.ge.f32.partialorder %v853, 0.0
    %vm856 = vcmp.ge.f32.partialorder %v854, 0.0
    %v857 = vmul.f32 %v853, 0.2
    %v858 = vmul.f32 %v854, 0.2
    %v859 = vsel %vm855, %v853, %v857
    %v860 = vsel %vm856, %v854, %v858
    %s861 = scalar_lea.vmem [#allocation2], 192
    %862 = vst [vmem:[%s861] sm:$0xff] %v859
    %863 = vst [vmem:[%s861 + $0x8] sm:$0xff] %v860
    %v864 = vadd.f32 %v859, %v860
    %v865 = vrot.slane %v864, 4
    %v866 = vadd.f32 %v864, %v865
    %v867 = vrot.slane %v866, 2
    %v868 = vadd.f32 %v866, %v867
    %v869 = vrot.slane %v868, 1
    %v870 = vadd.f32 %v868, %v869
    %v871 = vadd.f32 %v822, %v870
    %v872 = vmul.f32 %v859, %v859
    %v873 = vmul.f32 %v860, %v860
    %v874 = vadd.f32 %v872, %v873
    %v875 = vrot.slane %v874, 4
    %v876 = vadd.f32 %v874, %v875
    %v877 = vrot.slane %v876, 2
    %v878 = vadd.f32 %v876, %v877
    %v879 = vrot.slane %v878, 1
    %v880 = vadd.f32 %v878, %v879
    %v881 = vadd.f32 %v832, %v880
    %v882 = vmul.f32 %v794, %v391
    %v883 = vmul.f32 %v798, %v391
    %v884 = vadd.f32 %v882, 0.0
    %v885 = vadd.f32 %v883, 0.0
    %v886 = vmul.f32 %v843, %v341
    %v887 = vmul.f32 %v847, %v341
    %v888 = vadd.f32 %v884, %v886
    %v889 = vadd.f32 %v885, %v887
    %890 = vset.pattern.permute.xlu0 12
    %891 = vperm.xlu0 %890, %v247
    %v892 = vpop.permute.xlu0 %891
    %894 = vset.pattern.permute.xlu0 12
    %895 = vperm.xlu0 %894, %v248
    %v896 = vpop.permute.xlu0 %895
    %v898 = vmul.f32 %v892, %v354
    %v899 = vmul.f32 %v896, %v354
    %v900 = vadd.f32 %v888, %v898
    %v901 = vadd.f32 %v889, %v899
    %v902 = vadd.f32 %v900, %v360
    %v903 = vadd.f32 %v901, %v360
    %vm904 = vcmp.ge.f32.partialorder %v902, 0.0
    %vm905 = vcmp.ge.f32.partialorder %v903, 0.0
    %v906 = vmul.f32 %v902, 0.2
    %v907 = vmul.f32 %v903, 0.2
    %v908 = vsel %vm904, %v902, %v906
    %v909 = vsel %vm905, %v903, %v907
    %s910 = scalar_lea.vmem [#allocation2], 208
    %911 = vst [vmem:[%s910] sm:$0xff] %v908
    %912 = vst [vmem:[%s910 + $0x8] sm:$0xff] %v909
    %v913 = vadd.f32 %v908, %v909
    %v914 = vrot.slane %v913, 4
    %v915 = vadd.f32 %v913, %v914
    %v916 = vrot.slane %v915, 2
    %v917 = vadd.f32 %v915, %v916
    %v918 = vrot.slane %v917, 1
    %v919 = vadd.f32 %v917, %v918
    %v920 = vadd.f32 %v871, %v919
    %v921 = vmul.f32 %v908, %v908
    %v922 = vmul.f32 %v909, %v909
    %v923 = vadd.f32 %v921, %v922
    %v924 = vrot.slane %v923, 4
    %v925 = vadd.f32 %v923, %v924
    %v926 = vrot.slane %v925, 2
    %v927 = vadd.f32 %v925, %v926
    %v928 = vrot.slane %v927, 1
    %v929 = vadd.f32 %v927, %v928
    %v930 = vadd.f32 %v881, %v929
    %v931 = vmul.f32 %v843, %v391
    %v932 = vmul.f32 %v847, %v391
    %v933 = vadd.f32 %v931, 0.0
    %v934 = vadd.f32 %v932, 0.0
    %v935 = vmul.f32 %v892, %v341
    %v936 = vmul.f32 %v896, %v341
    %v937 = vadd.f32 %v933, %v935
    %v938 = vadd.f32 %v934, %v936
    %939 = vset.pattern.permute.xlu0 13
    %940 = vperm.xlu0 %939, %v247
    %v941 = vpop.permute.xlu0 %940
    %943 = vset.pattern.permute.xlu0 13
    %944 = vperm.xlu0 %943, %v248
    %v945 = vpop.permute.xlu0 %944
    %v947 = vmul.f32 %v941, %v354
    %v948 = vmul.f32 %v945, %v354
    %v949 = vadd.f32 %v937, %v947
    %v950 = vadd.f32 %v938, %v948
    %v951 = vadd.f32 %v949, %v360
    %v952 = vadd.f32 %v950, %v360
    %vm953 = vcmp.ge.f32.partialorder %v951, 0.0
    %vm954 = vcmp.ge.f32.partialorder %v952, 0.0
    %v955 = vmul.f32 %v951, 0.2
    %v956 = vmul.f32 %v952, 0.2
    %v957 = vsel %vm953, %v951, %v955
    %v958 = vsel %vm954, %v952, %v956
    %s959 = scalar_lea.vmem [#allocation2], 224
    %960 = vst [vmem:[%s959] sm:$0xff] %v957
    %961 = vst [vmem:[%s959 + $0x8] sm:$0xff] %v958
    %v962 = vadd.f32 %v957, %v958
    %v963 = vrot.slane %v962, 4
    %v964 = vadd.f32 %v962, %v963
    %v965 = vrot.slane %v964, 2
    %v966 = vadd.f32 %v964, %v965
    %v967 = vrot.slane %v966, 1
    %v968 = vadd.f32 %v966, %v967
    %v969 = vadd.f32 %v920, %v968
    %v970 = vmul.f32 %v957, %v957
    %v971 = vmul.f32 %v958, %v958
    %v972 = vadd.f32 %v970, %v971
    %v973 = vrot.slane %v972, 4
    %v974 = vadd.f32 %v972, %v973
    %v975 = vrot.slane %v974, 2
    %v976 = vadd.f32 %v974, %v975
    %v977 = vrot.slane %v976, 1
    %v978 = vadd.f32 %v976, %v977
    %v979 = vadd.f32 %v930, %v978
    %v980 = vmul.f32 %v892, %v391
    %v981 = vmul.f32 %v896, %v391
    %v982 = vadd.f32 %v980, 0.0
    %v983 = vadd.f32 %v981, 0.0
    %v984 = vmul.f32 %v941, %v341
    %v985 = vmul.f32 %v945, %v341
    %v986 = vadd.f32 %v982, %v984
    %v987 = vadd.f32 %v983, %v985
    %988 = vset.pattern.permute.xlu0 14
    %989 = vperm.xlu0 %988, %v247
    %v990 = vpop.permute.xlu0 %989
    %992 = vset.pattern.permute.xlu0 14
    %993 = vperm.xlu0 %992, %v248
    %v994 = vpop.permute.xlu0 %993
    %v996 = vmul.f32 %v990, %v354
    %v997 = vmul.f32 %v994, %v354
    %v998 = vadd.f32 %v986, %v996
    %v999 = vadd.f32 %v987, %v997
    %v1000 = vadd.f32 %v998, %v360
    %v1001 = vadd.f32 %v999, %v360
    %vm1002 = vcmp.ge.f32.partialorder %v1000, 0.0
    %vm1003 = vcmp.ge.f32.partialorder %v1001, 0.0
    %v1004 = vmul.f32 %v1000, 0.2
    %v1005 = vmul.f32 %v1001, 0.2
    %v1006 = vsel %vm1002, %v1000, %v1004
    %v1007 = vsel %vm1003, %v1001, %v1005
    %s1008 = scalar_lea.vmem [#allocation2], 240
    %1009 = vst [vmem:[%s1008] sm:$0xff] %v1006
    %1010 = vst [vmem:[%s1008 + $0x8] sm:$0xff] %v1007
    %v1011 = vadd.f32 %v1006, %v1007
    %v1012 = vrot.slane %v1011, 4
    %v1013 = vadd.f32 %v1011, %v1012
    %v1014 = vrot.slane %v1013, 2
    %v1015 = vadd.f32 %v1013, %v1014
    %v1016 = vrot.slane %v1015, 1
    %v1017 = vadd.f32 %v1015, %v1016
    %v1018 = vadd.f32 %v969, %v1017
    %v1019 = vmul.f32 %v1006, %v1006
    %v1020 = vmul.f32 %v1007, %v1007
    %v1021 = vadd.f32 %v1019, %v1020
    %v1022 = vrot.slane %v1021, 4
    %v1023 = vadd.f32 %v1021, %v1022
    %v1024 = vrot.slane %v1023, 2
    %v1025 = vadd.f32 %v1023, %v1024
    %v1026 = vrot.slane %v1025, 1
    %v1027 = vadd.f32 %v1025, %v1026
    %v1028 = vadd.f32 %v979, %v1027
    %v1029 = vmul.f32 %v941, %v391
    %v1030 = vmul.f32 %v945, %v391
    %v1031 = vadd.f32 %v1029, 0.0
    %v1032 = vadd.f32 %v1030, 0.0
    %v1033 = vmul.f32 %v990, %v341
    %v1034 = vmul.f32 %v994, %v341
    %v1035 = vadd.f32 %v1031, %v1033
    %v1036 = vadd.f32 %v1032, %v1034
    %1037 = vset.pattern.permute.xlu0 15
    %1038 = vperm.xlu0 %1037, %v247
    %v1039 = vpop.permute.xlu0 %1038
    %1041 = vset.pattern.permute.xlu0 15
    %1042 = vperm.xlu0 %1041, %v248
    %v1043 = vpop.permute.xlu0 %1042
    %v1045 = vmul.f32 %v1039, %v354
    %v1046 = vmul.f32 %v1043, %v354
    %v1047 = vadd.f32 %v1035, %v1045
    %v1048 = vadd.f32 %v1036, %v1046
    %v1049 = vadd.f32 %v1047, %v360
    %v1050 = vadd.f32 %v1048, %v360
    %vm1051 = vcmp.ge.f32.partialorder %v1049, 0.0
    %vm1052 = vcmp.ge.f32.partialorder %v1050, 0.0
    %v1053 = vmul.f32 %v1049, 0.2
    %v1054 = vmul.f32 %v1050, 0.2
    %v1055 = vsel %vm1051, %v1049, %v1053
    %v1056 = vsel %vm1052, %v1050, %v1054
    %s1057 = scalar_lea.vmem [#allocation2], 256
    %1058 = vst [vmem:[%s1057] sm:$0xff] %v1055
    %1059 = vst [vmem:[%s1057 + $0x8] sm:$0xff] %v1056
    %v1060 = vadd.f32 %v1055, %v1056
    %v1061 = vrot.slane %v1060, 4
    %v1062 = vadd.f32 %v1060, %v1061
    %v1063 = vrot.slane %v1062, 2
    %v1064 = vadd.f32 %v1062, %v1063
    %v1065 = vrot.slane %v1064, 1
    %v1066 = vadd.f32 %v1064, %v1065
    %v1067 = vadd.f32 %v1018, %v1066
    %v1068 = vmul.f32 %v1055, %v1055
    %v1069 = vmul.f32 %v1056, %v1056
    %v1070 = vadd.f32 %v1068, %v1069
    %v1071 = vrot.slane %v1070, 4
    %v1072 = vadd.f32 %v1070, %v1071
    %v1073 = vrot.slane %v1072, 2
    %v1074 = vadd.f32 %v1072, %v1073
    %v1075 = vrot.slane %v1074, 1
    %v1076 = vadd.f32 %v1074, %v1075
    %v1077 = vadd.f32 %v1028, %v1076
    %v1078 = vmul.f32 %v990, %v391
    %v1079 = vmul.f32 %v994, %v391
    %v1080 = vadd.f32 %v1078, 0.0
    %v1081 = vadd.f32 %v1079, 0.0
    %v1082 = vmul.f32 %v1039, %v341
    %v1083 = vmul.f32 %v1043, %v341
    %v1084 = vadd.f32 %v1080, %v1082
    %v1085 = vadd.f32 %v1081, %v1083
    %v1086 = vadd.f32 %v1084, %v360
    %v1087 = vadd.f32 %v1085, %v360
    %vm1088 = vcmp.ge.f32.partialorder %v1086, 0.0
    %vm1089 = vcmp.ge.f32.partialorder %v1087, 0.0
    %v1090 = vmul.f32 %v1086, 0.2
    %v1091 = vmul.f32 %v1087, 0.2
    %v1092 = vsel %vm1088, %v1086, %v1090
    %v1093 = vsel %vm1089, %v1087, %v1091
    %s1094 = scalar_lea.vmem [#allocation2], 272
    %1095 = vst [vmem:[%s1094] sm:$0xff] %v1092
    %1096 = vst [vmem:[%s1094 + $0x8] sm:$0xff] %v1093
    %v1097 = vadd.f32 %v1092, %v1093
    %v1098 = vrot.slane %v1097, 4
    %v1099 = vadd.f32 %v1097, %v1098
    %v1100 = vrot.slane %v1099, 2
    %v1101 = vadd.f32 %v1099, %v1100
    %v1102 = vrot.slane %v1101, 1
    %v1103 = vadd.f32 %v1101, %v1102
    %v1104 = vadd.f32 %v1067, %v1103
    %v1105 = vmul.f32 %v1092, %v1092
    %v1106 = vmul.f32 %v1093, %v1093
    %v1107 = vadd.f32 %v1105, %v1106
    %v1108 = vrot.slane %v1107, 4
    %v1109 = vadd.f32 %v1107, %v1108
    %v1110 = vrot.slane %v1109, 2
    %v1111 = vadd.f32 %v1109, %v1110
    %v1112 = vrot.slane %v1111, 1
    %v1113 = vadd.f32 %v1111, %v1112
    %v1114 = vadd.f32 %v1077, %v1113
    %v1115 = vmul.f32 %v1104, 0.00390625
    %v1116 = vmul.f32 %v1114, 0.00390625
    %v1117 = vmul.f32 %v1115, %v1115
    %v1118 = vsub.f32 %v1116, %v1117
    %v1119 = vmax.f32 %v1118, 0.0
    %v1120 = vadd.f32 %v1119, 1e-05
    %v1121 = vrsqrt.pop %v1120
    %v1122 = vmul.f32 %v1121, %v1120
    %v1123 = vmul.f32 %v1122, %v1121
    %v1124 = vmul.f32 0.5, %v1123
    %v1125 = vsub.f32 1.5, %v1124
    %v1126 = vmul.f32 %v1121, %v1125
    %vm1127 = vweird.f32 %v1120
    %vm1128 = vweird.f32 %v1121
    %vm1129 = vmor %vm1127, %vm1128
    %v1130 = vsel %vm1129, %v1121, %v1126
    %v1131 = vld [vmem:[%s15] sm:$0x1]
    %v1132 = vmul.f32 %v1130, %v1131
    %v1133 = vld [vmem:[%s17] sm:$0x1]
    %v1134 = vmul.f32 %v1115, %v1132
    %v1135 = vsub.f32 %v1133, %v1134
    loop: start=0, step=1, limit=16
    $region126: #{tpu_custom_call.1} parent=1 // loop_pre_header
      _
    $region127: #{tpu_custom_call.1} parent=1 // loop_header
      %s1137 = sphi 0, %s1141
      %p1138 = scmp.ge.s32.totalorder %s1137, 16
    $region128: #{tpu_custom_call.1} parent=1 // loop_header_branch
      %1140 = sbr.rel (%p1138) target = $region132
    $region129: #{tpu_custom_call.1} parent=1 // loop_body
      %s1142 = sadd.s32 %s1137, 2
      %s1143 = smul.u32 %s1142, 16
      %s1144 = scalar_lea.vmem [#allocation2], %s1143
      %v1145 = vld [vmem:[%s1144] sm:$0xff]
      %v1146 = vld [vmem:[%s1144 + $0x8] sm:$0xff]
      %v1147 = vperm.slane %v1132, 0
      %v1148 = vmul.f32 %v1145, %v1147
      %v1149 = vmul.f32 %v1146, %v1147
      %v1151 = vperm.slane %v1135, 0
      %v1153 = vadd.f32 %v1148, %v1151
      %v1154 = vadd.f32 %v1149, %v1151
      %1155 = vst [vmem:[%s1144] sm:$0xff] %v1153
      %1156 = vst [vmem:[%s1144 + $0x8] sm:$0xff] %v1154
    $region130: #{tpu_custom_call.1} parent=1 // loop_footer
      %s1141 = sadd.s32 1, %s1137
    $region131: #{tpu_custom_call.1} parent=1 // loop_footer_branch
      %1136 = sbr.rel target = $region127
    $region132: #{tpu_custom_call.1} parent=1 // loop_exit
      _
    %v1157 = vld [vmem:[%s21] sm:$0x1]
    loop: start=0, step=1, limit=16
    $region133: #{tpu_custom_call.1} parent=1 // loop_pre_header
      _
    $region134: #{tpu_custom_call.1} parent=1 // loop_header
      %s1159 = sphi 0, %s1163
      %p1160 = scmp.ge.s32.totalorder %s1159, 16
      %v1164 = vphi 0.0, %v1616
      %v1165 = vphi 0.0, %v1626
    $region135: #{tpu_custom_call.1} parent=1 // loop_header_branch
      %1162 = sbr.rel (%p1160) target = $region139
    $region136: #{tpu_custom_call.1} parent=1 // loop_body
      %s1166 = smul.u32 %s1159, 16
      %s1167 = scalar_lea.vmem [#allocation2], %s1166
      %v1168 = vld [vmem:[%s1167] sm:$0xff]
      %v1169 = vld [vmem:[%s1167 + $0x8] sm:$0xff]
      %v1170 = vpack.c.bf16 %v1169, %v1168
      %v1171 = vld [vmem:[%s19] sm:$0xf]
      %v1172 = vld [vmem:[%s19 + $0x4] sm:$0xf]
      %v1173 = vld [vmem:[%s19 + $0x8] sm:$0xf]
      %v1174 = vld [vmem:[%s19 + $0xc] sm:$0xf]
      %v1175 = vld [vmem:[%s19 + $0x10] sm:$0xf]
      %v1176 = vld [vmem:[%s19 + $0x14] sm:$0xf]
      %v1177 = vld [vmem:[%s19 + $0x18] sm:$0xf]
      %v1178 = vld [vmem:[%s19 + $0x1c] sm:$0xf]
      %v1179 = vld [vmem:[%s19 + $0x20] sm:$0xf]
      %v1180 = vld [vmem:[%s19 + $0x24] sm:$0xf]
      %v1181 = vld [vmem:[%s19 + $0x28] sm:$0xf]
      %v1182 = vld [vmem:[%s19 + $0x2c] sm:$0xf]
      %v1183 = vld [vmem:[%s19 + $0x30] sm:$0xf]
      %v1184 = vld [vmem:[%s19 + $0x34] sm:$0xf]
      %v1185 = vld [vmem:[%s19 + $0x38] sm:$0xf]
      %v1186 = vld [vmem:[%s19 + $0x3c] sm:$0xf]
      %s1187 = sadd.s32 %s1159, 1
      %s1188 = smul.u32 %s1187, 16
      %s1189 = scalar_lea.vmem [#allocation2], %s1188
      %v1190 = vld [vmem:[%s1189] sm:$0xff]
      %v1191 = vld [vmem:[%s1189 + $0x8] sm:$0xff]
      %v1192 = vpack.c.bf16 %v1191, %v1190
      %s1193 = scalar_lea.vmem %s19, 64
      %v1194 = vld [vmem:[%s1193] sm:$0xf]
      %v1195 = vld [vmem:[%s1193 + $0x4] sm:$0xf]
      %v1196 = vld [vmem:[%s1193 + $0x8] sm:$0xf]
      %v1197 = vld [vmem:[%s1193 + $0xc] sm:$0xf]
      %v1198 = vld [vmem:[%s1193 + $0x10] sm:$0xf]
      %v1199 = vld [vmem:[%s1193 + $0x14] sm:$0xf]
      %v1200 = vld [vmem:[%s1193 + $0x18] sm:$0xf]
      %v1201 = vld [vmem:[%s1193 + $0x1c] sm:$0xf]
      %v1202 = vld [vmem:[%s1193 + $0x20] sm:$0xf]
      %v1203 = vld [vmem:[%s1193 + $0x24] sm:$0xf]
      %v1204 = vld [vmem:[%s1193 + $0x28] sm:$0xf]
      %v1205 = vld [vmem:[%s1193 + $0x2c] sm:$0xf]
      %v1206 = vld [vmem:[%s1193 + $0x30] sm:$0xf]
      %v1207 = vld [vmem:[%s1193 + $0x34] sm:$0xf]
      %v1208 = vld [vmem:[%s1193 + $0x38] sm:$0xf]
      %v1209 = vld [vmem:[%s1193 + $0x3c] sm:$0xf]
      %v1226 = vunpack.c.l.b16 %v1194
      %v1227 = vunpack.c.l.b16 %v1195
      %v1228 = vunpack.c.l.b16 %v1196
      %v1229 = vunpack.c.l.b16 %v1197
      %v1230 = vunpack.c.l.b16 %v1198
      %v1231 = vunpack.c.l.b16 %v1199
      %v1232 = vunpack.c.l.b16 %v1200
      %v1233 = vunpack.c.l.b16 %v1201
      %v1234 = vunpack.c.l.b16 %v1202
      %v1235 = vunpack.c.l.b16 %v1203
      %v1236 = vunpack.c.l.b16 %v1204
      %v1237 = vunpack.c.l.b16 %v1205
      %v1238 = vunpack.c.l.b16 %v1206
      %v1239 = vunpack.c.l.b16 %v1207
      %v1240 = vunpack.c.l.b16 %v1208
      %v1241 = vunpack.c.l.b16 %v1209
      %v1242 = vpack.c.b16 %v1227, %v1226
      %v1243 = vpack.c.b16 %v1229, %v1228
      %v1244 = vpack.c.b16 %v1231, %v1230
      %v1245 = vpack.c.b16 %v1233, %v1232
      %v1246 = vpack.c.b16 %v1235, %v1234
      %v1247 = vpack.c.b16 %v1237, %v1236
      %v1248 = vpack.c.b16 %v1239, %v1238
      %v1249 = vpack.c.b16 %v1241, %v1240
      %1258 = vmatpush.bf16.msra.mxu0 %v1249
      %1259 = vmatpush.bf16.msra.mxu0 %v1248
      %1260 = vmatpush.bf16.msra.mxu0 %v1247
      %1261 = vmatpush.bf16.msra.mxu0 %v1246
      %1262 = vmatpush.bf16.msra.mxu0 %v1245
      %1263 = vmatpush.bf16.msra.mxu0 %v1244
      %1264 = vmatpush.bf16.msra.mxu0 %v1243
      %1265 = vmatpush.bf16.msra.mxu0 %v1242
      %1266 = vmatmul.bf16.gmra.mxu0 %v1192
      %v1267 = vpop.f32.mrf.mxu0
      %v1268 = vadd.f32 0.0, %v1267
      %v1269 = vpop.f32.mrf.mxu0
      %v1270 = vadd.f32 0.0, %v1269
      %1271 = vdwg.mxu0
      %v1288 = vunpack.c.l.b16 %v1171
      %v1289 = vunpack.c.l.b16 %v1172
      %v1290 = vunpack.c.l.b16 %v1173
      %v1291 = vunpack.c.l.b16 %v1174
      %v1292 = vunpack.c.l.b16 %v1175
      %v1293 = vunpack.c.l.b16 %v1176
      %v1294 = vunpack.c.l.b16 %v1177
      %v1295 = vunpack.c.l.b16 %v1178
      %v1296 = vunpack.c.l.b16 %v1179
      %v1297 = vunpack.c.l.b16 %v1180
      %v1298 = vunpack.c.l.b16 %v1181
      %v1299 = vunpack.c.l.b16 %v1182
      %v1300 = vunpack.c.l.b16 %v1183
      %v1301 = vunpack.c.l.b16 %v1184
      %v1302 = vunpack.c.l.b16 %v1185
      %v1303 = vunpack.c.l.b16 %v1186
      %v1304 = vpack.c.b16 %v1289, %v1288
      %v1305 = vpack.c.b16 %v1291, %v1290
      %v1306 = vpack.c.b16 %v1293, %v1292
      %v1307 = vpack.c.b16 %v1295, %v1294
      %v1308 = vpack.c.b16 %v1297, %v1296
      %v1309 = vpack.c.b16 %v1299, %v1298
      %v1310 = vpack.c.b16 %v1301, %v1300
      %v1311 = vpack.c.b16 %v1303, %v1302
      %1320 = vmatpush.bf16.msra.mxu0 %v1311
      %1321 = vmatpush.bf16.msra.mxu0 %v1310
      %1322 = vmatpush.bf16.msra.mxu0 %v1309
      %1323 = vmatpush.bf16.msra.mxu0 %v1308
      %1324 = vmatpush.bf16.msra.mxu0 %v1307
      %1325 = vmatpush.bf16.msra.mxu0 %v1306
      %1326 = vmatpush.bf16.msra.mxu0 %v1305
      %1327 = vmatpush.bf16.msra.mxu0 %v1304
      %1328 = vmatmul.bf16.gmra.mxu0 %v1170
      %v1329 = vpop.f32.mrf.mxu0
      %v1330 = vadd.f32 %v1268, %v1329
      %v1331 = vpop.f32.mrf.mxu0
      %v1332 = vadd.f32 %v1270, %v1331
      %1333 = vdwg.mxu0
      %s1334 = sadd.s32 %s1159, 2
      %s1335 = smul.u32 %s1334, 16
      %s1336 = scalar_lea.vmem [#allocation2], %s1335
      %v1337 = vld [vmem:[%s1336] sm:$0xff]
      %v1338 = vld [vmem:[%s1336 + $0x8] sm:$0xff]
      %v1339 = vpack.c.bf16 %v1338, %v1337
      %s1340 = scalar_lea.vmem %s19, 128
      %v1341 = vld [vmem:[%s1340] sm:$0xf]
      %v1342 = vld [vmem:[%s1340 + $0x4] sm:$0xf]
      %v1343 = vld [vmem:[%s1340 + $0x8] sm:$0xf]
      %v1344 = vld [vmem:[%s1340 + $0xc] sm:$0xf]
      %v1345 = vld [vmem:[%s1340 + $0x10] sm:$0xf]
      %v1346 = vld [vmem:[%s1340 + $0x14] sm:$0xf]
      %v1347 = vld [vmem:[%s1340 + $0x18] sm:$0xf]
      %v1348 = vld [vmem:[%s1340 + $0x1c] sm:$0xf]
      %v1349 = vld [vmem:[%s1340 + $0x20] sm:$0xf]
      %v1350 = vld [vmem:[%s1340 + $0x24] sm:$0xf]
      %v1351 = vld [vmem:[%s1340 + $0x28] sm:$0xf]
      %v1352 = vld [vmem:[%s1340 + $0x2c] sm:$0xf]
      %v1353 = vld [vmem:[%s1340 + $0x30] sm:$0xf]
      %v1354 = vld [vmem:[%s1340 + $0x34] sm:$0xf]
      %v1355 = vld [vmem:[%s1340 + $0x38] sm:$0xf]
      %v1356 = vld [vmem:[%s1340 + $0x3c] sm:$0xf]
      %v1373 = vunpack.c.l.b16 %v1341
      %v1374 = vunpack.c.l.b16 %v1342
      %v1375 = vunpack.c.l.b16 %v1343
      %v1376 = vunpack.c.l.b16 %v1344
      %v1377 = vunpack.c.l.b16 %v1345
      %v1378 = vunpack.c.l.b16 %v1346
      %v1379 = vunpack.c.l.b16 %v1347
      %v1380 = vunpack.c.l.b16 %v1348
      %v1381 = vunpack.c.l.b16 %v1349
      %v1382 = vunpack.c.l.b16 %v1350
      %v1383 = vunpack.c.l.b16 %v1351
      %v1384 = vunpack.c.l.b16 %v1352
      %v1385 = vunpack.c.l.b16 %v1353
      %v1386 = vunpack.c.l.b16 %v1354
      %v1387 = vunpack.c.l.b16 %v1355
      %v1388 = vunpack.c.l.b16 %v1356
      %v1389 = vpack.c.b16 %v1374, %v1373
      %v1390 = vpack.c.b16 %v1376, %v1375
      %v1391 = vpack.c.b16 %v1378, %v1377
      %v1392 = vpack.c.b16 %v1380, %v1379
      %v1393 = vpack.c.b16 %v1382, %v1381
      %v1394 = vpack.c.b16 %v1384, %v1383
      %v1395 = vpack.c.b16 %v1386, %v1385
      %v1396 = vpack.c.b16 %v1388, %v1387
      %1405 = vmatpush.bf16.msra.mxu0 %v1396
      %1406 = vmatpush.bf16.msra.mxu0 %v1395
      %1407 = vmatpush.bf16.msra.mxu0 %v1394
      %1408 = vmatpush.bf16.msra.mxu0 %v1393
      %1409 = vmatpush.bf16.msra.mxu0 %v1392
      %1410 = vmatpush.bf16.msra.mxu0 %v1391
      %1411 = vmatpush.bf16.msra.mxu0 %v1390
      %1412 = vmatpush.bf16.msra.mxu0 %v1389
      %1413 = vmatmul.bf16.gmra.mxu0 %v1339
      %v1414 = vpop.f32.mrf.mxu0
      %v1415 = vadd.f32 0.0, %v1414
      %v1416 = vpop.f32.mrf.mxu0
      %v1417 = vadd.f32 0.0, %v1416
      %1418 = vdwg.mxu0
      %v1419 = vadd.f32 %v1330, %v1415
      %v1420 = vadd.f32 %v1332, %v1417
      %s1421 = sadd.s32 %s1159, 3
      %s1422 = smul.u32 %s1421, 16
      %s1423 = scalar_lea.vmem [#allocation2], %s1422
      %v1424 = vld [vmem:[%s1423] sm:$0xff]
      %v1425 = vld [vmem:[%s1423 + $0x8] sm:$0xff]
      %v1426 = vpack.c.bf16 %v1425, %v1424
      %s1427 = scalar_lea.vmem %s19, 192
      %v1428 = vld [vmem:[%s1427] sm:$0xf]
      %v1429 = vld [vmem:[%s1427 + $0x4] sm:$0xf]
      %v1430 = vld [vmem:[%s1427 + $0x8] sm:$0xf]
      %v1431 = vld [vmem:[%s1427 + $0xc] sm:$0xf]
      %v1432 = vld [vmem:[%s1427 + $0x10] sm:$0xf]
      %v1433 = vld [vmem:[%s1427 + $0x14] sm:$0xf]
      %v1434 = vld [vmem:[%s1427 + $0x18] sm:$0xf]
      %v1435 = vld [vmem:[%s1427 + $0x1c] sm:$0xf]
      %v1436 = vld [vmem:[%s1427 + $0x20] sm:$0xf]
      %v1437 = vld [vmem:[%s1427 + $0x24] sm:$0xf]
      %v1438 = vld [vmem:[%s1427 + $0x28] sm:$0xf]
      %v1439 = vld [vmem:[%s1427 + $0x2c] sm:$0xf]
      %v1440 = vld [vmem:[%s1427 + $0x30] sm:$0xf]
      %v1441 = vld [vmem:[%s1427 + $0x34] sm:$0xf]
      %v1442 = vld [vmem:[%s1427 + $0x38] sm:$0xf]
      %v1443 = vld [vmem:[%s1427 + $0x3c] sm:$0xf]
      %v1460 = vunpack.c.l.b16 %v1428
      %v1461 = vunpack.c.l.b16 %v1429
      %v1462 = vunpack.c.l.b16 %v1430
      %v1463 = vunpack.c.l.b16 %v1431
      %v1464 = vunpack.c.l.b16 %v1432
      %v1465 = vunpack.c.l.b16 %v1433
      %v1466 = vunpack.c.l.b16 %v1434
      %v1467 = vunpack.c.l.b16 %v1435
      %v1468 = vunpack.c.l.b16 %v1436
      %v1469 = vunpack.c.l.b16 %v1437
      %v1470 = vunpack.c.l.b16 %v1438
      %v1471 = vunpack.c.l.b16 %v1439
      %v1472 = vunpack.c.l.b16 %v1440
      %v1473 = vunpack.c.l.b16 %v1441
      %v1474 = vunpack.c.l.b16 %v1442
      %v1475 = vunpack.c.l.b16 %v1443
      %v1476 = vpack.c.b16 %v1461, %v1460
      %v1477 = vpack.c.b16 %v1463, %v1462
      %v1478 = vpack.c.b16 %v1465, %v1464
      %v1479 = vpack.c.b16 %v1467, %v1466
      %v1480 = vpack.c.b16 %v1469, %v1468
      %v1481 = vpack.c.b16 %v1471, %v1470
      %v1482 = vpack.c.b16 %v1473, %v1472
      %v1483 = vpack.c.b16 %v1475, %v1474
      %1492 = vmatpush.bf16.msra.mxu0 %v1483
      %1493 = vmatpush.bf16.msra.mxu0 %v1482
      %1494 = vmatpush.bf16.msra.mxu0 %v1481
      %1495 = vmatpush.bf16.msra.mxu0 %v1480
      %1496 = vmatpush.bf16.msra.mxu0 %v1479
      %1497 = vmatpush.bf16.msra.mxu0 %v1478
      %1498 = vmatpush.bf16.msra.mxu0 %v1477
      %1499 = vmatpush.bf16.msra.mxu0 %v1476
      %1500 = vmatmul.bf16.gmra.mxu0 %v1426
      %v1501 = vpop.f32.mrf.mxu0
      %v1502 = vadd.f32 0.0, %v1501
      %v1503 = vpop.f32.mrf.mxu0
      %v1504 = vadd.f32 0.0, %v1503
      %1505 = vdwg.mxu0
      %v1506 = vadd.f32 %v1419, %v1502
      %v1507 = vadd.f32 %v1420, %v1504
      %s1508 = sadd.s32 %s1159, 4
      %s1509 = smul.u32 %s1508, 16
      %s1510 = scalar_lea.vmem [#allocation2], %s1509
      %v1511 = vld [vmem:[%s1510] sm:$0xff]
      %v1512 = vld [vmem:[%s1510 + $0x8] sm:$0xff]
      %v1513 = vpack.c.bf16 %v1512, %v1511
      %s1514 = scalar_lea.vmem %s19, 256
      %v1515 = vld [vmem:[%s1514] sm:$0xf]
      %v1516 = vld [vmem:[%s1514 + $0x4] sm:$0xf]
      %v1517 = vld [vmem:[%s1514 + $0x8] sm:$0xf]
      %v1518 = vld [vmem:[%s1514 + $0xc] sm:$0xf]
      %v1519 = vld [vmem:[%s1514 + $0x10] sm:$0xf]
      %v1520 = vld [vmem:[%s1514 + $0x14] sm:$0xf]
      %v1521 = vld [vmem:[%s1514 + $0x18] sm:$0xf]
      %v1522 = vld [vmem:[%s1514 + $0x1c] sm:$0xf]
      %v1523 = vld [vmem:[%s1514 + $0x20] sm:$0xf]
      %v1524 = vld [vmem:[%s1514 + $0x24] sm:$0xf]
      %v1525 = vld [vmem:[%s1514 + $0x28] sm:$0xf]
      %v1526 = vld [vmem:[%s1514 + $0x2c] sm:$0xf]
      %v1527 = vld [vmem:[%s1514 + $0x30] sm:$0xf]
      %v1528 = vld [vmem:[%s1514 + $0x34] sm:$0xf]
      %v1529 = vld [vmem:[%s1514 + $0x38] sm:$0xf]
      %v1530 = vld [vmem:[%s1514 + $0x3c] sm:$0xf]
      %v1547 = vunpack.c.l.b16 %v1515
      %v1548 = vunpack.c.l.b16 %v1516
      %v1549 = vunpack.c.l.b16 %v1517
      %v1550 = vunpack.c.l.b16 %v1518
      %v1551 = vunpack.c.l.b16 %v1519
      %v1552 = vunpack.c.l.b16 %v1520
      %v1553 = vunpack.c.l.b16 %v1521
      %v1554 = vunpack.c.l.b16 %v1522
      %v1555 = vunpack.c.l.b16 %v1523
      %v1556 = vunpack.c.l.b16 %v1524
      %v1557 = vunpack.c.l.b16 %v1525
      %v1558 = vunpack.c.l.b16 %v1526
      %v1559 = vunpack.c.l.b16 %v1527
      %v1560 = vunpack.c.l.b16 %v1528
      %v1561 = vunpack.c.l.b16 %v1529
      %v1562 = vunpack.c.l.b16 %v1530
      %v1563 = vpack.c.b16 %v1548, %v1547
      %v1564 = vpack.c.b16 %v1550, %v1549
      %v1565 = vpack.c.b16 %v1552, %v1551
      %v1566 = vpack.c.b16 %v1554, %v1553
      %v1567 = vpack.c.b16 %v1556, %v1555
      %v1568 = vpack.c.b16 %v1558, %v1557
      %v1569 = vpack.c.b16 %v1560, %v1559
      %v1570 = vpack.c.b16 %v1562, %v1561
      %1579 = vmatpush.bf16.msra.mxu0 %v1570
      %1580 = vmatpush.bf16.msra.mxu0 %v1569
      %1581 = vmatpush.bf16.msra.mxu0 %v1568
      %1582 = vmatpush.bf16.msra.mxu0 %v1567
      %1583 = vmatpush.bf16.msra.mxu0 %v1566
      %1584 = vmatpush.bf16.msra.mxu0 %v1565
      %1585 = vmatpush.bf16.msra.mxu0 %v1564
      %1586 = vmatpush.bf16.msra.mxu0 %v1563
      %1587 = vmatmul.bf16.gmra.mxu0 %v1513
      %v1588 = vpop.f32.mrf.mxu0
      %v1589 = vadd.f32 0.0, %v1588
      %v1590 = vpop.f32.mrf.mxu0
      %v1591 = vadd.f32 0.0, %v1590
      %1592 = vdwg.mxu0
      %v1593 = vadd.f32 %v1506, %v1589
      %v1594 = vadd.f32 %v1507, %v1591
      %v1596 = vperm.slane %v1157, 0
      %v1598 = vadd.f32 %v1593, %v1596
      %v1599 = vadd.f32 %v1594, %v1596
      %vm1600 = vcmp.ge.f32.partialorder %v1598, 0.0
      %vm1601 = vcmp.ge.f32.partialorder %v1599, 0.0
      %v1602 = vmul.f32 %v1598, 0.2
      %v1603 = vmul.f32 %v1599, 0.2
      %v1604 = vsel %vm1600, %v1598, %v1602
      %v1605 = vsel %vm1601, %v1599, %v1603
      %s1606 = scalar_lea.vmem [#allocation3], %s1335
      %1607 = vst [vmem:[%s1606] sm:$0xff] %v1604
      %1608 = vst [vmem:[%s1606 + $0x8] sm:$0xff] %v1605
      %v1609 = vadd.f32 %v1604, %v1605
      %v1610 = vrot.slane %v1609, 4
      %v1611 = vadd.f32 %v1609, %v1610
      %v1612 = vrot.slane %v1611, 2
      %v1613 = vadd.f32 %v1611, %v1612
      %v1614 = vrot.slane %v1613, 1
      %v1615 = vadd.f32 %v1613, %v1614
      %v1616 = vadd.f32 %v1164, %v1615
      %v1617 = vmul.f32 %v1604, %v1604
      %v1618 = vmul.f32 %v1605, %v1605
      %v1619 = vadd.f32 %v1617, %v1618
      %v1620 = vrot.slane %v1619, 4
      %v1621 = vadd.f32 %v1619, %v1620
      %v1622 = vrot.slane %v1621, 2
      %v1623 = vadd.f32 %v1621, %v1622
      %v1624 = vrot.slane %v1623, 1
      %v1625 = vadd.f32 %v1623, %v1624
      %v1626 = vadd.f32 %v1165, %v1625
    $region137: #{tpu_custom_call.1} parent=1 // loop_footer
      %s1163 = sadd.s32 1, %s1159
    $region138: #{tpu_custom_call.1} parent=1 // loop_footer_branch
      %1158 = sbr.rel target = $region134
    $region139: #{tpu_custom_call.1} parent=1 // loop_exit
      _
    %v1627 = vmul.f32 %v1164, 0.00390625
    %v1628 = vmul.f32 %v1165, 0.00390625
    %v1629 = vmul.f32 %v1627, %v1627
    %v1630 = vsub.f32 %v1628, %v1629
    %v1631 = vmax.f32 %v1630, 0.0
    %v1632 = vadd.f32 %v1631, 1e-05
    %v1633 = vrsqrt.pop %v1632
    %v1634 = vmul.f32 %v1633, %v1632
    %v1635 = vmul.f32 %v1634, %v1633
    %v1636 = vmul.f32 0.5, %v1635
    %v1637 = vsub.f32 1.5, %v1636
    %v1638 = vmul.f32 %v1633, %v1637
    %vm1639 = vweird.f32 %v1632
    %vm1640 = vweird.f32 %v1633
    %vm1641 = vmor %vm1639, %vm1640
    %v1642 = vsel %vm1641, %v1633, %v1638
    %v1643 = vld [vmem:[%s23] sm:$0x1]
    %v1644 = vmul.f32 %v1642, %v1643
    %v1645 = vld [vmem:[%s25] sm:$0x1]
    %v1646 = vmul.f32 %v1627, %v1644
    %v1647 = vsub.f32 %v1645, %v1646
    loop: start=0, step=1, limit=16
    $region140: #{tpu_custom_call.1} parent=1 // loop_pre_header
      _
    $region141: #{tpu_custom_call.1} parent=1 // loop_header
      %s1649 = sphi 0, %s1653
      %p1650 = scmp.ge.s32.totalorder %s1649, 16
    $region142: #{tpu_custom_call.1} parent=1 // loop_header_branch
      %1652 = sbr.rel (%p1650) target = $region146
    $region143: #{tpu_custom_call.1} parent=1 // loop_body
      %s1654 = sadd.s32 %s1649, 2
      %s1655 = smul.u32 %s1654, 16
      %s1656 = scalar_lea.vmem [#allocation3], %s1655
      %v1657 = vld [vmem:[%s1656] sm:$0xff]
      %v1658 = vld [vmem:[%s1656 + $0x8] sm:$0xff]
      %v1659 = vperm.slane %v1644, 0
      %v1660 = vmul.f32 %v1657, %v1659
      %v1661 = vmul.f32 %v1658, %v1659
      %v1663 = vperm.slane %v1647, 0
      %v1665 = vadd.f32 %v1660, %v1663
      %v1666 = vadd.f32 %v1661, %v1663
      %1667 = vst [vmem:[%s1656] sm:$0xff] %v1665
      %1668 = vst [vmem:[%s1656 + $0x8] sm:$0xff] %v1666
    $region144: #{tpu_custom_call.1} parent=1 // loop_footer
      %s1653 = sadd.s32 1, %s1649
    $region145: #{tpu_custom_call.1} parent=1 // loop_footer_branch
      %1648 = sbr.rel target = $region141
    $region146: #{tpu_custom_call.1} parent=1 // loop_exit
      _
    %v1669 = vld [vmem:[%s29] sm:$0x1]
    loop: start=0, step=1, limit=16
    $region147: #{tpu_custom_call.1} parent=1 // loop_pre_header
      _
    $region148: #{tpu_custom_call.1} parent=1 // loop_header
      %s1671 = sphi 0, %s1675
      %p1672 = scmp.ge.s32.totalorder %s1671, 16
      %v1676 = vphi 0.0, %v2128
      %v1677 = vphi 0.0, %v2138
    $region149: #{tpu_custom_call.1} parent=1 // loop_header_branch
      %1674 = sbr.rel (%p1672) target = $region153
    $region150: #{tpu_custom_call.1} parent=1 // loop_body
      %s1678 = smul.u32 %s1671, 16
      %s1679 = scalar_lea.vmem [#allocation3], %s1678
      %v1680 = vld [vmem:[%s1679] sm:$0xff]
      %v1681 = vld [vmem:[%s1679 + $0x8] sm:$0xff]
      %v1682 = vpack.c.bf16 %v1681, %v1680
      %v1683 = vld [vmem:[%s27] sm:$0xf]
      %v1684 = vld [vmem:[%s27 + $0x4] sm:$0xf]
      %v1685 = vld [vmem:[%s27 + $0x8] sm:$0xf]
      %v1686 = vld [vmem:[%s27 + $0xc] sm:$0xf]
      %v1687 = vld [vmem:[%s27 + $0x10] sm:$0xf]
      %v1688 = vld [vmem:[%s27 + $0x14] sm:$0xf]
      %v1689 = vld [vmem:[%s27 + $0x18] sm:$0xf]
      %v1690 = vld [vmem:[%s27 + $0x1c] sm:$0xf]
      %v1691 = vld [vmem:[%s27 + $0x20] sm:$0xf]
      %v1692 = vld [vmem:[%s27 + $0x24] sm:$0xf]
      %v1693 = vld [vmem:[%s27 + $0x28] sm:$0xf]
      %v1694 = vld [vmem:[%s27 + $0x2c] sm:$0xf]
      %v1695 = vld [vmem:[%s27 + $0x30] sm:$0xf]
      %v1696 = vld [vmem:[%s27 + $0x34] sm:$0xf]
      %v1697 = vld [vmem:[%s27 + $0x38] sm:$0xf]
      %v1698 = vld [vmem:[%s27 + $0x3c] sm:$0xf]
      %s1699 = sadd.s32 %s1671, 1
      %s1700 = smul.u32 %s1699, 16
      %s1701 = scalar_lea.vmem [#allocation3], %s1700
      %v1702 = vld [vmem:[%s1701] sm:$0xff]
      %v1703 = vld [vmem:[%s1701 + $0x8] sm:$0xff]
      %v1704 = vpack.c.bf16 %v1703, %v1702
      %s1705 = scalar_lea.vmem %s27, 64
      %v1706 = vld [vmem:[%s1705] sm:$0xf]
      %v1707 = vld [vmem:[%s1705 + $0x4] sm:$0xf]
      %v1708 = vld [vmem:[%s1705 + $0x8] sm:$0xf]
      %v1709 = vld [vmem:[%s1705 + $0xc] sm:$0xf]
      %v1710 = vld [vmem:[%s1705 + $0x10] sm:$0xf]
      %v1711 = vld [vmem:[%s1705 + $0x14] sm:$0xf]
      %v1712 = vld [vmem:[%s1705 + $0x18] sm:$0xf]
      %v1713 = vld [vmem:[%s1705 + $0x1c] sm:$0xf]
      %v1714 = vld [vmem:[%s1705 + $0x20] sm:$0xf]
      %v1715 = vld [vmem:[%s1705 + $0x24] sm:$0xf]
      %v1716 = vld [vmem:[%s1705 + $0x28] sm:$0xf]
      %v1717 = vld [vmem:[%s1705 + $0x2c] sm:$0xf]
      %v1718 = vld [vmem:[%s1705 + $0x30] sm:$0xf]
      %v1719 = vld [vmem:[%s1705 + $0x34] sm:$0xf]
      %v1720 = vld [vmem:[%s1705 + $0x38] sm:$0xf]
      %v1721 = vld [vmem:[%s1705 + $0x3c] sm:$0xf]
      %v1738 = vunpack.c.l.b16 %v1706
      %v1739 = vunpack.c.l.b16 %v1707
      %v1740 = vunpack.c.l.b16 %v1708
      %v1741 = vunpack.c.l.b16 %v1709
      %v1742 = vunpack.c.l.b16 %v1710
      %v1743 = vunpack.c.l.b16 %v1711
      %v1744 = vunpack.c.l.b16 %v1712
      %v1745 = vunpack.c.l.b16 %v1713
      %v1746 = vunpack.c.l.b16 %v1714
      %v1747 = vunpack.c.l.b16 %v1715
      %v1748 = vunpack.c.l.b16 %v1716
      %v1749 = vunpack.c.l.b16 %v1717
      %v1750 = vunpack.c.l.b16 %v1718
      %v1751 = vunpack.c.l.b16 %v1719
      %v1752 = vunpack.c.l.b16 %v1720
      %v1753 = vunpack.c.l.b16 %v1721
      %v1754 = vpack.c.b16 %v1739, %v1738
      %v1755 = vpack.c.b16 %v1741, %v1740
      %v1756 = vpack.c.b16 %v1743, %v1742
      %v1757 = vpack.c.b16 %v1745, %v1744
      %v1758 = vpack.c.b16 %v1747, %v1746
      %v1759 = vpack.c.b16 %v1749, %v1748
      %v1760 = vpack.c.b16 %v1751, %v1750
      %v1761 = vpack.c.b16 %v1753, %v1752
      %1770 = vmatpush.bf16.msra.mxu0 %v1761
      %1771 = vmatpush.bf16.msra.mxu0 %v1760
      %1772 = vmatpush.bf16.msra.mxu0 %v1759
      %1773 = vmatpush.bf16.msra.mxu0 %v1758
      %1774 = vmatpush.bf16.msra.mxu0 %v1757
      %1775 = vmatpush.bf16.msra.mxu0 %v1756
      %1776 = vmatpush.bf16.msra.mxu0 %v1755
      %1777 = vmatpush.bf16.msra.mxu0 %v1754
      %1778 = vmatmul.bf16.gmra.mxu0 %v1704
      %v1779 = vpop.f32.mrf.mxu0
      %v1780 = vadd.f32 0.0, %v1779
      %v1781 = vpop.f32.mrf.mxu0
      %v1782 = vadd.f32 0.0, %v1781
      %1783 = vdwg.mxu0
      %v1800 = vunpack.c.l.b16 %v1683
      %v1801 = vunpack.c.l.b16 %v1684
      %v1802 = vunpack.c.l.b16 %v1685
      %v1803 = vunpack.c.l.b16 %v1686
      %v1804 = vunpack.c.l.b16 %v1687
      %v1805 = vunpack.c.l.b16 %v1688
      %v1806 = vunpack.c.l.b16 %v1689
      %v1807 = vunpack.c.l.b16 %v1690
      %v1808 = vunpack.c.l.b16 %v1691
      %v1809 = vunpack.c.l.b16 %v1692
      %v1810 = vunpack.c.l.b16 %v1693
      %v1811 = vunpack.c.l.b16 %v1694
      %v1812 = vunpack.c.l.b16 %v1695
      %v1813 = vunpack.c.l.b16 %v1696
      %v1814 = vunpack.c.l.b16 %v1697
      %v1815 = vunpack.c.l.b16 %v1698
      %v1816 = vpack.c.b16 %v1801, %v1800
      %v1817 = vpack.c.b16 %v1803, %v1802
      %v1818 = vpack.c.b16 %v1805, %v1804
      %v1819 = vpack.c.b16 %v1807, %v1806
      %v1820 = vpack.c.b16 %v1809, %v1808
      %v1821 = vpack.c.b16 %v1811, %v1810
      %v1822 = vpack.c.b16 %v1813, %v1812
      %v1823 = vpack.c.b16 %v1815, %v1814
      %1832 = vmatpush.bf16.msra.mxu0 %v1823
      %1833 = vmatpush.bf16.msra.mxu0 %v1822
      %1834 = vmatpush.bf16.msra.mxu0 %v1821
      %1835 = vmatpush.bf16.msra.mxu0 %v1820
      %1836 = vmatpush.bf16.msra.mxu0 %v1819
      %1837 = vmatpush.bf16.msra.mxu0 %v1818
      %1838 = vmatpush.bf16.msra.mxu0 %v1817
      %1839 = vmatpush.bf16.msra.mxu0 %v1816
      %1840 = vmatmul.bf16.gmra.mxu0 %v1682
      %v1841 = vpop.f32.mrf.mxu0
      %v1842 = vadd.f32 %v1780, %v1841
      %v1843 = vpop.f32.mrf.mxu0
      %v1844 = vadd.f32 %v1782, %v1843
      %1845 = vdwg.mxu0
      %s1846 = sadd.s32 %s1671, 2
      %s1847 = smul.u32 %s1846, 16
      %s1848 = scalar_lea.vmem [#allocation3], %s1847
      %v1849 = vld [vmem:[%s1848] sm:$0xff]
      %v1850 = vld [vmem:[%s1848 + $0x8] sm:$0xff]
      %v1851 = vpack.c.bf16 %v1850, %v1849
      %s1852 = scalar_lea.vmem %s27, 128
      %v1853 = vld [vmem:[%s1852] sm:$0xf]
      %v1854 = vld [vmem:[%s1852 + $0x4] sm:$0xf]
      %v1855 = vld [vmem:[%s1852 + $0x8] sm:$0xf]
      %v1856 = vld [vmem:[%s1852 + $0xc] sm:$0xf]
      %v1857 = vld [vmem:[%s1852 + $0x10] sm:$0xf]
      %v1858 = vld [vmem:[%s1852 + $0x14] sm:$0xf]
      %v1859 = vld [vmem:[%s1852 + $0x18] sm:$0xf]
      %v1860 = vld [vmem:[%s1852 + $0x1c] sm:$0xf]
      %v1861 = vld [vmem:[%s1852 + $0x20] sm:$0xf]
      %v1862 = vld [vmem:[%s1852 + $0x24] sm:$0xf]
      %v1863 = vld [vmem:[%s1852 + $0x28] sm:$0xf]
      %v1864 = vld [vmem:[%s1852 + $0x2c] sm:$0xf]
      %v1865 = vld [vmem:[%s1852 + $0x30] sm:$0xf]
      %v1866 = vld [vmem:[%s1852 + $0x34] sm:$0xf]
      %v1867 = vld [vmem:[%s1852 + $0x38] sm:$0xf]
      %v1868 = vld [vmem:[%s1852 + $0x3c] sm:$0xf]
      %v1885 = vunpack.c.l.b16 %v1853
      %v1886 = vunpack.c.l.b16 %v1854
      %v1887 = vunpack.c.l.b16 %v1855
      %v1888 = vunpack.c.l.b16 %v1856
      %v1889 = vunpack.c.l.b16 %v1857
      %v1890 = vunpack.c.l.b16 %v1858
      %v1891 = vunpack.c.l.b16 %v1859
      %v1892 = vunpack.c.l.b16 %v1860
      %v1893 = vunpack.c.l.b16 %v1861
      %v1894 = vunpack.c.l.b16 %v1862
      %v1895 = vunpack.c.l.b16 %v1863
      %v1896 = vunpack.c.l.b16 %v1864
      %v1897 = vunpack.c.l.b16 %v1865
      %v1898 = vunpack.c.l.b16 %v1866
      %v1899 = vunpack.c.l.b16 %v1867
      %v1900 = vunpack.c.l.b16 %v1868
      %v1901 = vpack.c.b16 %v1886, %v1885
      %v1902 = vpack.c.b16 %v1888, %v1887
      %v1903 = vpack.c.b16 %v1890, %v1889
      %v1904 = vpack.c.b16 %v1892, %v1891
      %v1905 = vpack.c.b16 %v1894, %v1893
      %v1906 = vpack.c.b16 %v1896, %v1895
      %v1907 = vpack.c.b16 %v1898, %v1897
      %v1908 = vpack.c.b16 %v1900, %v1899
      %1917 = vmatpush.bf16.msra.mxu0 %v1908
      %1918 = vmatpush.bf16.msra.mxu0 %v1907
      %1919 = vmatpush.bf16.msra.mxu0 %v1906
      %1920 = vmatpush.bf16.msra.mxu0 %v1905
      %1921 = vmatpush.bf16.msra.mxu0 %v1904
      %1922 = vmatpush.bf16.msra.mxu0 %v1903
      %1923 = vmatpush.bf16.msra.mxu0 %v1902
      %1924 = vmatpush.bf16.msra.mxu0 %v1901
      %1925 = vmatmul.bf16.gmra.mxu0 %v1851
      %v1926 = vpop.f32.mrf.mxu0
      %v1927 = vadd.f32 0.0, %v1926
      %v1928 = vpop.f32.mrf.mxu0
      %v1929 = vadd.f32 0.0, %v1928
      %1930 = vdwg.mxu0
      %v1931 = vadd.f32 %v1842, %v1927
      %v1932 = vadd.f32 %v1844, %v1929
      %s1933 = sadd.s32 %s1671, 3
      %s1934 = smul.u32 %s1933, 16
      %s1935 = scalar_lea.vmem [#allocation3], %s1934
      %v1936 = vld [vmem:[%s1935] sm:$0xff]
      %v1937 = vld [vmem:[%s1935 + $0x8] sm:$0xff]
      %v1938 = vpack.c.bf16 %v1937, %v1936
      %s1939 = scalar_lea.vmem %s27, 192
      %v1940 = vld [vmem:[%s1939] sm:$0xf]
      %v1941 = vld [vmem:[%s1939 + $0x4] sm:$0xf]
      %v1942 = vld [vmem:[%s1939 + $0x8] sm:$0xf]
      %v1943 = vld [vmem:[%s1939 + $0xc] sm:$0xf]
      %v1944 = vld [vmem:[%s1939 + $0x10] sm:$0xf]
      %v1945 = vld [vmem:[%s1939 + $0x14] sm:$0xf]
      %v1946 = vld [vmem:[%s1939 + $0x18] sm:$0xf]
      %v1947 = vld [vmem:[%s1939 + $0x1c] sm:$0xf]
      %v1948 = vld [vmem:[%s1939 + $0x20] sm:$0xf]
      %v1949 = vld [vmem:[%s1939 + $0x24] sm:$0xf]
      %v1950 = vld [vmem:[%s1939 + $0x28] sm:$0xf]
      %v1951 = vld [vmem:[%s1939 + $0x2c] sm:$0xf]
      %v1952 = vld [vmem:[%s1939 + $0x30] sm:$0xf]
      %v1953 = vld [vmem:[%s1939 + $0x34] sm:$0xf]
      %v1954 = vld [vmem:[%s1939 + $0x38] sm:$0xf]
      %v1955 = vld [vmem:[%s1939 + $0x3c] sm:$0xf]
      %v1972 = vunpack.c.l.b16 %v1940
      %v1973 = vunpack.c.l.b16 %v1941
      %v1974 = vunpack.c.l.b16 %v1942
      %v1975 = vunpack.c.l.b16 %v1943
      %v1976 = vunpack.c.l.b16 %v1944
      %v1977 = vunpack.c.l.b16 %v1945
      %v1978 = vunpack.c.l.b16 %v1946
      %v1979 = vunpack.c.l.b16 %v1947
      %v1980 = vunpack.c.l.b16 %v1948
      %v1981 = vunpack.c.l.b16 %v1949
      %v1982 = vunpack.c.l.b16 %v1950
      %v1983 = vunpack.c.l.b16 %v1951
      %v1984 = vunpack.c.l.b16 %v1952
      %v1985 = vunpack.c.l.b16 %v1953
      %v1986 = vunpack.c.l.b16 %v1954
      %v1987 = vunpack.c.l.b16 %v1955
      %v1988 = vpack.c.b16 %v1973, %v1972
      %v1989 = vpack.c.b16 %v1975, %v1974
      %v1990 = vpack.c.b16 %v1977, %v1976
      %v1991 = vpack.c.b16 %v1979, %v1978
      %v1992 = vpack.c.b16 %v1981, %v1980
      %v1993 = vpack.c.b16 %v1983, %v1982
      %v1994 = vpack.c.b16 %v1985, %v1984
      %v1995 = vpack.c.b16 %v1987, %v1986
      %2004 = vmatpush.bf16.msra.mxu0 %v1995
      %2005 = vmatpush.bf16.msra.mxu0 %v1994
      %2006 = vmatpush.bf16.msra.mxu0 %v1993
      %2007 = vmatpush.bf16.msra.mxu0 %v1992
      %2008 = vmatpush.bf16.msra.mxu0 %v1991
      %2009 = vmatpush.bf16.msra.mxu0 %v1990
      %2010 = vmatpush.bf16.msra.mxu0 %v1989
      %2011 = vmatpush.bf16.msra.mxu0 %v1988
      %2012 = vmatmul.bf16.gmra.mxu0 %v1938
      %v2013 = vpop.f32.mrf.mxu0
      %v2014 = vadd.f32 0.0, %v2013
      %v2015 = vpop.f32.mrf.mxu0
      %v2016 = vadd.f32 0.0, %v2015
      %2017 = vdwg.mxu0
      %v2018 = vadd.f32 %v1931, %v2014
      %v2019 = vadd.f32 %v1932, %v2016
      %s2020 = sadd.s32 %s1671, 4
      %s2021 = smul.u32 %s2020, 16
      %s2022 = scalar_lea.vmem [#allocation3], %s2021
      %v2023 = vld [vmem:[%s2022] sm:$0xff]
      %v2024 = vld [vmem:[%s2022 + $0x8] sm:$0xff]
      %v2025 = vpack.c.bf16 %v2024, %v2023
      %s2026 = scalar_lea.vmem %s27, 256
      %v2027 = vld [vmem:[%s2026] sm:$0xf]
      %v2028 = vld [vmem:[%s2026 + $0x4] sm:$0xf]
      %v2029 = vld [vmem:[%s2026 + $0x8] sm:$0xf]
      %v2030 = vld [vmem:[%s2026 + $0xc] sm:$0xf]
      %v2031 = vld [vmem:[%s2026 + $0x10] sm:$0xf]
      %v2032 = vld [vmem:[%s2026 + $0x14] sm:$0xf]
      %v2033 = vld [vmem:[%s2026 + $0x18] sm:$0xf]
      %v2034 = vld [vmem:[%s2026 + $0x1c] sm:$0xf]
      %v2035 = vld [vmem:[%s2026 + $0x20] sm:$0xf]
      %v2036 = vld [vmem:[%s2026 + $0x24] sm:$0xf]
      %v2037 = vld [vmem:[%s2026 + $0x28] sm:$0xf]
      %v2038 = vld [vmem:[%s2026 + $0x2c] sm:$0xf]
      %v2039 = vld [vmem:[%s2026 + $0x30] sm:$0xf]
      %v2040 = vld [vmem:[%s2026 + $0x34] sm:$0xf]
      %v2041 = vld [vmem:[%s2026 + $0x38] sm:$0xf]
      %v2042 = vld [vmem:[%s2026 + $0x3c] sm:$0xf]
      %v2059 = vunpack.c.l.b16 %v2027
      %v2060 = vunpack.c.l.b16 %v2028
      %v2061 = vunpack.c.l.b16 %v2029
      %v2062 = vunpack.c.l.b16 %v2030
      %v2063 = vunpack.c.l.b16 %v2031
      %v2064 = vunpack.c.l.b16 %v2032
      %v2065 = vunpack.c.l.b16 %v2033
      %v2066 = vunpack.c.l.b16 %v2034
      %v2067 = vunpack.c.l.b16 %v2035
      %v2068 = vunpack.c.l.b16 %v2036
      %v2069 = vunpack.c.l.b16 %v2037
      %v2070 = vunpack.c.l.b16 %v2038
      %v2071 = vunpack.c.l.b16 %v2039
      %v2072 = vunpack.c.l.b16 %v2040
      %v2073 = vunpack.c.l.b16 %v2041
      %v2074 = vunpack.c.l.b16 %v2042
      %v2075 = vpack.c.b16 %v2060, %v2059
      %v2076 = vpack.c.b16 %v2062, %v2061
      %v2077 = vpack.c.b16 %v2064, %v2063
      %v2078 = vpack.c.b16 %v2066, %v2065
      %v2079 = vpack.c.b16 %v2068, %v2067
      %v2080 = vpack.c.b16 %v2070, %v2069
      %v2081 = vpack.c.b16 %v2072, %v2071
      %v2082 = vpack.c.b16 %v2074, %v2073
      %2091 = vmatpush.bf16.msra.mxu0 %v2082
      %2092 = vmatpush.bf16.msra.mxu0 %v2081
      %2093 = vmatpush.bf16.msra.mxu0 %v2080
      %2094 = vmatpush.bf16.msra.mxu0 %v2079
      %2095 = vmatpush.bf16.msra.mxu0 %v2078
      %2096 = vmatpush.bf16.msra.mxu0 %v2077
      %2097 = vmatpush.bf16.msra.mxu0 %v2076
      %2098 = vmatpush.bf16.msra.mxu0 %v2075
      %2099 = vmatmul.bf16.gmra.mxu0 %v2025
      %v2100 = vpop.f32.mrf.mxu0
      %v2101 = vadd.f32 0.0, %v2100
      %v2102 = vpop.f32.mrf.mxu0
      %v2103 = vadd.f32 0.0, %v2102
      %2104 = vdwg.mxu0
      %v2105 = vadd.f32 %v2018, %v2101
      %v2106 = vadd.f32 %v2019, %v2103
      %v2108 = vperm.slane %v1669, 0
      %v2110 = vadd.f32 %v2105, %v2108
      %v2111 = vadd.f32 %v2106, %v2108
      %vm2112 = vcmp.ge.f32.partialorder %v2110, 0.0
      %vm2113 = vcmp.ge.f32.partialorder %v2111, 0.0
      %v2114 = vmul.f32 %v2110, 0.2
      %v2115 = vmul.f32 %v2111, 0.2
      %v2116 = vsel %vm2112, %v2110, %v2114
      %v2117 = vsel %vm2113, %v2111, %v2115
      %s2118 = scalar_lea.vmem [#allocation2], %s1847
      %2119 = vst [vmem:[%s2118] sm:$0xff] %v2116
      %2120 = vst [vmem:[%s2118 + $0x8] sm:$0xff] %v2117
      %v2121 = vadd.f32 %v2116, %v2117
      %v2122 = vrot.slane %v2121, 4
      %v2123 = vadd.f32 %v2121, %v2122
      %v2124 = vrot.slane %v2123, 2
      %v2125 = vadd.f32 %v2123, %v2124
      %v2126 = vrot.slane %v2125, 1
      %v2127 = vadd.f32 %v2125, %v2126
      %v2128 = vadd.f32 %v1676, %v2127
      %v2129 = vmul.f32 %v2116, %v2116
      %v2130 = vmul.f32 %v2117, %v2117
      %v2131 = vadd.f32 %v2129, %v2130
      %v2132 = vrot.slane %v2131, 4
      %v2133 = vadd.f32 %v2131, %v2132
      %v2134 = vrot.slane %v2133, 2
      %v2135 = vadd.f32 %v2133, %v2134
      %v2136 = vrot.slane %v2135, 1
      %v2137 = vadd.f32 %v2135, %v2136
      %v2138 = vadd.f32 %v1677, %v2137
    $region151: #{tpu_custom_call.1} parent=1 // loop_footer
      %s1675 = sadd.s32 1, %s1671
    $region152: #{tpu_custom_call.1} parent=1 // loop_footer_branch
      %1670 = sbr.rel target = $region148
    $region153: #{tpu_custom_call.1} parent=1 // loop_exit
      _
    %v2139 = vmul.f32 %v1676, 0.00390625
    %v2140 = vmul.f32 %v1677, 0.00390625
    %v2141 = vmul.f32 %v2139, %v2139
    %v2142 = vsub.f32 %v2140, %v2141
    %v2143 = vmax.f32 %v2142, 0.0
    %v2144 = vadd.f32 %v2143, 1e-05
    %v2145 = vrsqrt.pop %v2144
    %v2146 = vmul.f32 %v2145, %v2144
    %v2147 = vmul.f32 %v2146, %v2145
    %v2148 = vmul.f32 0.5, %v2147
    %v2149 = vsub.f32 1.5, %v2148
    %v2150 = vmul.f32 %v2145, %v2149
    %vm2151 = vweird.f32 %v2144
    %vm2152 = vweird.f32 %v2145
    %vm2153 = vmor %vm2151, %vm2152
    %v2154 = vsel %vm2153, %v2145, %v2150
    %v2155 = vld [vmem:[%s31] sm:$0x1]
    %v2156 = vmul.f32 %v2154, %v2155
    %v2157 = vld [vmem:[%s33] sm:$0x1]
    %v2158 = vmul.f32 %v2139, %v2156
    %v2159 = vsub.f32 %v2157, %v2158
    loop: start=0, step=1, limit=16
    $region154: #{tpu_custom_call.1} parent=1 // loop_pre_header
      _
    $region155: #{tpu_custom_call.1} parent=1 // loop_header
      %s2161 = sphi 0, %s2165
      %p2162 = scmp.ge.s32.totalorder %s2161, 16
    $region156: #{tpu_custom_call.1} parent=1 // loop_header_branch
      %2164 = sbr.rel (%p2162) target = $region160
    $region157: #{tpu_custom_call.1} parent=1 // loop_body
      %s2166 = sadd.s32 %s2161, 2
      %s2167 = smul.u32 %s2166, 16
      %s2168 = scalar_lea.vmem [#allocation2], %s2167
      %v2169 = vld [vmem:[%s2168] sm:$0xff]
      %v2170 = vld [vmem:[%s2168 + $0x8] sm:$0xff]
      %v2171 = vperm.slane %v2156, 0
      %v2172 = vmul.f32 %v2169, %v2171
      %v2173 = vmul.f32 %v2170, %v2171
      %v2175 = vperm.slane %v2159, 0
      %v2177 = vadd.f32 %v2172, %v2175
      %v2178 = vadd.f32 %v2173, %v2175
      %2179 = vst [vmem:[%s2168] sm:$0xff] %v2177
      %2180 = vst [vmem:[%s2168 + $0x8] sm:$0xff] %v2178
    $region158: #{tpu_custom_call.1} parent=1 // loop_footer
      %s2165 = sadd.s32 1, %s2161
    $region159: #{tpu_custom_call.1} parent=1 // loop_footer_branch
      %2160 = sbr.rel target = $region155
    $region160: #{tpu_custom_call.1} parent=1 // loop_exit
      _
    %v2181 = vld [vmem:[%s37] sm:$0x1]
    loop: start=0, step=1, limit=16
    $region161: #{tpu_custom_call.1} parent=1 // loop_pre_header
      _
    $region162: #{tpu_custom_call.1} parent=1 // loop_header
      %s2183 = sphi 0, %s2187
      %p2184 = scmp.ge.s32.totalorder %s2183, 16
      %v2188 = vphi 0.0, %v2640
      %v2189 = vphi 0.0, %v2650
    $region163: #{tpu_custom_call.1} parent=1 // loop_header_branch
      %2186 = sbr.rel (%p2184) target = $region167
    $region164: #{tpu_custom_call.1} parent=1 // loop_body
      %s2190 = smul.u32 %s2183, 16
      %s2191 = scalar_lea.vmem [#allocation2], %s2190
      %v2192 = vld [vmem:[%s2191] sm:$0xff]
      %v2193 = vld [vmem:[%s2191 + $0x8] sm:$0xff]
      %v2194 = vpack.c.bf16 %v2193, %v2192
      %v2195 = vld [vmem:[%s35] sm:$0xf]
      %v2196 = vld [vmem:[%s35 + $0x4] sm:$0xf]
      %v2197 = vld [vmem:[%s35 + $0x8] sm:$0xf]
      %v2198 = vld [vmem:[%s35 + $0xc] sm:$0xf]
      %v2199 = vld [vmem:[%s35 + $0x10] sm:$0xf]
      %v2200 = vld [vmem:[%s35 + $0x14] sm:$0xf]
      %v2201 = vld [vmem:[%s35 + $0x18] sm:$0xf]
      %v2202 = vld [vmem:[%s35 + $0x1c] sm:$0xf]
      %v2203 = vld [vmem:[%s35 + $0x20] sm:$0xf]
      %v2204 = vld [vmem:[%s35 + $0x24] sm:$0xf]
      %v2205 = vld [vmem:[%s35 + $0x28] sm:$0xf]
      %v2206 = vld [vmem:[%s35 + $0x2c] sm:$0xf]
      %v2207 = vld [vmem:[%s35 + $0x30] sm:$0xf]
      %v2208 = vld [vmem:[%s35 + $0x34] sm:$0xf]
      %v2209 = vld [vmem:[%s35 + $0x38] sm:$0xf]
      %v2210 = vld [vmem:[%s35 + $0x3c] sm:$0xf]
      %s2211 = sadd.s32 %s2183, 1
      %s2212 = smul.u32 %s2211, 16
      %s2213 = scalar_lea.vmem [#allocation2], %s2212
      %v2214 = vld [vmem:[%s2213] sm:$0xff]
      %v2215 = vld [vmem:[%s2213 + $0x8] sm:$0xff]
      %v2216 = vpack.c.bf16 %v2215, %v2214
      %s2217 = scalar_lea.vmem %s35, 64
      %v2218 = vld [vmem:[%s2217] sm:$0xf]
      %v2219 = vld [vmem:[%s2217 + $0x4] sm:$0xf]
      %v2220 = vld [vmem:[%s2217 + $0x8] sm:$0xf]
      %v2221 = vld [vmem:[%s2217 + $0xc] sm:$0xf]
      %v2222 = vld [vmem:[%s2217 + $0x10] sm:$0xf]
      %v2223 = vld [vmem:[%s2217 + $0x14] sm:$0xf]
      %v2224 = vld [vmem:[%s2217 + $0x18] sm:$0xf]
      %v2225 = vld [vmem:[%s2217 + $0x1c] sm:$0xf]
      %v2226 = vld [vmem:[%s2217 + $0x20] sm:$0xf]
      %v2227 = vld [vmem:[%s2217 + $0x24] sm:$0xf]
      %v2228 = vld [vmem:[%s2217 + $0x28] sm:$0xf]
      %v2229 = vld [vmem:[%s2217 + $0x2c] sm:$0xf]
      %v2230 = vld [vmem:[%s2217 + $0x30] sm:$0xf]
      %v2231 = vld [vmem:[%s2217 + $0x34] sm:$0xf]
      %v2232 = vld [vmem:[%s2217 + $0x38] sm:$0xf]
      %v2233 = vld [vmem:[%s2217 + $0x3c] sm:$0xf]
      %v2250 = vunpack.c.l.b16 %v2218
      %v2251 = vunpack.c.l.b16 %v2219
      %v2252 = vunpack.c.l.b16 %v2220
      %v2253 = vunpack.c.l.b16 %v2221
      %v2254 = vunpack.c.l.b16 %v2222
      %v2255 = vunpack.c.l.b16 %v2223
      %v2256 = vunpack.c.l.b16 %v2224
      %v2257 = vunpack.c.l.b16 %v2225
      %v2258 = vunpack.c.l.b16 %v2226
      %v2259 = vunpack.c.l.b16 %v2227
      %v2260 = vunpack.c.l.b16 %v2228
      %v2261 = vunpack.c.l.b16 %v2229
      %v2262 = vunpack.c.l.b16 %v2230
      %v2263 = vunpack.c.l.b16 %v2231
      %v2264 = vunpack.c.l.b16 %v2232
      %v2265 = vunpack.c.l.b16 %v2233
      %v2266 = vpack.c.b16 %v2251, %v2250
      %v2267 = vpack.c.b16 %v2253, %v2252
      %v2268 = vpack.c.b16 %v2255, %v2254
      %v2269 = vpack.c.b16 %v2257, %v2256
      %v2270 = vpack.c.b16 %v2259, %v2258
      %v2271 = vpack.c.b16 %v2261, %v2260
      %v2272 = vpack.c.b16 %v2263, %v2262
      %v2273 = vpack.c.b16 %v2265, %v2264
      %2282 = vmatpush.bf16.msra.mxu0 %v2273
      %2283 = vmatpush.bf16.msra.mxu0 %v2272
      %2284 = vmatpush.bf16.msra.mxu0 %v2271
      %2285 = vmatpush.bf16.msra.mxu0 %v2270
      %2286 = vmatpush.bf16.msra.mxu0 %v2269
      %2287 = vmatpush.bf16.msra.mxu0 %v2268
      %2288 = vmatpush.bf16.msra.mxu0 %v2267
      %2289 = vmatpush.bf16.msra.mxu0 %v2266
      %2290 = vmatmul.bf16.gmra.mxu0 %v2216
      %v2291 = vpop.f32.mrf.mxu0
      %v2292 = vadd.f32 0.0, %v2291
      %v2293 = vpop.f32.mrf.mxu0
      %v2294 = vadd.f32 0.0, %v2293
      %2295 = vdwg.mxu0
      %v2312 = vunpack.c.l.b16 %v2195
      %v2313 = vunpack.c.l.b16 %v2196
      %v2314 = vunpack.c.l.b16 %v2197
      %v2315 = vunpack.c.l.b16 %v2198
      %v2316 = vunpack.c.l.b16 %v2199
      %v2317 = vunpack.c.l.b16 %v2200
      %v2318 = vunpack.c.l.b16 %v2201
      %v2319 = vunpack.c.l.b16 %v2202
      %v2320 = vunpack.c.l.b16 %v2203
      %v2321 = vunpack.c.l.b16 %v2204
      %v2322 = vunpack.c.l.b16 %v2205
      %v2323 = vunpack.c.l.b16 %v2206
      %v2324 = vunpack.c.l.b16 %v2207
      %v2325 = vunpack.c.l.b16 %v2208
      %v2326 = vunpack.c.l.b16 %v2209
      %v2327 = vunpack.c.l.b16 %v2210
      %v2328 = vpack.c.b16 %v2313, %v2312
      %v2329 = vpack.c.b16 %v2315, %v2314
      %v2330 = vpack.c.b16 %v2317, %v2316
      %v2331 = vpack.c.b16 %v2319, %v2318
      %v2332 = vpack.c.b16 %v2321, %v2320
      %v2333 = vpack.c.b16 %v2323, %v2322
      %v2334 = vpack.c.b16 %v2325, %v2324
      %v2335 = vpack.c.b16 %v2327, %v2326
      %2344 = vmatpush.bf16.msra.mxu0 %v2335
      %2345 = vmatpush.bf16.msra.mxu0 %v2334
      %2346 = vmatpush.bf16.msra.mxu0 %v2333
      %2347 = vmatpush.bf16.msra.mxu0 %v2332
      %2348 = vmatpush.bf16.msra.mxu0 %v2331
      %2349 = vmatpush.bf16.msra.mxu0 %v2330
      %2350 = vmatpush.bf16.msra.mxu0 %v2329
      %2351 = vmatpush.bf16.msra.mxu0 %v2328
      %2352 = vmatmul.bf16.gmra.mxu0 %v2194
      %v2353 = vpop.f32.mrf.mxu0
      %v2354 = vadd.f32 %v2292, %v2353
      %v2355 = vpop.f32.mrf.mxu0
      %v2356 = vadd.f32 %v2294, %v2355
      %2357 = vdwg.mxu0
      %s2358 = sadd.s32 %s2183, 2
      %s2359 = smul.u32 %s2358, 16
      %s2360 = scalar_lea.vmem [#allocation2], %s2359
      %v2361 = vld [vmem:[%s2360] sm:$0xff]
      %v2362 = vld [vmem:[%s2360 + $0x8] sm:$0xff]
      %v2363 = vpack.c.bf16 %v2362, %v2361
      %s2364 = scalar_lea.vmem %s35, 128
      %v2365 = vld [vmem:[%s2364] sm:$0xf]
      %v2366 = vld [vmem:[%s2364 + $0x4] sm:$0xf]
      %v2367 = vld [vmem:[%s2364 + $0x8] sm:$0xf]
      %v2368 = vld [vmem:[%s2364 + $0xc] sm:$0xf]
      %v2369 = vld [vmem:[%s2364 + $0x10] sm:$0xf]
      %v2370 = vld [vmem:[%s2364 + $0x14] sm:$0xf]
      %v2371 = vld [vmem:[%s2364 + $0x18] sm:$0xf]
      %v2372 = vld [vmem:[%s2364 + $0x1c] sm:$0xf]
      %v2373 = vld [vmem:[%s2364 + $0x20] sm:$0xf]
      %v2374 = vld [vmem:[%s2364 + $0x24] sm:$0xf]
      %v2375 = vld [vmem:[%s2364 + $0x28] sm:$0xf]
      %v2376 = vld [vmem:[%s2364 + $0x2c] sm:$0xf]
      %v2377 = vld [vmem:[%s2364 + $0x30] sm:$0xf]
      %v2378 = vld [vmem:[%s2364 + $0x34] sm:$0xf]
      %v2379 = vld [vmem:[%s2364 + $0x38] sm:$0xf]
      %v2380 = vld [vmem:[%s2364 + $0x3c] sm:$0xf]
      %v2397 = vunpack.c.l.b16 %v2365
      %v2398 = vunpack.c.l.b16 %v2366
      %v2399 = vunpack.c.l.b16 %v2367
      %v2400 = vunpack.c.l.b16 %v2368
      %v2401 = vunpack.c.l.b16 %v2369
      %v2402 = vunpack.c.l.b16 %v2370
      %v2403 = vunpack.c.l.b16 %v2371
      %v2404 = vunpack.c.l.b16 %v2372
      %v2405 = vunpack.c.l.b16 %v2373
      %v2406 = vunpack.c.l.b16 %v2374
      %v2407 = vunpack.c.l.b16 %v2375
      %v2408 = vunpack.c.l.b16 %v2376
      %v2409 = vunpack.c.l.b16 %v2377
      %v2410 = vunpack.c.l.b16 %v2378
      %v2411 = vunpack.c.l.b16 %v2379
      %v2412 = vunpack.c.l.b16 %v2380
      %v2413 = vpack.c.b16 %v2398, %v2397
      %v2414 = vpack.c.b16 %v2400, %v2399
      %v2415 = vpack.c.b16 %v2402, %v2401
      %v2416 = vpack.c.b16 %v2404, %v2403
      %v2417 = vpack.c.b16 %v2406, %v2405
      %v2418 = vpack.c.b16 %v2408, %v2407
      %v2419 = vpack.c.b16 %v2410, %v2409
      %v2420 = vpack.c.b16 %v2412, %v2411
      %2429 = vmatpush.bf16.msra.mxu0 %v2420
      %2430 = vmatpush.bf16.msra.mxu0 %v2419
      %2431 = vmatpush.bf16.msra.mxu0 %v2418
      %2432 = vmatpush.bf16.msra.mxu0 %v2417
      %2433 = vmatpush.bf16.msra.mxu0 %v2416
      %2434 = vmatpush.bf16.msra.mxu0 %v2415
      %2435 = vmatpush.bf16.msra.mxu0 %v2414
      %2436 = vmatpush.bf16.msra.mxu0 %v2413
      %2437 = vmatmul.bf16.gmra.mxu0 %v2363
      %v2438 = vpop.f32.mrf.mxu0
      %v2439 = vadd.f32 0.0, %v2438
      %v2440 = vpop.f32.mrf.mxu0
      %v2441 = vadd.f32 0.0, %v2440
      %2442 = vdwg.mxu0
      %v2443 = vadd.f32 %v2354, %v2439
      %v2444 = vadd.f32 %v2356, %v2441
      %s2445 = sadd.s32 %s2183, 3
      %s2446 = smul.u32 %s2445, 16
      %s2447 = scalar_lea.vmem [#allocation2], %s2446
      %v2448 = vld [vmem:[%s2447] sm:$0xff]
      %v2449 = vld [vmem:[%s2447 + $0x8] sm:$0xff]
      %v2450 = vpack.c.bf16 %v2449, %v2448
      %s2451 = scalar_lea.vmem %s35, 192
      %v2452 = vld [vmem:[%s2451] sm:$0xf]
      %v2453 = vld [vmem:[%s2451 + $0x4] sm:$0xf]
      %v2454 = vld [vmem:[%s2451 + $0x8] sm:$0xf]
      %v2455 = vld [vmem:[%s2451 + $0xc] sm:$0xf]
      %v2456 = vld [vmem:[%s2451 + $0x10] sm:$0xf]
      %v2457 = vld [vmem:[%s2451 + $0x14] sm:$0xf]
      %v2458 = vld [vmem:[%s2451 + $0x18] sm:$0xf]
      %v2459 = vld [vmem:[%s2451 + $0x1c] sm:$0xf]
      %v2460 = vld [vmem:[%s2451 + $0x20] sm:$0xf]
      %v2461 = vld [vmem:[%s2451 + $0x24] sm:$0xf]
      %v2462 = vld [vmem:[%s2451 + $0x28] sm:$0xf]
      %v2463 = vld [vmem:[%s2451 + $0x2c] sm:$0xf]
      %v2464 = vld [vmem:[%s2451 + $0x30] sm:$0xf]
      %v2465 = vld [vmem:[%s2451 + $0x34] sm:$0xf]
      %v2466 = vld [vmem:[%s2451 + $0x38] sm:$0xf]
      %v2467 = vld [vmem:[%s2451 + $0x3c] sm:$0xf]
      %v2484 = vunpack.c.l.b16 %v2452
      %v2485 = vunpack.c.l.b16 %v2453
      %v2486 = vunpack.c.l.b16 %v2454
      %v2487 = vunpack.c.l.b16 %v2455
      %v2488 = vunpack.c.l.b16 %v2456
      %v2489 = vunpack.c.l.b16 %v2457
      %v2490 = vunpack.c.l.b16 %v2458
      %v2491 = vunpack.c.l.b16 %v2459
      %v2492 = vunpack.c.l.b16 %v2460
      %v2493 = vunpack.c.l.b16 %v2461
      %v2494 = vunpack.c.l.b16 %v2462
      %v2495 = vunpack.c.l.b16 %v2463
      %v2496 = vunpack.c.l.b16 %v2464
      %v2497 = vunpack.c.l.b16 %v2465
      %v2498 = vunpack.c.l.b16 %v2466
      %v2499 = vunpack.c.l.b16 %v2467
      %v2500 = vpack.c.b16 %v2485, %v2484
      %v2501 = vpack.c.b16 %v2487, %v2486
      %v2502 = vpack.c.b16 %v2489, %v2488
      %v2503 = vpack.c.b16 %v2491, %v2490
      %v2504 = vpack.c.b16 %v2493, %v2492
      %v2505 = vpack.c.b16 %v2495, %v2494
      %v2506 = vpack.c.b16 %v2497, %v2496
      %v2507 = vpack.c.b16 %v2499, %v2498
      %2516 = vmatpush.bf16.msra.mxu0 %v2507
      %2517 = vmatpush.bf16.msra.mxu0 %v2506
      %2518 = vmatpush.bf16.msra.mxu0 %v2505
      %2519 = vmatpush.bf16.msra.mxu0 %v2504
      %2520 = vmatpush.bf16.msra.mxu0 %v2503
      %2521 = vmatpush.bf16.msra.mxu0 %v2502
      %2522 = vmatpush.bf16.msra.mxu0 %v2501
      %2523 = vmatpush.bf16.msra.mxu0 %v2500
      %2524 = vmatmul.bf16.gmra.mxu0 %v2450
      %v2525 = vpop.f32.mrf.mxu0
      %v2526 = vadd.f32 0.0, %v2525
      %v2527 = vpop.f32.mrf.mxu0
      %v2528 = vadd.f32 0.0, %v2527
      %2529 = vdwg.mxu0
      %v2530 = vadd.f32 %v2443, %v2526
      %v2531 = vadd.f32 %v2444, %v2528
      %s2532 = sadd.s32 %s2183, 4
      %s2533 = smul.u32 %s2532, 16
      %s2534 = scalar_lea.vmem [#allocation2], %s2533
      %v2535 = vld [vmem:[%s2534] sm:$0xff]
      %v2536 = vld [vmem:[%s2534 + $0x8] sm:$0xff]
      %v2537 = vpack.c.bf16 %v2536, %v2535
      %s2538 = scalar_lea.vmem %s35, 256
      %v2539 = vld [vmem:[%s2538] sm:$0xf]
      %v2540 = vld [vmem:[%s2538 + $0x4] sm:$0xf]
      %v2541 = vld [vmem:[%s2538 + $0x8] sm:$0xf]
      %v2542 = vld [vmem:[%s2538 + $0xc] sm:$0xf]
      %v2543 = vld [vmem:[%s2538 + $0x10] sm:$0xf]
      %v2544 = vld [vmem:[%s2538 + $0x14] sm:$0xf]
      %v2545 = vld [vmem:[%s2538 + $0x18] sm:$0xf]
      %v2546 = vld [vmem:[%s2538 + $0x1c] sm:$0xf]
      %v2547 = vld [vmem:[%s2538 + $0x20] sm:$0xf]
      %v2548 = vld [vmem:[%s2538 + $0x24] sm:$0xf]
      %v2549 = vld [vmem:[%s2538 + $0x28] sm:$0xf]
      %v2550 = vld [vmem:[%s2538 + $0x2c] sm:$0xf]
      %v2551 = vld [vmem:[%s2538 + $0x30] sm:$0xf]
      %v2552 = vld [vmem:[%s2538 + $0x34] sm:$0xf]
      %v2553 = vld [vmem:[%s2538 + $0x38] sm:$0xf]
      %v2554 = vld [vmem:[%s2538 + $0x3c] sm:$0xf]
      %v2571 = vunpack.c.l.b16 %v2539
      %v2572 = vunpack.c.l.b16 %v2540
      %v2573 = vunpack.c.l.b16 %v2541
      %v2574 = vunpack.c.l.b16 %v2542
      %v2575 = vunpack.c.l.b16 %v2543
      %v2576 = vunpack.c.l.b16 %v2544
      %v2577 = vunpack.c.l.b16 %v2545
      %v2578 = vunpack.c.l.b16 %v2546
      %v2579 = vunpack.c.l.b16 %v2547
      %v2580 = vunpack.c.l.b16 %v2548
      %v2581 = vunpack.c.l.b16 %v2549
      %v2582 = vunpack.c.l.b16 %v2550
      %v2583 = vunpack.c.l.b16 %v2551
      %v2584 = vunpack.c.l.b16 %v2552
      %v2585 = vunpack.c.l.b16 %v2553
      %v2586 = vunpack.c.l.b16 %v2554
      %v2587 = vpack.c.b16 %v2572, %v2571
      %v2588 = vpack.c.b16 %v2574, %v2573
      %v2589 = vpack.c.b16 %v2576, %v2575
      %v2590 = vpack.c.b16 %v2578, %v2577
      %v2591 = vpack.c.b16 %v2580, %v2579
      %v2592 = vpack.c.b16 %v2582, %v2581
      %v2593 = vpack.c.b16 %v2584, %v2583
      %v2594 = vpack.c.b16 %v2586, %v2585
      %2603 = vmatpush.bf16.msra.mxu0 %v2594
      %2604 = vmatpush.bf16.msra.mxu0 %v2593
      %2605 = vmatpush.bf16.msra.mxu0 %v2592
      %2606 = vmatpush.bf16.msra.mxu0 %v2591
      %2607 = vmatpush.bf16.msra.mxu0 %v2590
      %2608 = vmatpush.bf16.msra.mxu0 %v2589
      %2609 = vmatpush.bf16.msra.mxu0 %v2588
      %2610 = vmatpush.bf16.msra.mxu0 %v2587
      %2611 = vmatmul.bf16.gmra.mxu0 %v2537
      %v2612 = vpop.f32.mrf.mxu0
      %v2613 = vadd.f32 0.0, %v2612
      %v2614 = vpop.f32.mrf.mxu0
      %v2615 = vadd.f32 0.0, %v2614
      %2616 = vdwg.mxu0
      %v2617 = vadd.f32 %v2530, %v2613
      %v2618 = vadd.f32 %v2531, %v2615
      %v2620 = vperm.slane %v2181, 0
      %v2622 = vadd.f32 %v2617, %v2620
      %v2623 = vadd.f32 %v2618, %v2620
      %vm2624 = vcmp.ge.f32.partialorder %v2622, 0.0
      %vm2625 = vcmp.ge.f32.partialorder %v2623, 0.0
      %v2626 = vmul.f32 %v2622, 0.2
      %v2627 = vmul.f32 %v2623, 0.2
      %v2628 = vsel %vm2624, %v2622, %v2626
      %v2629 = vsel %vm2625, %v2623, %v2627
      %s2630 = scalar_lea.vmem [#allocation3], %s2359
      %2631 = vst [vmem:[%s2630] sm:$0xff] %v2628
      %2632 = vst [vmem:[%s2630 + $0x8] sm:$0xff] %v2629
      %v2633 = vadd.f32 %v2628, %v2629
      %v2634 = vrot.slane %v2633, 4
      %v2635 = vadd.f32 %v2633, %v2634
      %v2636 = vrot.slane %v2635, 2
      %v2637 = vadd.f32 %v2635, %v2636
      %v2638 = vrot.slane %v2637, 1
      %v2639 = vadd.f32 %v2637, %v2638
      %v2640 = vadd.f32 %v2188, %v2639
      %v2641 = vmul.f32 %v2628, %v2628
      %v2642 = vmul.f32 %v2629, %v2629
      %v2643 = vadd.f32 %v2641, %v2642
      %v2644 = vrot.slane %v2643, 4
      %v2645 = vadd.f32 %v2643, %v2644
      %v2646 = vrot.slane %v2645, 2
      %v2647 = vadd.f32 %v2645, %v2646
      %v2648 = vrot.slane %v2647, 1
      %v2649 = vadd.f32 %v2647, %v2648
      %v2650 = vadd.f32 %v2189, %v2649
    $region165: #{tpu_custom_call.1} parent=1 // loop_footer
      %s2187 = sadd.s32 1, %s2183
    $region166: #{tpu_custom_call.1} parent=1 // loop_footer_branch
      %2182 = sbr.rel target = $region162
    $region167: #{tpu_custom_call.1} parent=1 // loop_exit
      _
    %v2651 = vmul.f32 %v2188, 0.00390625
    %v2652 = vmul.f32 %v2189, 0.00390625
    %v2653 = vmul.f32 %v2651, %v2651
    %v2654 = vsub.f32 %v2652, %v2653
    %v2655 = vmax.f32 %v2654, 0.0
    %v2656 = vadd.f32 %v2655, 1e-05
    %v2657 = vrsqrt.pop %v2656
    %v2658 = vmul.f32 %v2657, %v2656
    %v2659 = vmul.f32 %v2658, %v2657
    %v2660 = vmul.f32 0.5, %v2659
    %v2661 = vsub.f32 1.5, %v2660
    %v2662 = vmul.f32 %v2657, %v2661
    %vm2663 = vweird.f32 %v2656
    %vm2664 = vweird.f32 %v2657
    %vm2665 = vmor %vm2663, %vm2664
    %v2666 = vsel %vm2665, %v2657, %v2662
    %v2667 = vld [vmem:[%s39] sm:$0x1]
    %v2668 = vmul.f32 %v2666, %v2667
    %v2669 = vld [vmem:[%s41] sm:$0x1]
    %v2670 = vmul.f32 %v2651, %v2668
    %v2671 = vsub.f32 %v2669, %v2670
    loop: start=0, step=1, limit=16
    $region168: #{tpu_custom_call.1} parent=1 // loop_pre_header
      _
    $region169: #{tpu_custom_call.1} parent=1 // loop_header
      %s2673 = sphi 0, %s2677
      %p2674 = scmp.ge.s32.totalorder %s2673, 16
    $region170: #{tpu_custom_call.1} parent=1 // loop_header_branch
      %2676 = sbr.rel (%p2674) target = $region174
    $region171: #{tpu_custom_call.1} parent=1 // loop_body
      %s2678 = sadd.s32 %s2673, 2
      %s2679 = smul.u32 %s2678, 16
      %s2680 = scalar_lea.vmem [#allocation3], %s2679
      %v2681 = vld [vmem:[%s2680] sm:$0xff]
      %v2682 = vld [vmem:[%s2680 + $0x8] sm:$0xff]
      %v2683 = vperm.slane %v2668, 0
      %v2684 = vmul.f32 %v2681, %v2683
      %v2685 = vmul.f32 %v2682, %v2683
      %v2687 = vperm.slane %v2671, 0
      %v2689 = vadd.f32 %v2684, %v2687
      %v2690 = vadd.f32 %v2685, %v2687
      %2691 = vst [vmem:[%s2680] sm:$0xff] %v2689
      %2692 = vst [vmem:[%s2680 + $0x8] sm:$0xff] %v2690
    $region172: #{tpu_custom_call.1} parent=1 // loop_footer
      %s2677 = sadd.s32 1, %s2673
    $region173: #{tpu_custom_call.1} parent=1 // loop_footer_branch
      %2672 = sbr.rel target = $region169
    $region174: #{tpu_custom_call.1} parent=1 // loop_exit
      _
    %v2693 = vld [vmem:[%s45] sm:$0x1]
    loop: start=0, step=1, limit=16
    $region175: #{tpu_custom_call.1} parent=1 // loop_pre_header
      _
    $region176: #{tpu_custom_call.1} parent=1 // loop_header
      %s2695 = sphi 0, %s2699
      %p2696 = scmp.ge.s32.totalorder %s2695, 16
      %v2700 = vphi 0.0, %v3152
      %v2701 = vphi 0.0, %v3162
    $region177: #{tpu_custom_call.1} parent=1 // loop_header_branch
      %2698 = sbr.rel (%p2696) target = $region181
    $region178: #{tpu_custom_call.1} parent=1 // loop_body
      %s2702 = smul.u32 %s2695, 16
      %s2703 = scalar_lea.vmem [#allocation3], %s2702
      %v2704 = vld [vmem:[%s2703] sm:$0xff]
      %v2705 = vld [vmem:[%s2703 + $0x8] sm:$0xff]
      %v2706 = vpack.c.bf16 %v2705, %v2704
      %v2707 = vld [vmem:[#allocation4] sm:$0xf]
      %v2708 = vld [vmem:[#allocation4 + $0x4] sm:$0xf]
      %v2709 = vld [vmem:[#allocation4 + $0x8] sm:$0xf]
      %v2710 = vld [vmem:[#allocation4 + $0xc] sm:$0xf]
      %v2711 = vld [vmem:[#allocation4 + $0x10] sm:$0xf]
      %v2712 = vld [vmem:[#allocation4 + $0x14] sm:$0xf]
      %v2713 = vld [vmem:[#allocation4 + $0x18] sm:$0xf]
      %v2714 = vld [vmem:[#allocation4 + $0x1c] sm:$0xf]
      %v2715 = vld [vmem:[#allocation4 + $0x20] sm:$0xf]
      %v2716 = vld [vmem:[#allocation4 + $0x24] sm:$0xf]
      %v2717 = vld [vmem:[#allocation4 + $0x28] sm:$0xf]
      %v2718 = vld [vmem:[#allocation4 + $0x2c] sm:$0xf]
      %v2719 = vld [vmem:[#allocation4 + $0x30] sm:$0xf]
      %v2720 = vld [vmem:[#allocation4 + $0x34] sm:$0xf]
      %v2721 = vld [vmem:[#allocation4 + $0x38] sm:$0xf]
      %v2722 = vld [vmem:[#allocation4 + $0x3c] sm:$0xf]
      %s2723 = sadd.s32 %s2695, 1
      %s2724 = smul.u32 %s2723, 16
      %s2725 = scalar_lea.vmem [#allocation3], %s2724
      %v2726 = vld [vmem:[%s2725] sm:$0xff]
      %v2727 = vld [vmem:[%s2725 + $0x8] sm:$0xff]
      %v2728 = vpack.c.bf16 %v2727, %v2726
      %s2729 = scalar_lea.vmem [#allocation4], 64
      %v2730 = vld [vmem:[%s2729] sm:$0xf]
      %v2731 = vld [vmem:[%s2729 + $0x4] sm:$0xf]
      %v2732 = vld [vmem:[%s2729 + $0x8] sm:$0xf]
      %v2733 = vld [vmem:[%s2729 + $0xc] sm:$0xf]
      %v2734 = vld [vmem:[%s2729 + $0x10] sm:$0xf]
      %v2735 = vld [vmem:[%s2729 + $0x14] sm:$0xf]
      %v2736 = vld [vmem:[%s2729 + $0x18] sm:$0xf]
      %v2737 = vld [vmem:[%s2729 + $0x1c] sm:$0xf]
      %v2738 = vld [vmem:[%s2729 + $0x20] sm:$0xf]
      %v2739 = vld [vmem:[%s2729 + $0x24] sm:$0xf]
      %v2740 = vld [vmem:[%s2729 + $0x28] sm:$0xf]
      %v2741 = vld [vmem:[%s2729 + $0x2c] sm:$0xf]
      %v2742 = vld [vmem:[%s2729 + $0x30] sm:$0xf]
      %v2743 = vld [vmem:[%s2729 + $0x34] sm:$0xf]
      %v2744 = vld [vmem:[%s2729 + $0x38] sm:$0xf]
      %v2745 = vld [vmem:[%s2729 + $0x3c] sm:$0xf]
      %v2762 = vunpack.c.l.b16 %v2730
      %v2763 = vunpack.c.l.b16 %v2731
      %v2764 = vunpack.c.l.b16 %v2732
      %v2765 = vunpack.c.l.b16 %v2733
      %v2766 = vunpack.c.l.b16 %v2734
      %v2767 = vunpack.c.l.b16 %v2735
      %v2768 = vunpack.c.l.b16 %v2736
      %v2769 = vunpack.c.l.b16 %v2737
      %v2770 = vunpack.c.l.b16 %v2738
      %v2771 = vunpack.c.l.b16 %v2739
      %v2772 = vunpack.c.l.b16 %v2740
      %v2773 = vunpack.c.l.b16 %v2741
      %v2774 = vunpack.c.l.b16 %v2742
      %v2775 = vunpack.c.l.b16 %v2743
      %v2776 = vunpack.c.l.b16 %v2744
      %v2777 = vunpack.c.l.b16 %v2745
      %v2778 = vpack.c.b16 %v2763, %v2762
      %v2779 = vpack.c.b16 %v2765, %v2764
      %v2780 = vpack.c.b16 %v2767, %v2766
      %v2781 = vpack.c.b16 %v2769, %v2768
      %v2782 = vpack.c.b16 %v2771, %v2770
      %v2783 = vpack.c.b16 %v2773, %v2772
      %v2784 = vpack.c.b16 %v2775, %v2774
      %v2785 = vpack.c.b16 %v2777, %v2776
      %2794 = vmatpush.bf16.msra.mxu0 %v2785
      %2795 = vmatpush.bf16.msra.mxu0 %v2784
      %2796 = vmatpush.bf16.msra.mxu0 %v2783
      %2797 = vmatpush.bf16.msra.mxu0 %v2782
      %2798 = vmatpush.bf16.msra.mxu0 %v2781
      %2799 = vmatpush.bf16.msra.mxu0 %v2780
      %2800 = vmatpush.bf16.msra.mxu0 %v2779
      %2801 = vmatpush.bf16.msra.mxu0 %v2778
      %2802 = vmatmul.bf16.gmra.mxu0 %v2728
      %v2803 = vpop.f32.mrf.mxu0
      %v2804 = vadd.f32 0.0, %v2803
      %v2805 = vpop.f32.mrf.mxu0
      %v2806 = vadd.f32 0.0, %v2805
      %2807 = vdwg.mxu0
      %v2824 = vunpack.c.l.b16 %v2707
      %v2825 = vunpack.c.l.b16 %v2708
      %v2826 = vunpack.c.l.b16 %v2709
      %v2827 = vunpack.c.l.b16 %v2710
      %v2828 = vunpack.c.l.b16 %v2711
      %v2829 = vunpack.c.l.b16 %v2712
      %v2830 = vunpack.c.l.b16 %v2713
      %v2831 = vunpack.c.l.b16 %v2714
      %v2832 = vunpack.c.l.b16 %v2715
      %v2833 = vunpack.c.l.b16 %v2716
      %v2834 = vunpack.c.l.b16 %v2717
      %v2835 = vunpack.c.l.b16 %v2718
      %v2836 = vunpack.c.l.b16 %v2719
      %v2837 = vunpack.c.l.b16 %v2720
      %v2838 = vunpack.c.l.b16 %v2721
      %v2839 = vunpack.c.l.b16 %v2722
      %v2840 = vpack.c.b16 %v2825, %v2824
      %v2841 = vpack.c.b16 %v2827, %v2826
      %v2842 = vpack.c.b16 %v2829, %v2828
      %v2843 = vpack.c.b16 %v2831, %v2830
      %v2844 = vpack.c.b16 %v2833, %v2832
      %v2845 = vpack.c.b16 %v2835, %v2834
      %v2846 = vpack.c.b16 %v2837, %v2836
      %v2847 = vpack.c.b16 %v2839, %v2838
      %2856 = vmatpush.bf16.msra.mxu0 %v2847
      %2857 = vmatpush.bf16.msra.mxu0 %v2846
      %2858 = vmatpush.bf16.msra.mxu0 %v2845
      %2859 = vmatpush.bf16.msra.mxu0 %v2844
      %2860 = vmatpush.bf16.msra.mxu0 %v2843
      %2861 = vmatpush.bf16.msra.mxu0 %v2842
      %2862 = vmatpush.bf16.msra.mxu0 %v2841
      %2863 = vmatpush.bf16.msra.mxu0 %v2840
      %2864 = vmatmul.bf16.gmra.mxu0 %v2706
      %v2865 = vpop.f32.mrf.mxu0
      %v2866 = vadd.f32 %v2804, %v2865
      %v2867 = vpop.f32.mrf.mxu0
      %v2868 = vadd.f32 %v2806, %v2867
      %2869 = vdwg.mxu0
      %s2870 = sadd.s32 %s2695, 2
      %s2871 = smul.u32 %s2870, 16
      %s2872 = scalar_lea.vmem [#allocation3], %s2871
      %v2873 = vld [vmem:[%s2872] sm:$0xff]
      %v2874 = vld [vmem:[%s2872 + $0x8] sm:$0xff]
      %v2875 = vpack.c.bf16 %v2874, %v2873
      %s2876 = scalar_lea.vmem [#allocation4], 128
      %v2877 = vld [vmem:[%s2876] sm:$0xf]
      %v2878 = vld [vmem:[%s2876 + $0x4] sm:$0xf]
      %v2879 = vld [vmem:[%s2876 + $0x8] sm:$0xf]
      %v2880 = vld [vmem:[%s2876 + $0xc] sm:$0xf]
      %v2881 = vld [vmem:[%s2876 + $0x10] sm:$0xf]
      %v2882 = vld [vmem:[%s2876 + $0x14] sm:$0xf]
      %v2883 = vld [vmem:[%s2876 + $0x18] sm:$0xf]
      %v2884 = vld [vmem:[%s2876 + $0x1c] sm:$0xf]
      %v2885 = vld [vmem:[%s2876 + $0x20] sm:$0xf]
      %v2886 = vld [vmem:[%s2876 + $0x24] sm:$0xf]
      %v2887 = vld [vmem:[%s2876 + $0x28] sm:$0xf]
      %v2888 = vld [vmem:[%s2876 + $0x2c] sm:$0xf]
      %v2889 = vld [vmem:[%s2876 + $0x30] sm:$0xf]
      %v2890 = vld [vmem:[%s2876 + $0x34] sm:$0xf]
      %v2891 = vld [vmem:[%s2876 + $0x38] sm:$0xf]
      %v2892 = vld [vmem:[%s2876 + $0x3c] sm:$0xf]
      %v2909 = vunpack.c.l.b16 %v2877
      %v2910 = vunpack.c.l.b16 %v2878
      %v2911 = vunpack.c.l.b16 %v2879
      %v2912 = vunpack.c.l.b16 %v2880
      %v2913 = vunpack.c.l.b16 %v2881
      %v2914 = vunpack.c.l.b16 %v2882
      %v2915 = vunpack.c.l.b16 %v2883
      %v2916 = vunpack.c.l.b16 %v2884
      %v2917 = vunpack.c.l.b16 %v2885
      %v2918 = vunpack.c.l.b16 %v2886
      %v2919 = vunpack.c.l.b16 %v2887
      %v2920 = vunpack.c.l.b16 %v2888
      %v2921 = vunpack.c.l.b16 %v2889
      %v2922 = vunpack.c.l.b16 %v2890
      %v2923 = vunpack.c.l.b16 %v2891
      %v2924 = vunpack.c.l.b16 %v2892
      %v2925 = vpack.c.b16 %v2910, %v2909
      %v2926 = vpack.c.b16 %v2912, %v2911
      %v2927 = vpack.c.b16 %v2914, %v2913
      %v2928 = vpack.c.b16 %v2916, %v2915
      %v2929 = vpack.c.b16 %v2918, %v2917
      %v2930 = vpack.c.b16 %v2920, %v2919
      %v2931 = vpack.c.b16 %v2922, %v2921
      %v2932 = vpack.c.b16 %v2924, %v2923
      %2941 = vmatpush.bf16.msra.mxu0 %v2932
      %2942 = vmatpush.bf16.msra.mxu0 %v2931
      %2943 = vmatpush.bf16.msra.mxu0 %v2930
      %2944 = vmatpush.bf16.msra.mxu0 %v2929
      %2945 = vmatpush.bf16.msra.mxu0 %v2928
      %2946 = vmatpush.bf16.msra.mxu0 %v2927
      %2947 = vmatpush.bf16.msra.mxu0 %v2926
      %2948 = vmatpush.bf16.msra.mxu0 %v2925
      %2949 = vmatmul.bf16.gmra.mxu0 %v2875
      %v2950 = vpop.f32.mrf.mxu0
      %v2951 = vadd.f32 0.0, %v2950
      %v2952 = vpop.f32.mrf.mxu0
      %v2953 = vadd.f32 0.0, %v2952
      %2954 = vdwg.mxu0
      %v2955 = vadd.f32 %v2866, %v2951
      %v2956 = vadd.f32 %v2868, %v2953
      %s2957 = sadd.s32 %s2695, 3
      %s2958 = smul.u32 %s2957, 16
      %s2959 = scalar_lea.vmem [#allocation3], %s2958
      %v2960 = vld [vmem:[%s2959] sm:$0xff]
      %v2961 = vld [vmem:[%s2959 + $0x8] sm:$0xff]
      %v2962 = vpack.c.bf16 %v2961, %v2960
      %s2963 = scalar_lea.vmem [#allocation4], 192
      %v2964 = vld [vmem:[%s2963] sm:$0xf]
      %v2965 = vld [vmem:[%s2963 + $0x4] sm:$0xf]
      %v2966 = vld [vmem:[%s2963 + $0x8] sm:$0xf]
      %v2967 = vld [vmem:[%s2963 + $0xc] sm:$0xf]
      %v2968 = vld [vmem:[%s2963 + $0x10] sm:$0xf]
      %v2969 = vld [vmem:[%s2963 + $0x14] sm:$0xf]
      %v2970 = vld [vmem:[%s2963 + $0x18] sm:$0xf]
      %v2971 = vld [vmem:[%s2963 + $0x1c] sm:$0xf]
      %v2972 = vld [vmem:[%s2963 + $0x20] sm:$0xf]
      %v2973 = vld [vmem:[%s2963 + $0x24] sm:$0xf]
      %v2974 = vld [vmem:[%s2963 + $0x28] sm:$0xf]
      %v2975 = vld [vmem:[%s2963 + $0x2c] sm:$0xf]
      %v2976 = vld [vmem:[%s2963 + $0x30] sm:$0xf]
      %v2977 = vld [vmem:[%s2963 + $0x34] sm:$0xf]
      %v2978 = vld [vmem:[%s2963 + $0x38] sm:$0xf]
      %v2979 = vld [vmem:[%s2963 + $0x3c] sm:$0xf]
      %v2996 = vunpack.c.l.b16 %v2964
      %v2997 = vunpack.c.l.b16 %v2965
      %v2998 = vunpack.c.l.b16 %v2966
      %v2999 = vunpack.c.l.b16 %v2967
      %v3000 = vunpack.c.l.b16 %v2968
      %v3001 = vunpack.c.l.b16 %v2969
      %v3002 = vunpack.c.l.b16 %v2970
      %v3003 = vunpack.c.l.b16 %v2971
      %v3004 = vunpack.c.l.b16 %v2972
      %v3005 = vunpack.c.l.b16 %v2973
      %v3006 = vunpack.c.l.b16 %v2974
      %v3007 = vunpack.c.l.b16 %v2975
      %v3008 = vunpack.c.l.b16 %v2976
      %v3009 = vunpack.c.l.b16 %v2977
      %v3010 = vunpack.c.l.b16 %v2978
      %v3011 = vunpack.c.l.b16 %v2979
      %v3012 = vpack.c.b16 %v2997, %v2996
      %v3013 = vpack.c.b16 %v2999, %v2998
      %v3014 = vpack.c.b16 %v3001, %v3000
      %v3015 = vpack.c.b16 %v3003, %v3002
      %v3016 = vpack.c.b16 %v3005, %v3004
      %v3017 = vpack.c.b16 %v3007, %v3006
      %v3018 = vpack.c.b16 %v3009, %v3008
      %v3019 = vpack.c.b16 %v3011, %v3010
      %3028 = vmatpush.bf16.msra.mxu0 %v3019
      %3029 = vmatpush.bf16.msra.mxu0 %v3018
      %3030 = vmatpush.bf16.msra.mxu0 %v3017
      %3031 = vmatpush.bf16.msra.mxu0 %v3016
      %3032 = vmatpush.bf16.msra.mxu0 %v3015
      %3033 = vmatpush.bf16.msra.mxu0 %v3014
      %3034 = vmatpush.bf16.msra.mxu0 %v3013
      %3035 = vmatpush.bf16.msra.mxu0 %v3012
      %3036 = vmatmul.bf16.gmra.mxu0 %v2962
      %v3037 = vpop.f32.mrf.mxu0
      %v3038 = vadd.f32 0.0, %v3037
      %v3039 = vpop.f32.mrf.mxu0
      %v3040 = vadd.f32 0.0, %v3039
      %3041 = vdwg.mxu0
      %v3042 = vadd.f32 %v2955, %v3038
      %v3043 = vadd.f32 %v2956, %v3040
      %s3044 = sadd.s32 %s2695, 4
      %s3045 = smul.u32 %s3044, 16
      %s3046 = scalar_lea.vmem [#allocation3], %s3045
      %v3047 = vld [vmem:[%s3046] sm:$0xff]
      %v3048 = vld [vmem:[%s3046 + $0x8] sm:$0xff]
      %v3049 = vpack.c.bf16 %v3048, %v3047
      %s3050 = scalar_lea.vmem [#allocation4], 256
      %v3051 = vld [vmem:[%s3050] sm:$0xf]
      %v3052 = vld [vmem:[%s3050 + $0x4] sm:$0xf]
      %v3053 = vld [vmem:[%s3050 + $0x8] sm:$0xf]
      %v3054 = vld [vmem:[%s3050 + $0xc] sm:$0xf]
      %v3055 = vld [vmem:[%s3050 + $0x10] sm:$0xf]
      %v3056 = vld [vmem:[%s3050 + $0x14] sm:$0xf]
      %v3057 = vld [vmem:[%s3050 + $0x18] sm:$0xf]
      %v3058 = vld [vmem:[%s3050 + $0x1c] sm:$0xf]
      %v3059 = vld [vmem:[%s3050 + $0x20] sm:$0xf]
      %v3060 = vld [vmem:[%s3050 + $0x24] sm:$0xf]
      %v3061 = vld [vmem:[%s3050 + $0x28] sm:$0xf]
      %v3062 = vld [vmem:[%s3050 + $0x2c] sm:$0xf]
      %v3063 = vld [vmem:[%s3050 + $0x30] sm:$0xf]
      %v3064 = vld [vmem:[%s3050 + $0x34] sm:$0xf]
      %v3065 = vld [vmem:[%s3050 + $0x38] sm:$0xf]
      %v3066 = vld [vmem:[%s3050 + $0x3c] sm:$0xf]
      %v3083 = vunpack.c.l.b16 %v3051
      %v3084 = vunpack.c.l.b16 %v3052
      %v3085 = vunpack.c.l.b16 %v3053
      %v3086 = vunpack.c.l.b16 %v3054
      %v3087 = vunpack.c.l.b16 %v3055
      %v3088 = vunpack.c.l.b16 %v3056
      %v3089 = vunpack.c.l.b16 %v3057
      %v3090 = vunpack.c.l.b16 %v3058
      %v3091 = vunpack.c.l.b16 %v3059
      %v3092 = vunpack.c.l.b16 %v3060
      %v3093 = vunpack.c.l.b16 %v3061
      %v3094 = vunpack.c.l.b16 %v3062
      %v3095 = vunpack.c.l.b16 %v3063
      %v3096 = vunpack.c.l.b16 %v3064
      %v3097 = vunpack.c.l.b16 %v3065
      %v3098 = vunpack.c.l.b16 %v3066
      %v3099 = vpack.c.b16 %v3084, %v3083
      %v3100 = vpack.c.b16 %v3086, %v3085
      %v3101 = vpack.c.b16 %v3088, %v3087
      %v3102 = vpack.c.b16 %v3090, %v3089
      %v3103 = vpack.c.b16 %v3092, %v3091
      %v3104 = vpack.c.b16 %v3094, %v3093
      %v3105 = vpack.c.b16 %v3096, %v3095
      %v3106 = vpack.c.b16 %v3098, %v3097
      %3115 = vmatpush.bf16.msra.mxu0 %v3106
      %3116 = vmatpush.bf16.msra.mxu0 %v3105
      %3117 = vmatpush.bf16.msra.mxu0 %v3104
      %3118 = vmatpush.bf16.msra.mxu0 %v3103
      %3119 = vmatpush.bf16.msra.mxu0 %v3102
      %3120 = vmatpush.bf16.msra.mxu0 %v3101
      %3121 = vmatpush.bf16.msra.mxu0 %v3100
      %3122 = vmatpush.bf16.msra.mxu0 %v3099
      %3123 = vmatmul.bf16.gmra.mxu0 %v3049
      %v3124 = vpop.f32.mrf.mxu0
      %v3125 = vadd.f32 0.0, %v3124
      %v3126 = vpop.f32.mrf.mxu0
      %v3127 = vadd.f32 0.0, %v3126
      %3128 = vdwg.mxu0
      %v3129 = vadd.f32 %v3042, %v3125
      %v3130 = vadd.f32 %v3043, %v3127
      %v3132 = vperm.slane %v2693, 0
      %v3134 = vadd.f32 %v3129, %v3132
      %v3135 = vadd.f32 %v3130, %v3132
      %vm3136 = vcmp.ge.f32.partialorder %v3134, 0.0
      %vm3137 = vcmp.ge.f32.partialorder %v3135, 0.0
      %v3138 = vmul.f32 %v3134, 0.2
      %v3139 = vmul.f32 %v3135, 0.2
      %v3140 = vsel %vm3136, %v3134, %v3138
      %v3141 = vsel %vm3137, %v3135, %v3139
      %s3142 = scalar_lea.vmem [#allocation2], %s2871
      %3143 = vst [vmem:[%s3142] sm:$0xff] %v3140
      %3144 = vst [vmem:[%s3142 + $0x8] sm:$0xff] %v3141
      %v3145 = vadd.f32 %v3140, %v3141
      %v3146 = vrot.slane %v3145, 4
      %v3147 = vadd.f32 %v3145, %v3146
      %v3148 = vrot.slane %v3147, 2
      %v3149 = vadd.f32 %v3147, %v3148
      %v3150 = vrot.slane %v3149, 1
      %v3151 = vadd.f32 %v3149, %v3150
      %v3152 = vadd.f32 %v2700, %v3151
      %v3153 = vmul.f32 %v3140, %v3140
      %v3154 = vmul.f32 %v3141, %v3141
      %v3155 = vadd.f32 %v3153, %v3154
      %v3156 = vrot.slane %v3155, 4
      %v3157 = vadd.f32 %v3155, %v3156
      %v3158 = vrot.slane %v3157, 2
      %v3159 = vadd.f32 %v3157, %v3158
      %v3160 = vrot.slane %v3159, 1
      %v3161 = vadd.f32 %v3159, %v3160
      %v3162 = vadd.f32 %v2701, %v3161
    $region179: #{tpu_custom_call.1} parent=1 // loop_footer
      %s2699 = sadd.s32 1, %s2695
    $region180: #{tpu_custom_call.1} parent=1 // loop_footer_branch
      %2694 = sbr.rel target = $region176
    $region181: #{tpu_custom_call.1} parent=1 // loop_exit
      _
    %v3163 = vmul.f32 %v2700, 0.00390625
    %v3164 = vmul.f32 %v2701, 0.00390625
    %v3165 = vmul.f32 %v3163, %v3163
    %v3166 = vsub.f32 %v3164, %v3165
    %v3167 = vmax.f32 %v3166, 0.0
    %v3168 = vadd.f32 %v3167, 1e-05
    %v3169 = vrsqrt.pop %v3168
    %v3170 = vmul.f32 %v3169, %v3168
    %v3171 = vmul.f32 %v3170, %v3169
    %v3172 = vmul.f32 0.5, %v3171
    %v3173 = vsub.f32 1.5, %v3172
    %v3174 = vmul.f32 %v3169, %v3173
    %vm3175 = vweird.f32 %v3168
    %vm3176 = vweird.f32 %v3169
    %vm3177 = vmor %vm3175, %vm3176
    %v3178 = vsel %vm3177, %v3169, %v3174
    %v3179 = vld [vmem:[%s47] sm:$0x1]
    %v3180 = vmul.f32 %v3178, %v3179
    %v3181 = vld [vmem:[%s49] sm:$0x1]
    %v3182 = vmul.f32 %v3163, %v3180
    %v3183 = vsub.f32 %v3181, %v3182
    loop: start=0, step=1, limit=16
    $region182: #{tpu_custom_call.1} parent=1 // loop_pre_header
      _
    $region183: #{tpu_custom_call.1} parent=1 // loop_header
      %s3185 = sphi 0, %s3189
      %p3186 = scmp.ge.s32.totalorder %s3185, 16
    $region184: #{tpu_custom_call.1} parent=1 // loop_header_branch
      %3188 = sbr.rel (%p3186) target = $region188
    $region185: #{tpu_custom_call.1} parent=1 // loop_body
      %s3190 = sadd.s32 %s3185, 2
      %s3191 = smul.u32 %s3190, 16
      %s3192 = scalar_lea.vmem [#allocation2], %s3191
      %v3193 = vld [vmem:[%s3192] sm:$0xff]
      %v3194 = vld [vmem:[%s3192 + $0x8] sm:$0xff]
      %v3195 = vperm.slane %v3180, 0
      %v3196 = vmul.f32 %v3193, %v3195
      %v3197 = vmul.f32 %v3194, %v3195
      %v3199 = vperm.slane %v3183, 0
      %v3201 = vadd.f32 %v3196, %v3199
      %v3202 = vadd.f32 %v3197, %v3199
      %3203 = vst [vmem:[%s3192] sm:$0xff] %v3201
      %3204 = vst [vmem:[%s3192 + $0x8] sm:$0xff] %v3202
    $region186: #{tpu_custom_call.1} parent=1 // loop_footer
      %s3189 = sadd.s32 1, %s3185
    $region187: #{tpu_custom_call.1} parent=1 // loop_footer_branch
      %3184 = sbr.rel target = $region183
    $region188: #{tpu_custom_call.1} parent=1 // loop_exit
      _
    %v3205 = vld [vmem:[%s53] sm:$0x1]
    loop: start=0, step=1, limit=16
    $region189: #{tpu_custom_call.1} parent=1 // loop_pre_header
      _
    $region190: #{tpu_custom_call.1} parent=1 // loop_header
      %s3207 = sphi 0, %s3211
      %p3208 = scmp.ge.s32.totalorder %s3207, 16
    $region191: #{tpu_custom_call.1} parent=1 // loop_header_branch
      %3210 = sbr.rel (%p3208) target = $region195
    $region192: #{tpu_custom_call.1} parent=1 // loop_body
      %s3212 = smul.u32 %s3207, 16
      %s3213 = scalar_lea.vmem [#allocation2], %s3212
      %v3214 = vld [vmem:[%s3213] sm:$0xff]
      %v3215 = vld [vmem:[%s3213 + $0x8] sm:$0xff]
      %v3216 = vpack.c.bf16 %v3215, %v3214
      %v3217 = vld [vmem:[#allocation7] sm:$0xf]
      %v3218 = vld [vmem:[#allocation7 + $0x4] sm:$0xf]
      %v3219 = vld [vmem:[#allocation7 + $0x8] sm:$0xf]
      %v3220 = vld [vmem:[#allocation7 + $0xc] sm:$0xf]
      %v3221 = vld [vmem:[#allocation7 + $0x10] sm:$0xf]
      %v3222 = vld [vmem:[#allocation7 + $0x14] sm:$0xf]
      %v3223 = vld [vmem:[#allocation7 + $0x18] sm:$0xf]
      %v3224 = vld [vmem:[#allocation7 + $0x1c] sm:$0xf]
      %v3225 = vld [vmem:[#allocation7 + $0x20] sm:$0xf]
      %v3226 = vld [vmem:[#allocation7 + $0x24] sm:$0xf]
      %v3227 = vld [vmem:[#allocation7 + $0x28] sm:$0xf]
      %v3228 = vld [vmem:[#allocation7 + $0x2c] sm:$0xf]
      %v3229 = vld [vmem:[#allocation7 + $0x30] sm:$0xf]
      %v3230 = vld [vmem:[#allocation7 + $0x34] sm:$0xf]
      %v3231 = vld [vmem:[#allocation7 + $0x38] sm:$0xf]
      %v3232 = vld [vmem:[#allocation7 + $0x3c] sm:$0xf]
      %s3233 = sadd.s32 %s3207, 1
      %s3234 = smul.u32 %s3233, 16
      %s3235 = scalar_lea.vmem [#allocation2], %s3234
      %v3236 = vld [vmem:[%s3235] sm:$0xff]
      %v3237 = vld [vmem:[%s3235 + $0x8] sm:$0xff]
      %v3238 = vpack.c.bf16 %v3237, %v3236
      %s3239 = scalar_lea.vmem [#allocation7], 64
      %v3240 = vld [vmem:[%s3239] sm:$0xf]
      %v3241 = vld [vmem:[%s3239 + $0x4] sm:$0xf]
      %v3242 = vld [vmem:[%s3239 + $0x8] sm:$0xf]
      %v3243 = vld [vmem:[%s3239 + $0xc] sm:$0xf]
      %v3244 = vld [vmem:[%s3239 + $0x10] sm:$0xf]
      %v3245 = vld [vmem:[%s3239 + $0x14] sm:$0xf]
      %v3246 = vld [vmem:[%s3239 + $0x18] sm:$0xf]
      %v3247 = vld [vmem:[%s3239 + $0x1c] sm:$0xf]
      %v3248 = vld [vmem:[%s3239 + $0x20] sm:$0xf]
      %v3249 = vld [vmem:[%s3239 + $0x24] sm:$0xf]
      %v3250 = vld [vmem:[%s3239 + $0x28] sm:$0xf]
      %v3251 = vld [vmem:[%s3239 + $0x2c] sm:$0xf]
      %v3252 = vld [vmem:[%s3239 + $0x30] sm:$0xf]
      %v3253 = vld [vmem:[%s3239 + $0x34] sm:$0xf]
      %v3254 = vld [vmem:[%s3239 + $0x38] sm:$0xf]
      %v3255 = vld [vmem:[%s3239 + $0x3c] sm:$0xf]
      %v3272 = vunpack.c.l.b16 %v3240
      %v3273 = vunpack.c.l.b16 %v3241
      %v3274 = vunpack.c.l.b16 %v3242
      %v3275 = vunpack.c.l.b16 %v3243
      %v3276 = vunpack.c.l.b16 %v3244
      %v3277 = vunpack.c.l.b16 %v3245
      %v3278 = vunpack.c.l.b16 %v3246
      %v3279 = vunpack.c.l.b16 %v3247
      %v3280 = vunpack.c.l.b16 %v3248
      %v3281 = vunpack.c.l.b16 %v3249
      %v3282 = vunpack.c.l.b16 %v3250
      %v3283 = vunpack.c.l.b16 %v3251
      %v3284 = vunpack.c.l.b16 %v3252
      %v3285 = vunpack.c.l.b16 %v3253
      %v3286 = vunpack.c.l.b16 %v3254
      %v3287 = vunpack.c.l.b16 %v3255
      %v3288 = vpack.c.b16 %v3273, %v3272
      %v3289 = vpack.c.b16 %v3275, %v3274
      %v3290 = vpack.c.b16 %v3277, %v3276
      %v3291 = vpack.c.b16 %v3279, %v3278
      %v3292 = vpack.c.b16 %v3281, %v3280
      %v3293 = vpack.c.b16 %v3283, %v3282
      %v3294 = vpack.c.b16 %v3285, %v3284
      %v3295 = vpack.c.b16 %v3287, %v3286
      %3304 = vmatpush.bf16.msra.mxu0 %v3295
      %3305 = vmatpush.bf16.msra.mxu0 %v3294
      %3306 = vmatpush.bf16.msra.mxu0 %v3293
      %3307 = vmatpush.bf16.msra.mxu0 %v3292
      %3308 = vmatpush.bf16.msra.mxu0 %v3291
      %3309 = vmatpush.bf16.msra.mxu0 %v3290
      %3310 = vmatpush.bf16.msra.mxu0 %v3289
      %3311 = vmatpush.bf16.msra.mxu0 %v3288
      %3312 = vmatmul.bf16.gmra.mxu0 %v3238
      %v3313 = vpop.f32.mrf.mxu0
      %v3314 = vadd.f32 0.0, %v3313
      %v3315 = vpop.f32.mrf.mxu0
      %v3316 = vadd.f32 0.0, %v3315
      %3317 = vdwg.mxu0
      %v3334 = vunpack.c.l.b16 %v3217
      %v3335 = vunpack.c.l.b16 %v3218
      %v3336 = vunpack.c.l.b16 %v3219
      %v3337 = vunpack.c.l.b16 %v3220
      %v3338 = vunpack.c.l.b16 %v3221
      %v3339 = vunpack.c.l.b16 %v3222
      %v3340 = vunpack.c.l.b16 %v3223
      %v3341 = vunpack.c.l.b16 %v3224
      %v3342 = vunpack.c.l.b16 %v3225
      %v3343 = vunpack.c.l.b16 %v3226
      %v3344 = vunpack.c.l.b16 %v3227
      %v3345 = vunpack.c.l.b16 %v3228
      %v3346 = vunpack.c.l.b16 %v3229
      %v3347 = vunpack.c.l.b16 %v3230
      %v3348 = vunpack.c.l.b16 %v3231
      %v3349 = vunpack.c.l.b16 %v3232
      %v3350 = vpack.c.b16 %v3335, %v3334
      %v3351 = vpack.c.b16 %v3337, %v3336
      %v3352 = vpack.c.b16 %v3339, %v3338
      %v3353 = vpack.c.b16 %v3341, %v3340
      %v3354 = vpack.c.b16 %v3343, %v3342
      %v3355 = vpack.c.b16 %v3345, %v3344
      %v3356 = vpack.c.b16 %v3347, %v3346
      %v3357 = vpack.c.b16 %v3349, %v3348
      %3366 = vmatpush.bf16.msra.mxu0 %v3357
      %3367 = vmatpush.bf16.msra.mxu0 %v3356
      %3368 = vmatpush.bf16.msra.mxu0 %v3355
      %3369 = vmatpush.bf16.msra.mxu0 %v3354
      %3370 = vmatpush.bf16.msra.mxu0 %v3353
      %3371 = vmatpush.bf16.msra.mxu0 %v3352
      %3372 = vmatpush.bf16.msra.mxu0 %v3351
      %3373 = vmatpush.bf16.msra.mxu0 %v3350
      %3374 = vmatmul.bf16.gmra.mxu0 %v3216
      %v3375 = vpop.f32.mrf.mxu0
      %v3376 = vadd.f32 %v3314, %v3375
      %v3377 = vpop.f32.mrf.mxu0
      %v3378 = vadd.f32 %v3316, %v3377
      %3379 = vdwg.mxu0
      %s3380 = sadd.s32 %s3207, 2
      %s3381 = smul.u32 %s3380, 16
      %s3382 = scalar_lea.vmem [#allocation2], %s3381
      %v3383 = vld [vmem:[%s3382] sm:$0xff]
      %v3384 = vld [vmem:[%s3382 + $0x8] sm:$0xff]
      %v3385 = vpack.c.bf16 %v3384, %v3383
      %s3386 = scalar_lea.vmem [#allocation7], 128
      %v3387 = vld [vmem:[%s3386] sm:$0xf]
      %v3388 = vld [vmem:[%s3386 + $0x4] sm:$0xf]
      %v3389 = vld [vmem:[%s3386 + $0x8] sm:$0xf]
      %v3390 = vld [vmem:[%s3386 + $0xc] sm:$0xf]
      %v3391 = vld [vmem:[%s3386 + $0x10] sm:$0xf]
      %v3392 = vld [vmem:[%s3386 + $0x14] sm:$0xf]
      %v3393 = vld [vmem:[%s3386 + $0x18] sm:$0xf]
      %v3394 = vld [vmem:[%s3386 + $0x1c] sm:$0xf]
      %v3395 = vld [vmem:[%s3386 + $0x20] sm:$0xf]
      %v3396 = vld [vmem:[%s3386 + $0x24] sm:$0xf]
      %v3397 = vld [vmem:[%s3386 + $0x28] sm:$0xf]
      %v3398 = vld [vmem:[%s3386 + $0x2c] sm:$0xf]
      %v3399 = vld [vmem:[%s3386 + $0x30] sm:$0xf]
      %v3400 = vld [vmem:[%s3386 + $0x34] sm:$0xf]
      %v3401 = vld [vmem:[%s3386 + $0x38] sm:$0xf]
      %v3402 = vld [vmem:[%s3386 + $0x3c] sm:$0xf]
      %v3419 = vunpack.c.l.b16 %v3387
      %v3420 = vunpack.c.l.b16 %v3388
      %v3421 = vunpack.c.l.b16 %v3389
      %v3422 = vunpack.c.l.b16 %v3390
      %v3423 = vunpack.c.l.b16 %v3391
      %v3424 = vunpack.c.l.b16 %v3392
      %v3425 = vunpack.c.l.b16 %v3393
      %v3426 = vunpack.c.l.b16 %v3394
      %v3427 = vunpack.c.l.b16 %v3395
      %v3428 = vunpack.c.l.b16 %v3396
      %v3429 = vunpack.c.l.b16 %v3397
      %v3430 = vunpack.c.l.b16 %v3398
      %v3431 = vunpack.c.l.b16 %v3399
      %v3432 = vunpack.c.l.b16 %v3400
      %v3433 = vunpack.c.l.b16 %v3401
      %v3434 = vunpack.c.l.b16 %v3402
      %v3435 = vpack.c.b16 %v3420, %v3419
      %v3436 = vpack.c.b16 %v3422, %v3421
      %v3437 = vpack.c.b16 %v3424, %v3423
      %v3438 = vpack.c.b16 %v3426, %v3425
      %v3439 = vpack.c.b16 %v3428, %v3427
      %v3440 = vpack.c.b16 %v3430, %v3429
      %v3441 = vpack.c.b16 %v3432, %v3431
      %v3442 = vpack.c.b16 %v3434, %v3433
      %3451 = vmatpush.bf16.msra.mxu0 %v3442
      %3452 = vmatpush.bf16.msra.mxu0 %v3441
      %3453 = vmatpush.bf16.msra.mxu0 %v3440
      %3454 = vmatpush.bf16.msra.mxu0 %v3439
      %3455 = vmatpush.bf16.msra.mxu0 %v3438
      %3456 = vmatpush.bf16.msra.mxu0 %v3437
      %3457 = vmatpush.bf16.msra.mxu0 %v3436
      %3458 = vmatpush.bf16.msra.mxu0 %v3435
      %3459 = vmatmul.bf16.gmra.mxu0 %v3385
      %v3460 = vpop.f32.mrf.mxu0
      %v3461 = vadd.f32 0.0, %v3460
      %v3462 = vpop.f32.mrf.mxu0
      %v3463 = vadd.f32 0.0, %v3462
      %3464 = vdwg.mxu0
      %v3465 = vadd.f32 %v3376, %v3461
      %v3466 = vadd.f32 %v3378, %v3463
      %s3467 = sadd.s32 %s3207, 3
      %s3468 = smul.u32 %s3467, 16
      %s3469 = scalar_lea.vmem [#allocation2], %s3468
      %v3470 = vld [vmem:[%s3469] sm:$0xff]
      %v3471 = vld [vmem:[%s3469 + $0x8] sm:$0xff]
      %v3472 = vpack.c.bf16 %v3471, %v3470
      %s3473 = scalar_lea.vmem [#allocation7], 192
      %v3474 = vld [vmem:[%s3473] sm:$0xf]
      %v3475 = vld [vmem:[%s3473 + $0x4] sm:$0xf]
      %v3476 = vld [vmem:[%s3473 + $0x8] sm:$0xf]
      %v3477 = vld [vmem:[%s3473 + $0xc] sm:$0xf]
      %v3478 = vld [vmem:[%s3473 + $0x10] sm:$0xf]
      %v3479 = vld [vmem:[%s3473 + $0x14] sm:$0xf]
      %v3480 = vld [vmem:[%s3473 + $0x18] sm:$0xf]
      %v3481 = vld [vmem:[%s3473 + $0x1c] sm:$0xf]
      %v3482 = vld [vmem:[%s3473 + $0x20] sm:$0xf]
      %v3483 = vld [vmem:[%s3473 + $0x24] sm:$0xf]
      %v3484 = vld [vmem:[%s3473 + $0x28] sm:$0xf]
      %v3485 = vld [vmem:[%s3473 + $0x2c] sm:$0xf]
      %v3486 = vld [vmem:[%s3473 + $0x30] sm:$0xf]
      %v3487 = vld [vmem:[%s3473 + $0x34] sm:$0xf]
      %v3488 = vld [vmem:[%s3473 + $0x38] sm:$0xf]
      %v3489 = vld [vmem:[%s3473 + $0x3c] sm:$0xf]
      %v3506 = vunpack.c.l.b16 %v3474
      %v3507 = vunpack.c.l.b16 %v3475
      %v3508 = vunpack.c.l.b16 %v3476
      %v3509 = vunpack.c.l.b16 %v3477
      %v3510 = vunpack.c.l.b16 %v3478
      %v3511 = vunpack.c.l.b16 %v3479
      %v3512 = vunpack.c.l.b16 %v3480
      %v3513 = vunpack.c.l.b16 %v3481
      %v3514 = vunpack.c.l.b16 %v3482
      %v3515 = vunpack.c.l.b16 %v3483
      %v3516 = vunpack.c.l.b16 %v3484
      %v3517 = vunpack.c.l.b16 %v3485
      %v3518 = vunpack.c.l.b16 %v3486
      %v3519 = vunpack.c.l.b16 %v3487
      %v3520 = vunpack.c.l.b16 %v3488
      %v3521 = vunpack.c.l.b16 %v3489
      %v3522 = vpack.c.b16 %v3507, %v3506
      %v3523 = vpack.c.b16 %v3509, %v3508
      %v3524 = vpack.c.b16 %v3511, %v3510
      %v3525 = vpack.c.b16 %v3513, %v3512
      %v3526 = vpack.c.b16 %v3515, %v3514
      %v3527 = vpack.c.b16 %v3517, %v3516
      %v3528 = vpack.c.b16 %v3519, %v3518
      %v3529 = vpack.c.b16 %v3521, %v3520
      %3538 = vmatpush.bf16.msra.mxu0 %v3529
      %3539 = vmatpush.bf16.msra.mxu0 %v3528
      %3540 = vmatpush.bf16.msra.mxu0 %v3527
      %3541 = vmatpush.bf16.msra.mxu0 %v3526
      %3542 = vmatpush.bf16.msra.mxu0 %v3525
      %3543 = vmatpush.bf16.msra.mxu0 %v3524
      %3544 = vmatpush.bf16.msra.mxu0 %v3523
      %3545 = vmatpush.bf16.msra.mxu0 %v3522
      %3546 = vmatmul.bf16.gmra.mxu0 %v3472
      %v3547 = vpop.f32.mrf.mxu0
      %v3548 = vadd.f32 0.0, %v3547
      %v3549 = vpop.f32.mrf.mxu0
      %v3550 = vadd.f32 0.0, %v3549
      %3551 = vdwg.mxu0
      %v3552 = vadd.f32 %v3465, %v3548
      %v3553 = vadd.f32 %v3466, %v3550
      %s3554 = sadd.s32 %s3207, 4
      %s3555 = smul.u32 %s3554, 16
      %s3556 = scalar_lea.vmem [#allocation2], %s3555
      %v3557 = vld [vmem:[%s3556] sm:$0xff]
      %v3558 = vld [vmem:[%s3556 + $0x8] sm:$0xff]
      %v3559 = vpack.c.bf16 %v3558, %v3557
      %s3560 = scalar_lea.vmem [#allocation7], 256
      %v3561 = vld [vmem:[%s3560] sm:$0xf]
      %v3562 = vld [vmem:[%s3560 + $0x4] sm:$0xf]
      %v3563 = vld [vmem:[%s3560 + $0x8] sm:$0xf]
      %v3564 = vld [vmem:[%s3560 + $0xc] sm:$0xf]
      %v3565 = vld [vmem:[%s3560 + $0x10] sm:$0xf]
      %v3566 = vld [vmem:[%s3560 + $0x14] sm:$0xf]
      %v3567 = vld [vmem:[%s3560 + $0x18] sm:$0xf]
      %v3568 = vld [vmem:[%s3560 + $0x1c] sm:$0xf]
      %v3569 = vld [vmem:[%s3560 + $0x20] sm:$0xf]
      %v3570 = vld [vmem:[%s3560 + $0x24] sm:$0xf]
      %v3571 = vld [vmem:[%s3560 + $0x28] sm:$0xf]
      %v3572 = vld [vmem:[%s3560 + $0x2c] sm:$0xf]
      %v3573 = vld [vmem:[%s3560 + $0x30] sm:$0xf]
      %v3574 = vld [vmem:[%s3560 + $0x34] sm:$0xf]
      %v3575 = vld [vmem:[%s3560 + $0x38] sm:$0xf]
      %v3576 = vld [vmem:[%s3560 + $0x3c] sm:$0xf]
      %v3593 = vunpack.c.l.b16 %v3561
      %v3594 = vunpack.c.l.b16 %v3562
      %v3595 = vunpack.c.l.b16 %v3563
      %v3596 = vunpack.c.l.b16 %v3564
      %v3597 = vunpack.c.l.b16 %v3565
      %v3598 = vunpack.c.l.b16 %v3566
      %v3599 = vunpack.c.l.b16 %v3567
      %v3600 = vunpack.c.l.b16 %v3568
      %v3601 = vunpack.c.l.b16 %v3569
      %v3602 = vunpack.c.l.b16 %v3570
      %v3603 = vunpack.c.l.b16 %v3571
      %v3604 = vunpack.c.l.b16 %v3572
      %v3605 = vunpack.c.l.b16 %v3573
      %v3606 = vunpack.c.l.b16 %v3574
      %v3607 = vunpack.c.l.b16 %v3575
      %v3608 = vunpack.c.l.b16 %v3576
      %v3609 = vpack.c.b16 %v3594, %v3593
      %v3610 = vpack.c.b16 %v3596, %v3595
      %v3611 = vpack.c.b16 %v3598, %v3597
      %v3612 = vpack.c.b16 %v3600, %v3599
      %v3613 = vpack.c.b16 %v3602, %v3601
      %v3614 = vpack.c.b16 %v3604, %v3603
      %v3615 = vpack.c.b16 %v3606, %v3605
      %v3616 = vpack.c.b16 %v3608, %v3607
      %3625 = vmatpush.bf16.msra.mxu0 %v3616
      %3626 = vmatpush.bf16.msra.mxu0 %v3615
      %3627 = vmatpush.bf16.msra.mxu0 %v3614
      %3628 = vmatpush.bf16.msra.mxu0 %v3613
      %3629 = vmatpush.bf16.msra.mxu0 %v3612
      %3630 = vmatpush.bf16.msra.mxu0 %v3611
      %3631 = vmatpush.bf16.msra.mxu0 %v3610
      %3632 = vmatpush.bf16.msra.mxu0 %v3609
      %3633 = vmatmul.bf16.gmra.mxu0 %v3559
      %v3634 = vpop.f32.mrf.mxu0
      %v3635 = vadd.f32 0.0, %v3634
      %v3636 = vpop.f32.mrf.mxu0
      %v3637 = vadd.f32 0.0, %v3636
      %3638 = vdwg.mxu0
      %v3639 = vadd.f32 %v3552, %v3635
      %v3640 = vadd.f32 %v3553, %v3637
      %v3642 = vperm.slane %v3205, 0
      %v3644 = vadd.f32 %v3639, %v3642
      %v3645 = vadd.f32 %v3640, %v3642
      %vm3646 = vcmp.ge.f32.partialorder %v3644, 0.0
      %vm3647 = vcmp.ge.f32.partialorder %v3645, 0.0
      %v3648 = vmul.f32 %v3644, 0.2
      %v3649 = vmul.f32 %v3645, 0.2
      %v3650 = vsel %vm3646, %v3644, %v3648
      %v3651 = vsel %vm3647, %v3645, %v3649
      %s3652 = scalar_lea.vmem [#allocation3], %s3381
      %3653 = vst [vmem:[%s3652] sm:$0xff] %v3650
      %3654 = vst [vmem:[%s3652 + $0x8] sm:$0xff] %v3651
    $region193: #{tpu_custom_call.1} parent=1 // loop_footer
      %s3211 = sadd.s32 1, %s3207
    $region194: #{tpu_custom_call.1} parent=1 // loop_footer_branch
      %3206 = sbr.rel target = $region190
    $region195: #{tpu_custom_call.1} parent=1 // loop_exit
      _
    %s3655 = scalar_lea.vmem [#allocation3], 32
    %v3656 = vld [vmem:[%s3655] sm:$0xff]
    %v3657 = vld [vmem:[%s3655 + $0x8] sm:$0xff]
    %v3658 = vpack.c.bf16 %v3657, %v3656
    %v3659 = vld [vmem:[%s55] sm:$0xf]
    %v3660 = vld [vmem:[%s55 + $0x4] sm:$0xf]
    %v3661 = vld [vmem:[%s55 + $0x8] sm:$0xf]
    %v3662 = vld [vmem:[%s55 + $0xc] sm:$0xf]
    %v3663 = vld [vmem:[%s55 + $0x10] sm:$0xf]
    %v3664 = vld [vmem:[%s55 + $0x14] sm:$0xf]
    %v3665 = vld [vmem:[%s55 + $0x18] sm:$0xf]
    %v3666 = vld [vmem:[%s55 + $0x1c] sm:$0xf]
    %v3667 = vld [vmem:[%s55 + $0x20] sm:$0xf]
    %v3668 = vld [vmem:[%s55 + $0x24] sm:$0xf]
    %v3669 = vld [vmem:[%s55 + $0x28] sm:$0xf]
    %v3670 = vld [vmem:[%s55 + $0x2c] sm:$0xf]
    %v3671 = vld [vmem:[%s55 + $0x30] sm:$0xf]
    %v3672 = vld [vmem:[%s55 + $0x34] sm:$0xf]
    %v3673 = vld [vmem:[%s55 + $0x38] sm:$0xf]
    %v3674 = vld [vmem:[%s55 + $0x3c] sm:$0xf]
    %s3675 = scalar_lea.vmem [#allocation3], 48
    %v3676 = vld [vmem:[%s3675] sm:$0xff]
    %v3677 = vld [vmem:[%s3675 + $0x8] sm:$0xff]
    %v3678 = vpack.c.bf16 %v3677, %v3676
    %s3679 = scalar_lea.vmem %s55, 64
    %v3680 = vld [vmem:[%s3679] sm:$0xf]
    %v3681 = vld [vmem:[%s3679 + $0x4] sm:$0xf]
    %v3682 = vld [vmem:[%s3679 + $0x8] sm:$0xf]
    %v3683 = vld [vmem:[%s3679 + $0xc] sm:$0xf]
    %v3684 = vld [vmem:[%s3679 + $0x10] sm:$0xf]
    %v3685 = vld [vmem:[%s3679 + $0x14] sm:$0xf]
    %v3686 = vld [vmem:[%s3679 + $0x18] sm:$0xf]
    %v3687 = vld [vmem:[%s3679 + $0x1c] sm:$0xf]
    %v3688 = vld [vmem:[%s3679 + $0x20] sm:$0xf]
    %v3689 = vld [vmem:[%s3679 + $0x24] sm:$0xf]
    %v3690 = vld [vmem:[%s3679 + $0x28] sm:$0xf]
    %v3691 = vld [vmem:[%s3679 + $0x2c] sm:$0xf]
    %v3692 = vld [vmem:[%s3679 + $0x30] sm:$0xf]
    %v3693 = vld [vmem:[%s3679 + $0x34] sm:$0xf]
    %v3694 = vld [vmem:[%s3679 + $0x38] sm:$0xf]
    %v3695 = vld [vmem:[%s3679 + $0x3c] sm:$0xf]
    %v3712 = vunpack.c.l.b16 %v3680
    %v3713 = vunpack.c.l.b16 %v3681
    %v3714 = vunpack.c.l.b16 %v3682
    %v3715 = vunpack.c.l.b16 %v3683
    %v3716 = vunpack.c.l.b16 %v3684
    %v3717 = vunpack.c.l.b16 %v3685
    %v3718 = vunpack.c.l.b16 %v3686
    %v3719 = vunpack.c.l.b16 %v3687
    %v3720 = vunpack.c.l.b16 %v3688
    %v3721 = vunpack.c.l.b16 %v3689
    %v3722 = vunpack.c.l.b16 %v3690
    %v3723 = vunpack.c.l.b16 %v3691
    %v3724 = vunpack.c.l.b16 %v3692
    %v3725 = vunpack.c.l.b16 %v3693
    %v3726 = vunpack.c.l.b16 %v3694
    %v3727 = vunpack.c.l.b16 %v3695
    %v3728 = vpack.c.b16 %v3713, %v3712
    %v3729 = vpack.c.b16 %v3715, %v3714
    %v3730 = vpack.c.b16 %v3717, %v3716
    %v3731 = vpack.c.b16 %v3719, %v3718
    %v3732 = vpack.c.b16 %v3721, %v3720
    %v3733 = vpack.c.b16 %v3723, %v3722
    %v3734 = vpack.c.b16 %v3725, %v3724
    %v3735 = vpack.c.b16 %v3727, %v3726
    %3744 = vmatpush.bf16.msra.mxu0 %v3735
    %3745 = vmatpush.bf16.msra.mxu0 %v3734
    %3746 = vmatpush.bf16.msra.mxu0 %v3733
    %3747 = vmatpush.bf16.msra.mxu0 %v3732
    %3748 = vmatpush.bf16.msra.mxu0 %v3731
    %3749 = vmatpush.bf16.msra.mxu0 %v3730
    %3750 = vmatpush.bf16.msra.mxu0 %v3729
    %3751 = vmatpush.bf16.msra.mxu0 %v3728
    %3752 = vmatmul.bf16.gmra.mxu0 %v3678
    %v3753 = vpop.f32.mrf.mxu0
    %v3754 = vadd.f32 0.0, %v3753
    %v3755 = vpop.f32.mrf.mxu0
    %v3756 = vadd.f32 0.0, %v3755
    %3757 = vdwg.mxu0
    %v3774 = vunpack.c.l.b16 %v3659
    %v3775 = vunpack.c.l.b16 %v3660
    %v3776 = vunpack.c.l.b16 %v3661
    %v3777 = vunpack.c.l.b16 %v3662
    %v3778 = vunpack.c.l.b16 %v3663
    %v3779 = vunpack.c.l.b16 %v3664
    %v3780 = vunpack.c.l.b16 %v3665
    %v3781 = vunpack.c.l.b16 %v3666
    %v3782 = vunpack.c.l.b16 %v3667
    %v3783 = vunpack.c.l.b16 %v3668
    %v3784 = vunpack.c.l.b16 %v3669
    %v3785 = vunpack.c.l.b16 %v3670
    %v3786 = vunpack.c.l.b16 %v3671
    %v3787 = vunpack.c.l.b16 %v3672
    %v3788 = vunpack.c.l.b16 %v3673
    %v3789 = vunpack.c.l.b16 %v3674
    %v3790 = vpack.c.b16 %v3775, %v3774
    %v3791 = vpack.c.b16 %v3777, %v3776
    %v3792 = vpack.c.b16 %v3779, %v3778
    %v3793 = vpack.c.b16 %v3781, %v3780
    %v3794 = vpack.c.b16 %v3783, %v3782
    %v3795 = vpack.c.b16 %v3785, %v3784
    %v3796 = vpack.c.b16 %v3787, %v3786
    %v3797 = vpack.c.b16 %v3789, %v3788
    %3806 = vmatpush.bf16.msra.mxu0 %v3797
    %3807 = vmatpush.bf16.msra.mxu0 %v3796
    %3808 = vmatpush.bf16.msra.mxu0 %v3795
    %3809 = vmatpush.bf16.msra.mxu0 %v3794
    %3810 = vmatpush.bf16.msra.mxu0 %v3793
    %3811 = vmatpush.bf16.msra.mxu0 %v3792
    %3812 = vmatpush.bf16.msra.mxu0 %v3791
    %3813 = vmatpush.bf16.msra.mxu0 %v3790
    %3814 = vmatmul.bf16.gmra.mxu0 %v3658
    %v3815 = vpop.f32.mrf.mxu0
    %v3816 = vadd.f32 %v3754, %v3815
    %v3817 = vpop.f32.mrf.mxu0
    %v3818 = vadd.f32 %v3756, %v3817
    %3819 = vdwg.mxu0
    %s3820 = scalar_lea.vmem [#allocation3], 64
    %v3821 = vld [vmem:[%s3820] sm:$0xff]
    %v3822 = vld [vmem:[%s3820 + $0x8] sm:$0xff]
    %v3823 = vpack.c.bf16 %v3822, %v3821
    %s3824 = scalar_lea.vmem %s55, 128
    %v3825 = vld [vmem:[%s3824] sm:$0xf]
    %v3826 = vld [vmem:[%s3824 + $0x4] sm:$0xf]
    %v3827 = vld [vmem:[%s3824 + $0x8] sm:$0xf]
    %v3828 = vld [vmem:[%s3824 + $0xc] sm:$0xf]
    %v3829 = vld [vmem:[%s3824 + $0x10] sm:$0xf]
    %v3830 = vld [vmem:[%s3824 + $0x14] sm:$0xf]
    %v3831 = vld [vmem:[%s3824 + $0x18] sm:$0xf]
    %v3832 = vld [vmem:[%s3824 + $0x1c] sm:$0xf]
    %v3833 = vld [vmem:[%s3824 + $0x20] sm:$0xf]
    %v3834 = vld [vmem:[%s3824 + $0x24] sm:$0xf]
    %v3835 = vld [vmem:[%s3824 + $0x28] sm:$0xf]
    %v3836 = vld [vmem:[%s3824 + $0x2c] sm:$0xf]
    %v3837 = vld [vmem:[%s3824 + $0x30] sm:$0xf]
    %v3838 = vld [vmem:[%s3824 + $0x34] sm:$0xf]
    %v3839 = vld [vmem:[%s3824 + $0x38] sm:$0xf]
    %v3840 = vld [vmem:[%s3824 + $0x3c] sm:$0xf]
    %v3857 = vunpack.c.l.b16 %v3825
    %v3858 = vunpack.c.l.b16 %v3826
    %v3859 = vunpack.c.l.b16 %v3827
    %v3860 = vunpack.c.l.b16 %v3828
    %v3861 = vunpack.c.l.b16 %v3829
    %v3862 = vunpack.c.l.b16 %v3830
    %v3863 = vunpack.c.l.b16 %v3831
    %v3864 = vunpack.c.l.b16 %v3832
    %v3865 = vunpack.c.l.b16 %v3833
    %v3866 = vunpack.c.l.b16 %v3834
    %v3867 = vunpack.c.l.b16 %v3835
    %v3868 = vunpack.c.l.b16 %v3836
    %v3869 = vunpack.c.l.b16 %v3837
    %v3870 = vunpack.c.l.b16 %v3838
    %v3871 = vunpack.c.l.b16 %v3839
    %v3872 = vunpack.c.l.b16 %v3840
    %v3873 = vpack.c.b16 %v3858, %v3857
    %v3874 = vpack.c.b16 %v3860, %v3859
    %v3875 = vpack.c.b16 %v3862, %v3861
    %v3876 = vpack.c.b16 %v3864, %v3863
    %v3877 = vpack.c.b16 %v3866, %v3865
    %v3878 = vpack.c.b16 %v3868, %v3867
    %v3879 = vpack.c.b16 %v3870, %v3869
    %v3880 = vpack.c.b16 %v3872, %v3871
    %3889 = vmatpush.bf16.msra.mxu0 %v3880
    %3890 = vmatpush.bf16.msra.mxu0 %v3879
    %3891 = vmatpush.bf16.msra.mxu0 %v3878
    %3892 = vmatpush.bf16.msra.mxu0 %v3877
    %3893 = vmatpush.bf16.msra.mxu0 %v3876
    %3894 = vmatpush.bf16.msra.mxu0 %v3875
    %3895 = vmatpush.bf16.msra.mxu0 %v3874
    %3896 = vmatpush.bf16.msra.mxu0 %v3873
    %3897 = vmatmul.bf16.gmra.mxu0 %v3823
    %v3898 = vpop.f32.mrf.mxu0
    %v3899 = vadd.f32 0.0, %v3898
    %v3900 = vpop.f32.mrf.mxu0
    %v3901 = vadd.f32 0.0, %v3900
    %3902 = vdwg.mxu0
    %v3903 = vadd.f32 %v3816, %v3899
    %v3904 = vadd.f32 %v3818, %v3901
    %s3905 = scalar_lea.vmem [#allocation3], 80
    %v3906 = vld [vmem:[%s3905] sm:$0xff]
    %v3907 = vld [vmem:[%s3905 + $0x8] sm:$0xff]
    %v3908 = vpack.c.bf16 %v3907, %v3906
    %s3909 = scalar_lea.vmem %s55, 192
    %v3910 = vld [vmem:[%s3909] sm:$0xf]
    %v3911 = vld [vmem:[%s3909 + $0x4] sm:$0xf]
    %v3912 = vld [vmem:[%s3909 + $0x8] sm:$0xf]
    %v3913 = vld [vmem:[%s3909 + $0xc] sm:$0xf]
    %v3914 = vld [vmem:[%s3909 + $0x10] sm:$0xf]
    %v3915 = vld [vmem:[%s3909 + $0x14] sm:$0xf]
    %v3916 = vld [vmem:[%s3909 + $0x18] sm:$0xf]
    %v3917 = vld [vmem:[%s3909 + $0x1c] sm:$0xf]
    %v3918 = vld [vmem:[%s3909 + $0x20] sm:$0xf]
    %v3919 = vld [vmem:[%s3909 + $0x24] sm:$0xf]
    %v3920 = vld [vmem:[%s3909 + $0x28] sm:$0xf]
    %v3921 = vld [vmem:[%s3909 + $0x2c] sm:$0xf]
    %v3922 = vld [vmem:[%s3909 + $0x30] sm:$0xf]
    %v3923 = vld [vmem:[%s3909 + $0x34] sm:$0xf]
    %v3924 = vld [vmem:[%s3909 + $0x38] sm:$0xf]
    %v3925 = vld [vmem:[%s3909 + $0x3c] sm:$0xf]
    %v3942 = vunpack.c.l.b16 %v3910
    %v3943 = vunpack.c.l.b16 %v3911
    %v3944 = vunpack.c.l.b16 %v3912
    %v3945 = vunpack.c.l.b16 %v3913
    %v3946 = vunpack.c.l.b16 %v3914
    %v3947 = vunpack.c.l.b16 %v3915
    %v3948 = vunpack.c.l.b16 %v3916
    %v3949 = vunpack.c.l.b16 %v3917
    %v3950 = vunpack.c.l.b16 %v3918
    %v3951 = vunpack.c.l.b16 %v3919
    %v3952 = vunpack.c.l.b16 %v3920
    %v3953 = vunpack.c.l.b16 %v3921
    %v3954 = vunpack.c.l.b16 %v3922
    %v3955 = vunpack.c.l.b16 %v3923
    %v3956 = vunpack.c.l.b16 %v3924
    %v3957 = vunpack.c.l.b16 %v3925
    %v3958 = vpack.c.b16 %v3943, %v3942
    %v3959 = vpack.c.b16 %v3945, %v3944
    %v3960 = vpack.c.b16 %v3947, %v3946
    %v3961 = vpack.c.b16 %v3949, %v3948
    %v3962 = vpack.c.b16 %v3951, %v3950
    %v3963 = vpack.c.b16 %v3953, %v3952
    %v3964 = vpack.c.b16 %v3955, %v3954
    %v3965 = vpack.c.b16 %v3957, %v3956
    %3974 = vmatpush.bf16.msra.mxu0 %v3965
    %3975 = vmatpush.bf16.msra.mxu0 %v3964
    %3976 = vmatpush.bf16.msra.mxu0 %v3963
    %3977 = vmatpush.bf16.msra.mxu0 %v3962
    %3978 = vmatpush.bf16.msra.mxu0 %v3961
    %3979 = vmatpush.bf16.msra.mxu0 %v3960
    %3980 = vmatpush.bf16.msra.mxu0 %v3959
    %3981 = vmatpush.bf16.msra.mxu0 %v3958
    %3982 = vmatmul.bf16.gmra.mxu0 %v3908
    %v3983 = vpop.f32.mrf.mxu0
    %v3984 = vadd.f32 0.0, %v3983
    %v3985 = vpop.f32.mrf.mxu0
    %v3986 = vadd.f32 0.0, %v3985
    %3987 = vdwg.mxu0
    %v3988 = vadd.f32 %v3903, %v3984
    %v3989 = vadd.f32 %v3904, %v3986
    %s3990 = scalar_lea.vmem [#allocation3], 96
    %v3991 = vld [vmem:[%s3990] sm:$0xff]
    %v3992 = vld [vmem:[%s3990 + $0x8] sm:$0xff]
    %v3993 = vpack.c.bf16 %v3992, %v3991
    %s3994 = scalar_lea.vmem %s55, 256
    %v3995 = vld [vmem:[%s3994] sm:$0xf]
    %v3996 = vld [vmem:[%s3994 + $0x4] sm:$0xf]
    %v3997 = vld [vmem:[%s3994 + $0x8] sm:$0xf]
    %v3998 = vld [vmem:[%s3994 + $0xc] sm:$0xf]
    %v3999 = vld [vmem:[%s3994 + $0x10] sm:$0xf]
    %v4000 = vld [vmem:[%s3994 + $0x14] sm:$0xf]
    %v4001 = vld [vmem:[%s3994 + $0x18] sm:$0xf]
    %v4002 = vld [vmem:[%s3994 + $0x1c] sm:$0xf]
    %v4003 = vld [vmem:[%s3994 + $0x20] sm:$0xf]
    %v4004 = vld [vmem:[%s3994 + $0x24] sm:$0xf]
    %v4005 = vld [vmem:[%s3994 + $0x28] sm:$0xf]
    %v4006 = vld [vmem:[%s3994 + $0x2c] sm:$0xf]
    %v4007 = vld [vmem:[%s3994 + $0x30] sm:$0xf]
    %v4008 = vld [vmem:[%s3994 + $0x34] sm:$0xf]
    %v4009 = vld [vmem:[%s3994 + $0x38] sm:$0xf]
    %v4010 = vld [vmem:[%s3994 + $0x3c] sm:$0xf]
    %v4027 = vunpack.c.l.b16 %v3995
    %v4028 = vunpack.c.l.b16 %v3996
    %v4029 = vunpack.c.l.b16 %v3997
    %v4030 = vunpack.c.l.b16 %v3998
    %v4031 = vunpack.c.l.b16 %v3999
    %v4032 = vunpack.c.l.b16 %v4000
    %v4033 = vunpack.c.l.b16 %v4001
    %v4034 = vunpack.c.l.b16 %v4002
    %v4035 = vunpack.c.l.b16 %v4003
    %v4036 = vunpack.c.l.b16 %v4004
    %v4037 = vunpack.c.l.b16 %v4005
    %v4038 = vunpack.c.l.b16 %v4006
    %v4039 = vunpack.c.l.b16 %v4007
    %v4040 = vunpack.c.l.b16 %v4008
    %v4041 = vunpack.c.l.b16 %v4009
    %v4042 = vunpack.c.l.b16 %v4010
    %v4043 = vpack.c.b16 %v4028, %v4027
    %v4044 = vpack.c.b16 %v4030, %v4029
    %v4045 = vpack.c.b16 %v4032, %v4031
    %v4046 = vpack.c.b16 %v4034, %v4033
    %v4047 = vpack.c.b16 %v4036, %v4035
    %v4048 = vpack.c.b16 %v4038, %v4037
    %v4049 = vpack.c.b16 %v4040, %v4039
    %v4050 = vpack.c.b16 %v4042, %v4041
    %4059 = vmatpush.bf16.msra.mxu0 %v4050
    %4060 = vmatpush.bf16.msra.mxu0 %v4049
    %4061 = vmatpush.bf16.msra.mxu0 %v4048
    %4062 = vmatpush.bf16.msra.mxu0 %v4047
    %4063 = vmatpush.bf16.msra.mxu0 %v4046
    %4064 = vmatpush.bf16.msra.mxu0 %v4045
    %4065 = vmatpush.bf16.msra.mxu0 %v4044
    %4066 = vmatpush.bf16.msra.mxu0 %v4043
    %4067 = vmatmul.bf16.gmra.mxu0 %v3993
    %v4068 = vpop.f32.mrf.mxu0
    %v4069 = vadd.f32 0.0, %v4068
    %v4070 = vpop.f32.mrf.mxu0
    %v4071 = vadd.f32 0.0, %v4070
    %4072 = vdwg.mxu0
    %v4073 = vadd.f32 %v3988, %v4069
    %v4074 = vadd.f32 %v3989, %v4071
    %s4075 = scalar_lea.vmem [#allocation3], 112
    %v4076 = vld [vmem:[%s4075] sm:$0xff]
    %v4077 = vld [vmem:[%s4075 + $0x8] sm:$0xff]
    %v4078 = vpack.c.bf16 %v4077, %v4076
    %s4079 = scalar_lea.vmem %s55, 320
    %v4080 = vld [vmem:[%s4079] sm:$0xf]
    %v4081 = vld [vmem:[%s4079 + $0x4] sm:$0xf]
    %v4082 = vld [vmem:[%s4079 + $0x8] sm:$0xf]
    %v4083 = vld [vmem:[%s4079 + $0xc] sm:$0xf]
    %v4084 = vld [vmem:[%s4079 + $0x10] sm:$0xf]
    %v4085 = vld [vmem:[%s4079 + $0x14] sm:$0xf]
    %v4086 = vld [vmem:[%s4079 + $0x18] sm:$0xf]
    %v4087 = vld [vmem:[%s4079 + $0x1c] sm:$0xf]
    %v4088 = vld [vmem:[%s4079 + $0x20] sm:$0xf]
    %v4089 = vld [vmem:[%s4079 + $0x24] sm:$0xf]
    %v4090 = vld [vmem:[%s4079 + $0x28] sm:$0xf]
    %v4091 = vld [vmem:[%s4079 + $0x2c] sm:$0xf]
    %v4092 = vld [vmem:[%s4079 + $0x30] sm:$0xf]
    %v4093 = vld [vmem:[%s4079 + $0x34] sm:$0xf]
    %v4094 = vld [vmem:[%s4079 + $0x38] sm:$0xf]
    %v4095 = vld [vmem:[%s4079 + $0x3c] sm:$0xf]
    %v4112 = vunpack.c.l.b16 %v4080
    %v4113 = vunpack.c.l.b16 %v4081
    %v4114 = vunpack.c.l.b16 %v4082
    %v4115 = vunpack.c.l.b16 %v4083
    %v4116 = vunpack.c.l.b16 %v4084
    %v4117 = vunpack.c.l.b16 %v4085
    %v4118 = vunpack.c.l.b16 %v4086
    %v4119 = vunpack.c.l.b16 %v4087
    %v4120 = vunpack.c.l.b16 %v4088
    %v4121 = vunpack.c.l.b16 %v4089
    %v4122 = vunpack.c.l.b16 %v4090
    %v4123 = vunpack.c.l.b16 %v4091
    %v4124 = vunpack.c.l.b16 %v4092
    %v4125 = vunpack.c.l.b16 %v4093
    %v4126 = vunpack.c.l.b16 %v4094
    %v4127 = vunpack.c.l.b16 %v4095
    %v4128 = vpack.c.b16 %v4113, %v4112
    %v4129 = vpack.c.b16 %v4115, %v4114
    %v4130 = vpack.c.b16 %v4117, %v4116
    %v4131 = vpack.c.b16 %v4119, %v4118
    %v4132 = vpack.c.b16 %v4121, %v4120
    %v4133 = vpack.c.b16 %v4123, %v4122
    %v4134 = vpack.c.b16 %v4125, %v4124
    %v4135 = vpack.c.b16 %v4127, %v4126
    %4144 = vmatpush.bf16.msra.mxu0 %v4135
    %4145 = vmatpush.bf16.msra.mxu0 %v4134
    %4146 = vmatpush.bf16.msra.mxu0 %v4133
    %4147 = vmatpush.bf16.msra.mxu0 %v4132
    %4148 = vmatpush.bf16.msra.mxu0 %v4131
    %4149 = vmatpush.bf16.msra.mxu0 %v4130
    %4150 = vmatpush.bf16.msra.mxu0 %v4129
    %4151 = vmatpush.bf16.msra.mxu0 %v4128
    %4152 = vmatmul.bf16.gmra.mxu0 %v4078
    %v4153 = vpop.f32.mrf.mxu0
    %v4154 = vadd.f32 0.0, %v4153
    %v4155 = vpop.f32.mrf.mxu0
    %v4156 = vadd.f32 0.0, %v4155
    %4157 = vdwg.mxu0
    %v4158 = vadd.f32 %v4073, %v4154
    %v4159 = vadd.f32 %v4074, %v4156
    %s4160 = scalar_lea.vmem [#allocation3], 128
    %v4161 = vld [vmem:[%s4160] sm:$0xff]
    %v4162 = vld [vmem:[%s4160 + $0x8] sm:$0xff]
    %v4163 = vpack.c.bf16 %v4162, %v4161
    %s4164 = scalar_lea.vmem %s55, 384
    %v4165 = vld [vmem:[%s4164] sm:$0xf]
    %v4166 = vld [vmem:[%s4164 + $0x4] sm:$0xf]
    %v4167 = vld [vmem:[%s4164 + $0x8] sm:$0xf]
    %v4168 = vld [vmem:[%s4164 + $0xc] sm:$0xf]
    %v4169 = vld [vmem:[%s4164 + $0x10] sm:$0xf]
    %v4170 = vld [vmem:[%s4164 + $0x14] sm:$0xf]
    %v4171 = vld [vmem:[%s4164 + $0x18] sm:$0xf]
    %v4172 = vld [vmem:[%s4164 + $0x1c] sm:$0xf]
    %v4173 = vld [vmem:[%s4164 + $0x20] sm:$0xf]
    %v4174 = vld [vmem:[%s4164 + $0x24] sm:$0xf]
    %v4175 = vld [vmem:[%s4164 + $0x28] sm:$0xf]
    %v4176 = vld [vmem:[%s4164 + $0x2c] sm:$0xf]
    %v4177 = vld [vmem:[%s4164 + $0x30] sm:$0xf]
    %v4178 = vld [vmem:[%s4164 + $0x34] sm:$0xf]
    %v4179 = vld [vmem:[%s4164 + $0x38] sm:$0xf]
    %v4180 = vld [vmem:[%s4164 + $0x3c] sm:$0xf]
    %v4197 = vunpack.c.l.b16 %v4165
    %v4198 = vunpack.c.l.b16 %v4166
    %v4199 = vunpack.c.l.b16 %v4167
    %v4200 = vunpack.c.l.b16 %v4168
    %v4201 = vunpack.c.l.b16 %v4169
    %v4202 = vunpack.c.l.b16 %v4170
    %v4203 = vunpack.c.l.b16 %v4171
    %v4204 = vunpack.c.l.b16 %v4172
    %v4205 = vunpack.c.l.b16 %v4173
    %v4206 = vunpack.c.l.b16 %v4174
    %v4207 = vunpack.c.l.b16 %v4175
    %v4208 = vunpack.c.l.b16 %v4176
    %v4209 = vunpack.c.l.b16 %v4177
    %v4210 = vunpack.c.l.b16 %v4178
    %v4211 = vunpack.c.l.b16 %v4179
    %v4212 = vunpack.c.l.b16 %v4180
    %v4213 = vpack.c.b16 %v4198, %v4197
    %v4214 = vpack.c.b16 %v4200, %v4199
    %v4215 = vpack.c.b16 %v4202, %v4201
    %v4216 = vpack.c.b16 %v4204, %v4203
    %v4217 = vpack.c.b16 %v4206, %v4205
    %v4218 = vpack.c.b16 %v4208, %v4207
    %v4219 = vpack.c.b16 %v4210, %v4209
    %v4220 = vpack.c.b16 %v4212, %v4211
    %4229 = vmatpush.bf16.msra.mxu0 %v4220
    %4230 = vmatpush.bf16.msra.mxu0 %v4219
    %4231 = vmatpush.bf16.msra.mxu0 %v4218
    %4232 = vmatpush.bf16.msra.mxu0 %v4217
    %4233 = vmatpush.bf16.msra.mxu0 %v4216
    %4234 = vmatpush.bf16.msra.mxu0 %v4215
    %4235 = vmatpush.bf16.msra.mxu0 %v4214
    %4236 = vmatpush.bf16.msra.mxu0 %v4213
    %4237 = vmatmul.bf16.gmra.mxu0 %v4163
    %v4238 = vpop.f32.mrf.mxu0
    %v4239 = vadd.f32 0.0, %v4238
    %v4240 = vpop.f32.mrf.mxu0
    %v4241 = vadd.f32 0.0, %v4240
    %4242 = vdwg.mxu0
    %v4243 = vadd.f32 %v4158, %v4239
    %v4244 = vadd.f32 %v4159, %v4241
    %s4245 = scalar_lea.vmem [#allocation3], 144
    %v4246 = vld [vmem:[%s4245] sm:$0xff]
    %v4247 = vld [vmem:[%s4245 + $0x8] sm:$0xff]
    %v4248 = vpack.c.bf16 %v4247, %v4246
    %s4249 = scalar_lea.vmem %s55, 448
    %v4250 = vld [vmem:[%s4249] sm:$0xf]
    %v4251 = vld [vmem:[%s4249 + $0x4] sm:$0xf]
    %v4252 = vld [vmem:[%s4249 + $0x8] sm:$0xf]
    %v4253 = vld [vmem:[%s4249 + $0xc] sm:$0xf]
    %v4254 = vld [vmem:[%s4249 + $0x10] sm:$0xf]
    %v4255 = vld [vmem:[%s4249 + $0x14] sm:$0xf]
    %v4256 = vld [vmem:[%s4249 + $0x18] sm:$0xf]
    %v4257 = vld [vmem:[%s4249 + $0x1c] sm:$0xf]
    %v4258 = vld [vmem:[%s4249 + $0x20] sm:$0xf]
    %v4259 = vld [vmem:[%s4249 + $0x24] sm:$0xf]
    %v4260 = vld [vmem:[%s4249 + $0x28] sm:$0xf]
    %v4261 = vld [vmem:[%s4249 + $0x2c] sm:$0xf]
    %v4262 = vld [vmem:[%s4249 + $0x30] sm:$0xf]
    %v4263 = vld [vmem:[%s4249 + $0x34] sm:$0xf]
    %v4264 = vld [vmem:[%s4249 + $0x38] sm:$0xf]
    %v4265 = vld [vmem:[%s4249 + $0x3c] sm:$0xf]
    %v4282 = vunpack.c.l.b16 %v4250
    %v4283 = vunpack.c.l.b16 %v4251
    %v4284 = vunpack.c.l.b16 %v4252
    %v4285 = vunpack.c.l.b16 %v4253
    %v4286 = vunpack.c.l.b16 %v4254
    %v4287 = vunpack.c.l.b16 %v4255
    %v4288 = vunpack.c.l.b16 %v4256
    %v4289 = vunpack.c.l.b16 %v4257
    %v4290 = vunpack.c.l.b16 %v4258
    %v4291 = vunpack.c.l.b16 %v4259
    %v4292 = vunpack.c.l.b16 %v4260
    %v4293 = vunpack.c.l.b16 %v4261
    %v4294 = vunpack.c.l.b16 %v4262
    %v4295 = vunpack.c.l.b16 %v4263
    %v4296 = vunpack.c.l.b16 %v4264
    %v4297 = vunpack.c.l.b16 %v4265
    %v4298 = vpack.c.b16 %v4283, %v4282
    %v4299 = vpack.c.b16 %v4285, %v4284
    %v4300 = vpack.c.b16 %v4287, %v4286
    %v4301 = vpack.c.b16 %v4289, %v4288
    %v4302 = vpack.c.b16 %v4291, %v4290
    %v4303 = vpack.c.b16 %v4293, %v4292
    %v4304 = vpack.c.b16 %v4295, %v4294
    %v4305 = vpack.c.b16 %v4297, %v4296
    %4314 = vmatpush.bf16.msra.mxu0 %v4305
    %4315 = vmatpush.bf16.msra.mxu0 %v4304
    %4316 = vmatpush.bf16.msra.mxu0 %v4303
    %4317 = vmatpush.bf16.msra.mxu0 %v4302
    %4318 = vmatpush.bf16.msra.mxu0 %v4301
    %4319 = vmatpush.bf16.msra.mxu0 %v4300
    %4320 = vmatpush.bf16.msra.mxu0 %v4299
    %4321 = vmatpush.bf16.msra.mxu0 %v4298
    %4322 = vmatmul.bf16.gmra.mxu0 %v4248
    %v4323 = vpop.f32.mrf.mxu0
    %v4324 = vadd.f32 0.0, %v4323
    %v4325 = vpop.f32.mrf.mxu0
    %v4326 = vadd.f32 0.0, %v4325
    %4327 = vdwg.mxu0
    %v4328 = vadd.f32 %v4243, %v4324
    %v4329 = vadd.f32 %v4244, %v4326
    %s4330 = scalar_lea.vmem [#allocation3], 160
    %v4331 = vld [vmem:[%s4330] sm:$0xff]
    %v4332 = vld [vmem:[%s4330 + $0x8] sm:$0xff]
    %v4333 = vpack.c.bf16 %v4332, %v4331
    %s4334 = scalar_lea.vmem %s55, 512
    %v4335 = vld [vmem:[%s4334] sm:$0xf]
    %v4336 = vld [vmem:[%s4334 + $0x4] sm:$0xf]
    %v4337 = vld [vmem:[%s4334 + $0x8] sm:$0xf]
    %v4338 = vld [vmem:[%s4334 + $0xc] sm:$0xf]
    %v4339 = vld [vmem:[%s4334 + $0x10] sm:$0xf]
    %v4340 = vld [vmem:[%s4334 + $0x14] sm:$0xf]
    %v4341 = vld [vmem:[%s4334 + $0x18] sm:$0xf]
    %v4342 = vld [vmem:[%s4334 + $0x1c] sm:$0xf]
    %v4343 = vld [vmem:[%s4334 + $0x20] sm:$0xf]
    %v4344 = vld [vmem:[%s4334 + $0x24] sm:$0xf]
    %v4345 = vld [vmem:[%s4334 + $0x28] sm:$0xf]
    %v4346 = vld [vmem:[%s4334 + $0x2c] sm:$0xf]
    %v4347 = vld [vmem:[%s4334 + $0x30] sm:$0xf]
    %v4348 = vld [vmem:[%s4334 + $0x34] sm:$0xf]
    %v4349 = vld [vmem:[%s4334 + $0x38] sm:$0xf]
    %v4350 = vld [vmem:[%s4334 + $0x3c] sm:$0xf]
    %v4367 = vunpack.c.l.b16 %v4335
    %v4368 = vunpack.c.l.b16 %v4336
    %v4369 = vunpack.c.l.b16 %v4337
    %v4370 = vunpack.c.l.b16 %v4338
    %v4371 = vunpack.c.l.b16 %v4339
    %v4372 = vunpack.c.l.b16 %v4340
    %v4373 = vunpack.c.l.b16 %v4341
    %v4374 = vunpack.c.l.b16 %v4342
    %v4375 = vunpack.c.l.b16 %v4343
    %v4376 = vunpack.c.l.b16 %v4344
    %v4377 = vunpack.c.l.b16 %v4345
    %v4378 = vunpack.c.l.b16 %v4346
    %v4379 = vunpack.c.l.b16 %v4347
    %v4380 = vunpack.c.l.b16 %v4348
    %v4381 = vunpack.c.l.b16 %v4349
    %v4382 = vunpack.c.l.b16 %v4350
    %v4383 = vpack.c.b16 %v4368, %v4367
    %v4384 = vpack.c.b16 %v4370, %v4369
    %v4385 = vpack.c.b16 %v4372, %v4371
    %v4386 = vpack.c.b16 %v4374, %v4373
    %v4387 = vpack.c.b16 %v4376, %v4375
    %v4388 = vpack.c.b16 %v4378, %v4377
    %v4389 = vpack.c.b16 %v4380, %v4379
    %v4390 = vpack.c.b16 %v4382, %v4381
    %4399 = vmatpush.bf16.msra.mxu0 %v4390
    %4400 = vmatpush.bf16.msra.mxu0 %v4389
    %4401 = vmatpush.bf16.msra.mxu0 %v4388
    %4402 = vmatpush.bf16.msra.mxu0 %v4387
    %4403 = vmatpush.bf16.msra.mxu0 %v4386
    %4404 = vmatpush.bf16.msra.mxu0 %v4385
    %4405 = vmatpush.bf16.msra.mxu0 %v4384
    %4406 = vmatpush.bf16.msra.mxu0 %v4383
    %4407 = vmatmul.bf16.gmra.mxu0 %v4333
    %v4408 = vpop.f32.mrf.mxu0
    %v4409 = vadd.f32 0.0, %v4408
    %v4410 = vpop.f32.mrf.mxu0
    %v4411 = vadd.f32 0.0, %v4410
    %4412 = vdwg.mxu0
    %v4413 = vadd.f32 %v4328, %v4409
    %v4414 = vadd.f32 %v4329, %v4411
    %s4415 = scalar_lea.vmem [#allocation3], 176
    %v4416 = vld [vmem:[%s4415] sm:$0xff]
    %v4417 = vld [vmem:[%s4415 + $0x8] sm:$0xff]
    %v4418 = vpack.c.bf16 %v4417, %v4416
    %s4419 = scalar_lea.vmem %s55, 576
    %v4420 = vld [vmem:[%s4419] sm:$0xf]
    %v4421 = vld [vmem:[%s4419 + $0x4] sm:$0xf]
    %v4422 = vld [vmem:[%s4419 + $0x8] sm:$0xf]
    %v4423 = vld [vmem:[%s4419 + $0xc] sm:$0xf]
    %v4424 = vld [vmem:[%s4419 + $0x10] sm:$0xf]
    %v4425 = vld [vmem:[%s4419 + $0x14] sm:$0xf]
    %v4426 = vld [vmem:[%s4419 + $0x18] sm:$0xf]
    %v4427 = vld [vmem:[%s4419 + $0x1c] sm:$0xf]
    %v4428 = vld [vmem:[%s4419 + $0x20] sm:$0xf]
    %v4429 = vld [vmem:[%s4419 + $0x24] sm:$0xf]
    %v4430 = vld [vmem:[%s4419 + $0x28] sm:$0xf]
    %v4431 = vld [vmem:[%s4419 + $0x2c] sm:$0xf]
    %v4432 = vld [vmem:[%s4419 + $0x30] sm:$0xf]
    %v4433 = vld [vmem:[%s4419 + $0x34] sm:$0xf]
    %v4434 = vld [vmem:[%s4419 + $0x38] sm:$0xf]
    %v4435 = vld [vmem:[%s4419 + $0x3c] sm:$0xf]
    %v4452 = vunpack.c.l.b16 %v4420
    %v4453 = vunpack.c.l.b16 %v4421
    %v4454 = vunpack.c.l.b16 %v4422
    %v4455 = vunpack.c.l.b16 %v4423
    %v4456 = vunpack.c.l.b16 %v4424
    %v4457 = vunpack.c.l.b16 %v4425
    %v4458 = vunpack.c.l.b16 %v4426
    %v4459 = vunpack.c.l.b16 %v4427
    %v4460 = vunpack.c.l.b16 %v4428
    %v4461 = vunpack.c.l.b16 %v4429
    %v4462 = vunpack.c.l.b16 %v4430
    %v4463 = vunpack.c.l.b16 %v4431
    %v4464 = vunpack.c.l.b16 %v4432
    %v4465 = vunpack.c.l.b16 %v4433
    %v4466 = vunpack.c.l.b16 %v4434
    %v4467 = vunpack.c.l.b16 %v4435
    %v4468 = vpack.c.b16 %v4453, %v4452
    %v4469 = vpack.c.b16 %v4455, %v4454
    %v4470 = vpack.c.b16 %v4457, %v4456
    %v4471 = vpack.c.b16 %v4459, %v4458
    %v4472 = vpack.c.b16 %v4461, %v4460
    %v4473 = vpack.c.b16 %v4463, %v4462
    %v4474 = vpack.c.b16 %v4465, %v4464
    %v4475 = vpack.c.b16 %v4467, %v4466
    %4484 = vmatpush.bf16.msra.mxu0 %v4475
    %4485 = vmatpush.bf16.msra.mxu0 %v4474
    %4486 = vmatpush.bf16.msra.mxu0 %v4473
    %4487 = vmatpush.bf16.msra.mxu0 %v4472
    %4488 = vmatpush.bf16.msra.mxu0 %v4471
    %4489 = vmatpush.bf16.msra.mxu0 %v4470
    %4490 = vmatpush.bf16.msra.mxu0 %v4469
    %4491 = vmatpush.bf16.msra.mxu0 %v4468
    %4492 = vmatmul.bf16.gmra.mxu0 %v4418
    %v4493 = vpop.f32.mrf.mxu0
    %v4494 = vadd.f32 0.0, %v4493
    %v4495 = vpop.f32.mrf.mxu0
    %v4496 = vadd.f32 0.0, %v4495
    %4497 = vdwg.mxu0
    %v4498 = vadd.f32 %v4413, %v4494
    %v4499 = vadd.f32 %v4414, %v4496
    %s4500 = scalar_lea.vmem [#allocation3], 192
    %v4501 = vld [vmem:[%s4500] sm:$0xff]
    %v4502 = vld [vmem:[%s4500 + $0x8] sm:$0xff]
    %v4503 = vpack.c.bf16 %v4502, %v4501
    %s4504 = scalar_lea.vmem %s55, 640
    %v4505 = vld [vmem:[%s4504] sm:$0xf]
    %v4506 = vld [vmem:[%s4504 + $0x4] sm:$0xf]
    %v4507 = vld [vmem:[%s4504 + $0x8] sm:$0xf]
    %v4508 = vld [vmem:[%s4504 + $0xc] sm:$0xf]
    %v4509 = vld [vmem:[%s4504 + $0x10] sm:$0xf]
    %v4510 = vld [vmem:[%s4504 + $0x14] sm:$0xf]
    %v4511 = vld [vmem:[%s4504 + $0x18] sm:$0xf]
    %v4512 = vld [vmem:[%s4504 + $0x1c] sm:$0xf]
    %v4513 = vld [vmem:[%s4504 + $0x20] sm:$0xf]
    %v4514 = vld [vmem:[%s4504 + $0x24] sm:$0xf]
    %v4515 = vld [vmem:[%s4504 + $0x28] sm:$0xf]
    %v4516 = vld [vmem:[%s4504 + $0x2c] sm:$0xf]
    %v4517 = vld [vmem:[%s4504 + $0x30] sm:$0xf]
    %v4518 = vld [vmem:[%s4504 + $0x34] sm:$0xf]
    %v4519 = vld [vmem:[%s4504 + $0x38] sm:$0xf]
    %v4520 = vld [vmem:[%s4504 + $0x3c] sm:$0xf]
    %v4537 = vunpack.c.l.b16 %v4505
    %v4538 = vunpack.c.l.b16 %v4506
    %v4539 = vunpack.c.l.b16 %v4507
    %v4540 = vunpack.c.l.b16 %v4508
    %v4541 = vunpack.c.l.b16 %v4509
    %v4542 = vunpack.c.l.b16 %v4510
    %v4543 = vunpack.c.l.b16 %v4511
    %v4544 = vunpack.c.l.b16 %v4512
    %v4545 = vunpack.c.l.b16 %v4513
    %v4546 = vunpack.c.l.b16 %v4514
    %v4547 = vunpack.c.l.b16 %v4515
    %v4548 = vunpack.c.l.b16 %v4516
    %v4549 = vunpack.c.l.b16 %v4517
    %v4550 = vunpack.c.l.b16 %v4518
    %v4551 = vunpack.c.l.b16 %v4519
    %v4552 = vunpack.c.l.b16 %v4520
    %v4553 = vpack.c.b16 %v4538, %v4537
    %v4554 = vpack.c.b16 %v4540, %v4539
    %v4555 = vpack.c.b16 %v4542, %v4541
    %v4556 = vpack.c.b16 %v4544, %v4543
    %v4557 = vpack.c.b16 %v4546, %v4545
    %v4558 = vpack.c.b16 %v4548, %v4547
    %v4559 = vpack.c.b16 %v4550, %v4549
    %v4560 = vpack.c.b16 %v4552, %v4551
    %4569 = vmatpush.bf16.msra.mxu0 %v4560
    %4570 = vmatpush.bf16.msra.mxu0 %v4559
    %4571 = vmatpush.bf16.msra.mxu0 %v4558
    %4572 = vmatpush.bf16.msra.mxu0 %v4557
    %4573 = vmatpush.bf16.msra.mxu0 %v4556
    %4574 = vmatpush.bf16.msra.mxu0 %v4555
    %4575 = vmatpush.bf16.msra.mxu0 %v4554
    %4576 = vmatpush.bf16.msra.mxu0 %v4553
    %4577 = vmatmul.bf16.gmra.mxu0 %v4503
    %v4578 = vpop.f32.mrf.mxu0
    %v4579 = vadd.f32 0.0, %v4578
    %v4580 = vpop.f32.mrf.mxu0
    %v4581 = vadd.f32 0.0, %v4580
    %4582 = vdwg.mxu0
    %v4583 = vadd.f32 %v4498, %v4579
    %v4584 = vadd.f32 %v4499, %v4581
    %s4585 = scalar_lea.vmem [#allocation3], 208
    %v4586 = vld [vmem:[%s4585] sm:$0xff]
    %v4587 = vld [vmem:[%s4585 + $0x8] sm:$0xff]
    %v4588 = vpack.c.bf16 %v4587, %v4586
    %s4589 = scalar_lea.vmem %s55, 704
    %v4590 = vld [vmem:[%s4589] sm:$0xf]
    %v4591 = vld [vmem:[%s4589 + $0x4] sm:$0xf]
    %v4592 = vld [vmem:[%s4589 + $0x8] sm:$0xf]
    %v4593 = vld [vmem:[%s4589 + $0xc] sm:$0xf]
    %v4594 = vld [vmem:[%s4589 + $0x10] sm:$0xf]
    %v4595 = vld [vmem:[%s4589 + $0x14] sm:$0xf]
    %v4596 = vld [vmem:[%s4589 + $0x18] sm:$0xf]
    %v4597 = vld [vmem:[%s4589 + $0x1c] sm:$0xf]
    %v4598 = vld [vmem:[%s4589 + $0x20] sm:$0xf]
    %v4599 = vld [vmem:[%s4589 + $0x24] sm:$0xf]
    %v4600 = vld [vmem:[%s4589 + $0x28] sm:$0xf]
    %v4601 = vld [vmem:[%s4589 + $0x2c] sm:$0xf]
    %v4602 = vld [vmem:[%s4589 + $0x30] sm:$0xf]
    %v4603 = vld [vmem:[%s4589 + $0x34] sm:$0xf]
    %v4604 = vld [vmem:[%s4589 + $0x38] sm:$0xf]
    %v4605 = vld [vmem:[%s4589 + $0x3c] sm:$0xf]
    %v4622 = vunpack.c.l.b16 %v4590
    %v4623 = vunpack.c.l.b16 %v4591
    %v4624 = vunpack.c.l.b16 %v4592
    %v4625 = vunpack.c.l.b16 %v4593
    %v4626 = vunpack.c.l.b16 %v4594
    %v4627 = vunpack.c.l.b16 %v4595
    %v4628 = vunpack.c.l.b16 %v4596
    %v4629 = vunpack.c.l.b16 %v4597
    %v4630 = vunpack.c.l.b16 %v4598
    %v4631 = vunpack.c.l.b16 %v4599
    %v4632 = vunpack.c.l.b16 %v4600
    %v4633 = vunpack.c.l.b16 %v4601
    %v4634 = vunpack.c.l.b16 %v4602
    %v4635 = vunpack.c.l.b16 %v4603
    %v4636 = vunpack.c.l.b16 %v4604
    %v4637 = vunpack.c.l.b16 %v4605
    %v4638 = vpack.c.b16 %v4623, %v4622
    %v4639 = vpack.c.b16 %v4625, %v4624
    %v4640 = vpack.c.b16 %v4627, %v4626
    %v4641 = vpack.c.b16 %v4629, %v4628
    %v4642 = vpack.c.b16 %v4631, %v4630
    %v4643 = vpack.c.b16 %v4633, %v4632
    %v4644 = vpack.c.b16 %v4635, %v4634
    %v4645 = vpack.c.b16 %v4637, %v4636
    %4654 = vmatpush.bf16.msra.mxu0 %v4645
    %4655 = vmatpush.bf16.msra.mxu0 %v4644
    %4656 = vmatpush.bf16.msra.mxu0 %v4643
    %4657 = vmatpush.bf16.msra.mxu0 %v4642
    %4658 = vmatpush.bf16.msra.mxu0 %v4641
    %4659 = vmatpush.bf16.msra.mxu0 %v4640
    %4660 = vmatpush.bf16.msra.mxu0 %v4639
    %4661 = vmatpush.bf16.msra.mxu0 %v4638
    %4662 = vmatmul.bf16.gmra.mxu0 %v4588
    %v4663 = vpop.f32.mrf.mxu0
    %v4664 = vadd.f32 0.0, %v4663
    %v4665 = vpop.f32.mrf.mxu0
    %v4666 = vadd.f32 0.0, %v4665
    %4667 = vdwg.mxu0
    %v4668 = vadd.f32 %v4583, %v4664
    %v4669 = vadd.f32 %v4584, %v4666
    %s4670 = scalar_lea.vmem [#allocation3], 224
    %v4671 = vld [vmem:[%s4670] sm:$0xff]
    %v4672 = vld [vmem:[%s4670 + $0x8] sm:$0xff]
    %v4673 = vpack.c.bf16 %v4672, %v4671
    %s4674 = scalar_lea.vmem %s55, 768
    %v4675 = vld [vmem:[%s4674] sm:$0xf]
    %v4676 = vld [vmem:[%s4674 + $0x4] sm:$0xf]
    %v4677 = vld [vmem:[%s4674 + $0x8] sm:$0xf]
    %v4678 = vld [vmem:[%s4674 + $0xc] sm:$0xf]
    %v4679 = vld [vmem:[%s4674 + $0x10] sm:$0xf]
    %v4680 = vld [vmem:[%s4674 + $0x14] sm:$0xf]
    %v4681 = vld [vmem:[%s4674 + $0x18] sm:$0xf]
    %v4682 = vld [vmem:[%s4674 + $0x1c] sm:$0xf]
    %v4683 = vld [vmem:[%s4674 + $0x20] sm:$0xf]
    %v4684 = vld [vmem:[%s4674 + $0x24] sm:$0xf]
    %v4685 = vld [vmem:[%s4674 + $0x28] sm:$0xf]
    %v4686 = vld [vmem:[%s4674 + $0x2c] sm:$0xf]
    %v4687 = vld [vmem:[%s4674 + $0x30] sm:$0xf]
    %v4688 = vld [vmem:[%s4674 + $0x34] sm:$0xf]
    %v4689 = vld [vmem:[%s4674 + $0x38] sm:$0xf]
    %v4690 = vld [vmem:[%s4674 + $0x3c] sm:$0xf]
    %v4707 = vunpack.c.l.b16 %v4675
    %v4708 = vunpack.c.l.b16 %v4676
    %v4709 = vunpack.c.l.b16 %v4677
    %v4710 = vunpack.c.l.b16 %v4678
    %v4711 = vunpack.c.l.b16 %v4679
    %v4712 = vunpack.c.l.b16 %v4680
    %v4713 = vunpack.c.l.b16 %v4681
    %v4714 = vunpack.c.l.b16 %v4682
    %v4715 = vunpack.c.l.b16 %v4683
    %v4716 = vunpack.c.l.b16 %v4684
    %v4717 = vunpack.c.l.b16 %v4685
    %v4718 = vunpack.c.l.b16 %v4686
    %v4719 = vunpack.c.l.b16 %v4687
    %v4720 = vunpack.c.l.b16 %v4688
    %v4721 = vunpack.c.l.b16 %v4689
    %v4722 = vunpack.c.l.b16 %v4690
    %v4723 = vpack.c.b16 %v4708, %v4707
    %v4724 = vpack.c.b16 %v4710, %v4709
    %v4725 = vpack.c.b16 %v4712, %v4711
    %v4726 = vpack.c.b16 %v4714, %v4713
    %v4727 = vpack.c.b16 %v4716, %v4715
    %v4728 = vpack.c.b16 %v4718, %v4717
    %v4729 = vpack.c.b16 %v4720, %v4719
    %v4730 = vpack.c.b16 %v4722, %v4721
    %4739 = vmatpush.bf16.msra.mxu0 %v4730
    %4740 = vmatpush.bf16.msra.mxu0 %v4729
    %4741 = vmatpush.bf16.msra.mxu0 %v4728
    %4742 = vmatpush.bf16.msra.mxu0 %v4727
    %4743 = vmatpush.bf16.msra.mxu0 %v4726
    %4744 = vmatpush.bf16.msra.mxu0 %v4725
    %4745 = vmatpush.bf16.msra.mxu0 %v4724
    %4746 = vmatpush.bf16.msra.mxu0 %v4723
    %4747 = vmatmul.bf16.gmra.mxu0 %v4673
    %v4748 = vpop.f32.mrf.mxu0
    %v4749 = vadd.f32 0.0, %v4748
    %v4750 = vpop.f32.mrf.mxu0
    %v4751 = vadd.f32 0.0, %v4750
    %4752 = vdwg.mxu0
    %v4753 = vadd.f32 %v4668, %v4749
    %v4754 = vadd.f32 %v4669, %v4751
    %s4755 = scalar_lea.vmem [#allocation3], 240
    %v4756 = vld [vmem:[%s4755] sm:$0xff]
    %v4757 = vld [vmem:[%s4755 + $0x8] sm:$0xff]
    %v4758 = vpack.c.bf16 %v4757, %v4756
    %s4759 = scalar_lea.vmem %s55, 832
    %v4760 = vld [vmem:[%s4759] sm:$0xf]
    %v4761 = vld [vmem:[%s4759 + $0x4] sm:$0xf]
    %v4762 = vld [vmem:[%s4759 + $0x8] sm:$0xf]
    %v4763 = vld [vmem:[%s4759 + $0xc] sm:$0xf]
    %v4764 = vld [vmem:[%s4759 + $0x10] sm:$0xf]
    %v4765 = vld [vmem:[%s4759 + $0x14] sm:$0xf]
    %v4766 = vld [vmem:[%s4759 + $0x18] sm:$0xf]
    %v4767 = vld [vmem:[%s4759 + $0x1c] sm:$0xf]
    %v4768 = vld [vmem:[%s4759 + $0x20] sm:$0xf]
    %v4769 = vld [vmem:[%s4759 + $0x24] sm:$0xf]
    %v4770 = vld [vmem:[%s4759 + $0x28] sm:$0xf]
    %v4771 = vld [vmem:[%s4759 + $0x2c] sm:$0xf]
    %v4772 = vld [vmem:[%s4759 + $0x30] sm:$0xf]
    %v4773 = vld [vmem:[%s4759 + $0x34] sm:$0xf]
    %v4774 = vld [vmem:[%s4759 + $0x38] sm:$0xf]
    %v4775 = vld [vmem:[%s4759 + $0x3c] sm:$0xf]
    %v4792 = vunpack.c.l.b16 %v4760
    %v4793 = vunpack.c.l.b16 %v4761
    %v4794 = vunpack.c.l.b16 %v4762
    %v4795 = vunpack.c.l.b16 %v4763
    %v4796 = vunpack.c.l.b16 %v4764
    %v4797 = vunpack.c.l.b16 %v4765
    %v4798 = vunpack.c.l.b16 %v4766
    %v4799 = vunpack.c.l.b16 %v4767
    %v4800 = vunpack.c.l.b16 %v4768
    %v4801 = vunpack.c.l.b16 %v4769
    %v4802 = vunpack.c.l.b16 %v4770
    %v4803 = vunpack.c.l.b16 %v4771
    %v4804 = vunpack.c.l.b16 %v4772
    %v4805 = vunpack.c.l.b16 %v4773
    %v4806 = vunpack.c.l.b16 %v4774
    %v4807 = vunpack.c.l.b16 %v4775
    %v4808 = vpack.c.b16 %v4793, %v4792
    %v4809 = vpack.c.b16 %v4795, %v4794
    %v4810 = vpack.c.b16 %v4797, %v4796
    %v4811 = vpack.c.b16 %v4799, %v4798
    %v4812 = vpack.c.b16 %v4801, %v4800
    %v4813 = vpack.c.b16 %v4803, %v4802
    %v4814 = vpack.c.b16 %v4805, %v4804
    %v4815 = vpack.c.b16 %v4807, %v4806
    %4824 = vmatpush.bf16.msra.mxu0 %v4815
    %4825 = vmatpush.bf16.msra.mxu0 %v4814
    %4826 = vmatpush.bf16.msra.mxu0 %v4813
    %4827 = vmatpush.bf16.msra.mxu0 %v4812
    %4828 = vmatpush.bf16.msra.mxu0 %v4811
    %4829 = vmatpush.bf16.msra.mxu0 %v4810
    %4830 = vmatpush.bf16.msra.mxu0 %v4809
    %4831 = vmatpush.bf16.msra.mxu0 %v4808
    %4832 = vmatmul.bf16.gmra.mxu0 %v4758
    %v4833 = vpop.f32.mrf.mxu0
    %v4834 = vadd.f32 0.0, %v4833
    %v4835 = vpop.f32.mrf.mxu0
    %v4836 = vadd.f32 0.0, %v4835
    %4837 = vdwg.mxu0
    %v4838 = vadd.f32 %v4753, %v4834
    %v4839 = vadd.f32 %v4754, %v4836
    %s4840 = scalar_lea.vmem [#allocation3], 256
    %v4841 = vld [vmem:[%s4840] sm:$0xff]
    %v4842 = vld [vmem:[%s4840 + $0x8] sm:$0xff]
    %v4843 = vpack.c.bf16 %v4842, %v4841
    %s4844 = scalar_lea.vmem %s55, 896
    %v4845 = vld [vmem:[%s4844] sm:$0xf]
    %v4846 = vld [vmem:[%s4844 + $0x4] sm:$0xf]
    %v4847 = vld [vmem:[%s4844 + $0x8] sm:$0xf]
    %v4848 = vld [vmem:[%s4844 + $0xc] sm:$0xf]
    %v4849 = vld [vmem:[%s4844 + $0x10] sm:$0xf]
    %v4850 = vld [vmem:[%s4844 + $0x14] sm:$0xf]
    %v4851 = vld [vmem:[%s4844 + $0x18] sm:$0xf]
    %v4852 = vld [vmem:[%s4844 + $0x1c] sm:$0xf]
    %v4853 = vld [vmem:[%s4844 + $0x20] sm:$0xf]
    %v4854 = vld [vmem:[%s4844 + $0x24] sm:$0xf]
    %v4855 = vld [vmem:[%s4844 + $0x28] sm:$0xf]
    %v4856 = vld [vmem:[%s4844 + $0x2c] sm:$0xf]
    %v4857 = vld [vmem:[%s4844 + $0x30] sm:$0xf]
    %v4858 = vld [vmem:[%s4844 + $0x34] sm:$0xf]
    %v4859 = vld [vmem:[%s4844 + $0x38] sm:$0xf]
    %v4860 = vld [vmem:[%s4844 + $0x3c] sm:$0xf]
    %v4877 = vunpack.c.l.b16 %v4845
    %v4878 = vunpack.c.l.b16 %v4846
    %v4879 = vunpack.c.l.b16 %v4847
    %v4880 = vunpack.c.l.b16 %v4848
    %v4881 = vunpack.c.l.b16 %v4849
    %v4882 = vunpack.c.l.b16 %v4850
    %v4883 = vunpack.c.l.b16 %v4851
    %v4884 = vunpack.c.l.b16 %v4852
    %v4885 = vunpack.c.l.b16 %v4853
    %v4886 = vunpack.c.l.b16 %v4854
    %v4887 = vunpack.c.l.b16 %v4855
    %v4888 = vunpack.c.l.b16 %v4856
    %v4889 = vunpack.c.l.b16 %v4857
    %v4890 = vunpack.c.l.b16 %v4858
    %v4891 = vunpack.c.l.b16 %v4859
    %v4892 = vunpack.c.l.b16 %v4860
    %v4893 = vpack.c.b16 %v4878, %v4877
    %v4894 = vpack.c.b16 %v4880, %v4879
    %v4895 = vpack.c.b16 %v4882, %v4881
    %v4896 = vpack.c.b16 %v4884, %v4883
    %v4897 = vpack.c.b16 %v4886, %v4885
    %v4898 = vpack.c.b16 %v4888, %v4887
    %v4899 = vpack.c.b16 %v4890, %v4889
    %v4900 = vpack.c.b16 %v4892, %v4891
    %4909 = vmatpush.bf16.msra.mxu0 %v4900
    %4910 = vmatpush.bf16.msra.mxu0 %v4899
    %4911 = vmatpush.bf16.msra.mxu0 %v4898
    %4912 = vmatpush.bf16.msra.mxu0 %v4897
    %4913 = vmatpush.bf16.msra.mxu0 %v4896
    %4914 = vmatpush.bf16.msra.mxu0 %v4895
    %4915 = vmatpush.bf16.msra.mxu0 %v4894
    %4916 = vmatpush.bf16.msra.mxu0 %v4893
    %4917 = vmatmul.bf16.gmra.mxu0 %v4843
    %v4918 = vpop.f32.mrf.mxu0
    %v4919 = vadd.f32 0.0, %v4918
    %v4920 = vpop.f32.mrf.mxu0
    %v4921 = vadd.f32 0.0, %v4920
    %4922 = vdwg.mxu0
    %v4923 = vadd.f32 %v4838, %v4919
    %v4924 = vadd.f32 %v4839, %v4921
    %s4925 = scalar_lea.vmem [#allocation3], 272
    %v4926 = vld [vmem:[%s4925] sm:$0xff]
    %v4927 = vld [vmem:[%s4925 + $0x8] sm:$0xff]
    %v4928 = vpack.c.bf16 %v4927, %v4926
    %s4929 = scalar_lea.vmem %s55, 960
    %v4930 = vld [vmem:[%s4929] sm:$0xf]
    %v4931 = vld [vmem:[%s4929 + $0x4] sm:$0xf]
    %v4932 = vld [vmem:[%s4929 + $0x8] sm:$0xf]
    %v4933 = vld [vmem:[%s4929 + $0xc] sm:$0xf]
    %v4934 = vld [vmem:[%s4929 + $0x10] sm:$0xf]
    %v4935 = vld [vmem:[%s4929 + $0x14] sm:$0xf]
    %v4936 = vld [vmem:[%s4929 + $0x18] sm:$0xf]
    %v4937 = vld [vmem:[%s4929 + $0x1c] sm:$0xf]
    %v4938 = vld [vmem:[%s4929 + $0x20] sm:$0xf]
    %v4939 = vld [vmem:[%s4929 + $0x24] sm:$0xf]
    %v4940 = vld [vmem:[%s4929 + $0x28] sm:$0xf]
    %v4941 = vld [vmem:[%s4929 + $0x2c] sm:$0xf]
    %v4942 = vld [vmem:[%s4929 + $0x30] sm:$0xf]
    %v4943 = vld [vmem:[%s4929 + $0x34] sm:$0xf]
    %v4944 = vld [vmem:[%s4929 + $0x38] sm:$0xf]
    %v4945 = vld [vmem:[%s4929 + $0x3c] sm:$0xf]
    %v4962 = vunpack.c.l.b16 %v4930
    %v4963 = vunpack.c.l.b16 %v4931
    %v4964 = vunpack.c.l.b16 %v4932
    %v4965 = vunpack.c.l.b16 %v4933
    %v4966 = vunpack.c.l.b16 %v4934
    %v4967 = vunpack.c.l.b16 %v4935
    %v4968 = vunpack.c.l.b16 %v4936
    %v4969 = vunpack.c.l.b16 %v4937
    %v4970 = vunpack.c.l.b16 %v4938
    %v4971 = vunpack.c.l.b16 %v4939
    %v4972 = vunpack.c.l.b16 %v4940
    %v4973 = vunpack.c.l.b16 %v4941
    %v4974 = vunpack.c.l.b16 %v4942
    %v4975 = vunpack.c.l.b16 %v4943
    %v4976 = vunpack.c.l.b16 %v4944
    %v4977 = vunpack.c.l.b16 %v4945
    %v4978 = vpack.c.b16 %v4963, %v4962
    %v4979 = vpack.c.b16 %v4965, %v4964
    %v4980 = vpack.c.b16 %v4967, %v4966
    %v4981 = vpack.c.b16 %v4969, %v4968
    %v4982 = vpack.c.b16 %v4971, %v4970
    %v4983 = vpack.c.b16 %v4973, %v4972
    %v4984 = vpack.c.b16 %v4975, %v4974
    %v4985 = vpack.c.b16 %v4977, %v4976
    %4994 = vmatpush.bf16.msra.mxu0 %v4985
    %4995 = vmatpush.bf16.msra.mxu0 %v4984
    %4996 = vmatpush.bf16.msra.mxu0 %v4983
    %4997 = vmatpush.bf16.msra.mxu0 %v4982
    %4998 = vmatpush.bf16.msra.mxu0 %v4981
    %4999 = vmatpush.bf16.msra.mxu0 %v4980
    %5000 = vmatpush.bf16.msra.mxu0 %v4979
    %5001 = vmatpush.bf16.msra.mxu0 %v4978
    %5002 = vmatmul.bf16.gmra.mxu0 %v4928
    %v5003 = vpop.f32.mrf.mxu0
    %v5004 = vadd.f32 0.0, %v5003
    %v5005 = vpop.f32.mrf.mxu0
    %v5006 = vadd.f32 0.0, %v5005
    %5007 = vdwg.mxu0
    %v5008 = vadd.f32 %v4923, %v5004
    %v5009 = vadd.f32 %v4924, %v5006
    %v5010 = vld [vmem:[%s57] sm:$0x1]
    %v5012 = vperm.slane %v5010, 0
    %v5014 = vadd.f32 %v5008, %v5012
    %v5015 = vadd.f32 %v5009, %v5012
    %v5016 = vtanh.pop %v5014
    %v5017 = vtanh.pop %v5015
    %5018 = vst.msk [vmem:[#allocation10] sm:$0xff] %vm218, %v5016
    %5019 = vst.msk [vmem:[#allocation10 + $0x8] sm:$0xff] %vm218, %v5017
    // Predicated region
    $region196: #{tpu_custom_call.1} parent=1 // pred_check
      _
    $region197: #{tpu_custom_call.1} parent=1 // pred_check_branch
      %5021 = sbr.rel (0) target = $region199
    $region198: #{tpu_custom_call.1} parent=1 // pred_region
      %5023 = vsyncadd [#allocation6], 0
      %s5024 = sshll.u32 [#allocation9], 4
      %s5025 = int_to_ptr.vmem [resolvable:$true] %s5024
      %s5026 = sshll.u32 %s59, 4
      %s5027 = int_to_ptr.hbm [resolvable:$true] %s5026
      %5032 = dma.vmem_to_hbm [thread:$0]  %s5025, 256, %s5027, [#allocation6], 128, 128, 8
    $region199: #{tpu_custom_call.1} parent=1 // pred_fallthru
      _
    // Predicated region
    $region200: #{tpu_custom_call.1} parent=1 // pred_check
      _
    $region201: #{tpu_custom_call.1} parent=1 // pred_check_branch
      %5034 = sbr.rel (0) target = $region203
    $region202: #{tpu_custom_call.1} parent=1 // pred_region
      %5036 = vsyncadd [#allocation11], 0
      %s5037 = sshll.u32 [#allocation10], 4
      %s5038 = int_to_ptr.vmem [resolvable:$true] %s5037
      %s5039 = sshll.u32 %s61, 4
      %s5040 = int_to_ptr.hbm [resolvable:$true] %s5039
      %5045 = dma.vmem_to_hbm [thread:$0]  %s5038, 256, %s5040, [#allocation11], 128, 128, 8
    $region203: #{tpu_custom_call.1} parent=1 // pred_fallthru
      _
    // Predicated region
    $region204: #{tpu_custom_call.1} parent=1 // pred_check
      _
    $region205: #{tpu_custom_call.1} parent=1 // pred_check_branch
      %5047 = sbr.rel (0) target = $region207
    $region206: #{tpu_custom_call.1} parent=1 // pred_region
      %5049 = dma.done [#allocation6], 256
    $region207: #{tpu_custom_call.1} parent=1 // pred_fallthru
      _
    // Predicated region
    $region208: #{tpu_custom_call.1} parent=1 // pred_check
      _
    $region209: #{tpu_custom_call.1} parent=1 // pred_check_branch
      %5051 = sbr.rel (0) target = $region211
    $region210: #{tpu_custom_call.1} parent=1 // pred_region
      %5053 = dma.done [#allocation11], 256
    $region211: #{tpu_custom_call.1} parent=1 // pred_fallthru
      _
    %5054 = vsyncpa [#allocation5], 1
    %5055 = vsyncpa [#allocation8], 1
    %5056 = vsyncpa [#allocation6], 1
    %5057 = vsyncpa [#allocation11], 1

</llo_original>
